<compile_context>
chip_gen: v5e
topology: v5e:2x2
jax: 0.10.0
libtpu: 0.0.40
codegen_flags: <defaults>
</compile_context>

<pallas_src>
import functools
import math

import jax
import jax.numpy as jnp
from jax.experimental import pallas as pl
from jax.experimental.pallas import tpu as pltpu

MXU_DTYPE = jnp.bfloat16     # dot inputs; accumulation & elementwise stay f32


def _round_up(x, m):
    return (x + m - 1) // m * m


# ----------------------------------------------------------------------------
# Fused matmul kernel:  y = act( LN?(x) @ w [* scale] [+ bias] )
# ----------------------------------------------------------------------------
def _mm_kernel(*refs, activation, has_scale, has_bias, has_ln, eps):
    it = iter(refs)
    x_ref, w_ref = next(it), next(it)
    g_ref = next(it) if has_ln else None
    gb_ref = next(it) if has_ln else None
    s_ref = next(it) if has_scale else None
    b_ref = next(it) if has_bias else None
    o_ref = next(it)

    x = x_ref[...]
    if has_ln:                                   # LayerNorm fused before the dot (f32)
        mu = jnp.mean(x, axis=-1, keepdims=True)
        xc = x - mu
        var = jnp.mean(xc * xc, axis=-1, keepdims=True)
        x = xc * jax.lax.rsqrt(var + eps) * g_ref[...] + gb_ref[...]
    y = jnp.dot(x.astype(MXU_DTYPE), w_ref[...].astype(MXU_DTYPE),
                preferred_element_type=jnp.float32)
    if has_scale:
        y = y * s_ref[...]
    if has_bias:
        y = y + b_ref[...]
    if activation == "swish":
        y = y * jax.nn.sigmoid(y)
    o_ref[...] = y


def fused_matmul(x, w, scale=None, bias=None, activation=None,
                 ln_gamma=None, ln_beta=None, ln_eps=1e-5, tm=256, tn=512):
    M, K = x.shape
    N = w.shape[1]
    x = x.astype(jnp.float32)
    w = w.astype(jnp.float32)

    # Row tiling with cdiv + zero padding (never one giant block, never truncate).
    tm = min(tm, _round_up(M, 8))
    Mp = _round_up(M, tm)
    if Mp != M:
        x = jnp.pad(x, ((0, Mp - M), (0, 0)))
    # Optional N tiling keeps per-step VMEM bounded for large layers (v7x).
    tn = tn if (N > tn and N % tn == 0) else N
    grid = (Mp // tm, N // tn)

    has_ln = ln_gamma is not None
    has_scale = scale is not None
    has_bias = bias is not None

    in_specs = [pl.BlockSpec((tm, K), lambda i, j: (i, 0)),
                pl.BlockSpec((K, tn), lambda i, j: (0, j))]
    args = [x, w]
    if has_ln:
        in_specs += [pl.BlockSpec((1, K), lambda i, j: (0, 0)),
                     pl.BlockSpec((1, K), lambda i, j: (0, 0))]
        args += [ln_gamma.reshape(1, K).astype(jnp.float32),
                 ln_beta.reshape(1, K).astype(jnp.float32)]
    if has_scale:
        in_specs.append(pl.BlockSpec((1, tn), lambda i, j: (0, j)))
        args.append(scale.reshape(1, N).astype(jnp.float32))
    if has_bias:
        in_specs.append(pl.BlockSpec((1, tn), lambda i, j: (0, j)))
        args.append(bias.reshape(1, N).astype(jnp.float32))

    # Explicit VMEM budget: double-buffered f32 blocks + margin, capped for v7x.
    vmem_bytes = 8 * (tm * K + K * tn + tm * tn) + (4 << 20)
    vmem_bytes = int(min(max(vmem_bytes, 16 << 20), 64 << 20))

    out = pl.pallas_call(
        functools.partial(_mm_kernel, activation=activation, has_scale=has_scale,
                          has_bias=has_bias, has_ln=has_ln, eps=ln_eps),
        out_shape=jax.ShapeDtypeStruct((Mp, N), jnp.float32),
        grid_spec=pltpu.PrefetchScalarGridSpec(
            num_scalar_prefetch=0, grid=grid,
            in_specs=in_specs,
            out_specs=pl.BlockSpec((tm, tn), lambda i, j: (i, j))),
        compiler_params=pltpu.CompilerParams(
            dimension_semantics=("parallel", "parallel"),
            vmem_limit_bytes=vmem_bytes),
    )(*args)
    return out[:M] if Mp != M else out


# ----------------------------------------------------------------------------
# 3x3 conv + folded BN (+ optional Swish): in-kernel shift-and-accumulate,
# no HBM im2col — the padded NHWC halo block is read once per batch element.
# ----------------------------------------------------------------------------
def _conv3x3_kernel(x_ref, w_ref, s_ref, b_ref, o_ref, *, H, W, activation):
    x = x_ref[0]                                   # (H+2, W+2, Cin) f32, in VMEM
    cout = o_ref.shape[-1]
    acc = jnp.zeros((H * W, cout), jnp.float32)
    for t in range(9):                             # 9 in-VMEM shift + matmul taps
        dy, dx = t // 3, t % 3
        win = x[dy:dy + H, dx:dx + W, :].reshape(H * W, -1)
        acc = acc + jnp.dot(win.astype(MXU_DTYPE), w_ref[t].astype(MXU_DTYPE),
                            preferred_element_type=jnp.float32)
    y = acc * s_ref[...] + b_ref[...]              # folded BatchNorm (f32)
    if activation == "swish":
        y = y * jax.nn.sigmoid(y)
    o_ref[0] = y.reshape(H, W, cout)


def conv3x3_bn(x_nhwc, w_oihw, scale, bias, activation=None):
    B, H, W, Cin = x_nhwc.shape
    Cout = w_oihw.shape[0]
    xp = jnp.pad(x_nhwc.astype(jnp.float32), ((0, 0), (1, 1), (1, 1), (0, 0)))
    wk = jnp.transpose(w_oihw, (2, 3, 1, 0)).reshape(9, Cin, Cout)   # (kh*kw, Cin, Cout)
    return pl.pallas_call(
        functools.partial(_conv3x3_kernel, H=H, W=W, activation=activation),
        out_shape=jax.ShapeDtypeStruct((B, H, W, Cout), jnp.float32),
        grid_spec=pltpu.PrefetchScalarGridSpec(
            num_scalar_prefetch=0, grid=(B,),
            in_specs=[
                pl.BlockSpec((1, H + 2, W + 2, Cin), lambda b: (b, 0, 0, 0)),
                pl.BlockSpec((9, Cin, Cout), lambda b: (0, 0, 0)),
                pl.BlockSpec((1, Cout), lambda b: (0, 0)),
                pl.BlockSpec((1, Cout), lambda b: (0, 0)),
            ],
            out_specs=pl.BlockSpec((1, H, W, Cout), lambda b: (b, 0, 0, 0))),
        compiler_params=pltpu.CompilerParams(dimension_semantics=("parallel",)),
    )(xp, wk.astype(jnp.float32),
      scale.reshape(1, Cout).astype(jnp.float32),
      bias.reshape(1, Cout).astype(jnp.float32))


# ----------------------------------------------------------------------------
# Fused transformer sub-blocks (pre-norm, qkv_bias=True, drop rates = 0)
# ----------------------------------------------------------------------------
def _attn_block_kernel(x_ref, g_ref, b_ref, qkv_w_ref, qkv_b_ref,
                       pw_ref, pb_ref, o_ref, *, num_heads, eps):
    x = x_ref[0]                                   # (N, C) f32
    C = x.shape[-1]
    dh = C // num_heads
    # LayerNorm (f32)
    mu = jnp.mean(x, axis=-1, keepdims=True)
    xc = x - mu
    var = jnp.mean(xc * xc, axis=-1, keepdims=True)
    h = xc * jax.lax.rsqrt(var + eps) * g_ref[...] + b_ref[...]
    # fused QKV projection (bf16 MXU, f32 accumulate)
    qkv = jnp.dot(h.astype(MXU_DTYPE), qkv_w_ref[...].astype(MXU_DTYPE),
                  preferred_element_type=jnp.float32) + qkv_b_ref[...]
    # multi-head attention: heads are static lane slices, everything stays in VMEM
    inv_sqrt_dh = 1.0 / math.sqrt(dh)
    heads = []
    for hd in range(num_heads):
        q = qkv[:, hd * dh:(hd + 1) * dh] * inv_sqrt_dh      # scale q, not the NxN scores
        k = qkv[:, C + hd * dh:C + (hd + 1) * dh]
        v = qkv[:, 2 * C + hd * dh:2 * C + (hd + 1) * dh]
        s = jnp.dot(q, k.T, preferred_element_type=jnp.float32)
        m = jnp.max(s, axis=-1, keepdims=True)
        p = jnp.exp(s - m)
        p = p * pl.reciprocal(jnp.sum(p, axis=-1, keepdims=True), approx=True)
        heads.append(jnp.dot(p, v, preferred_element_type=jnp.float32))
    attn = jnp.concatenate(heads, axis=-1)          # (N, C)
    out = jnp.dot(attn.astype(MXU_DTYPE), pw_ref[...].astype(MXU_DTYPE),
                  preferred_element_type=jnp.float32) + pb_ref[...]
    o_ref[0] = x + out                              # fused residual add


def attention_block(x, p, num_heads, eps=1e-5):
    Bp, N, C = x.shape
    return pl.pallas_call(
        functools.partial(_attn_block_kernel, num_heads=num_heads, eps=eps),
        out_shape=jax.ShapeDtypeStruct((Bp, N, C), jnp.float32),
        grid_spec=pltpu.PrefetchScalarGridSpec(
            num_scalar_prefetch=0, grid=(Bp,),
            in_specs=[
                pl.BlockSpec((1, N, C), lambda i: (i, 0, 0)),
                pl.BlockSpec((1, C), lambda i: (0, 0)),
                pl.BlockSpec((1, C), lambda i: (0, 0)),
                pl.BlockSpec((C, 3 * C), lambda i: (0, 0)),
                pl.BlockSpec((1, 3 * C), lambda i: (0, 0)),
                pl.BlockSpec((C, C), lambda i: (0, 0)),
                pl.BlockSpec((1, C), lambda i: (0, 0)),
            ],
            out_specs=pl.BlockSpec((1, N, C), lambda i: (i, 0, 0))),
        compiler_params=pltpu.CompilerParams(dimension_semantics=("parallel",)),
    )(x.astype(jnp.float32),
      p["ln1_g"].reshape(1, C), p["ln1_b"].reshape(1, C),
      p["qkv_w"], p["qkv_b"].reshape(1, 3 * C),
      p["proj_w"], p["proj_b"].reshape(1, C))


def _ffn_block_kernel(x_ref, g_ref, b_ref, w1_ref, b1_ref, w2_ref, b2_ref,
                      o_ref, *, eps):
    x = x_ref[...]                                  # (tm, C) f32
    mu = jnp.mean(x, axis=-1, keepdims=True)
    xc = x - mu
    var = jnp.mean(xc * xc, axis=-1, keepdims=True)
    h = xc * jax.lax.rsqrt(var + eps) * g_ref[...] + b_ref[...]
    h = jnp.dot(h.astype(MXU_DTYPE), w1_ref[...].astype(MXU_DTYPE),
                preferred_element_type=jnp.float32) + b1_ref[...]
    h = h * jax.nn.sigmoid(h)                       # Swish (f32)
    y = jnp.dot(h.astype(MXU_DTYPE), w2_ref[...].astype(MXU_DTYPE),
                preferred_element_type=jnp.float32) + b2_ref[...]
    o_ref[...] = x + y                              # fused residual add


def ffn_block(x, p, eps=1e-5, tm=256):
    Bp, N, C = x.shape
    Fd = p["fc1_w"].shape[1]
    M = Bp * N
    x2 = x.reshape(M, C).astype(jnp.float32)
    tm = min(tm, _round_up(M, 8))
    Mp = _round_up(M, tm)
    if Mp != M:
        x2 = jnp.pad(x2, ((0, Mp - M), (0, 0)))
    out = pl.pallas_call(
        functools.partial(_ffn_block_kernel, eps=eps),
        out_shape=jax.ShapeDtypeStruct((Mp, C), jnp.float32),
        grid_spec=pltpu.PrefetchScalarGridSpec(
            num_scalar_prefetch=0, grid=(Mp // tm,),
            in_specs=[
                pl.BlockSpec((tm, C), lambda i: (i, 0)),
                pl.BlockSpec((1, C), lambda i: (0, 0)),
                pl.BlockSpec((1, C), lambda i: (0, 0)),
                pl.BlockSpec((C, Fd), lambda i: (0, 0)),
                pl.BlockSpec((1, Fd), lambda i: (0, 0)),
                pl.BlockSpec((Fd, C), lambda i: (0, 0)),
                pl.BlockSpec((1, C), lambda i: (0, 0)),
            ],
            out_specs=pl.BlockSpec((tm, C), lambda i: (i, 0))),
        compiler_params=pltpu.CompilerParams(dimension_semantics=("parallel",)),
    )(x2, p["ln2_g"].reshape(1, C), p["ln2_b"].reshape(1, C),
      p["fc1_w"], p["fc1_b"].reshape(1, Fd),
      p["fc2_w"], p["fc2_b"].reshape(1, C))
    if Mp != M:
        out = out[:M]
    return out.reshape(Bp, N, C)


# ----------------------------------------------------------------------------
# BN folding + full MobileVitBlock forward
# ----------------------------------------------------------------------------
def fold_bn(bn, eps=1e-5):
    scale = bn["gamma"] / jnp.sqrt(bn["var"] + eps)
    bias = bn["beta"] - bn["mean"] * scale
    return scale, bias


def mobilevit_block_forward(x_nchw, params, patch_size=2, num_heads=4):
    B, Cin, H, W = x_nchw.shape

    # channels-last end-to-end; NCHW<->NHWC only at the block boundary
    x = jnp.transpose(x_nchw, (0, 2, 3, 1)).astype(jnp.float32)   # NHWC
    shortcut = x

    # local_rep: 3x3 conv + BN + Swish, then 1x1 conv -> transformer_dim
    s1, b1 = fold_bn(params["bn1"])
    x = conv3x3_bn(x, params["conv1_w"], s1, b1, activation="swish")
    C = params["conv2_w"].shape[0]
    w2 = params["conv2_w"].reshape(C, Cin).T
    x = fused_matmul(x.reshape(B * H * W, Cin), w2).reshape(B, H, W, C)

    ph = pw = patch_size
    # TODO(synk): bilinear-interpolation path (H/W not multiples of patch_size) not implemented.
    assert H % ph == 0 and W % pw == 0
    nph, npw = H // ph, W // pw
    num_patches = nph * npw
    Bp = B * ph * pw

    # patch unfold, channels-last (equivalent to the PyTorch NCHW reshape chain)
    x = x.reshape(B, nph, ph, npw, pw, C)
    x = jnp.transpose(x, (0, 2, 4, 1, 3, 5)).reshape(Bp, num_patches, C)

    # global_rep: each transformer layer = 2 fused Pallas kernels
    for p in params["layers"]:
        x = attention_block(x, p, num_heads)
        x = ffn_block(x, p)

    # final LayerNorm + conv_proj (1x1 conv, no bias) + BN, fused into one matmul
    Cout = params["conv_proj_w"].shape[0]
    sp, bp = fold_bn(params["bn_proj"])
    wp = params["conv_proj_w"].reshape(Cout, C).T
    y = fused_matmul(x.reshape(Bp * num_patches, C), wp, scale=sp, bias=bp,
                     ln_gamma=params["final_ln_g"], ln_beta=params["final_ln_b"])

    # patch fold, channels-last
    y = y.reshape(B, ph, pw, nph, npw, Cout)
    y = jnp.transpose(y, (0, 3, 1, 4, 2, 5)).reshape(B, H, W, Cout)

    # conv_fusion: concat(shortcut, y) -> 3x3 conv + BN + Swish
    sf, bf = fold_bn(params["bn_fus"])
    y = conv3x3_bn(jnp.concatenate([shortcut, y], axis=-1),
                   params["conv_fus_w"], sf, bf, activation="swish")
    return jnp.transpose(y, (0, 3, 1, 2))                         # NCHW out


# ----------------------------------------------------------------------------
# Deterministic parameter init (shapes follow MobileVitBlock.__init__)
# ----------------------------------------------------------------------------
def init_params(key, in_channels, transformer_dim, ffn_dim, out_channels, num_layers):
    keys = iter(jax.random.split(key, 64))

    def w(shape, s=0.05):
        return s * jax.random.normal(next(keys), shape, jnp.float32)

    def bn(c):
        return dict(
            gamma=1.0 + 0.1 * jax.random.normal(next(keys), (c,), jnp.float32),
            beta=0.1 * jax.random.normal(next(keys), (c,), jnp.float32),
            mean=0.1 * jax.random.normal(next(keys), (c,), jnp.float32),
            var=1.0 + 0.1 * jax.random.uniform(next(keys), (c,), jnp.float32),
        )

    C = transformer_dim
    layers = []
    for _ in range(num_layers):
        layers.append(dict(
            ln1_g=jnp.ones((C,), jnp.float32), ln1_b=jnp.zeros((C,), jnp.float32),
            qkv_w=w((C, 3 * C)), qkv_b=w((3 * C,)),
            proj_w=w((C, C)), proj_b=w((C,)),
            ln2_g=jnp.ones((C,), jnp.float32), ln2_b=jnp.zeros((C,), jnp.float32),
            fc1_w=w((C, ffn_dim)), fc1_b=w((ffn_dim,)),
            fc2_w=w((ffn_dim, C)), fc2_b=w((C,)),
        ))
    return dict(
        conv1_w=w((in_channels, in_channels, 3, 3)),
        bn1=bn(in_channels),
        conv2_w=w((C, in_channels, 1, 1)),
        layers=layers,
        final_ln_g=jnp.ones((C,), jnp.float32),
        final_ln_b=jnp.zeros((C,), jnp.float32),
        conv_proj_w=w((out_channels, C, 1, 1)),
        bn_proj=bn(out_channels),
        conv_fus_w=w((out_channels, in_channels + out_channels, 3, 3)),
        bn_fus=bn(out_channels),
    )


if __name__ == "__main__":
    key = jax.random.PRNGKey(0)
    k_in, k_p = jax.random.split(key)

    B, Cin, H, W = 2, 4, 16, 16
    transformer_dim, ffn_dim, Cout = 16, 32, 8
    num_heads, num_layers, patch_size = 4, 2, 2

    x = jax.random.normal(k_in, (B, Cin, H, W), jnp.float32)
    params = init_params(k_p, Cin, transformer_dim, ffn_dim, Cout,
                         num_layers=num_layers)

    fwd = jax.jit(functools.partial(mobilevit_block_forward,
                                    patch_size=patch_size, num_heads=num_heads))
    out = jax.block_until_ready(fwd(x, params))
    assert out.shape == (B, Cout, H, W), out.shape
    assert bool(jnp.all(jnp.isfinite(out)))
    print("KERNEL_OK")
</pallas_src>

<mosaic_0001>
module attributes {stable_mosaic.version = 11 : i64} {
  func.func @_mm_kernel(%arg0: i32, %arg1: i32, %arg2: memref<256x4xf32, #tpu.memory_space<vmem>>, %arg3: memref<4x16xf32, #tpu.memory_space<vmem>>, %arg4: memref<256x16xf32, #tpu.memory_space<vmem>>) attributes {dimension_semantics = [#tpu.dimension_semantics<parallel>, #tpu.dimension_semantics<parallel>], iteration_bounds = array<i64: 2, 1>, scalar_prefetch = 0 : i64, scratch_operands = 0 : i64, tpu.core_type = #tpu.core_type<tc>, window_params = [{transform_indices = @transform_0, window_bounds = array<i64: 256, 4>}, {transform_indices = @transform_1, window_bounds = array<i64: 4, 16>}, {transform_indices = @transform_2, window_bounds = array<i64: 256, 16>}]} {
    %c0 = arith.constant 0 : index
    %c0_0 = arith.constant 0 : index
    %0 = vector.load %arg2[%c0, %c0_0] : memref<256x4xf32, #tpu.memory_space<vmem>>, vector<256x4xf32>
    %1 = arith.truncf %0 : vector<256x4xf32> to vector<256x4xbf16>
    %c0_1 = arith.constant 0 : index
    %c0_2 = arith.constant 0 : index
    %2 = vector.load %arg3[%c0_1, %c0_2] : memref<4x16xf32, #tpu.memory_space<vmem>>, vector<4x16xf32>
    %3 = arith.truncf %2 : vector<4x16xf32> to vector<4x16xbf16>
    %cst = arith.constant dense<0.000000e+00> : vector<256x16xf32>
    %4 = tpu.matmul %1, %3, %cst {dimension_numbers = #tpu.dot_dimension_numbers<[1], [0], [0], [1], [0, 0, 1, 1], [], []>} : vector<256x4xbf16>, vector<4x16xbf16>, vector<256x16xf32> -> vector<256x16xf32>
    %c0_3 = arith.constant 0 : index
    %c0_4 = arith.constant 0 : index
    %5 = vector.load %arg4[%c0_3, %c0_4] : memref<256x16xf32, #tpu.memory_space<vmem>>, vector<256x16xf32>
    tpu.vector_store %arg4[%c0_3, %c0_4], %4 {strides = array<i32>} : memref<256x16xf32, #tpu.memory_space<vmem>>, vector<256x16xf32>,
    return
  }
  func.func @transform_0(%arg0: i32, %arg1: i32) -> (i32, i32) {
    %c0_i32 = arith.constant 0 : i32
    %c0_i32_0 = arith.constant 0 : i32
    return %arg0, %c0_i32 : i32, i32
  }
  func.func @transform_1(%arg0: i32, %arg1: i32) -> (i32, i32) {
    %c0_i32 = arith.constant 0 : i32
    %c0_i32_0 = arith.constant 0 : i32
    return %c0_i32, %arg1 : i32, i32
  }
  func.func @transform_2(%arg0: i32, %arg1: i32) -> (i32, i32) {
    %c0_i32 = arith.constant 0 : i32
    return %arg0, %arg1 : i32, i32
  }
}

module attributes {stable_mosaic.version = 11 : i64} {
  func.func @_conv3x3_kernel(%arg0: i32, %arg1: memref<1x18x18x4xf32, #tpu.memory_space<vmem>>, %arg2: memref<9x4x4xf32, #tpu.memory_space<vmem>>, %arg3: memref<1x4xf32, #tpu.memory_space<vmem>>, %arg4: memref<1x4xf32, #tpu.memory_space<vmem>>, %arg5: memref<1x16x16x4xf32, #tpu.memory_space<vmem>>) attributes {dimension_semantics = [#tpu.dimension_semantics<parallel>], iteration_bounds = array<i64: 2>, scalar_prefetch = 0 : i64, scratch_operands = 0 : i64, tpu.core_type = #tpu.core_type<tc>, window_params = [{transform_indices = @transform_0, window_bounds = array<i64: 1, 18, 18, 4>}, {pipeline_mode = #tpu.pipeline_mode<synchronous>, transform_indices = @transform_1, window_bounds = array<i64: 9, 4, 4>}, {pipeline_mode = #tpu.pipeline_mode<synchronous>, transform_indices = @transform_2, window_bounds = array<i64: 1, 4>}, {pipeline_mode = #tpu.pipeline_mode<synchronous>, transform_indices = @transform_3, window_bounds = array<i64: 1, 4>}, {transform_indices = @transform_4, window_bounds = array<i64: 1, 16, 16, 4>}]} {
    %c0 = arith.constant 0 : index
    %c0_0 = arith.constant 0 : index
    %c0_1 = arith.constant 0 : index
    %c0_2 = arith.constant 0 : index
    %0 = vector.load %arg1[%c0, %c0_0, %c0_1, %c0_2] : memref<1x18x18x4xf32, #tpu.memory_space<vmem>>, vector<1x18x18x4xf32>
    %1 = vector.shape_cast %0 : vector<1x18x18x4xf32> to vector<18x18x4xf32>
    %cst = arith.constant 0.000000e+00 : f32
    %2 = vector.broadcast %cst : f32 to vector<256x4xf32>
    %3 = vector.extract_strided_slice %1 {offsets = [0, 0, 0], sizes = [16, 16, 4], strides = [1, 1, 1]} : vector<18x18x4xf32> to vector<16x16x4xf32>
    %4 = vector.shape_cast %3 : vector<16x16x4xf32> to vector<256x4xf32>
    %5 = arith.truncf %4 : vector<256x4xf32> to vector<256x4xbf16>
    %c0_3 = arith.constant 0 : index
    %c0_4 = arith.constant 0 : index
    %c0_5 = arith.constant 0 : index
    %6 = vector.load %arg2[%c0_3, %c0_4, %c0_5] : memref<9x4x4xf32, #tpu.memory_space<vmem>>, vector<1x4x4xf32>
    %7 = vector.shape_cast %6 : vector<1x4x4xf32> to vector<4x4xf32>
    %8 = arith.truncf %7 : vector<4x4xf32> to vector<4x4xbf16>
    %cst_6 = arith.constant dense<0.000000e+00> : vector<256x4xf32>
    %9 = tpu.matmul %5, %8, %cst_6 {dimension_numbers = #tpu.dot_dimension_numbers<[1], [0], [0], [1], [0, 0, 1, 1], [], []>} : vector<256x4xbf16>, vector<4x4xbf16>, vector<256x4xf32> -> vector<256x4xf32>
    %10 = arith.addf %2, %9 : vector<256x4xf32>
    %11 = vector.extract_strided_slice %1 {offsets = [0, 1, 0], sizes = [16, 16, 4], strides = [1, 1, 1]} : vector<18x18x4xf32> to vector<16x16x4xf32>
    %12 = vector.shape_cast %11 : vector<16x16x4xf32> to vector<256x4xf32>
    %13 = arith.truncf %12 : vector<256x4xf32> to vector<256x4xbf16>
    %c1 = arith.constant 1 : index
    %c0_7 = arith.constant 0 : index
    %c0_8 = arith.constant 0 : index
    %14 = vector.load %arg2[%c1, %c0_7, %c0_8] : memref<9x4x4xf32, #tpu.memory_space<vmem>>, vector<1x4x4xf32>
    %15 = vector.shape_cast %14 : vector<1x4x4xf32> to vector<4x4xf32>
    %16 = arith.truncf %15 : vector<4x4xf32> to vector<4x4xbf16>
    %cst_9 = arith.constant dense<0.000000e+00> : vector<256x4xf32>
    %17 = tpu.matmul %13, %16, %cst_9 {dimension_numbers = #tpu.dot_dimension_numbers<[1], [0], [0], [1], [0, 0, 1, 1], [], []>} : vector<256x4xbf16>, vector<4x4xbf16>, vector<256x4xf32> -> vector<256x4xf32>
    %18 = arith.addf %10, %17 : vector<256x4xf32>
    %19 = vector.extract_strided_slice %1 {offsets = [0, 2, 0], sizes = [16, 16, 4], strides = [1, 1, 1]} : vector<18x18x4xf32> to vector<16x16x4xf32>
    %20 = vector.shape_cast %19 : vector<16x16x4xf32> to vector<256x4xf32>
    %21 = arith.truncf %20 : vector<256x4xf32> to vector<256x4xbf16>
    %c2 = arith.constant 2 : index
    %c0_10 = arith.constant 0 : index
    %c0_11 = arith.constant 0 : index
    %22 = vector.load %arg2[%c2, %c0_10, %c0_11] : memref<9x4x4xf32, #tpu.memory_space<vmem>>, vector<1x4x4xf32>
    %23 = vector.shape_cast %22 : vector<1x4x4xf32> to vector<4x4xf32>
    %24 = arith.truncf %23 : vector<4x4xf32> to vector<4x4xbf16>
    %cst_12 = arith.constant dense<0.000000e+00> : vector<256x4xf32>
    %25 = tpu.matmul %21, %24, %cst_12 {dimension_numbers = #tpu.dot_dimension_numbers<[1], [0], [0], [1], [0, 0, 1, 1], [], []>} : vector<256x4xbf16>, vector<4x4xbf16>, vector<256x4xf32> -> vector<256x4xf32>
    %26 = arith.addf %18, %25 : vector<256x4xf32>
    %27 = vector.extract_strided_slice %1 {offsets = [1, 0, 0], sizes = [16, 16, 4], strides = [1, 1, 1]} : vector<18x18x4xf32> to vector<16x16x4xf32>
    %28 = vector.shape_cast %27 : vector<16x16x4xf32> to vector<256x4xf32>
    %29 = arith.truncf %28 : vector<256x4xf32> to vector<256x4xbf16>
    %c3 = arith.constant 3 : index
    %c0_13 = arith.constant 0 : index
    %c0_14 = arith.constant 0 : index
    %30 = vector.load %arg2[%c3, %c0_13, %c0_14] : memref<9x4x4xf32, #tpu.memory_space<vmem>>, vector<1x4x4xf32>
    %31 = vector.shape_cast %30 : vector<1x4x4xf32> to vector<4x4xf32>
    %32 = arith.truncf %31 : vector<4x4xf32> to vector<4x4xbf16>
    %cst_15 = arith.constant dense<0.000000e+00> : vector<256x4xf32>
    %33 = tpu.matmul %29, %32, %cst_15 {dimension_numbers = #tpu.dot_dimension_numbers<[1], [0], [0], [1], [0, 0, 1, 1], [], []>} : vector<256x4xbf16>, vector<4x4xbf16>, vector<256x4xf32> -> vector<256x4xf32>
    %34 = arith.addf %26, %33 : vector<256x4xf32>
    %35 = vector.extract_strided_slice %1 {offsets = [1, 1, 0], sizes = [16, 16, 4], strides = [1, 1, 1]} : vector<18x18x4xf32> to vector<16x16x4xf32>
    %36 = vector.shape_cast %35 : vector<16x16x4xf32> to vector<256x4xf32>
    %37 = arith.truncf %36 : vector<256x4xf32> to vector<256x4xbf16>
    %c4 = arith.constant 4 : index
    %c0_16 = arith.constant 0 : index
    %c0_17 = arith.constant 0 : index
    %38 = vector.load %arg2[%c4, %c0_16, %c0_17] : memref<9x4x4xf32, #tpu.memory_space<vmem>>, vector<1x4x4xf32>
    %39 = vector.shape_cast %38 : vector<1x4x4xf32> to vector<4x4xf32>
    %40 = arith.truncf %39 : vector<4x4xf32> to vector<4x4xbf16>
    %cst_18 = arith.constant dense<0.000000e+00> : vector<256x4xf32>
    %41 = tpu.matmul %37, %40, %cst_18 {dimension_numbers = #tpu.dot_dimension_numbers<[1], [0], [0], [1], [0, 0, 1, 1], [], []>} : vector<256x4xbf16>, vector<4x4xbf16>, vector<256x4xf32> -> vector<256x4xf32>
    %42 = arith.addf %34, %41 : vector<256x4xf32>
    %43 = vector.extract_strided_slice %1 {offsets = [1, 2, 0], sizes = [16, 16, 4], strides = [1, 1, 1]} : vector<18x18x4xf32> to vector<16x16x4xf32>
    %44 = vector.shape_cast %43 : vector<16x16x4xf32> to vector<256x4xf32>
    %45 = arith.truncf %44 : vector<256x4xf32> to vector<256x4xbf16>
    %c5 = arith.constant 5 : index
    %c0_19 = arith.constant 0 : index
    %c0_20 = arith.constant 0 : index
    %46 = vector.load %arg2[%c5, %c0_19, %c0_20] : memref<9x4x4xf32, #tpu.memory_space<vmem>>, vector<1x4x4xf32>
    %47 = vector.shape_cast %46 : vector<1x4x4xf32> to vector<4x4xf32>
    %48 = arith.truncf %47 : vector<4x4xf32> to vector<4x4xbf16>
    %cst_21 = arith.constant dense<0.000000e+00> : vector<256x4xf32>
    %49 = tpu.matmul %45, %48, %cst_21 {dimension_numbers = #tpu.dot_dimension_numbers<[1], [0], [0], [1], [0, 0, 1, 1], [], []>} : vector<256x4xbf16>, vector<4x4xbf16>, vector<256x4xf32> -> vector<256x4xf32>
    %50 = arith.addf %42, %49 : vector<256x4xf32>
    %51 = vector.extract_strided_slice %1 {offsets = [2, 0, 0], sizes = [16, 16, 4], strides = [1, 1, 1]} : vector<18x18x4xf32> to vector<16x16x4xf32>
    %52 = vector.shape_cast %51 : vector<16x16x4xf32> to vector<256x4xf32>
    %53 = arith.truncf %52 : vector<256x4xf32> to vector<256x4xbf16>
    %c6 = arith.constant 6 : index
    %c0_22 = arith.constant 0 : index
    %c0_23 = arith.constant 0 : index
    %54 = vector.load %arg2[%c6, %c0_22, %c0_23] : memref<9x4x4xf32, #tpu.memory_space<vmem>>, vector<1x4x4xf32>
    %55 = vector.shape_cast %54 : vector<1x4x4xf32> to vector<4x4xf32>
    %56 = arith.truncf %55 : vector<4x4xf32> to vector<4x4xbf16>
    %cst_24 = arith.constant dense<0.000000e+00> : vector<256x4xf32>
    %57 = tpu.matmul %53, %56, %cst_24 {dimension_numbers = #tpu.dot_dimension_numbers<[1], [0], [0], [1], [0, 0, 1, 1], [], []>} : vector<256x4xbf16>, vector<4x4xbf16>, vector<256x4xf32> -> vector<256x4xf32>
    %58 = arith.addf %50, %57 : vector<256x4xf32>
    %59 = vector.extract_strided_slice %1 {offsets = [2, 1, 0], sizes = [16, 16, 4], strides = [1, 1, 1]} : vector<18x18x4xf32> to vector<16x16x4xf32>
    %60 = vector.shape_cast %59 : vector<16x16x4xf32> to vector<256x4xf32>
    %61 = arith.truncf %60 : vector<256x4xf32> to vector<256x4xbf16>
    %c7 = arith.constant 7 : index
    %c0_25 = arith.constant 0 : index
    %c0_26 = arith.constant 0 : index
    %62 = vector.load %arg2[%c7, %c0_25, %c0_26] : memref<9x4x4xf32, #tpu.memory_space<vmem>>, vector<1x4x4xf32>
    %63 = vector.shape_cast %62 : vector<1x4x4xf32> to vector<4x4xf32>
    %64 = arith.truncf %63 : vector<4x4xf32> to vector<4x4xbf16>
    %cst_27 = arith.constant dense<0.000000e+00> : vector<256x4xf32>
    %65 = tpu.matmul %61, %64, %cst_27 {dimension_numbers = #tpu.dot_dimension_numbers<[1], [0], [0], [1], [0, 0, 1, 1], [], []>} : vector<256x4xbf16>, vector<4x4xbf16>, vector<256x4xf32> -> vector<256x4xf32>
    %66 = arith.addf %58, %65 : vector<256x4xf32>
    %67 = vector.extract_strided_slice %1 {offsets = [2, 2, 0], sizes = [16, 16, 4], strides = [1, 1, 1]} : vector<18x18x4xf32> to vector<16x16x4xf32>
    %68 = vector.shape_cast %67 : vector<16x16x4xf32> to vector<256x4xf32>
    %69 = arith.truncf %68 : vector<256x4xf32> to vector<256x4xbf16>
    %c8 = arith.constant 8 : index
    %c0_28 = arith.constant 0 : index
    %c0_29 = arith.constant 0 : index
    %70 = vector.load %arg2[%c8, %c0_28, %c0_29] : memref<9x4x4xf32, #tpu.memory_space<vmem>>, vector<1x4x4xf32>
    %71 = vector.shape_cast %70 : vector<1x4x4xf32> to vector<4x4xf32>
    %72 = arith.truncf %71 : vector<4x4xf32> to vector<4x4xbf16>
    %cst_30 = arith.constant dense<0.000000e+00> : vector<256x4xf32>
    %73 = tpu.matmul %69, %72, %cst_30 {dimension_numbers = #tpu.dot_dimension_numbers<[1], [0], [0], [1], [0, 0, 1, 1], [], []>} : vector<256x4xbf16>, vector<4x4xbf16>, vector<256x4xf32> -> vector<256x4xf32>
    %74 = arith.addf %66, %73 : vector<256x4xf32>
    %c0_31 = arith.constant 0 : index
    %c0_32 = arith.constant 0 : index
    %75 = vector.load %arg3[%c0_31, %c0_32] : memref<1x4xf32, #tpu.memory_space<vmem>>, vector<1x4xf32>
    %76 = vector.broadcast %75 : vector<1x4xf32> to vector<256x4xf32>
    %77 = arith.mulf %74, %76 : vector<256x4xf32>
    %c0_33 = arith.constant 0 : index
    %c0_34 = arith.constant 0 : index
    %78 = vector.load %arg4[%c0_33, %c0_34] : memref<1x4xf32, #tpu.memory_space<vmem>>, vector<1x4xf32>
    %79 = vector.broadcast %78 : vector<1x4xf32> to vector<256x4xf32>
    %80 = arith.addf %77, %79 : vector<256x4xf32>
    %81 = arith.negf %80 : vector<256x4xf32>
    %82 = math.exp %81 : vector<256x4xf32>
    %cst_35 = arith.constant 1.000000e+00 : f32
    %83 = vector.broadcast %cst_35 : f32 to vector<256x4xf32>
    %84 = arith.addf %83, %82 : vector<256x4xf32>
    %85 = arith.divf %83, %84 : vector<256x4xf32>
    %86 = arith.mulf %80, %85 : vector<256x4xf32>
    %87 = vector.shape_cast %86 : vector<256x4xf32> to vector<16x16x4xf32>
    %c0_36 = arith.constant 0 : index
    %c0_37 = arith.constant 0 : index
    %c0_38 = arith.constant 0 : index
    %c0_39 = arith.constant 0 : index
    %88 = vector.load %arg5[%c0_36, %c0_37, %c0_38, %c0_39] : memref<1x16x16x4xf32, #tpu.memory_space<vmem>>, vector<1x16x16x4xf32>
    %89 = vector.shape_cast %88 : vector<1x16x16x4xf32> to vector<16x16x4xf32>
    %90 = vector.shape_cast %87 : vector<16x16x4xf32> to vector<1x16x16x4xf32>
    tpu.vector_store %arg5[%c0_36, %c0_37, %c0_38, %c0_39], %90 {strides = array<i32>} : memref<1x16x16x4xf32, #tpu.memory_space<vmem>>, vector<1x16x16x4xf32>,
    return
  }
  func.func @transform_0(%arg0: i32) -> (i32, i32, i32, i32) {
    %c0_i32 = arith.constant 0 : i32
    %c0_i32_0 = arith.constant 0 : i32
    %c0_i32_1 = arith.constant 0 : i32
    %c0_i32_2 = arith.constant 0 : i32
    return %arg0, %c0_i32, %c0_i32_0, %c0_i32_1 : i32, i32, i32, i32
  }
  func.func @transform_1(%arg0: i32) -> (i32, i32, i32) {
    %c0_i32 = arith.constant 0 : i32
    %c0_i32_0 = arith.constant 0 : i32
    %c0_i32_1 = arith.constant 0 : i32
    %c0_i32_2 = arith.constant 0 : i32
    return %c0_i32, %c0_i32_0, %c0_i32_1 : i32, i32, i32
  }
  func.func @transform_2(%arg0: i32) -> (i32, i32) {
    %c0_i32 = arith.constant 0 : i32
    %c0_i32_0 = arith.constant 0 : i32
    %c0_i32_1 = arith.constant 0 : i32
    return %c0_i32, %c0_i32_0 : i32, i32
  }
  func.func @transform_3(%arg0: i32) -> (i32, i32) {
    %c0_i32 = arith.constant 0 : i32
    %c0_i32_0 = arith.constant 0 : i32
    %c0_i32_1 = arith.constant 0 : i32
    return %c0_i32, %c0_i32_0 : i32, i32
  }
  func.func @transform_4(%arg0: i32) -> (i32, i32, i32, i32) {
    %c0_i32 = arith.constant 0 : i32
    %c0_i32_0 = arith.constant 0 : i32
    %c0_i32_1 = arith.constant 0 : i32
    %c0_i32_2 = arith.constant 0 : i32
    return %arg0, %c0_i32, %c0_i32_0, %c0_i32_1 : i32, i32, i32, i32
  }
}

module attributes {stable_mosaic.version = 11 : i64} {
  func.func @_attn_block_kernel(%arg0: i32, %arg1: memref<1x64x16xf32, #tpu.memory_space<vmem>>, %arg2: memref<1x16xf32, #tpu.memory_space<vmem>>, %arg3: memref<1x16xf32, #tpu.memory_space<vmem>>, %arg4: memref<16x48xf32, #tpu.memory_space<vmem>>, %arg5: memref<1x48xf32, #tpu.memory_space<vmem>>, %arg6: memref<16x16xf32, #tpu.memory_space<vmem>>, %arg7: memref<1x16xf32, #tpu.memory_space<vmem>>, %arg8: memref<1x64x16xf32, #tpu.memory_space<vmem>>) attributes {dimension_semantics = [#tpu.dimension_semantics<parallel>], iteration_bounds = array<i64: 8>, scalar_prefetch = 0 : i64, scratch_operands = 0 : i64, tpu.core_type = #tpu.core_type<tc>, window_params = [{transform_indices = @transform_0, window_bounds = array<i64: 1, 64, 16>}, {pipeline_mode = #tpu.pipeline_mode<synchronous>, transform_indices = @transform_1, window_bounds = array<i64: 1, 16>}, {pipeline_mode = #tpu.pipeline_mode<synchronous>, transform_indices = @transform_2, window_bounds = array<i64: 1, 16>}, {pipeline_mode = #tpu.pipeline_mode<synchronous>, transform_indices = @transform_3, window_bounds = array<i64: 16, 48>}, {pipeline_mode = #tpu.pipeline_mode<synchronous>, transform_indices = @transform_4, window_bounds = array<i64: 1, 48>}, {pipeline_mode = #tpu.pipeline_mode<synchronous>, transform_indices = @transform_5, window_bounds = array<i64: 16, 16>}, {pipeline_mode = #tpu.pipeline_mode<synchronous>, transform_indices = @transform_6, window_bounds = array<i64: 1, 16>}, {transform_indices = @transform_7, window_bounds = array<i64: 1, 64, 16>}]} {
    %c0 = arith.constant 0 : index
    %c0_0 = arith.constant 0 : index
    %c0_1 = arith.constant 0 : index
    %0 = vector.load %arg1[%c0, %c0_0, %c0_1] : memref<1x64x16xf32, #tpu.memory_space<vmem>>, vector<1x64x16xf32>
    %1 = vector.shape_cast %0 : vector<1x64x16xf32> to vector<64x16xf32>
    %cst = arith.constant dense<0.000000e+00> : vector<64xf32>
    %2 = vector.multi_reduction <add>, %1, %cst [1] : vector<64x16xf32> to vector<64xf32>
    %3 = vector.shape_cast %2 : vector<64xf32> to vector<64x1xf32>
    %cst_2 = arith.constant 1.600000e+01 : f32
    %4 = vector.broadcast %cst_2 : f32 to vector<64x1xf32>
    %5 = arith.divf %3, %4 : vector<64x1xf32>
    %6 = vector.broadcast %5 : vector<64x1xf32> to vector<64x16xf32>
    %7 = arith.subf %1, %6 : vector<64x16xf32>
    %8 = arith.mulf %7, %7 : vector<64x16xf32>
    %cst_3 = arith.constant dense<0.000000e+00> : vector<64xf32>
    %9 = vector.multi_reduction <add>, %8, %cst_3 [1] : vector<64x16xf32> to vector<64xf32>
    %10 = vector.shape_cast %9 : vector<64xf32> to vector<64x1xf32>
    %cst_4 = arith.constant 1.600000e+01 : f32
    %11 = vector.broadcast %cst_4 : f32 to vector<64x1xf32>
    %12 = arith.divf %10, %11 : vector<64x1xf32>
    %cst_5 = arith.constant 9.99999974E-6 : f32
    %13 = vector.broadcast %cst_5 : f32 to vector<64x1xf32>
    %14 = arith.addf %12, %13 : vector<64x1xf32>
    %15 = math.rsqrt %14 : vector<64x1xf32>
    %16 = vector.broadcast %15 : vector<64x1xf32> to vector<64x16xf32>
    %17 = arith.mulf %7, %16 : vector<64x16xf32>
    %c0_6 = arith.constant 0 : index
    %c0_7 = arith.constant 0 : index
    %18 = vector.load %arg2[%c0_6, %c0_7] : memref<1x16xf32, #tpu.memory_space<vmem>>, vector<1x16xf32>
    %19 = vector.broadcast %18 : vector<1x16xf32> to vector<64x16xf32>
    %20 = arith.mulf %17, %19 : vector<64x16xf32>
    %c0_8 = arith.constant 0 : index
    %c0_9 = arith.constant 0 : index
    %21 = vector.load %arg3[%c0_8, %c0_9] : memref<1x16xf32, #tpu.memory_space<vmem>>, vector<1x16xf32>
    %22 = vector.broadcast %21 : vector<1x16xf32> to vector<64x16xf32>
    %23 = arith.addf %20, %22 : vector<64x16xf32>
    %24 = arith.truncf %23 : vector<64x16xf32> to vector<64x16xbf16>
    %c0_10 = arith.constant 0 : index
    %c0_11 = arith.constant 0 : index
    %25 = vector.load %arg4[%c0_10, %c0_11] : memref<16x48xf32, #tpu.memory_space<vmem>>, vector<16x48xf32>
    %26 = arith.truncf %25 : vector<16x48xf32> to vector<16x48xbf16>
    %cst_12 = arith.constant dense<0.000000e+00> : vector<64x48xf32>
    %27 = tpu.matmul %24, %26, %cst_12 {dimension_numbers = #tpu.dot_dimension_numbers<[1], [0], [0], [1], [0, 0, 1, 1], [], []>} : vector<64x16xbf16>, vector<16x48xbf16>, vector<64x48xf32> -> vector<64x48xf32>
    %c0_13 = arith.constant 0 : index
    %c0_14 = arith.constant 0 : index
    %28 = vector.load %arg5[%c0_13, %c0_14] : memref<1x48xf32, #tpu.memory_space<vmem>>, vector<1x48xf32>
    %29 = vector.broadcast %28 : vector<1x48xf32> to vector<64x48xf32>
    %30 = arith.addf %27, %29 : vector<64x48xf32>
    %31 = vector.extract_strided_slice %30 {offsets = [0, 0], sizes = [64, 4], strides = [1, 1]} : vector<64x48xf32> to vector<64x4xf32>
    %cst_15 = arith.constant 5.000000e-01 : f32
    %32 = vector.broadcast %cst_15 : f32 to vector<64x4xf32>
    %33 = arith.mulf %31, %32 : vector<64x4xf32>
    %34 = vector.extract_strided_slice %30 {offsets = [0, 16], sizes = [64, 4], strides = [1, 1]} : vector<64x48xf32> to vector<64x4xf32>
    %35 = vector.extract_strided_slice %30 {offsets = [0, 32], sizes = [64, 4], strides = [1, 1]} : vector<64x48xf32> to vector<64x4xf32>
    %36 = tpu.transpose %34, [1, 0] : vector<64x4xf32> -> vector<4x64xf32>
    %cst_16 = arith.constant dense<0.000000e+00> : vector<64x64xf32>
    %37 = tpu.matmul %33, %36, %cst_16 {dimension_numbers = #tpu.dot_dimension_numbers<[1], [0], [0], [1], [0, 0, 1, 1], [], []>} : vector<64x4xf32>, vector<4x64xf32>, vector<64x64xf32> -> vector<64x64xf32>
    %cst_17 = arith.constant dense<0xFF800000> : vector<64xf32>
    %38 = vector.multi_reduction <maximumf>, %37, %cst_17 [1] : vector<64x64xf32> to vector<64xf32>
    %39 = vector.shape_cast %38 : vector<64xf32> to vector<64x1xf32>
    %40 = vector.broadcast %39 : vector<64x1xf32> to vector<64x64xf32>
    %41 = arith.subf %37, %40 : vector<64x64xf32>
    %42 = math.exp %41 : vector<64x64xf32>
    %cst_18 = arith.constant dense<0.000000e+00> : vector<64xf32>
    %43 = vector.multi_reduction <add>, %42, %cst_18 [1] : vector<64x64xf32> to vector<64xf32>
    %44 = vector.shape_cast %43 : vector<64xf32> to vector<64x1xf32>
    %45 = tpu.reciprocal %44 {approx = true} : vector<64x1xf32> -> vector<64x1xf32>
    %46 = vector.broadcast %45 : vector<64x1xf32> to vector<64x64xf32>
    %47 = arith.mulf %42, %46 : vector<64x64xf32>
    %cst_19 = arith.constant dense<0.000000e+00> : vector<64x4xf32>
    %48 = tpu.matmul %47, %35, %cst_19 {dimension_numbers = #tpu.dot_dimension_numbers<[1], [0], [0], [1], [0, 0, 1, 1], [], []>} : vector<64x64xf32>, vector<64x4xf32>, vector<64x4xf32> -> vector<64x4xf32>
    %49 = vector.extract_strided_slice %30 {offsets = [0, 4], sizes = [64, 4], strides = [1, 1]} : vector<64x48xf32> to vector<64x4xf32>
    %cst_20 = arith.constant 5.000000e-01 : f32
    %50 = vector.broadcast %cst_20 : f32 to vector<64x4xf32>
    %51 = arith.mulf %49, %50 : vector<64x4xf32>
    %52 = vector.extract_strided_slice %30 {offsets = [0, 20], sizes = [64, 4], strides = [1, 1]} : vector<64x48xf32> to vector<64x4xf32>
    %53 = vector.extract_strided_slice %30 {offsets = [0, 36], sizes = [64, 4], strides = [1, 1]} : vector<64x48xf32> to vector<64x4xf32>
    %54 = tpu.transpose %52, [1, 0] : vector<64x4xf32> -> vector<4x64xf32>
    %cst_21 = arith.constant dense<0.000000e+00> : vector<64x64xf32>
    %55 = tpu.matmul %51, %54, %cst_21 {dimension_numbers = #tpu.dot_dimension_numbers<[1], [0], [0], [1], [0, 0, 1, 1], [], []>} : vector<64x4xf32>, vector<4x64xf32>, vector<64x64xf32> -> vector<64x64xf32>
    %cst_22 = arith.constant dense<0xFF800000> : vector<64xf32>
    %56 = vector.multi_reduction <maximumf>, %55, %cst_22 [1] : vector<64x64xf32> to vector<64xf32>
    %57 = vector.shape_cast %56 : vector<64xf32> to vector<64x1xf32>
    %58 = vector.broadcast %57 : vector<64x1xf32> to vector<64x64xf32>
    %59 = arith.subf %55, %58 : vector<64x64xf32>
    %60 = math.exp %59 : vector<64x64xf32>
    %cst_23 = arith.constant dense<0.000000e+00> : vector<64xf32>
    %61 = vector.multi_reduction <add>, %60, %cst_23 [1] : vector<64x64xf32> to vector<64xf32>
    %62 = vector.shape_cast %61 : vector<64xf32> to vector<64x1xf32>
    %63 = tpu.reciprocal %62 {approx = true} : vector<64x1xf32> -> vector<64x1xf32>
    %64 = vector.broadcast %63 : vector<64x1xf32> to vector<64x64xf32>
    %65 = arith.mulf %60, %64 : vector<64x64xf32>
    %cst_24 = arith.constant dense<0.000000e+00> : vector<64x4xf32>
    %66 = tpu.matmul %65, %53, %cst_24 {dimension_numbers = #tpu.dot_dimension_numbers<[1], [0], [0], [1], [0, 0, 1, 1], [], []>} : vector<64x64xf32>, vector<64x4xf32>, vector<64x4xf32> -> vector<64x4xf32>
    %67 = vector.extract_strided_slice %30 {offsets = [0, 8], sizes = [64, 4], strides = [1, 1]} : vector<64x48xf32> to vector<64x4xf32>
    %cst_25 = arith.constant 5.000000e-01 : f32
    %68 = vector.broadcast %cst_25 : f32 to vector<64x4xf32>
    %69 = arith.mulf %67, %68 : vector<64x4xf32>
    %70 = vector.extract_strided_slice %30 {offsets = [0, 24], sizes = [64, 4], strides = [1, 1]} : vector<64x48xf32> to vector<64x4xf32>
    %71 = vector.extract_strided_slice %30 {offsets = [0, 40], sizes = [64, 4], strides = [1, 1]} : vector<64x48xf32> to vector<64x4xf32>
    %72 = tpu.transpose %70, [1, 0] : vector<64x4xf32> -> vector<4x64xf32>
    %cst_26 = arith.constant dense<0.000000e+00> : vector<64x64xf32>
    %73 = tpu.matmul %69, %72, %cst_26 {dimension_numbers = #tpu.dot_dimension_numbers<[1], [0], [0], [1], [0, 0, 1, 1], [], []>} : vector<64x4xf32>, vector<4x64xf32>, vector<64x64xf32> -> vector<64x64xf32>
    %cst_27 = arith.constant dense<0xFF800000> : vector<64xf32>
    %74 = vector.multi_reduction <maximumf>, %73, %cst_27 [1] : vector<64x64xf32> to vector<64xf32>
    %75 = vector.shape_cast %74 : vector<64xf32> to vector<64x1xf32>
    %76 = vector.broadcast %75 : vector<64x1xf32> to vector<64x64xf32>
    %77 = arith.subf %73, %76 : vector<64x64xf32>
    %78 = math.exp %77 : vector<64x64xf32>
    %cst_28 = arith.constant dense<0.000000e+00> : vector<64xf32>
    %79 = vector.multi_reduction <add>, %78, %cst_28 [1] : vector<64x64xf32> to vector<64xf32>
    %80 = vector.shape_cast %79 : vector<64xf32> to vector<64x1xf32>
    %81 = tpu.reciprocal %80 {approx = true} : vector<64x1xf32> -> vector<64x1xf32>
    %82 = vector.broadcast %81 : vector<64x1xf32> to vector<64x64xf32>
    %83 = arith.mulf %78, %82 : vector<64x64xf32>
    %cst_29 = arith.constant dense<0.000000e+00> : vector<64x4xf32>
    %84 = tpu.matmul %83, %71, %cst_29 {dimension_numbers = #tpu.dot_dimension_numbers<[1], [0], [0], [1], [0, 0, 1, 1], [], []>} : vector<64x64xf32>, vector<64x4xf32>, vector<64x4xf32> -> vector<64x4xf32>
    %85 = vector.extract_strided_slice %30 {offsets = [0, 12], sizes = [64, 4], strides = [1, 1]} : vector<64x48xf32> to vector<64x4xf32>
    %cst_30 = arith.constant 5.000000e-01 : f32
    %86 = vector.broadcast %cst_30 : f32 to vector<64x4xf32>
    %87 = arith.mulf %85, %86 : vector<64x4xf32>
    %88 = vector.extract_strided_slice %30 {offsets = [0, 28], sizes = [64, 4], strides = [1, 1]} : vector<64x48xf32> to vector<64x4xf32>
    %89 = vector.extract_strided_slice %30 {offsets = [0, 44], sizes = [64, 4], strides = [1, 1]} : vector<64x48xf32> to vector<64x4xf32>
    %90 = tpu.transpose %88, [1, 0] : vector<64x4xf32> -> vector<4x64xf32>
    %cst_31 = arith.constant dense<0.000000e+00> : vector<64x64xf32>
    %91 = tpu.matmul %87, %90, %cst_31 {dimension_numbers = #tpu.dot_dimension_numbers<[1], [0], [0], [1], [0, 0, 1, 1], [], []>} : vector<64x4xf32>, vector<4x64xf32>, vector<64x64xf32> -> vector<64x64xf32>
    %cst_32 = arith.constant dense<0xFF800000> : vector<64xf32>
    %92 = vector.multi_reduction <maximumf>, %91, %cst_32 [1] : vector<64x64xf32> to vector<64xf32>
    %93 = vector.shape_cast %92 : vector<64xf32> to vector<64x1xf32>
    %94 = vector.broadcast %93 : vector<64x1xf32> to vector<64x64xf32>
    %95 = arith.subf %91, %94 : vector<64x64xf32>
    %96 = math.exp %95 : vector<64x64xf32>
    %cst_33 = arith.constant dense<0.000000e+00> : vector<64xf32>
    %97 = vector.multi_reduction <add>, %96, %cst_33 [1] : vector<64x64xf32> to vector<64xf32>
    %98 = vector.shape_cast %97 : vector<64xf32> to vector<64x1xf32>
    %99 = tpu.reciprocal %98 {approx = true} : vector<64x1xf32> -> vector<64x1xf32>
    %100 = vector.broadcast %99 : vector<64x1xf32> to vector<64x64xf32>
    %101 = arith.mulf %96, %100 : vector<64x64xf32>
    %cst_34 = arith.constant dense<0.000000e+00> : vector<64x4xf32>
    %102 = tpu.matmul %101, %89, %cst_34 {dimension_numbers = #tpu.dot_dimension_numbers<[1], [0], [0], [1], [0, 0, 1, 1], [], []>} : vector<64x64xf32>, vector<64x4xf32>, vector<64x4xf32> -> vector<64x4xf32>
    %103 = tpu.concatenate %48, %66, %84, %102 in 1 : vector<64x4xf32>, vector<64x4xf32>, vector<64x4xf32>, vector<64x4xf32> -> vector<64x16xf32>
    %104 = arith.truncf %103 : vector<64x16xf32> to vector<64x16xbf16>
    %c0_35 = arith.constant 0 : index
    %c0_36 = arith.constant 0 : index
    %105 = vector.load %arg6[%c0_35, %c0_36] : memref<16x16xf32, #tpu.memory_space<vmem>>, vector<16x16xf32>
    %106 = arith.truncf %105 : vector<16x16xf32> to vector<16x16xbf16>
    %cst_37 = arith.constant dense<0.000000e+00> : vector<64x16xf32>
    %107 = tpu.matmul %104, %106, %cst_37 {dimension_numbers = #tpu.dot_dimension_numbers<[1], [0], [0], [1], [0, 0, 1, 1], [], []>} : vector<64x16xbf16>, vector<16x16xbf16>, vector<64x16xf32> -> vector<64x16xf32>
    %c0_38 = arith.constant 0 : index
    %c0_39 = arith.constant 0 : index
    %108 = vector.load %arg7[%c0_38, %c0_39] : memref<1x16xf32, #tpu.memory_space<vmem>>, vector<1x16xf32>
    %109 = vector.broadcast %108 : vector<1x16xf32> to vector<64x16xf32>
    %110 = arith.addf %107, %109 : vector<64x16xf32>
    %111 = arith.addf %1, %110 : vector<64x16xf32>
    %c0_40 = arith.constant 0 : index
    %c0_41 = arith.constant 0 : index
    %c0_42 = arith.constant 0 : index
    %112 = vector.load %arg8[%c0_40, %c0_41, %c0_42] : memref<1x64x16xf32, #tpu.memory_space<vmem>>, vector<1x64x16xf32>
    %113 = vector.shape_cast %112 : vector<1x64x16xf32> to vector<64x16xf32>
    %114 = vector.shape_cast %111 : vector<64x16xf32> to vector<1x64x16xf32>
    tpu.vector_store %arg8[%c0_40, %c0_41, %c0_42], %114 {strides = array<i32>} : memref<1x64x16xf32, #tpu.memory_space<vmem>>, vector<1x64x16xf32>,
    return
  }
  func.func @transform_0(%arg0: i32) -> (i32, i32, i32) {
    %c0_i32 = arith.constant 0 : i32
    %c0_i32_0 = arith.constant 0 : i32
    %c0_i32_1 = arith.constant 0 : i32
    return %arg0, %c0_i32, %c0_i32_0 : i32, i32, i32
  }
  func.func @transform_1(%arg0: i32) -> (i32, i32) {
    %c0_i32 = arith.constant 0 : i32
    %c0_i32_0 = arith.constant 0 : i32
    %c0_i32_1 = arith.constant 0 : i32
    return %c0_i32, %c0_i32_0 : i32, i32
  }
  func.func @transform_2(%arg0: i32) -> (i32, i32) {
    %c0_i32 = arith.constant 0 : i32
    %c0_i32_0 = arith.constant 0 : i32
    %c0_i32_1 = arith.constant 0 : i32
    return %c0_i32, %c0_i32_0 : i32, i32
  }
  func.func @transform_3(%arg0: i32) -> (i32, i32) {
    %c0_i32 = arith.constant 0 : i32
    %c0_i32_0 = arith.constant 0 : i32
    %c0_i32_1 = arith.constant 0 : i32
    return %c0_i32, %c0_i32_0 : i32, i32
  }
  func.func @transform_4(%arg0: i32) -> (i32, i32) {
    %c0_i32 = arith.constant 0 : i32
    %c0_i32_0 = arith.constant 0 : i32
    %c0_i32_1 = arith.constant 0 : i32
    return %c0_i32, %c0_i32_0 : i32, i32
  }
  func.func @transform_5(%arg0: i32) -> (i32, i32) {
    %c0_i32 = arith.constant 0 : i32
    %c0_i32_0 = arith.constant 0 : i32
    %c0_i32_1 = arith.constant 0 : i32
    return %c0_i32, %c0_i32_0 : i32, i32
  }
  func.func @transform_6(%arg0: i32) -> (i32, i32) {
    %c0_i32 = arith.constant 0 : i32
    %c0_i32_0 = arith.constant 0 : i32
    %c0_i32_1 = arith.constant 0 : i32
    return %c0_i32, %c0_i32_0 : i32, i32
  }
  func.func @transform_7(%arg0: i32) -> (i32, i32, i32) {
    %c0_i32 = arith.constant 0 : i32
    %c0_i32_0 = arith.constant 0 : i32
    %c0_i32_1 = arith.constant 0 : i32
    return %arg0, %c0_i32, %c0_i32_0 : i32, i32, i32
  }
}

module attributes {stable_mosaic.version = 11 : i64} {
  func.func @_ffn_block_kernel(%arg0: i32, %arg1: memref<256x16xf32, #tpu.memory_space<vmem>>, %arg2: memref<1x16xf32, #tpu.memory_space<vmem>>, %arg3: memref<1x16xf32, #tpu.memory_space<vmem>>, %arg4: memref<16x32xf32, #tpu.memory_space<vmem>>, %arg5: memref<1x32xf32, #tpu.memory_space<vmem>>, %arg6: memref<32x16xf32, #tpu.memory_space<vmem>>, %arg7: memref<1x16xf32, #tpu.memory_space<vmem>>, %arg8: memref<256x16xf32, #tpu.memory_space<vmem>>) attributes {dimension_semantics = [#tpu.dimension_semantics<parallel>], iteration_bounds = array<i64: 2>, scalar_prefetch = 0 : i64, scratch_operands = 0 : i64, tpu.core_type = #tpu.core_type<tc>, window_params = [{transform_indices = @transform_0, window_bounds = array<i64: 256, 16>}, {pipeline_mode = #tpu.pipeline_mode<synchronous>, transform_indices = @transform_1, window_bounds = array<i64: 1, 16>}, {pipeline_mode = #tpu.pipeline_mode<synchronous>, transform_indices = @transform_2, window_bounds = array<i64: 1, 16>}, {pipeline_mode = #tpu.pipeline_mode<synchronous>, transform_indices = @transform_3, window_bounds = array<i64: 16, 32>}, {pipeline_mode = #tpu.pipeline_mode<synchronous>, transform_indices = @transform_4, window_bounds = array<i64: 1, 32>}, {pipeline_mode = #tpu.pipeline_mode<synchronous>, transform_indices = @transform_5, window_bounds = array<i64: 32, 16>}, {pipeline_mode = #tpu.pipeline_mode<synchronous>, transform_indices = @transform_6, window_bounds = array<i64: 1, 16>}, {transform_indices = @transform_7, window_bounds = array<i64: 256, 16>}]} {
    %c0 = arith.constant 0 : index
    %c0_0 = arith.constant 0 : index
    %0 = vector.load %arg1[%c0, %c0_0] : memref<256x16xf32, #tpu.memory_space<vmem>>, vector<256x16xf32>
    %cst = arith.constant dense<0.000000e+00> : vector<256xf32>
    %1 = vector.multi_reduction <add>, %0, %cst [1] : vector<256x16xf32> to vector<256xf32>
    %2 = vector.shape_cast %1 : vector<256xf32> to vector<256x1xf32>
    %cst_1 = arith.constant 1.600000e+01 : f32
    %3 = vector.broadcast %cst_1 : f32 to vector<256x1xf32>
    %4 = arith.divf %2, %3 : vector<256x1xf32>
    %5 = vector.broadcast %4 : vector<256x1xf32> to vector<256x16xf32>
    %6 = arith.subf %0, %5 : vector<256x16xf32>
    %7 = arith.mulf %6, %6 : vector<256x16xf32>
    %cst_2 = arith.constant dense<0.000000e+00> : vector<256xf32>
    %8 = vector.multi_reduction <add>, %7, %cst_2 [1] : vector<256x16xf32> to vector<256xf32>
    %9 = vector.shape_cast %8 : vector<256xf32> to vector<256x1xf32>
    %cst_3 = arith.constant 1.600000e+01 : f32
    %10 = vector.broadcast %cst_3 : f32 to vector<256x1xf32>
    %11 = arith.divf %9, %10 : vector<256x1xf32>
    %cst_4 = arith.constant 9.99999974E-6 : f32
    %12 = vector.broadcast %cst_4 : f32 to vector<256x1xf32>
    %13 = arith.addf %11, %12 : vector<256x1xf32>
    %14 = math.rsqrt %13 : vector<256x1xf32>
    %15 = vector.broadcast %14 : vector<256x1xf32> to vector<256x16xf32>
    %16 = arith.mulf %6, %15 : vector<256x16xf32>
    %c0_5 = arith.constant 0 : index
    %c0_6 = arith.constant 0 : index
    %17 = vector.load %arg2[%c0_5, %c0_6] : memref<1x16xf32, #tpu.memory_space<vmem>>, vector<1x16xf32>
    %18 = vector.broadcast %17 : vector<1x16xf32> to vector<256x16xf32>
    %19 = arith.mulf %16, %18 : vector<256x16xf32>
    %c0_7 = arith.constant 0 : index
    %c0_8 = arith.constant 0 : index
    %20 = vector.load %arg3[%c0_7, %c0_8] : memref<1x16xf32, #tpu.memory_space<vmem>>, vector<1x16xf32>
    %21 = vector.broadcast %20 : vector<1x16xf32> to vector<256x16xf32>
    %22 = arith.addf %19, %21 : vector<256x16xf32>
    %23 = arith.truncf %22 : vector<256x16xf32> to vector<256x16xbf16>
    %c0_9 = arith.constant 0 : index
    %c0_10 = arith.constant 0 : index
    %24 = vector.load %arg4[%c0_9, %c0_10] : memref<16x32xf32, #tpu.memory_space<vmem>>, vector<16x32xf32>
    %25 = arith.truncf %24 : vector<16x32xf32> to vector<16x32xbf16>
    %cst_11 = arith.constant dense<0.000000e+00> : vector<256x32xf32>
    %26 = tpu.matmul %23, %25, %cst_11 {dimension_numbers = #tpu.dot_dimension_numbers<[1], [0], [0], [1], [0, 0, 1, 1], [], []>} : vector<256x16xbf16>, vector<16x32xbf16>, vector<256x32xf32> -> vector<256x32xf32>
    %c0_12 = arith.constant 0 : index
    %c0_13 = arith.constant 0 : index
    %27 = vector.load %arg5[%c0_12, %c0_13] : memref<1x32xf32, #tpu.memory_space<vmem>>, vector<1x32xf32>
    %28 = vector.broadcast %27 : vector<1x32xf32> to vector<256x32xf32>
    %29 = arith.addf %26, %28 : vector<256x32xf32>
    %30 = arith.negf %29 : vector<256x32xf32>
    %31 = math.exp %30 : vector<256x32xf32>
    %cst_14 = arith.constant 1.000000e+00 : f32
    %32 = vector.broadcast %cst_14 : f32 to vector<256x32xf32>
    %33 = arith.addf %32, %31 : vector<256x32xf32>
    %34 = arith.divf %32, %33 : vector<256x32xf32>
    %35 = arith.mulf %29, %34 : vector<256x32xf32>
    %36 = arith.truncf %35 : vector<256x32xf32> to vector<256x32xbf16>
    %c0_15 = arith.constant 0 : index
    %c0_16 = arith.constant 0 : index
    %37 = vector.load %arg6[%c0_15, %c0_16] : memref<32x16xf32, #tpu.memory_space<vmem>>, vector<32x16xf32>
    %38 = arith.truncf %37 : vector<32x16xf32> to vector<32x16xbf16>
    %cst_17 = arith.constant dense<0.000000e+00> : vector<256x16xf32>
    %39 = tpu.matmul %36, %38, %cst_17 {dimension_numbers = #tpu.dot_dimension_numbers<[1], [0], [0], [1], [0, 0, 1, 1], [], []>} : vector<256x32xbf16>, vector<32x16xbf16>, vector<256x16xf32> -> vector<256x16xf32>
    %c0_18 = arith.constant 0 : index
    %c0_19 = arith.constant 0 : index
    %40 = vector.load %arg7[%c0_18, %c0_19] : memref<1x16xf32, #tpu.memory_space<vmem>>, vector<1x16xf32>
    %41 = vector.broadcast %40 : vector<1x16xf32> to vector<256x16xf32>
    %42 = arith.addf %39, %41 : vector<256x16xf32>
    %43 = arith.addf %0, %42 : vector<256x16xf32>
    %c0_20 = arith.constant 0 : index
    %c0_21 = arith.constant 0 : index
    %44 = vector.load %arg8[%c0_20, %c0_21] : memref<256x16xf32, #tpu.memory_space<vmem>>, vector<256x16xf32>
    tpu.vector_store %arg8[%c0_20, %c0_21], %43 {strides = array<i32>} : memref<256x16xf32, #tpu.memory_space<vmem>>, vector<256x16xf32>,
    return
  }
  func.func @transform_0(%arg0: i32) -> (i32, i32) {
    %c0_i32 = arith.constant 0 : i32
    %c0_i32_0 = arith.constant 0 : i32
    return %arg0, %c0_i32 : i32, i32
  }
  func.func @transform_1(%arg0: i32) -> (i32, i32) {
    %c0_i32 = arith.constant 0 : i32
    %c0_i32_0 = arith.constant 0 : i32
    %c0_i32_1 = arith.constant 0 : i32
    return %c0_i32, %c0_i32_0 : i32, i32
  }
  func.func @transform_2(%arg0: i32) -> (i32, i32) {
    %c0_i32 = arith.constant 0 : i32
    %c0_i32_0 = arith.constant 0 : i32
    %c0_i32_1 = arith.constant 0 : i32
    return %c0_i32, %c0_i32_0 : i32, i32
  }
  func.func @transform_3(%arg0: i32) -> (i32, i32) {
    %c0_i32 = arith.constant 0 : i32
    %c0_i32_0 = arith.constant 0 : i32
    %c0_i32_1 = arith.constant 0 : i32
    return %c0_i32, %c0_i32_0 : i32, i32
  }
  func.func @transform_4(%arg0: i32) -> (i32, i32) {
    %c0_i32 = arith.constant 0 : i32
    %c0_i32_0 = arith.constant 0 : i32
    %c0_i32_1 = arith.constant 0 : i32
    return %c0_i32, %c0_i32_0 : i32, i32
  }
  func.func @transform_5(%arg0: i32) -> (i32, i32) {
    %c0_i32 = arith.constant 0 : i32
    %c0_i32_0 = arith.constant 0 : i32
    %c0_i32_1 = arith.constant 0 : i32
    return %c0_i32, %c0_i32_0 : i32, i32
  }
  func.func @transform_6(%arg0: i32) -> (i32, i32) {
    %c0_i32 = arith.constant 0 : i32
    %c0_i32_0 = arith.constant 0 : i32
    %c0_i32_1 = arith.constant 0 : i32
    return %c0_i32, %c0_i32_0 : i32, i32
  }
  func.func @transform_7(%arg0: i32) -> (i32, i32) {
    %c0_i32 = arith.constant 0 : i32
    %c0_i32_0 = arith.constant 0 : i32
    return %arg0, %c0_i32 : i32, i32
  }
}

module attributes {stable_mosaic.version = 11 : i64} {
  func.func @_mm_kernel(%arg0: i32, %arg1: i32, %arg2: memref<256x16xf32, #tpu.memory_space<vmem>>, %arg3: memref<16x8xf32, #tpu.memory_space<vmem>>, %arg4: memref<1x16xf32, #tpu.memory_space<vmem>>, %arg5: memref<1x16xf32, #tpu.memory_space<vmem>>, %arg6: memref<1x8xf32, #tpu.memory_space<vmem>>, %arg7: memref<1x8xf32, #tpu.memory_space<vmem>>, %arg8: memref<256x8xf32, #tpu.memory_space<vmem>>) attributes {dimension_semantics = [#tpu.dimension_semantics<parallel>, #tpu.dimension_semantics<parallel>], iteration_bounds = array<i64: 2, 1>, scalar_prefetch = 0 : i64, scratch_operands = 0 : i64, tpu.core_type = #tpu.core_type<tc>, window_params = [{transform_indices = @transform_0, window_bounds = array<i64: 256, 16>}, {transform_indices = @transform_1, window_bounds = array<i64: 16, 8>}, {pipeline_mode = #tpu.pipeline_mode<synchronous>, transform_indices = @transform_2, window_bounds = array<i64: 1, 16>}, {pipeline_mode = #tpu.pipeline_mode<synchronous>, transform_indices = @transform_3, window_bounds = array<i64: 1, 16>}, {transform_indices = @transform_4, window_bounds = array<i64: 1, 8>}, {transform_indices = @transform_5, window_bounds = array<i64: 1, 8>}, {transform_indices = @transform_6, window_bounds = array<i64: 256, 8>}]} {
    %c0 = arith.constant 0 : index
    %c0_0 = arith.constant 0 : index
    %0 = vector.load %arg2[%c0, %c0_0] : memref<256x16xf32, #tpu.memory_space<vmem>>, vector<256x16xf32>
    %cst = arith.constant dense<0.000000e+00> : vector<256xf32>
    %1 = vector.multi_reduction <add>, %0, %cst [1] : vector<256x16xf32> to vector<256xf32>
    %2 = vector.shape_cast %1 : vector<256xf32> to vector<256x1xf32>
    %cst_1 = arith.constant 1.600000e+01 : f32
    %3 = vector.broadcast %cst_1 : f32 to vector<256x1xf32>
    %4 = arith.divf %2, %3 : vector<256x1xf32>
    %5 = vector.broadcast %4 : vector<256x1xf32> to vector<256x16xf32>
    %6 = arith.subf %0, %5 : vector<256x16xf32>
    %7 = arith.mulf %6, %6 : vector<256x16xf32>
    %cst_2 = arith.constant dense<0.000000e+00> : vector<256xf32>
    %8 = vector.multi_reduction <add>, %7, %cst_2 [1] : vector<256x16xf32> to vector<256xf32>
    %9 = vector.shape_cast %8 : vector<256xf32> to vector<256x1xf32>
    %cst_3 = arith.constant 1.600000e+01 : f32
    %10 = vector.broadcast %cst_3 : f32 to vector<256x1xf32>
    %11 = arith.divf %9, %10 : vector<256x1xf32>
    %cst_4 = arith.constant 9.99999974E-6 : f32
    %12 = vector.broadcast %cst_4 : f32 to vector<256x1xf32>
    %13 = arith.addf %11, %12 : vector<256x1xf32>
    %14 = math.rsqrt %13 : vector<256x1xf32>
    %15 = vector.broadcast %14 : vector<256x1xf32> to vector<256x16xf32>
    %16 = arith.mulf %6, %15 : vector<256x16xf32>
    %c0_5 = arith.constant 0 : index
    %c0_6 = arith.constant 0 : index
    %17 = vector.load %arg4[%c0_5, %c0_6] : memref<1x16xf32, #tpu.memory_space<vmem>>, vector<1x16xf32>
    %18 = vector.broadcast %17 : vector<1x16xf32> to vector<256x16xf32>
    %19 = arith.mulf %16, %18 : vector<256x16xf32>
    %c0_7 = arith.constant 0 : index
    %c0_8 = arith.constant 0 : index
    %20 = vector.load %arg5[%c0_7, %c0_8] : memref<1x16xf32, #tpu.memory_space<vmem>>, vector<1x16xf32>
    %21 = vector.broadcast %20 : vector<1x16xf32> to vector<256x16xf32>
    %22 = arith.addf %19, %21 : vector<256x16xf32>
    %23 = arith.truncf %22 : vector<256x16xf32> to vector<256x16xbf16>
    %c0_9 = arith.constant 0 : index
    %c0_10 = arith.constant 0 : index
    %24 = vector.load %arg3[%c0_9, %c0_10] : memref<16x8xf32, #tpu.memory_space<vmem>>, vector<16x8xf32>
    %25 = arith.truncf %24 : vector<16x8xf32> to vector<16x8xbf16>
    %cst_11 = arith.constant dense<0.000000e+00> : vector<256x8xf32>
    %26 = tpu.matmul %23, %25, %cst_11 {dimension_numbers = #tpu.dot_dimension_numbers<[1], [0], [0], [1], [0, 0, 1, 1], [], []>} : vector<256x16xbf16>, vector<16x8xbf16>, vector<256x8xf32> -> vector<256x8xf32>
    %c0_12 = arith.constant 0 : index
    %c0_13 = arith.constant 0 : index
    %27 = vector.load %arg6[%c0_12, %c0_13] : memref<1x8xf32, #tpu.memory_space<vmem>>, vector<1x8xf32>
    %28 = vector.broadcast %27 : vector<1x8xf32> to vector<256x8xf32>
    %29 = arith.mulf %26, %28 : vector<256x8xf32>
    %c0_14 = arith.constant 0 : index
    %c0_15 = arith.constant 0 : index
    %30 = vector.load %arg7[%c0_14, %c0_15] : memref<1x8xf32, #tpu.memory_space<vmem>>, vector<1x8xf32>
    %31 = vector.broadcast %30 : vector<1x8xf32> to vector<256x8xf32>
    %32 = arith.addf %29, %31 : vector<256x8xf32>
    %c0_16 = arith.constant 0 : index
    %c0_17 = arith.constant 0 : index
    %33 = vector.load %arg8[%c0_16, %c0_17] : memref<256x8xf32, #tpu.memory_space<vmem>>, vector<256x8xf32>
    tpu.vector_store %arg8[%c0_16, %c0_17], %32 {strides = array<i32>} : memref<256x8xf32, #tpu.memory_space<vmem>>, vector<256x8xf32>,
    return
  }
  func.func @transform_0(%arg0: i32, %arg1: i32) -> (i32, i32) {
    %c0_i32 = arith.constant 0 : i32
    %c0_i32_0 = arith.constant 0 : i32
    return %arg0, %c0_i32 : i32, i32
  }
  func.func @transform_1(%arg0: i32, %arg1: i32) -> (i32, i32) {
    %c0_i32 = arith.constant 0 : i32
    %c0_i32_0 = arith.constant 0 : i32
    return %c0_i32, %arg1 : i32, i32
  }
  func.func @transform_2(%arg0: i32, %arg1: i32) -> (i32, i32) {
    %c0_i32 = arith.constant 0 : i32
    %c0_i32_0 = arith.constant 0 : i32
    %c0_i32_1 = arith.constant 0 : i32
    return %c0_i32, %c0_i32_0 : i32, i32
  }
  func.func @transform_3(%arg0: i32, %arg1: i32) -> (i32, i32) {
    %c0_i32 = arith.constant 0 : i32
    %c0_i32_0 = arith.constant 0 : i32
    %c0_i32_1 = arith.constant 0 : i32
    return %c0_i32, %c0_i32_0 : i32, i32
  }
  func.func @transform_4(%arg0: i32, %arg1: i32) -> (i32, i32) {
    %c0_i32 = arith.constant 0 : i32
    %c0_i32_0 = arith.constant 0 : i32
    return %c0_i32, %arg1 : i32, i32
  }
  func.func @transform_5(%arg0: i32, %arg1: i32) -> (i32, i32) {
    %c0_i32 = arith.constant 0 : i32
    %c0_i32_0 = arith.constant 0 : i32
    return %c0_i32, %arg1 : i32, i32
  }
  func.func @transform_6(%arg0: i32, %arg1: i32) -> (i32, i32) {
    %c0_i32 = arith.constant 0 : i32
    return %arg0, %arg1 : i32, i32
  }
}

module attributes {stable_mosaic.version = 11 : i64} {
  func.func @_conv3x3_kernel(%arg0: i32, %arg1: memref<1x18x18x12xf32, #tpu.memory_space<vmem>>, %arg2: memref<9x12x8xf32, #tpu.memory_space<vmem>>, %arg3: memref<1x8xf32, #tpu.memory_space<vmem>>, %arg4: memref<1x8xf32, #tpu.memory_space<vmem>>, %arg5: memref<1x16x16x8xf32, #tpu.memory_space<vmem>>) attributes {dimension_semantics = [#tpu.dimension_semantics<parallel>], iteration_bounds = array<i64: 2>, scalar_prefetch = 0 : i64, scratch_operands = 0 : i64, tpu.core_type = #tpu.core_type<tc>, window_params = [{transform_indices = @transform_0, window_bounds = array<i64: 1, 18, 18, 12>}, {pipeline_mode = #tpu.pipeline_mode<synchronous>, transform_indices = @transform_1, window_bounds = array<i64: 9, 12, 8>}, {pipeline_mode = #tpu.pipeline_mode<synchronous>, transform_indices = @transform_2, window_bounds = array<i64: 1, 8>}, {pipeline_mode = #tpu.pipeline_mode<synchronous>, transform_indices = @transform_3, window_bounds = array<i64: 1, 8>}, {transform_indices = @transform_4, window_bounds = array<i64: 1, 16, 16, 8>}]} {
    %c0 = arith.constant 0 : index
    %c0_0 = arith.constant 0 : index
    %c0_1 = arith.constant 0 : index
    %c0_2 = arith.constant 0 : index
    %0 = vector.load %arg1[%c0, %c0_0, %c0_1, %c0_2] : memref<1x18x18x12xf32, #tpu.memory_space<vmem>>, vector<1x18x18x12xf32>
    %1 = vector.shape_cast %0 : vector<1x18x18x12xf32> to vector<18x18x12xf32>
    %cst = arith.constant 0.000000e+00 : f32
    %2 = vector.broadcast %cst : f32 to vector<256x8xf32>
    %3 = vector.extract_strided_slice %1 {offsets = [0, 0, 0], sizes = [16, 16, 12], strides = [1, 1, 1]} : vector<18x18x12xf32> to vector<16x16x12xf32>
    %4 = vector.shape_cast %3 : vector<16x16x12xf32> to vector<256x12xf32>
    %5 = arith.truncf %4 : vector<256x12xf32> to vector<256x12xbf16>
    %c0_3 = arith.constant 0 : index
    %c0_4 = arith.constant 0 : index
    %c0_5 = arith.constant 0 : index
    %6 = vector.load %arg2[%c0_3, %c0_4, %c0_5] : memref<9x12x8xf32, #tpu.memory_space<vmem>>, vector<1x12x8xf32>
    %7 = vector.shape_cast %6 : vector<1x12x8xf32> to vector<12x8xf32>
    %8 = arith.truncf %7 : vector<12x8xf32> to vector<12x8xbf16>
    %cst_6 = arith.constant dense<0.000000e+00> : vector<256x8xf32>
    %9 = tpu.matmul %5, %8, %cst_6 {dimension_numbers = #tpu.dot_dimension_numbers<[1], [0], [0], [1], [0, 0, 1, 1], [], []>} : vector<256x12xbf16>, vector<12x8xbf16>, vector<256x8xf32> -> vector<256x8xf32>
    %10 = arith.addf %2, %9 : vector<256x8xf32>
    %11 = vector.extract_strided_slice %1 {offsets = [0, 1, 0], sizes = [16, 16, 12], strides = [1, 1, 1]} : vector<18x18x12xf32> to vector<16x16x12xf32>
    %12 = vector.shape_cast %11 : vector<16x16x12xf32> to vector<256x12xf32>
    %13 = arith.truncf %12 : vector<256x12xf32> to vector<256x12xbf16>
    %c1 = arith.constant 1 : index
    %c0_7 = arith.constant 0 : index
    %c0_8 = arith.constant 0 : index
    %14 = vector.load %arg2[%c1, %c0_7, %c0_8] : memref<9x12x8xf32, #tpu.memory_space<vmem>>, vector<1x12x8xf32>
    %15 = vector.shape_cast %14 : vector<1x12x8xf32> to vector<12x8xf32>
    %16 = arith.truncf %15 : vector<12x8xf32> to vector<12x8xbf16>
    %cst_9 = arith.constant dense<0.000000e+00> : vector<256x8xf32>
    %17 = tpu.matmul %13, %16, %cst_9 {dimension_numbers = #tpu.dot_dimension_numbers<[1], [0], [0], [1], [0, 0, 1, 1], [], []>} : vector<256x12xbf16>, vector<12x8xbf16>, vector<256x8xf32> -> vector<256x8xf32>
    %18 = arith.addf %10, %17 : vector<256x8xf32>
    %19 = vector.extract_strided_slice %1 {offsets = [0, 2, 0], sizes = [16, 16, 12], strides = [1, 1, 1]} : vector<18x18x12xf32> to vector<16x16x12xf32>
    %20 = vector.shape_cast %19 : vector<16x16x12xf32> to vector<256x12xf32>
    %21 = arith.truncf %20 : vector<256x12xf32> to vector<256x12xbf16>
    %c2 = arith.constant 2 : index
    %c0_10 = arith.constant 0 : index
    %c0_11 = arith.constant 0 : index
    %22 = vector.load %arg2[%c2, %c0_10, %c0_11] : memref<9x12x8xf32, #tpu.memory_space<vmem>>, vector<1x12x8xf32>
    %23 = vector.shape_cast %22 : vector<1x12x8xf32> to vector<12x8xf32>
    %24 = arith.truncf %23 : vector<12x8xf32> to vector<12x8xbf16>
    %cst_12 = arith.constant dense<0.000000e+00> : vector<256x8xf32>
    %25 = tpu.matmul %21, %24, %cst_12 {dimension_numbers = #tpu.dot_dimension_numbers<[1], [0], [0], [1], [0, 0, 1, 1], [], []>} : vector<256x12xbf16>, vector<12x8xbf16>, vector<256x8xf32> -> vector<256x8xf32>
    %26 = arith.addf %18, %25 : vector<256x8xf32>
    %27 = vector.extract_strided_slice %1 {offsets = [1, 0, 0], sizes = [16, 16, 12], strides = [1, 1, 1]} : vector<18x18x12xf32> to vector<16x16x12xf32>
    %28 = vector.shape_cast %27 : vector<16x16x12xf32> to vector<256x12xf32>
    %29 = arith.truncf %28 : vector<256x12xf32> to vector<256x12xbf16>
    %c3 = arith.constant 3 : index
    %c0_13 = arith.constant 0 : index
    %c0_14 = arith.constant 0 : index
    %30 = vector.load %arg2[%c3, %c0_13, %c0_14] : memref<9x12x8xf32, #tpu.memory_space<vmem>>, vector<1x12x8xf32>
    %31 = vector.shape_cast %30 : vector<1x12x8xf32> to vector<12x8xf32>
    %32 = arith.truncf %31 : vector<12x8xf32> to vector<12x8xbf16>
    %cst_15 = arith.constant dense<0.000000e+00> : vector<256x8xf32>
    %33 = tpu.matmul %29, %32, %cst_15 {dimension_numbers = #tpu.dot_dimension_numbers<[1], [0], [0], [1], [0, 0, 1, 1], [], []>} : vector<256x12xbf16>, vector<12x8xbf16>, vector<256x8xf32> -> vector<256x8xf32>
    %34 = arith.addf %26, %33 : vector<256x8xf32>
    %35 = vector.extract_strided_slice %1 {offsets = [1, 1, 0], sizes = [16, 16, 12], strides = [1, 1, 1]} : vector<18x18x12xf32> to vector<16x16x12xf32>
    %36 = vector.shape_cast %35 : vector<16x16x12xf32> to vector<256x12xf32>
    %37 = arith.truncf %36 : vector<256x12xf32> to vector<256x12xbf16>
    %c4 = arith.constant 4 : index
    %c0_16 = arith.constant 0 : index
    %c0_17 = arith.constant 0 : index
    %38 = vector.load %arg2[%c4, %c0_16, %c0_17] : memref<9x12x8xf32, #tpu.memory_space<vmem>>, vector<1x12x8xf32>
    %39 = vector.shape_cast %38 : vector<1x12x8xf32> to vector<12x8xf32>
    %40 = arith.truncf %39 : vector<12x8xf32> to vector<12x8xbf16>
    %cst_18 = arith.constant dense<0.000000e+00> : vector<256x8xf32>
    %41 = tpu.matmul %37, %40, %cst_18 {dimension_numbers = #tpu.dot_dimension_numbers<[1], [0], [0], [1], [0, 0, 1, 1], [], []>} : vector<256x12xbf16>, vector<12x8xbf16>, vector<256x8xf32> -> vector<256x8xf32>
    %42 = arith.addf %34, %41 : vector<256x8xf32>
    %43 = vector.extract_strided_slice %1 {offsets = [1, 2, 0], sizes = [16, 16, 12], strides = [1, 1, 1]} : vector<18x18x12xf32> to vector<16x16x12xf32>
    %44 = vector.shape_cast %43 : vector<16x16x12xf32> to vector<256x12xf32>
    %45 = arith.truncf %44 : vector<256x12xf32> to vector<256x12xbf16>
    %c5 = arith.constant 5 : index
    %c0_19 = arith.constant 0 : index
    %c0_20 = arith.constant 0 : index
    %46 = vector.load %arg2[%c5, %c0_19, %c0_20] : memref<9x12x8xf32, #tpu.memory_space<vmem>>, vector<1x12x8xf32>
    %47 = vector.shape_cast %46 : vector<1x12x8xf32> to vector<12x8xf32>
    %48 = arith.truncf %47 : vector<12x8xf32> to vector<12x8xbf16>
    %cst_21 = arith.constant dense<0.000000e+00> : vector<256x8xf32>
    %49 = tpu.matmul %45, %48, %cst_21 {dimension_numbers = #tpu.dot_dimension_numbers<[1], [0], [0], [1], [0, 0, 1, 1], [], []>} : vector<256x12xbf16>, vector<12x8xbf16>, vector<256x8xf32> -> vector<256x8xf32>
    %50 = arith.addf %42, %49 : vector<256x8xf32>
    %51 = vector.extract_strided_slice %1 {offsets = [2, 0, 0], sizes = [16, 16, 12], strides = [1, 1, 1]} : vector<18x18x12xf32> to vector<16x16x12xf32>
    %52 = vector.shape_cast %51 : vector<16x16x12xf32> to vector<256x12xf32>
    %53 = arith.truncf %52 : vector<256x12xf32> to vector<256x12xbf16>
    %c6 = arith.constant 6 : index
    %c0_22 = arith.constant 0 : index
    %c0_23 = arith.constant 0 : index
    %54 = vector.load %arg2[%c6, %c0_22, %c0_23] : memref<9x12x8xf32, #tpu.memory_space<vmem>>, vector<1x12x8xf32>
    %55 = vector.shape_cast %54 : vector<1x12x8xf32> to vector<12x8xf32>
    %56 = arith.truncf %55 : vector<12x8xf32> to vector<12x8xbf16>
    %cst_24 = arith.constant dense<0.000000e+00> : vector<256x8xf32>
    %57 = tpu.matmul %53, %56, %cst_24 {dimension_numbers = #tpu.dot_dimension_numbers<[1], [0], [0], [1], [0, 0, 1, 1], [], []>} : vector<256x12xbf16>, vector<12x8xbf16>, vector<256x8xf32> -> vector<256x8xf32>
    %58 = arith.addf %50, %57 : vector<256x8xf32>
    %59 = vector.extract_strided_slice %1 {offsets = [2, 1, 0], sizes = [16, 16, 12], strides = [1, 1, 1]} : vector<18x18x12xf32> to vector<16x16x12xf32>
    %60 = vector.shape_cast %59 : vector<16x16x12xf32> to vector<256x12xf32>
    %61 = arith.truncf %60 : vector<256x12xf32> to vector<256x12xbf16>
    %c7 = arith.constant 7 : index
    %c0_25 = arith.constant 0 : index
    %c0_26 = arith.constant 0 : index
    %62 = vector.load %arg2[%c7, %c0_25, %c0_26] : memref<9x12x8xf32, #tpu.memory_space<vmem>>, vector<1x12x8xf32>
    %63 = vector.shape_cast %62 : vector<1x12x8xf32> to vector<12x8xf32>
    %64 = arith.truncf %63 : vector<12x8xf32> to vector<12x8xbf16>
    %cst_27 = arith.constant dense<0.000000e+00> : vector<256x8xf32>
    %65 = tpu.matmul %61, %64, %cst_27 {dimension_numbers = #tpu.dot_dimension_numbers<[1], [0], [0], [1], [0, 0, 1, 1], [], []>} : vector<256x12xbf16>, vector<12x8xbf16>, vector<256x8xf32> -> vector<256x8xf32>
    %66 = arith.addf %58, %65 : vector<256x8xf32>
    %67 = vector.extract_strided_slice %1 {offsets = [2, 2, 0], sizes = [16, 16, 12], strides = [1, 1, 1]} : vector<18x18x12xf32> to vector<16x16x12xf32>
    %68 = vector.shape_cast %67 : vector<16x16x12xf32> to vector<256x12xf32>
    %69 = arith.truncf %68 : vector<256x12xf32> to vector<256x12xbf16>
    %c8 = arith.constant 8 : index
    %c0_28 = arith.constant 0 : index
    %c0_29 = arith.constant 0 : index
    %70 = vector.load %arg2[%c8, %c0_28, %c0_29] : memref<9x12x8xf32, #tpu.memory_space<vmem>>, vector<1x12x8xf32>
    %71 = vector.shape_cast %70 : vector<1x12x8xf32> to vector<12x8xf32>
    %72 = arith.truncf %71 : vector<12x8xf32> to vector<12x8xbf16>
    %cst_30 = arith.constant dense<0.000000e+00> : vector<256x8xf32>
    %73 = tpu.matmul %69, %72, %cst_30 {dimension_numbers = #tpu.dot_dimension_numbers<[1], [0], [0], [1], [0, 0, 1, 1], [], []>} : vector<256x12xbf16>, vector<12x8xbf16>, vector<256x8xf32> -> vector<256x8xf32>
    %74 = arith.addf %66, %73 : vector<256x8xf32>
    %c0_31 = arith.constant 0 : index
    %c0_32 = arith.constant 0 : index
    %75 = vector.load %arg3[%c0_31, %c0_32] : memref<1x8xf32, #tpu.memory_space<vmem>>, vector<1x8xf32>
    %76 = vector.broadcast %75 : vector<1x8xf32> to vector<256x8xf32>
    %77 = arith.mulf %74, %76 : vector<256x8xf32>
    %c0_33 = arith.constant 0 : index
    %c0_34 = arith.constant 0 : index
    %78 = vector.load %arg4[%c0_33, %c0_34] : memref<1x8xf32, #tpu.memory_space<vmem>>, vector<1x8xf32>
    %79 = vector.broadcast %78 : vector<1x8xf32> to vector<256x8xf32>
    %80 = arith.addf %77, %79 : vector<256x8xf32>
    %81 = arith.negf %80 : vector<256x8xf32>
    %82 = math.exp %81 : vector<256x8xf32>
    %cst_35 = arith.constant 1.000000e+00 : f32
    %83 = vector.broadcast %cst_35 : f32 to vector<256x8xf32>
    %84 = arith.addf %83, %82 : vector<256x8xf32>
    %85 = arith.divf %83, %84 : vector<256x8xf32>
    %86 = arith.mulf %80, %85 : vector<256x8xf32>
    %87 = vector.shape_cast %86 : vector<256x8xf32> to vector<16x16x8xf32>
    %c0_36 = arith.constant 0 : index
    %c0_37 = arith.constant 0 : index
    %c0_38 = arith.constant 0 : index
    %c0_39 = arith.constant 0 : index
    %88 = vector.load %arg5[%c0_36, %c0_37, %c0_38, %c0_39] : memref<1x16x16x8xf32, #tpu.memory_space<vmem>>, vector<1x16x16x8xf32>
    %89 = vector.shape_cast %88 : vector<1x16x16x8xf32> to vector<16x16x8xf32>
    %90 = vector.shape_cast %87 : vector<16x16x8xf32> to vector<1x16x16x8xf32>
    tpu.vector_store %arg5[%c0_36, %c0_37, %c0_38, %c0_39], %90 {strides = array<i32>} : memref<1x16x16x8xf32, #tpu.memory_space<vmem>>, vector<1x16x16x8xf32>,
    return
  }
  func.func @transform_0(%arg0: i32) -> (i32, i32, i32, i32) {
    %c0_i32 = arith.constant 0 : i32
    %c0_i32_0 = arith.constant 0 : i32
    %c0_i32_1 = arith.constant 0 : i32
    %c0_i32_2 = arith.constant 0 : i32
    return %arg0, %c0_i32, %c0_i32_0, %c0_i32_1 : i32, i32, i32, i32
  }
  func.func @transform_1(%arg0: i32) -> (i32, i32, i32) {
    %c0_i32 = arith.constant 0 : i32
    %c0_i32_0 = arith.constant 0 : i32
    %c0_i32_1 = arith.constant 0 : i32
    %c0_i32_2 = arith.constant 0 : i32
    return %c0_i32, %c0_i32_0, %c0_i32_1 : i32, i32, i32
  }
  func.func @transform_2(%arg0: i32) -> (i32, i32) {
    %c0_i32 = arith.constant 0 : i32
    %c0_i32_0 = arith.constant 0 : i32
    %c0_i32_1 = arith.constant 0 : i32
    return %c0_i32, %c0_i32_0 : i32, i32
  }
  func.func @transform_3(%arg0: i32) -> (i32, i32) {
    %c0_i32 = arith.constant 0 : i32
    %c0_i32_0 = arith.constant 0 : i32
    %c0_i32_1 = arith.constant 0 : i32
    return %c0_i32, %c0_i32_0 : i32, i32
  }
  func.func @transform_4(%arg0: i32) -> (i32, i32, i32, i32) {
    %c0_i32 = arith.constant 0 : i32
    %c0_i32_0 = arith.constant 0 : i32
    %c0_i32_1 = arith.constant 0 : i32
    %c0_i32_2 = arith.constant 0 : i32
    return %arg0, %c0_i32, %c0_i32_0, %c0_i32_1 : i32, i32, i32, i32
  }
}

</mosaic_0001>

<llo_original>
// kernel: mobilevit_block_forward.9
$region0: #{mobilevit_block_forward.9}
  #allocation0 [shape = 'u32[]', space=smem, size = 0x4, offset = 0x4, fixed_abs, tag = 'smem constant byte address 0x4 - core index']
  #allocation1 [shape = 'u32[72,128]{1,0:T(1,128)}', space=vmem, size = 0x9000, scoped, tag = 'internal scratch']
  %s0 = inlined_call_operand.vmem [shape: f32[512,4], index: 0, kind: input, shape index: {}]
  %s1 = inlined_call_operand.vmem [shape: f32[4,16], index: 1, kind: input, shape index: {}]
  %s2 = inlined_call_operand.vmem [shape: f32[512,16], index: 2, kind: output, shape index: {}]
  %s3 = sld [smem:[#allocation0]]
  $region41: #{mobilevit_block_forward.9} parent=0
    _
  %s5 = ssub.s32 1, %s3
  %s6 = scalar_select 0, %s5, %s3
  loop: start=0, step=1, limit=4
  $region2: #{mobilevit_block_forward.9} parent=0 // loop_pre_header
    _
  $region3: #{mobilevit_block_forward.9} parent=0 // loop_header
    %s8 = sphi 0, %s12
    %p9 = scmp.ge.s32.totalorder %s8, 4
    %s15 = sphi 0, %s27
    %s16 = sphi 0, %s23
    %s17 = sphi 0, %s15
    %s18 = sphi 0, %s16
    %s19 = sphi 0, %s17
    %s20 = sphi 0, %s18
    %s30 = sphi 0, %s32
    %s33 = sphi 0, %s30
    %s34 = sphi 0, %s33
    %s50 = sphi 0, %s34
    %s56 = sphi 0, %s58
    %s59 = sphi 0, %s56
    %s60 = sphi 0, %s59
    %s76 = sphi 0, %s60
    %s84 = sphi 0, %s86
    %s87 = sphi 0, %s84
    %s88 = sphi 0, %s87
    %s104 = sphi 0, %s88
  $region4: #{mobilevit_block_forward.9} parent=0 // loop_header_branch
    %11 = sbr.rel (%p9) target = $region8
  $region5: #{mobilevit_block_forward.9} parent=0 // loop_body
    %s13 = ssub.s32 %s8, 1
    %s14 = ssub.s32 %s8, 2
    %s21 = sadd.s32 1, %s16
    %p22 = scmp.ge.s32.totalorder %s21, 1
    %s23 = scalar_select %p22, 0, %s21
    %s24 = sadd.s32 1, %s15
    %s25 = scalar_select %p22, %s24, %s15
    %p26 = scmp.ge.s32.totalorder %s25, 2
    %s27 = scalar_select %p26, 0, %s25
    %s28 = ssub.s32 %s15, %s27
    %p29 = scmp.eq.s32.totalorder %s28, 0
    %s31 = sadd.s32 %s30, 1
    %s32 = scalar_select %p29, %s30, %s31
    %p35 = pneg %p29
    %p36 = scmp.eq.s32.totalorder %s8, 1
    %p37 = por %p35, %p36
    %p38 = scmp.ne.s32.totalorder %s30, %s33
    %p39 = scmp.eq.s32.totalorder %s8, 0
    %p40 = por %p38, %p39
    %p41 = scmp.ne.s32.totalorder %s30, %s33
    %p42 = scmp.eq.s32.totalorder %s13, 1
    %p43 = por %p41, %p42
    %p44 = scmp.ne.s32.totalorder %s33, %s34
    %p45 = scmp.eq.s32.totalorder %s13, 0
    %p46 = por %p44, %p45
    %p47 = scmp.ne.s32.totalorder %s33, %s34
    %p48 = scmp.eq.s32.totalorder %s14, 1
    %p49 = por %p47, %p48
    %p51 = scmp.ne.s32.totalorder %s34, %s50
    %p52 = scmp.eq.s32.totalorder %s14, 0
    %p53 = por %p51, %p52
    %s54 = ssub.s32 %s16, %s23
    %p55 = scmp.eq.s32.totalorder %s54, 0
    %s57 = sadd.s32 %s56, 1
    %s58 = scalar_select %p55, %s56, %s57
    %p61 = pneg %p55
    %p62 = scmp.eq.s32.totalorder %s8, 1
    %p63 = por %p61, %p62
    %p64 = scmp.ne.s32.totalorder %s56, %s59
    %p65 = scmp.eq.s32.totalorder %s8, 0
    %p66 = por %p64, %p65
    %p67 = scmp.ne.s32.totalorder %s56, %s59
    %p68 = scmp.eq.s32.totalorder %s13, 1
    %p69 = por %p67, %p68
    %p70 = scmp.ne.s32.totalorder %s59, %s60
    %p71 = scmp.eq.s32.totalorder %s13, 0
    %p72 = por %p70, %p71
    %p73 = scmp.ne.s32.totalorder %s59, %s60
    %p74 = scmp.eq.s32.totalorder %s14, 1
    %p75 = por %p73, %p74
    %p77 = scmp.ne.s32.totalorder %s60, %s76
    %p78 = scmp.eq.s32.totalorder %s14, 0
    %p79 = por %p77, %p78
    %s80 = ssub.s32 %s15, %s27
    %s81 = ssub.s32 %s16, %s23
    %s82 = sor.u32 %s80, %s81
    %p83 = scmp.eq.s32.totalorder %s82, 0
    %s85 = sadd.s32 %s84, 1
    %s86 = scalar_select %p83, %s84, %s85
    %p89 = pneg %p83
    %p90 = scmp.eq.s32.totalorder %s8, 1
    %p91 = por %p89, %p90
    %p92 = scmp.ne.s32.totalorder %s84, %s87
    %p93 = scmp.eq.s32.totalorder %s8, 0
    %p94 = por %p92, %p93
    %p95 = scmp.ne.s32.totalorder %s84, %s87
    %p96 = scmp.eq.s32.totalorder %s13, 1
    %p97 = por %p95, %p96
    %p98 = scmp.ne.s32.totalorder %s87, %s88
    %p99 = scmp.eq.s32.totalorder %s13, 0
    %p100 = por %p98, %p99
    %p101 = scmp.ne.s32.totalorder %s87, %s88
    %p102 = scmp.eq.s32.totalorder %s14, 1
    %p103 = por %p101, %p102
    %p105 = scmp.ne.s32.totalorder %s88, %s104
    %p106 = scmp.eq.s32.totalorder %s14, 0
    %p107 = por %p105, %p106
    %p108 = scmp.le.s32.totalorder 1, %s8
    %p109 = scmp.lt.s32.totalorder %s8, 3
    %p110 = pnand %p108, %p109
    %p111 = pneg %p110
    // Predicated region
    $region9: #{mobilevit_block_forward.9} parent=5 // pred_check
      _
    $region10: #{mobilevit_block_forward.9} parent=5 // pred_check_branch
      %113 = sbr.rel (%p110) target = $region12
    $region11: #{mobilevit_block_forward.9} parent=5 // pred_region
      %s114 = ssub.s32 %s8, 1
      // Predicated region
      $region13: #{mobilevit_block_forward.9} parent=11 // pred_check
        %p115 = pneg %p72
      $region14: #{mobilevit_block_forward.9} parent=11 // pred_check_branch
        %117 = sbr.rel (%p115) target = $region16
      $region15: #{mobilevit_block_forward.9} parent=11 // pred_region
        %p118 = scmp.lt.s32.totalorder %s18, 0
        %s119 = scalar_select %p118, %s18, 0
        %s120 = smul.addr %s119, 4
        %s121 = scalar_lea.vmem %s1, %s120
      $region16: #{mobilevit_block_forward.9} parent=11 // pred_fallthru
        _
    $region12: #{mobilevit_block_forward.9} parent=5 // pred_fallthru
      _
    %p122 = scmp.lt.s32.totalorder %s8, 2
    // Predicated region
    $region17: #{mobilevit_block_forward.9} parent=5 // pred_check
      %p123 = pneg %p122
    $region18: #{mobilevit_block_forward.9} parent=5 // pred_check_branch
      %125 = sbr.rel (%p123) target = $region20
    $region19: #{mobilevit_block_forward.9} parent=5 // pred_region
      // Predicated region
      $region21: #{mobilevit_block_forward.9} parent=19 // pred_check
        %p126 = pneg %p40
      $region22: #{mobilevit_block_forward.9} parent=19 // pred_check_branch
        %128 = sbr.rel (%p126) target = $region24
      $region23: #{mobilevit_block_forward.9} parent=19 // pred_region
        %s129 = smul.u32 32, %s15
        %p130 = scmp.lt.s32.totalorder %s129, 63
        %s131 = scalar_select %p130, %s129, 63
        %s132 = smul.addr %s131, 8
        %s133 = scalar_lea.vmem %s0, %s132
        %s134 = smul.u32 32, %s15
      $region24: #{mobilevit_block_forward.9} parent=19 // pred_fallthru
        _
    $region20: #{mobilevit_block_forward.9} parent=5 // pred_fallthru
      _
    %p135 = scmp.le.s32.totalorder 1, %s8
    %p136 = scmp.lt.s32.totalorder %s8, 3
    %p137 = pnand %p135, %p136
    %p138 = pneg %p137
    // Predicated region
    $region25: #{mobilevit_block_forward.9} parent=5 // pred_check
      _
    $region26: #{mobilevit_block_forward.9} parent=5 // pred_check_branch
      %140 = sbr.rel (%p137) target = $region28
    $region27: #{mobilevit_block_forward.9} parent=5 // pred_region
      %s141 = ssub.s32 %s8, 1
      %s142 = smul.u32 32, %s17
      %p143 = scmp.lt.s32.totalorder %s142, 63
      %s144 = scalar_select %p143, %s142, 63
      %s145 = smul.addr %s144, 8
      %s146 = scalar_lea.vmem %s0, %s145
      %p147 = pneg %p46
      %p148 = pneg %p43
      %p149 = scmp.lt.s32.totalorder %s18, 0
      %s150 = scalar_select %p149, %s18, 0
      %s151 = smul.addr %s150, 4
      %s152 = scalar_lea.vmem %s1, %s151
      %p153 = pneg %p72
      %p154 = pneg %p69
      %p155 = pneg %p100
      %p156 = pneg %p97
      %s157 = smul.u32 32, %s17
      %p158 = scmp.lt.s32.totalorder %s157, 63
      %s159 = scalar_select %p158, %s157, 63
      %p160 = scmp.lt.s32.totalorder %s18, 0
      %s161 = scalar_select %p160, %s18, 0
      %s162 = sadd.s32 %s161, %s159
      %s163 = smul.addr %s162, 8
      %s164 = scalar_lea.vmem %s2, %s163
      %s165 = smul.u32 32, %s17
      %p166 = scmp.lt.s32.totalorder %s165, 63
      %s167 = scalar_select %p166, %s165, 63
      %s168 = smul.addr %s167, 8
      %s169 = scalar_lea.vmem %s0, %s168
      %s170 = smul.u32 32, %s17
      %p171 = scmp.lt.s32.totalorder %s18, 0
      %s172 = scalar_select %p171, %s18, 0
      %s173 = smul.addr %s172, 4
      %s174 = scalar_lea.vmem %s1, %s173
      %s175 = smul.u32 32, %s17
      %p176 = scmp.lt.s32.totalorder %s175, 63
      %s177 = scalar_select %p176, %s175, 63
      %p178 = scmp.lt.s32.totalorder %s18, 0
      %s179 = scalar_select %p178, %s18, 0
      %s180 = sadd.s32 %s179, %s177
      %s181 = smul.addr %s180, 8
      %s182 = scalar_lea.vmem %s2, %s181
      %s183 = smul.u32 32, %s17
      %v185 = vld [vmem:[%s169] sm:$0xff]
      %v186 = vld [vmem:[%s169 + $0x8] sm:$0xff]
      %v187 = vld [vmem:[%s169 + $0x10] sm:$0xff]
      %v188 = vld [vmem:[%s169 + $0x18] sm:$0xff]
      %v189 = vld [vmem:[%s169 + $0x20] sm:$0xff]
      %v190 = vld [vmem:[%s169 + $0x28] sm:$0xff]
      %v191 = vld [vmem:[%s169 + $0x30] sm:$0xff]
      %v192 = vld [vmem:[%s169 + $0x38] sm:$0xff]
      %v193 = vld [vmem:[%s169 + $0x40] sm:$0xff]
      %v194 = vld [vmem:[%s169 + $0x48] sm:$0xff]
      %v195 = vld [vmem:[%s169 + $0x50] sm:$0xff]
      %v196 = vld [vmem:[%s169 + $0x58] sm:$0xff]
      %v197 = vld [vmem:[%s169 + $0x60] sm:$0xff]
      %v198 = vld [vmem:[%s169 + $0x68] sm:$0xff]
      %v199 = vld [vmem:[%s169 + $0x70] sm:$0xff]
      %v200 = vld [vmem:[%s169 + $0x78] sm:$0xff]
      %v201 = vld [vmem:[%s169 + $0x80] sm:$0xff]
      %v202 = vld [vmem:[%s169 + $0x88] sm:$0xff]
      %v203 = vld [vmem:[%s169 + $0x90] sm:$0xff]
      %v204 = vld [vmem:[%s169 + $0x98] sm:$0xff]
      %v205 = vld [vmem:[%s169 + $0xa0] sm:$0xff]
      %v206 = vld [vmem:[%s169 + $0xa8] sm:$0xff]
      %v207 = vld [vmem:[%s169 + $0xb0] sm:$0xff]
      %v208 = vld [vmem:[%s169 + $0xb8] sm:$0xff]
      %v209 = vld [vmem:[%s169 + $0xc0] sm:$0xff]
      %v210 = vld [vmem:[%s169 + $0xc8] sm:$0xff]
      %v211 = vld [vmem:[%s169 + $0xd0] sm:$0xff]
      %v212 = vld [vmem:[%s169 + $0xd8] sm:$0xff]
      %v213 = vld [vmem:[%s169 + $0xe0] sm:$0xff]
      %v214 = vld [vmem:[%s169 + $0xe8] sm:$0xff]
      %v215 = vld [vmem:[%s169 + $0xf0] sm:$0xff]
      %v216 = vld [vmem:[%s169 + $0xf8] sm:$0xff]
      %v217 = vpack.c.bf16 %v186, %v185
      %v218 = vpack.c.bf16 %v188, %v187
      %v219 = vpack.c.bf16 %v190, %v189
      %v220 = vpack.c.bf16 %v192, %v191
      %v221 = vpack.c.bf16 %v194, %v193
      %v222 = vpack.c.bf16 %v196, %v195
      %v223 = vpack.c.bf16 %v198, %v197
      %v224 = vpack.c.bf16 %v200, %v199
      %v225 = vpack.c.bf16 %v202, %v201
      %v226 = vpack.c.bf16 %v204, %v203
      %v227 = vpack.c.bf16 %v206, %v205
      %v228 = vpack.c.bf16 %v208, %v207
      %v229 = vpack.c.bf16 %v210, %v209
      %v230 = vpack.c.bf16 %v212, %v211
      %v231 = vpack.c.bf16 %v214, %v213
      %v232 = vpack.c.bf16 %v216, %v215
      %v233 = vld [vmem:[%s174] sm:$0xf]
      %v234 = vpack.c.bf16 %v233, %v233
      %vm235 = vcmask 31744
      %v237 = vsel %vm235, %v217, 0
      %v240 = vsel %vm235, %v218, 0
      %v243 = vsel %vm235, %v219, 0
      %v246 = vsel %vm235, %v220, 0
      %v249 = vsel %vm235, %v221, 0
      %v252 = vsel %vm235, %v222, 0
      %v255 = vsel %vm235, %v223, 0
      %v258 = vsel %vm235, %v224, 0
      %v261 = vsel %vm235, %v225, 0
      %v264 = vsel %vm235, %v226, 0
      %v267 = vsel %vm235, %v227, 0
      %v270 = vsel %vm235, %v228, 0
      %v273 = vsel %vm235, %v229, 0
      %v276 = vsel %vm235, %v230, 0
      %v279 = vsel %vm235, %v231, 0
      %v282 = vsel %vm235, %v232, 0
      %vm284 = vcmask 1041408
      %v286 = vsel %vm284, %v234, 0
      %288 = vmatpush.bf16.msra.mxu0 0
      %289 = vmatpush.bf16.msra.mxu0 0
      %290 = vmatpush.bf16.msra.mxu0 0
      %291 = vmatpush.bf16.msra.mxu0 0
      %292 = vmatpush.bf16.msra.mxu0 0
      %293 = vmatpush.bf16.msra.mxu0 0
      %294 = vmatpush.bf16.msra.mxu0 0
      %295 = vmatpush.bf16.msra.mxu0 %v286
      %296 = vmatmul.bf16.gmra.mxu0 %v237
      %v297 = vpop.f32.mrf.mxu0
      %v298 = vadd.f32 0.0, %v297
      %v299 = vpop.f32.mrf.mxu0
      %v300 = vadd.f32 0.0, %v299
      %301 = vmatmul.bf16.gmra.mxu0 %v240
      %v302 = vpop.f32.mrf.mxu0
      %v303 = vadd.f32 0.0, %v302
      %v304 = vpop.f32.mrf.mxu0
      %v305 = vadd.f32 0.0, %v304
      %306 = vmatmul.bf16.gmra.mxu0 %v243
      %v307 = vpop.f32.mrf.mxu0
      %v308 = vadd.f32 0.0, %v307
      %v309 = vpop.f32.mrf.mxu0
      %v310 = vadd.f32 0.0, %v309
      %311 = vmatmul.bf16.gmra.mxu0 %v246
      %v312 = vpop.f32.mrf.mxu0
      %v313 = vadd.f32 0.0, %v312
      %v314 = vpop.f32.mrf.mxu0
      %v315 = vadd.f32 0.0, %v314
      %316 = vmatmul.bf16.gmra.mxu0 %v249
      %v317 = vpop.f32.mrf.mxu0
      %v318 = vadd.f32 0.0, %v317
      %v319 = vpop.f32.mrf.mxu0
      %v320 = vadd.f32 0.0, %v319
      %321 = vmatmul.bf16.gmra.mxu0 %v252
      %v322 = vpop.f32.mrf.mxu0
      %v323 = vadd.f32 0.0, %v322
      %v324 = vpop.f32.mrf.mxu0
      %v325 = vadd.f32 0.0, %v324
      %326 = vmatmul.bf16.gmra.mxu0 %v255
      %v327 = vpop.f32.mrf.mxu0
      %v328 = vadd.f32 0.0, %v327
      %v329 = vpop.f32.mrf.mxu0
      %v330 = vadd.f32 0.0, %v329
      %331 = vmatmul.bf16.gmra.mxu0 %v258
      %v332 = vpop.f32.mrf.mxu0
      %v333 = vadd.f32 0.0, %v332
      %v334 = vpop.f32.mrf.mxu0
      %v335 = vadd.f32 0.0, %v334
      %336 = vmatmul.bf16.gmra.mxu0 %v261
      %v337 = vpop.f32.mrf.mxu0
      %v338 = vadd.f32 0.0, %v337
      %v339 = vpop.f32.mrf.mxu0
      %v340 = vadd.f32 0.0, %v339
      %341 = vmatmul.bf16.gmra.mxu0 %v264
      %v342 = vpop.f32.mrf.mxu0
      %v343 = vadd.f32 0.0, %v342
      %v344 = vpop.f32.mrf.mxu0
      %v345 = vadd.f32 0.0, %v344
      %346 = vmatmul.bf16.gmra.mxu0 %v267
      %v347 = vpop.f32.mrf.mxu0
      %v348 = vadd.f32 0.0, %v347
      %v349 = vpop.f32.mrf.mxu0
      %v350 = vadd.f32 0.0, %v349
      %351 = vmatmul.bf16.gmra.mxu0 %v270
      %v352 = vpop.f32.mrf.mxu0
      %v353 = vadd.f32 0.0, %v352
      %v354 = vpop.f32.mrf.mxu0
      %v355 = vadd.f32 0.0, %v354
      %356 = vmatmul.bf16.gmra.mxu0 %v273
      %v357 = vpop.f32.mrf.mxu0
      %v358 = vadd.f32 0.0, %v357
      %v359 = vpop.f32.mrf.mxu0
      %v360 = vadd.f32 0.0, %v359
      %361 = vmatmul.bf16.gmra.mxu0 %v276
      %v362 = vpop.f32.mrf.mxu0
      %v363 = vadd.f32 0.0, %v362
      %v364 = vpop.f32.mrf.mxu0
      %v365 = vadd.f32 0.0, %v364
      %366 = vmatmul.bf16.gmra.mxu0 %v279
      %v367 = vpop.f32.mrf.mxu0
      %v368 = vadd.f32 0.0, %v367
      %v369 = vpop.f32.mrf.mxu0
      %v370 = vadd.f32 0.0, %v369
      %371 = vmatmul.bf16.gmra.mxu0 %v282
      %v372 = vpop.f32.mrf.mxu0
      %v373 = vadd.f32 0.0, %v372
      %v374 = vpop.f32.mrf.mxu0
      %v375 = vadd.f32 0.0, %v374
      %376 = vdwg.mxu0
      %vm377 = vcmask 130048
      %378 = vst.msk [vmem:[%s182] sm:$0xff] %vm377, %v298
      %379 = vst.msk [vmem:[%s182 + $0x8] sm:$0xff] %vm377, %v300
      %380 = vst.msk [vmem:[%s182 + $0x10] sm:$0xff] %vm377, %v303
      %381 = vst.msk [vmem:[%s182 + $0x18] sm:$0xff] %vm377, %v305
      %382 = vst.msk [vmem:[%s182 + $0x20] sm:$0xff] %vm377, %v308
      %383 = vst.msk [vmem:[%s182 + $0x28] sm:$0xff] %vm377, %v310
      %384 = vst.msk [vmem:[%s182 + $0x30] sm:$0xff] %vm377, %v313
      %385 = vst.msk [vmem:[%s182 + $0x38] sm:$0xff] %vm377, %v315
      %386 = vst.msk [vmem:[%s182 + $0x40] sm:$0xff] %vm377, %v318
      %387 = vst.msk [vmem:[%s182 + $0x48] sm:$0xff] %vm377, %v320
      %388 = vst.msk [vmem:[%s182 + $0x50] sm:$0xff] %vm377, %v323
      %389 = vst.msk [vmem:[%s182 + $0x58] sm:$0xff] %vm377, %v325
      %390 = vst.msk [vmem:[%s182 + $0x60] sm:$0xff] %vm377, %v328
      %391 = vst.msk [vmem:[%s182 + $0x68] sm:$0xff] %vm377, %v330
      %392 = vst.msk [vmem:[%s182 + $0x70] sm:$0xff] %vm377, %v333
      %393 = vst.msk [vmem:[%s182 + $0x78] sm:$0xff] %vm377, %v335
      %394 = vst.msk [vmem:[%s182 + $0x80] sm:$0xff] %vm377, %v338
      %395 = vst.msk [vmem:[%s182 + $0x88] sm:$0xff] %vm377, %v340
      %396 = vst.msk [vmem:[%s182 + $0x90] sm:$0xff] %vm377, %v343
      %397 = vst.msk [vmem:[%s182 + $0x98] sm:$0xff] %vm377, %v345
      %398 = vst.msk [vmem:[%s182 + $0xa0] sm:$0xff] %vm377, %v348
      %399 = vst.msk [vmem:[%s182 + $0xa8] sm:$0xff] %vm377, %v350
      %400 = vst.msk [vmem:[%s182 + $0xb0] sm:$0xff] %vm377, %v353
      %401 = vst.msk [vmem:[%s182 + $0xb8] sm:$0xff] %vm377, %v355
      %402 = vst.msk [vmem:[%s182 + $0xc0] sm:$0xff] %vm377, %v358
      %403 = vst.msk [vmem:[%s182 + $0xc8] sm:$0xff] %vm377, %v360
      %404 = vst.msk [vmem:[%s182 + $0xd0] sm:$0xff] %vm377, %v363
      %405 = vst.msk [vmem:[%s182 + $0xd8] sm:$0xff] %vm377, %v365
      %406 = vst.msk [vmem:[%s182 + $0xe0] sm:$0xff] %vm377, %v368
      %407 = vst.msk [vmem:[%s182 + $0xe8] sm:$0xff] %vm377, %v370
      %408 = vst.msk [vmem:[%s182 + $0xf0] sm:$0xff] %vm377, %v373
      %409 = vst.msk [vmem:[%s182 + $0xf8] sm:$0xff] %vm377, %v375
      %s410 = smul.u32 32, %s17
      %p411 = scmp.lt.s32.totalorder %s410, 63
      %s412 = scalar_select %p411, %s410, 63
      %p413 = scmp.lt.s32.totalorder %s18, 0
      %s414 = scalar_select %p413, %s18, 0
      %s415 = sadd.s32 %s414, %s412
      %s416 = smul.addr %s415, 8
      %s417 = scalar_lea.vmem %s2, %s416
      // Predicated region
      $region29: #{mobilevit_block_forward.9} parent=27 // pred_check
        %p418 = pneg %p97
      $region30: #{mobilevit_block_forward.9} parent=27 // pred_check_branch
        %420 = sbr.rel (%p418) target = $region32
      $region31: #{mobilevit_block_forward.9} parent=27 // pred_region
        %s421 = smul.u32 32, %s17
      $region32: #{mobilevit_block_forward.9} parent=27 // pred_fallthru
        _
    $region28: #{mobilevit_block_forward.9} parent=5 // pred_fallthru
      _
    %p422 = scmp.le.s32.totalorder 2, %s8
    // Predicated region
    $region33: #{mobilevit_block_forward.9} parent=5 // pred_check
      %p423 = pneg %p422
    $region34: #{mobilevit_block_forward.9} parent=5 // pred_check_branch
      %425 = sbr.rel (%p423) target = $region36
    $region35: #{mobilevit_block_forward.9} parent=5 // pred_region
      %s426 = ssub.s32 %s8, 2
      // Predicated region
      $region37: #{mobilevit_block_forward.9} parent=35 // pred_check
        %p427 = pneg %p103
      $region38: #{mobilevit_block_forward.9} parent=35 // pred_check_branch
        %429 = sbr.rel (%p427) target = $region40
      $region39: #{mobilevit_block_forward.9} parent=35 // pred_region
        %s430 = smul.u32 32, %s19
        %p431 = scmp.lt.s32.totalorder %s430, 63
        %s432 = scalar_select %p431, %s430, 63
        %p433 = scmp.lt.s32.totalorder %s20, 0
        %s434 = scalar_select %p433, %s20, 0
        %s435 = sadd.s32 %s434, %s432
        %s436 = smul.addr %s435, 8
        %s437 = scalar_lea.vmem %s2, %s436
      $region40: #{mobilevit_block_forward.9} parent=35 // pred_fallthru
        _
    $region36: #{mobilevit_block_forward.9} parent=5 // pred_fallthru
      _
  $region6: #{mobilevit_block_forward.9} parent=0 // loop_footer
    %s12 = sadd.s32 1, %s8
  $region7: #{mobilevit_block_forward.9} parent=0 // loop_footer_branch
    %7 = sbr.rel target = $region3
  $region8: #{mobilevit_block_forward.9} parent=0 // loop_exit
    _

// kernel: mobilevit_block_forward.11
$region0: #{mobilevit_block_forward.11}
  #allocation0 [shape = 'u32[]', space=smem, size = 0x4, offset = 0x4, fixed_abs, tag = 'smem constant byte address 0x4 - core index']
  #allocation1 [shape = 'u32[72,128]{1,0:T(1,128)}', space=vmem, size = 0x9000, scoped, tag = 'internal scratch']
  %s0 = inlined_call_operand.vmem [shape: f32[512,16], index: 0, kind: input, shape index: {}]
  %s1 = inlined_call_operand.vmem [shape: f32[1,16], index: 1, kind: input, shape index: {}]
  %s2 = inlined_call_operand.vmem [shape: f32[1,16], index: 2, kind: input, shape index: {}]
  %s3 = inlined_call_operand.vmem [shape: f32[16,32], index: 3, kind: input, shape index: {}]
  %s4 = inlined_call_operand.vmem [shape: f32[1,32], index: 4, kind: input, shape index: {}]
  %s5 = inlined_call_operand.vmem [shape: f32[32,16], index: 5, kind: input, shape index: {}]
  %s6 = inlined_call_operand.vmem [shape: f32[1,16], index: 6, kind: input, shape index: {}]
  %s7 = inlined_call_operand.vmem [shape: f32[512,16], index: 7, kind: output, shape index: {}]
  %s8 = sld [smem:[#allocation0]]
  $region61: #{mobilevit_block_forward.11} parent=0
    _
  %s10 = ssub.s32 1, %s8
  %s11 = scalar_select 0, %s10, %s8
  loop: start=0, step=1, limit=4
  $region2: #{mobilevit_block_forward.11} parent=0 // loop_pre_header
    _
  $region3: #{mobilevit_block_forward.11} parent=0 // loop_header
    %s13 = sphi 0, %s17
    %p14 = scmp.ge.s32.totalorder %s13, 4
    %s23 = sphi 0, %s25
    %s26 = sphi 0, %s23
    %s27 = sphi 0, %s26
    %s43 = sphi 0, %s27
    %s47 = sphi 0, %s47
    %s49 = sphi 0, %s47
    %s50 = sphi 0, %s49
    %s64 = sphi 0, %s50
    %s68 = sphi 0, %s68
    %s70 = sphi 0, %s68
    %s71 = sphi 0, %s70
    %s85 = sphi 0, %s71
    %s89 = sphi 0, %s89
    %s91 = sphi 0, %s89
    %s92 = sphi 0, %s91
    %s106 = sphi 0, %s92
    %s110 = sphi 0, %s110
    %s112 = sphi 0, %s110
    %s113 = sphi 0, %s112
    %s127 = sphi 0, %s113
    %s131 = sphi 0, %s131
    %s133 = sphi 0, %s131
    %s134 = sphi 0, %s133
    %s148 = sphi 0, %s134
    %s152 = sphi 0, %s152
    %s154 = sphi 0, %s152
    %s155 = sphi 0, %s154
    %s169 = sphi 0, %s155
    %s175 = sphi 0, %s177
    %s178 = sphi 0, %s175
    %s179 = sphi 0, %s178
    %s195 = sphi 0, %s179
  $region4: #{mobilevit_block_forward.11} parent=0 // loop_header_branch
    %16 = sbr.rel (%p14) target = $region8
  $region5: #{mobilevit_block_forward.11} parent=0 // loop_body
    %s18 = ssub.s32 %s13, 1
    %s19 = ssub.s32 %s13, 2
    %s20 = sadd.s32 %s13, 1
    %s21 = ssub.s32 %s13, %s20
    %p22 = scmp.eq.s32.totalorder %s21, 0
    %s24 = sadd.s32 %s23, 1
    %s25 = scalar_select %p22, %s23, %s24
    %p28 = pneg %p22
    %p29 = scmp.eq.s32.totalorder %s13, 1
    %p30 = por %p28, %p29
    %p31 = scmp.ne.s32.totalorder %s23, %s26
    %p32 = scmp.eq.s32.totalorder %s13, 0
    %p33 = por %p31, %p32
    %p34 = scmp.ne.s32.totalorder %s23, %s26
    %p35 = scmp.eq.s32.totalorder %s18, 1
    %p36 = por %p34, %p35
    %p37 = scmp.ne.s32.totalorder %s26, %s27
    %p38 = scmp.eq.s32.totalorder %s18, 0
    %p39 = por %p37, %p38
    %p40 = scmp.ne.s32.totalorder %s26, %s27
    %p41 = scmp.eq.s32.totalorder %s19, 1
    %p42 = por %p40, %p41
    %p44 = scmp.ne.s32.totalorder %s27, %s43
    %p45 = scmp.eq.s32.totalorder %s19, 0
    %p46 = por %p44, %p45
    %s48 = sadd.s32 %s47, 1
    %p51 = scmp.eq.s32.totalorder %s13, 1
    %p52 = scmp.ne.s32.totalorder %s47, %s49
    %p53 = scmp.eq.s32.totalorder %s13, 0
    %p54 = por %p52, %p53
    %p55 = scmp.ne.s32.totalorder %s47, %s49
    %p56 = scmp.eq.s32.totalorder %s18, 1
    %p57 = por %p55, %p56
    %p58 = scmp.ne.s32.totalorder %s49, %s50
    %p59 = scmp.eq.s32.totalorder %s18, 0
    %p60 = por %p58, %p59
    %p61 = scmp.ne.s32.totalorder %s49, %s50
    %p62 = scmp.eq.s32.totalorder %s19, 1
    %p63 = por %p61, %p62
    %p65 = scmp.ne.s32.totalorder %s50, %s64
    %p66 = scmp.eq.s32.totalorder %s19, 0
    %p67 = por %p65, %p66
    %s69 = sadd.s32 %s68, 1
    %p72 = scmp.eq.s32.totalorder %s13, 1
    %p73 = scmp.ne.s32.totalorder %s68, %s70
    %p74 = scmp.eq.s32.totalorder %s13, 0
    %p75 = por %p73, %p74
    %p76 = scmp.ne.s32.totalorder %s68, %s70
    %p77 = scmp.eq.s32.totalorder %s18, 1
    %p78 = por %p76, %p77
    %p79 = scmp.ne.s32.totalorder %s70, %s71
    %p80 = scmp.eq.s32.totalorder %s18, 0
    %p81 = por %p79, %p80
    %p82 = scmp.ne.s32.totalorder %s70, %s71
    %p83 = scmp.eq.s32.totalorder %s19, 1
    %p84 = por %p82, %p83
    %p86 = scmp.ne.s32.totalorder %s71, %s85
    %p87 = scmp.eq.s32.totalorder %s19, 0
    %p88 = por %p86, %p87
    %s90 = sadd.s32 %s89, 1
    %p93 = scmp.eq.s32.totalorder %s13, 1
    %p94 = scmp.ne.s32.totalorder %s89, %s91
    %p95 = scmp.eq.s32.totalorder %s13, 0
    %p96 = por %p94, %p95
    %p97 = scmp.ne.s32.totalorder %s89, %s91
    %p98 = scmp.eq.s32.totalorder %s18, 1
    %p99 = por %p97, %p98
    %p100 = scmp.ne.s32.totalorder %s91, %s92
    %p101 = scmp.eq.s32.totalorder %s18, 0
    %p102 = por %p100, %p101
    %p103 = scmp.ne.s32.totalorder %s91, %s92
    %p104 = scmp.eq.s32.totalorder %s19, 1
    %p105 = por %p103, %p104
    %p107 = scmp.ne.s32.totalorder %s92, %s106
    %p108 = scmp.eq.s32.totalorder %s19, 0
    %p109 = por %p107, %p108
    %s111 = sadd.s32 %s110, 1
    %p114 = scmp.eq.s32.totalorder %s13, 1
    %p115 = scmp.ne.s32.totalorder %s110, %s112
    %p116 = scmp.eq.s32.totalorder %s13, 0
    %p117 = por %p115, %p116
    %p118 = scmp.ne.s32.totalorder %s110, %s112
    %p119 = scmp.eq.s32.totalorder %s18, 1
    %p120 = por %p118, %p119
    %p121 = scmp.ne.s32.totalorder %s112, %s113
    %p122 = scmp.eq.s32.totalorder %s18, 0
    %p123 = por %p121, %p122
    %p124 = scmp.ne.s32.totalorder %s112, %s113
    %p125 = scmp.eq.s32.totalorder %s19, 1
    %p126 = por %p124, %p125
    %p128 = scmp.ne.s32.totalorder %s113, %s127
    %p129 = scmp.eq.s32.totalorder %s19, 0
    %p130 = por %p128, %p129
    %s132 = sadd.s32 %s131, 1
    %p135 = scmp.eq.s32.totalorder %s13, 1
    %p136 = scmp.ne.s32.totalorder %s131, %s133
    %p137 = scmp.eq.s32.totalorder %s13, 0
    %p138 = por %p136, %p137
    %p139 = scmp.ne.s32.totalorder %s131, %s133
    %p140 = scmp.eq.s32.totalorder %s18, 1
    %p141 = por %p139, %p140
    %p142 = scmp.ne.s32.totalorder %s133, %s134
    %p143 = scmp.eq.s32.totalorder %s18, 0
    %p144 = por %p142, %p143
    %p145 = scmp.ne.s32.totalorder %s133, %s134
    %p146 = scmp.eq.s32.totalorder %s19, 1
    %p147 = por %p145, %p146
    %p149 = scmp.ne.s32.totalorder %s134, %s148
    %p150 = scmp.eq.s32.totalorder %s19, 0
    %p151 = por %p149, %p150
    %s153 = sadd.s32 %s152, 1
    %p156 = scmp.eq.s32.totalorder %s13, 1
    %p157 = scmp.ne.s32.totalorder %s152, %s154
    %p158 = scmp.eq.s32.totalorder %s13, 0
    %p159 = por %p157, %p158
    %p160 = scmp.ne.s32.totalorder %s152, %s154
    %p161 = scmp.eq.s32.totalorder %s18, 1
    %p162 = por %p160, %p161
    %p163 = scmp.ne.s32.totalorder %s154, %s155
    %p164 = scmp.eq.s32.totalorder %s18, 0
    %p165 = por %p163, %p164
    %p166 = scmp.ne.s32.totalorder %s154, %s155
    %p167 = scmp.eq.s32.totalorder %s19, 1
    %p168 = por %p166, %p167
    %p170 = scmp.ne.s32.totalorder %s155, %s169
    %p171 = scmp.eq.s32.totalorder %s19, 0
    %p172 = por %p170, %p171
    %s173 = ssub.s32 %s13, %s20
    %p174 = scmp.eq.s32.totalorder %s173, 0
    %s176 = sadd.s32 %s175, 1
    %s177 = scalar_select %p174, %s175, %s176
    %p180 = pneg %p174
    %p181 = scmp.eq.s32.totalorder %s13, 1
    %p182 = por %p180, %p181
    %p183 = scmp.ne.s32.totalorder %s175, %s178
    %p184 = scmp.eq.s32.totalorder %s13, 0
    %p185 = por %p183, %p184
    %p186 = scmp.ne.s32.totalorder %s175, %s178
    %p187 = scmp.eq.s32.totalorder %s18, 1
    %p188 = por %p186, %p187
    %p189 = scmp.ne.s32.totalorder %s178, %s179
    %p190 = scmp.eq.s32.totalorder %s18, 0
    %p191 = por %p189, %p190
    %p192 = scmp.ne.s32.totalorder %s178, %s179
    %p193 = scmp.eq.s32.totalorder %s19, 1
    %p194 = por %p192, %p193
    %p196 = scmp.ne.s32.totalorder %s179, %s195
    %p197 = scmp.eq.s32.totalorder %s19, 0
    %p198 = por %p196, %p197
    %p199 = scmp.le.s32.totalorder 1, %s13
    %p200 = scmp.lt.s32.totalorder %s13, 3
    %p201 = pnand %p199, %p200
    %p202 = pneg %p201
    // Predicated region
    $region9: #{mobilevit_block_forward.11} parent=5 // pred_check
      _
    $region10: #{mobilevit_block_forward.11} parent=5 // pred_check_branch
      %204 = sbr.rel (%p201) target = $region12
    $region11: #{mobilevit_block_forward.11} parent=5 // pred_region
      %s205 = ssub.s32 %s13, 1
      // Predicated region
      $region13: #{mobilevit_block_forward.11} parent=11 // pred_check
        %p206 = pneg %p60
      $region14: #{mobilevit_block_forward.11} parent=11 // pred_check_branch
        %208 = sbr.rel (%p206) target = $region16
      $region15: #{mobilevit_block_forward.11} parent=11 // pred_region
        _
      $region16: #{mobilevit_block_forward.11} parent=11 // pred_fallthru
        _
      // Predicated region
      $region17: #{mobilevit_block_forward.11} parent=11 // pred_check
        %p209 = pneg %p81
      $region18: #{mobilevit_block_forward.11} parent=11 // pred_check_branch
        %211 = sbr.rel (%p209) target = $region20
      $region19: #{mobilevit_block_forward.11} parent=11 // pred_region
        _
      $region20: #{mobilevit_block_forward.11} parent=11 // pred_fallthru
        _
      // Predicated region
      $region21: #{mobilevit_block_forward.11} parent=11 // pred_check
        %p212 = pneg %p102
      $region22: #{mobilevit_block_forward.11} parent=11 // pred_check_branch
        %214 = sbr.rel (%p212) target = $region24
      $region23: #{mobilevit_block_forward.11} parent=11 // pred_region
        _
      $region24: #{mobilevit_block_forward.11} parent=11 // pred_fallthru
        _
      // Predicated region
      $region25: #{mobilevit_block_forward.11} parent=11 // pred_check
        %p215 = pneg %p123
      $region26: #{mobilevit_block_forward.11} parent=11 // pred_check_branch
        %217 = sbr.rel (%p215) target = $region28
      $region27: #{mobilevit_block_forward.11} parent=11 // pred_region
        _
      $region28: #{mobilevit_block_forward.11} parent=11 // pred_fallthru
        _
      // Predicated region
      $region29: #{mobilevit_block_forward.11} parent=11 // pred_check
        %p218 = pneg %p144
      $region30: #{mobilevit_block_forward.11} parent=11 // pred_check_branch
        %220 = sbr.rel (%p218) target = $region32
      $region31: #{mobilevit_block_forward.11} parent=11 // pred_region
        _
      $region32: #{mobilevit_block_forward.11} parent=11 // pred_fallthru
        _
      // Predicated region
      $region33: #{mobilevit_block_forward.11} parent=11 // pred_check
        %p221 = pneg %p165
      $region34: #{mobilevit_block_forward.11} parent=11 // pred_check_branch
        %223 = sbr.rel (%p221) target = $region36
      $region35: #{mobilevit_block_forward.11} parent=11 // pred_region
        _
      $region36: #{mobilevit_block_forward.11} parent=11 // pred_fallthru
        _
    $region12: #{mobilevit_block_forward.11} parent=5 // pred_fallthru
      _
    %p224 = scmp.lt.s32.totalorder %s13, 2
    // Predicated region
    $region37: #{mobilevit_block_forward.11} parent=5 // pred_check
      %p225 = pneg %p224
    $region38: #{mobilevit_block_forward.11} parent=5 // pred_check_branch
      %227 = sbr.rel (%p225) target = $region40
    $region39: #{mobilevit_block_forward.11} parent=5 // pred_region
      // Predicated region
      $region41: #{mobilevit_block_forward.11} parent=39 // pred_check
        %p228 = pneg %p33
      $region42: #{mobilevit_block_forward.11} parent=39 // pred_check_branch
        %230 = sbr.rel (%p228) target = $region44
      $region43: #{mobilevit_block_forward.11} parent=39 // pred_region
        %s231 = smul.u32 32, %s13
        %p232 = scmp.lt.s32.totalorder %s231, 63
        %s233 = scalar_select %p232, %s231, 63
        %s234 = smul.addr %s233, 8
        %s235 = scalar_lea.vmem %s0, %s234
        %s236 = smul.u32 32, %s13
      $region44: #{mobilevit_block_forward.11} parent=39 // pred_fallthru
        _
    $region40: #{mobilevit_block_forward.11} parent=5 // pred_fallthru
      _
    %p237 = scmp.le.s32.totalorder 1, %s13
    %p238 = scmp.lt.s32.totalorder %s13, 3
    %p239 = pnand %p237, %p238
    %p240 = pneg %p239
    // Predicated region
    $region45: #{mobilevit_block_forward.11} parent=5 // pred_check
      _
    $region46: #{mobilevit_block_forward.11} parent=5 // pred_check_branch
      %242 = sbr.rel (%p239) target = $region48
    $region47: #{mobilevit_block_forward.11} parent=5 // pred_region
      %s243 = ssub.s32 %s13, 1
      %s244 = smul.u32 32, %s18
      %p245 = scmp.lt.s32.totalorder %s244, 63
      %s246 = scalar_select %p245, %s244, 63
      %s247 = smul.addr %s246, 8
      %s248 = scalar_lea.vmem %s0, %s247
      %p249 = pneg %p39
      %p250 = pneg %p36
      %p251 = pneg %p60
      %p252 = pneg %p57
      %p253 = pneg %p81
      %p254 = pneg %p78
      %p255 = pneg %p102
      %p256 = pneg %p99
      %p257 = pneg %p123
      %p258 = pneg %p120
      %p259 = pneg %p144
      %p260 = pneg %p141
      %p261 = pneg %p165
      %p262 = pneg %p162
      %p263 = pneg %p191
      %p264 = pneg %p188
      %s265 = smul.u32 32, %s18
      %p266 = scmp.lt.s32.totalorder %s265, 63
      %s267 = scalar_select %p266, %s265, 63
      %s268 = smul.addr %s267, 8
      %s269 = scalar_lea.vmem %s7, %s268
      %s270 = smul.u32 32, %s18
      %p271 = scmp.lt.s32.totalorder %s270, 63
      %s272 = scalar_select %p271, %s270, 63
      %s273 = smul.addr %s272, 8
      %s274 = scalar_lea.vmem %s0, %s273
      %s275 = smul.u32 32, %s18
      %s276 = smul.u32 32, %s18
      %p277 = scmp.lt.s32.totalorder %s276, 63
      %s278 = scalar_select %p277, %s276, 63
      %s279 = smul.addr %s278, 8
      %s280 = scalar_lea.vmem %s7, %s279
      %s281 = smul.u32 32, %s18
      %v283 = vld [vmem:[%s274] sm:$0xff]
      %v284 = vld [vmem:[%s274 + $0x8] sm:$0xff]
      %v285 = vld [vmem:[%s274 + $0x10] sm:$0xff]
      %v286 = vld [vmem:[%s274 + $0x18] sm:$0xff]
      %v287 = vld [vmem:[%s274 + $0x20] sm:$0xff]
      %v288 = vld [vmem:[%s274 + $0x28] sm:$0xff]
      %v289 = vld [vmem:[%s274 + $0x30] sm:$0xff]
      %v290 = vld [vmem:[%s274 + $0x38] sm:$0xff]
      %v291 = vld [vmem:[%s274 + $0x40] sm:$0xff]
      %v292 = vld [vmem:[%s274 + $0x48] sm:$0xff]
      %v293 = vld [vmem:[%s274 + $0x50] sm:$0xff]
      %v294 = vld [vmem:[%s274 + $0x58] sm:$0xff]
      %v295 = vld [vmem:[%s274 + $0x60] sm:$0xff]
      %v296 = vld [vmem:[%s274 + $0x68] sm:$0xff]
      %v297 = vld [vmem:[%s274 + $0x70] sm:$0xff]
      %v298 = vld [vmem:[%s274 + $0x78] sm:$0xff]
      %v299 = vld [vmem:[%s274 + $0x80] sm:$0xff]
      %v300 = vld [vmem:[%s274 + $0x88] sm:$0xff]
      %v301 = vld [vmem:[%s274 + $0x90] sm:$0xff]
      %v302 = vld [vmem:[%s274 + $0x98] sm:$0xff]
      %v303 = vld [vmem:[%s274 + $0xa0] sm:$0xff]
      %v304 = vld [vmem:[%s274 + $0xa8] sm:$0xff]
      %v305 = vld [vmem:[%s274 + $0xb0] sm:$0xff]
      %v306 = vld [vmem:[%s274 + $0xb8] sm:$0xff]
      %v307 = vld [vmem:[%s274 + $0xc0] sm:$0xff]
      %v308 = vld [vmem:[%s274 + $0xc8] sm:$0xff]
      %v309 = vld [vmem:[%s274 + $0xd0] sm:$0xff]
      %v310 = vld [vmem:[%s274 + $0xd8] sm:$0xff]
      %v311 = vld [vmem:[%s274 + $0xe0] sm:$0xff]
      %v312 = vld [vmem:[%s274 + $0xe8] sm:$0xff]
      %v313 = vld [vmem:[%s274 + $0xf0] sm:$0xff]
      %v314 = vld [vmem:[%s274 + $0xf8] sm:$0xff]
      %vm315 = vcmask 130048
      %v316 = vsel %vm315, %v283, 0.0
      %317 = vadd.xlane.f32.xlu0 %v316
      %v318 = vpop.xlane.xlu0 %317
      %v319 = vsel %vm315, %v284, 0.0
      %320 = vadd.xlane.f32.xlu0 %v319
      %v321 = vpop.xlane.xlu0 %320
      %v322 = vsel %vm315, %v285, 0.0
      %323 = vadd.xlane.f32.xlu0 %v322
      %v324 = vpop.xlane.xlu0 %323
      %v325 = vsel %vm315, %v286, 0.0
      %326 = vadd.xlane.f32.xlu0 %v325
      %v327 = vpop.xlane.xlu0 %326
      %v328 = vsel %vm315, %v287, 0.0
      %329 = vadd.xlane.f32.xlu0 %v328
      %v330 = vpop.xlane.xlu0 %329
      %v331 = vsel %vm315, %v288, 0.0
      %332 = vadd.xlane.f32.xlu0 %v331
      %v333 = vpop.xlane.xlu0 %332
      %v334 = vsel %vm315, %v289, 0.0
      %335 = vadd.xlane.f32.xlu0 %v334
      %v336 = vpop.xlane.xlu0 %335
      %v337 = vsel %vm315, %v290, 0.0
      %338 = vadd.xlane.f32.xlu0 %v337
      %v339 = vpop.xlane.xlu0 %338
      %v340 = vsel %vm315, %v291, 0.0
      %341 = vadd.xlane.f32.xlu0 %v340
      %v342 = vpop.xlane.xlu0 %341
      %v343 = vsel %vm315, %v292, 0.0
      %344 = vadd.xlane.f32.xlu0 %v343
      %v345 = vpop.xlane.xlu0 %344
      %v346 = vsel %vm315, %v293, 0.0
      %347 = vadd.xlane.f32.xlu0 %v346
      %v348 = vpop.xlane.xlu0 %347
      %v349 = vsel %vm315, %v294, 0.0
      %350 = vadd.xlane.f32.xlu0 %v349
      %v351 = vpop.xlane.xlu0 %350
      %v352 = vsel %vm315, %v295, 0.0
      %353 = vadd.xlane.f32.xlu0 %v352
      %v354 = vpop.xlane.xlu0 %353
      %v355 = vsel %vm315, %v296, 0.0
      %356 = vadd.xlane.f32.xlu0 %v355
      %v357 = vpop.xlane.xlu0 %356
      %v358 = vsel %vm315, %v297, 0.0
      %359 = vadd.xlane.f32.xlu0 %v358
      %v360 = vpop.xlane.xlu0 %359
      %v361 = vsel %vm315, %v298, 0.0
      %362 = vadd.xlane.f32.xlu0 %v361
      %v363 = vpop.xlane.xlu0 %362
      %v364 = vsel %vm315, %v299, 0.0
      %365 = vadd.xlane.f32.xlu0 %v364
      %v366 = vpop.xlane.xlu0 %365
      %v367 = vsel %vm315, %v300, 0.0
      %368 = vadd.xlane.f32.xlu0 %v367
      %v369 = vpop.xlane.xlu0 %368
      %v370 = vsel %vm315, %v301, 0.0
      %371 = vadd.xlane.f32.xlu0 %v370
      %v372 = vpop.xlane.xlu0 %371
      %v373 = vsel %vm315, %v302, 0.0
      %374 = vadd.xlane.f32.xlu0 %v373
      %v375 = vpop.xlane.xlu0 %374
      %v376 = vsel %vm315, %v303, 0.0
      %377 = vadd.xlane.f32.xlu0 %v376
      %v378 = vpop.xlane.xlu0 %377
      %v379 = vsel %vm315, %v304, 0.0
      %380 = vadd.xlane.f32.xlu0 %v379
      %v381 = vpop.xlane.xlu0 %380
      %v382 = vsel %vm315, %v305, 0.0
      %383 = vadd.xlane.f32.xlu0 %v382
      %v384 = vpop.xlane.xlu0 %383
      %v385 = vsel %vm315, %v306, 0.0
      %386 = vadd.xlane.f32.xlu0 %v385
      %v387 = vpop.xlane.xlu0 %386
      %v388 = vsel %vm315, %v307, 0.0
      %389 = vadd.xlane.f32.xlu0 %v388
      %v390 = vpop.xlane.xlu0 %389
      %v391 = vsel %vm315, %v308, 0.0
      %392 = vadd.xlane.f32.xlu0 %v391
      %v393 = vpop.xlane.xlu0 %392
      %v394 = vsel %vm315, %v309, 0.0
      %395 = vadd.xlane.f32.xlu0 %v394
      %v396 = vpop.xlane.xlu0 %395
      %v397 = vsel %vm315, %v310, 0.0
      %398 = vadd.xlane.f32.xlu0 %v397
      %v399 = vpop.xlane.xlu0 %398
      %v400 = vsel %vm315, %v311, 0.0
      %401 = vadd.xlane.f32.xlu0 %v400
      %v402 = vpop.xlane.xlu0 %401
      %v403 = vsel %vm315, %v312, 0.0
      %404 = vadd.xlane.f32.xlu0 %v403
      %v405 = vpop.xlane.xlu0 %404
      %v406 = vsel %vm315, %v313, 0.0
      %407 = vadd.xlane.f32.xlu0 %v406
      %v408 = vpop.xlane.xlu0 %407
      %v409 = vsel %vm315, %v314, 0.0
      %410 = vadd.xlane.f32.xlu0 %v409
      %v411 = vpop.xlane.xlu0 %410
      %v412 = vrcp.pop 16.0
      %v413 = vmul.f32 16.0, %v412
      %v414 = vsub.f32 1.0, %v413
      %v415 = vmul.f32 %v412, %v414
      %v416 = vadd.f32 %v412, %v415
      %vm417 = vweird.f32 %v412
      %v418 = vsel %vm417, %v412, %v416
      %v419 = vmul.f32 %v318, %v418
      %v420 = vmul.f32 %v321, %v418
      %v421 = vmul.f32 %v324, %v418
      %v422 = vmul.f32 %v327, %v418
      %v423 = vmul.f32 %v330, %v418
      %v424 = vmul.f32 %v333, %v418
      %v425 = vmul.f32 %v336, %v418
      %v426 = vmul.f32 %v339, %v418
      %v427 = vmul.f32 %v342, %v418
      %v428 = vmul.f32 %v345, %v418
      %v429 = vmul.f32 %v348, %v418
      %v430 = vmul.f32 %v351, %v418
      %v431 = vmul.f32 %v354, %v418
      %v432 = vmul.f32 %v357, %v418
      %v433 = vmul.f32 %v360, %v418
      %v434 = vmul.f32 %v363, %v418
      %v435 = vmul.f32 %v366, %v418
      %v436 = vmul.f32 %v369, %v418
      %v437 = vmul.f32 %v372, %v418
      %v438 = vmul.f32 %v375, %v418
      %v439 = vmul.f32 %v378, %v418
      %v440 = vmul.f32 %v381, %v418
      %v441 = vmul.f32 %v384, %v418
      %v442 = vmul.f32 %v387, %v418
      %v443 = vmul.f32 %v390, %v418
      %v444 = vmul.f32 %v393, %v418
      %v445 = vmul.f32 %v396, %v418
      %v446 = vmul.f32 %v399, %v418
      %v447 = vmul.f32 %v402, %v418
      %v448 = vmul.f32 %v405, %v418
      %v449 = vmul.f32 %v408, %v418
      %v450 = vmul.f32 %v411, %v418
      %v451 = vsub.f32 %v283, %v419
      %v452 = vsub.f32 %v284, %v420
      %v453 = vsub.f32 %v285, %v421
      %v454 = vsub.f32 %v286, %v422
      %v455 = vsub.f32 %v287, %v423
      %v456 = vsub.f32 %v288, %v424
      %v457 = vsub.f32 %v289, %v425
      %v458 = vsub.f32 %v290, %v426
      %v459 = vsub.f32 %v291, %v427
      %v460 = vsub.f32 %v292, %v428
      %v461 = vsub.f32 %v293, %v429
      %v462 = vsub.f32 %v294, %v430
      %v463 = vsub.f32 %v295, %v431
      %v464 = vsub.f32 %v296, %v432
      %v465 = vsub.f32 %v297, %v433
      %v466 = vsub.f32 %v298, %v434
      %v467 = vsub.f32 %v299, %v435
      %v468 = vsub.f32 %v300, %v436
      %v469 = vsub.f32 %v301, %v437
      %v470 = vsub.f32 %v302, %v438
      %v471 = vsub.f32 %v303, %v439
      %v472 = vsub.f32 %v304, %v440
      %v473 = vsub.f32 %v305, %v441
      %v474 = vsub.f32 %v306, %v442
      %v475 = vsub.f32 %v307, %v443
      %v476 = vsub.f32 %v308, %v444
      %v477 = vsub.f32 %v309, %v445
      %v478 = vsub.f32 %v310, %v446
      %v479 = vsub.f32 %v311, %v447
      %v480 = vsub.f32 %v312, %v448
      %v481 = vsub.f32 %v313, %v449
      %v482 = vsub.f32 %v314, %v450
      %v483 = vmul.f32 %v451, %v451
      %v484 = vmul.f32 %v452, %v452
      %v485 = vmul.f32 %v453, %v453
      %v486 = vmul.f32 %v454, %v454
      %v487 = vmul.f32 %v455, %v455
      %v488 = vmul.f32 %v456, %v456
      %v489 = vmul.f32 %v457, %v457
      %v490 = vmul.f32 %v458, %v458
      %v491 = vmul.f32 %v459, %v459
      %v492 = vmul.f32 %v460, %v460
      %v493 = vmul.f32 %v461, %v461
      %v494 = vmul.f32 %v462, %v462
      %v495 = vmul.f32 %v463, %v463
      %v496 = vmul.f32 %v464, %v464
      %v497 = vmul.f32 %v465, %v465
      %v498 = vmul.f32 %v466, %v466
      %v499 = vmul.f32 %v467, %v467
      %v500 = vmul.f32 %v468, %v468
      %v501 = vmul.f32 %v469, %v469
      %v502 = vmul.f32 %v470, %v470
      %v503 = vmul.f32 %v471, %v471
      %v504 = vmul.f32 %v472, %v472
      %v505 = vmul.f32 %v473, %v473
      %v506 = vmul.f32 %v474, %v474
      %v507 = vmul.f32 %v475, %v475
      %v508 = vmul.f32 %v476, %v476
      %v509 = vmul.f32 %v477, %v477
      %v510 = vmul.f32 %v478, %v478
      %v511 = vmul.f32 %v479, %v479
      %v512 = vmul.f32 %v480, %v480
      %v513 = vmul.f32 %v481, %v481
      %v514 = vmul.f32 %v482, %v482
      %v515 = vsel %vm315, %v483, 0.0
      %516 = vadd.xlane.f32.xlu0 %v515
      %v517 = vpop.xlane.xlu0 %516
      %v518 = vsel %vm315, %v484, 0.0
      %519 = vadd.xlane.f32.xlu0 %v518
      %v520 = vpop.xlane.xlu0 %519
      %v521 = vsel %vm315, %v485, 0.0
      %522 = vadd.xlane.f32.xlu0 %v521
      %v523 = vpop.xlane.xlu0 %522
      %v524 = vsel %vm315, %v486, 0.0
      %525 = vadd.xlane.f32.xlu0 %v524
      %v526 = vpop.xlane.xlu0 %525
      %v527 = vsel %vm315, %v487, 0.0
      %528 = vadd.xlane.f32.xlu0 %v527
      %v529 = vpop.xlane.xlu0 %528
      %v530 = vsel %vm315, %v488, 0.0
      %531 = vadd.xlane.f32.xlu0 %v530
      %v532 = vpop.xlane.xlu0 %531
      %v533 = vsel %vm315, %v489, 0.0
      %534 = vadd.xlane.f32.xlu0 %v533
      %v535 = vpop.xlane.xlu0 %534
      %v536 = vsel %vm315, %v490, 0.0
      %537 = vadd.xlane.f32.xlu0 %v536
      %v538 = vpop.xlane.xlu0 %537
      %v539 = vsel %vm315, %v491, 0.0
      %540 = vadd.xlane.f32.xlu0 %v539
      %v541 = vpop.xlane.xlu0 %540
      %v542 = vsel %vm315, %v492, 0.0
      %543 = vadd.xlane.f32.xlu0 %v542
      %v544 = vpop.xlane.xlu0 %543
      %v545 = vsel %vm315, %v493, 0.0
      %546 = vadd.xlane.f32.xlu0 %v545
      %v547 = vpop.xlane.xlu0 %546
      %v548 = vsel %vm315, %v494, 0.0
      %549 = vadd.xlane.f32.xlu0 %v548
      %v550 = vpop.xlane.xlu0 %549
      %v551 = vsel %vm315, %v495, 0.0
      %552 = vadd.xlane.f32.xlu0 %v551
      %v553 = vpop.xlane.xlu0 %552
      %v554 = vsel %vm315, %v496, 0.0
      %555 = vadd.xlane.f32.xlu0 %v554
      %v556 = vpop.xlane.xlu0 %555
      %v557 = vsel %vm315, %v497, 0.0
      %558 = vadd.xlane.f32.xlu0 %v557
      %v559 = vpop.xlane.xlu0 %558
      %v560 = vsel %vm315, %v498, 0.0
      %561 = vadd.xlane.f32.xlu0 %v560
      %v562 = vpop.xlane.xlu0 %561
      %v563 = vsel %vm315, %v499, 0.0
      %564 = vadd.xlane.f32.xlu0 %v563
      %v565 = vpop.xlane.xlu0 %564
      %v566 = vsel %vm315, %v500, 0.0
      %567 = vadd.xlane.f32.xlu0 %v566
      %v568 = vpop.xlane.xlu0 %567
      %v569 = vsel %vm315, %v501, 0.0
      %570 = vadd.xlane.f32.xlu0 %v569
      %v571 = vpop.xlane.xlu0 %570
      %v572 = vsel %vm315, %v502, 0.0
      %573 = vadd.xlane.f32.xlu0 %v572
      %v574 = vpop.xlane.xlu0 %573
      %v575 = vsel %vm315, %v503, 0.0
      %576 = vadd.xlane.f32.xlu0 %v575
      %v577 = vpop.xlane.xlu0 %576
      %v578 = vsel %vm315, %v504, 0.0
      %579 = vadd.xlane.f32.xlu0 %v578
      %v580 = vpop.xlane.xlu0 %579
      %v581 = vsel %vm315, %v505, 0.0
      %582 = vadd.xlane.f32.xlu0 %v581
      %v583 = vpop.xlane.xlu0 %582
      %v584 = vsel %vm315, %v506, 0.0
      %585 = vadd.xlane.f32.xlu0 %v584
      %v586 = vpop.xlane.xlu0 %585
      %v587 = vsel %vm315, %v507, 0.0
      %588 = vadd.xlane.f32.xlu0 %v587
      %v589 = vpop.xlane.xlu0 %588
      %v590 = vsel %vm315, %v508, 0.0
      %591 = vadd.xlane.f32.xlu0 %v590
      %v592 = vpop.xlane.xlu0 %591
      %v593 = vsel %vm315, %v509, 0.0
      %594 = vadd.xlane.f32.xlu0 %v593
      %v595 = vpop.xlane.xlu0 %594
      %v596 = vsel %vm315, %v510, 0.0
      %597 = vadd.xlane.f32.xlu0 %v596
      %v598 = vpop.xlane.xlu0 %597
      %v599 = vsel %vm315, %v511, 0.0
      %600 = vadd.xlane.f32.xlu0 %v599
      %v601 = vpop.xlane.xlu0 %600
      %v602 = vsel %vm315, %v512, 0.0
      %603 = vadd.xlane.f32.xlu0 %v602
      %v604 = vpop.xlane.xlu0 %603
      %v605 = vsel %vm315, %v513, 0.0
      %606 = vadd.xlane.f32.xlu0 %v605
      %v607 = vpop.xlane.xlu0 %606
      %v608 = vsel %vm315, %v514, 0.0
      %609 = vadd.xlane.f32.xlu0 %v608
      %v610 = vpop.xlane.xlu0 %609
      %v611 = vmul.f32 %v517, %v418
      %v612 = vmul.f32 %v520, %v418
      %v613 = vmul.f32 %v523, %v418
      %v614 = vmul.f32 %v526, %v418
      %v615 = vmul.f32 %v529, %v418
      %v616 = vmul.f32 %v532, %v418
      %v617 = vmul.f32 %v535, %v418
      %v618 = vmul.f32 %v538, %v418
      %v619 = vmul.f32 %v541, %v418
      %v620 = vmul.f32 %v544, %v418
      %v621 = vmul.f32 %v547, %v418
      %v622 = vmul.f32 %v550, %v418
      %v623 = vmul.f32 %v553, %v418
      %v624 = vmul.f32 %v556, %v418
      %v625 = vmul.f32 %v559, %v418
      %v626 = vmul.f32 %v562, %v418
      %v627 = vmul.f32 %v565, %v418
      %v628 = vmul.f32 %v568, %v418
      %v629 = vmul.f32 %v571, %v418
      %v630 = vmul.f32 %v574, %v418
      %v631 = vmul.f32 %v577, %v418
      %v632 = vmul.f32 %v580, %v418
      %v633 = vmul.f32 %v583, %v418
      %v634 = vmul.f32 %v586, %v418
      %v635 = vmul.f32 %v589, %v418
      %v636 = vmul.f32 %v592, %v418
      %v637 = vmul.f32 %v595, %v418
      %v638 = vmul.f32 %v598, %v418
      %v639 = vmul.f32 %v601, %v418
      %v640 = vmul.f32 %v604, %v418
      %v641 = vmul.f32 %v607, %v418
      %v642 = vmul.f32 %v610, %v418
      %v643 = vadd.f32 %v611, 1e-05
      %v644 = vadd.f32 %v612, 1e-05
      %v645 = vadd.f32 %v613, 1e-05
      %v646 = vadd.f32 %v614, 1e-05
      %v647 = vadd.f32 %v615, 1e-05
      %v648 = vadd.f32 %v616, 1e-05
      %v649 = vadd.f32 %v617, 1e-05
      %v650 = vadd.f32 %v618, 1e-05
      %v651 = vadd.f32 %v619, 1e-05
      %v652 = vadd.f32 %v620, 1e-05
      %v653 = vadd.f32 %v621, 1e-05
      %v654 = vadd.f32 %v622, 1e-05
      %v655 = vadd.f32 %v623, 1e-05
      %v656 = vadd.f32 %v624, 1e-05
      %v657 = vadd.f32 %v625, 1e-05
      %v658 = vadd.f32 %v626, 1e-05
      %v659 = vadd.f32 %v627, 1e-05
      %v660 = vadd.f32 %v628, 1e-05
      %v661 = vadd.f32 %v629, 1e-05
      %v662 = vadd.f32 %v630, 1e-05
      %v663 = vadd.f32 %v631, 1e-05
      %v664 = vadd.f32 %v632, 1e-05
      %v665 = vadd.f32 %v633, 1e-05
      %v666 = vadd.f32 %v634, 1e-05
      %v667 = vadd.f32 %v635, 1e-05
      %v668 = vadd.f32 %v636, 1e-05
      %v669 = vadd.f32 %v637, 1e-05
      %v670 = vadd.f32 %v638, 1e-05
      %v671 = vadd.f32 %v639, 1e-05
      %v672 = vadd.f32 %v640, 1e-05
      %v673 = vadd.f32 %v641, 1e-05
      %v674 = vadd.f32 %v642, 1e-05
      %v675 = vrsqrt.pop %v643
      %v676 = vmul.f32 %v675, %v643
      %v677 = vmul.f32 %v676, %v675
      %v678 = vmul.f32 0.5, %v677
      %v679 = vsub.f32 1.5, %v678
      %v680 = vmul.f32 %v675, %v679
      %vm681 = vweird.f32 %v643
      %vm682 = vweird.f32 %v675
      %vm683 = vmor %vm681, %vm682
      %v684 = vsel %vm683, %v675, %v680
      %v685 = vrsqrt.pop %v644
      %v686 = vmul.f32 %v685, %v644
      %v687 = vmul.f32 %v686, %v685
      %v688 = vmul.f32 0.5, %v687
      %v689 = vsub.f32 1.5, %v688
      %v690 = vmul.f32 %v685, %v689
      %vm691 = vweird.f32 %v644
      %vm692 = vweird.f32 %v685
      %vm693 = vmor %vm691, %vm692
      %v694 = vsel %vm693, %v685, %v690
      %v695 = vrsqrt.pop %v645
      %v696 = vmul.f32 %v695, %v645
      %v697 = vmul.f32 %v696, %v695
      %v698 = vmul.f32 0.5, %v697
      %v699 = vsub.f32 1.5, %v698
      %v700 = vmul.f32 %v695, %v699
      %vm701 = vweird.f32 %v645
      %vm702 = vweird.f32 %v695
      %vm703 = vmor %vm701, %vm702
      %v704 = vsel %vm703, %v695, %v700
      %v705 = vrsqrt.pop %v646
      %v706 = vmul.f32 %v705, %v646
      %v707 = vmul.f32 %v706, %v705
      %v708 = vmul.f32 0.5, %v707
      %v709 = vsub.f32 1.5, %v708
      %v710 = vmul.f32 %v705, %v709
      %vm711 = vweird.f32 %v646
      %vm712 = vweird.f32 %v705
      %vm713 = vmor %vm711, %vm712
      %v714 = vsel %vm713, %v705, %v710
      %v715 = vrsqrt.pop %v647
      %v716 = vmul.f32 %v715, %v647
      %v717 = vmul.f32 %v716, %v715
      %v718 = vmul.f32 0.5, %v717
      %v719 = vsub.f32 1.5, %v718
      %v720 = vmul.f32 %v715, %v719
      %vm721 = vweird.f32 %v647
      %vm722 = vweird.f32 %v715
      %vm723 = vmor %vm721, %vm722
      %v724 = vsel %vm723, %v715, %v720
      %v725 = vrsqrt.pop %v648
      %v726 = vmul.f32 %v725, %v648
      %v727 = vmul.f32 %v726, %v725
      %v728 = vmul.f32 0.5, %v727
      %v729 = vsub.f32 1.5, %v728
      %v730 = vmul.f32 %v725, %v729
      %vm731 = vweird.f32 %v648
      %vm732 = vweird.f32 %v725
      %vm733 = vmor %vm731, %vm732
      %v734 = vsel %vm733, %v725, %v730
      %v735 = vrsqrt.pop %v649
      %v736 = vmul.f32 %v735, %v649
      %v737 = vmul.f32 %v736, %v735
      %v738 = vmul.f32 0.5, %v737
      %v739 = vsub.f32 1.5, %v738
      %v740 = vmul.f32 %v735, %v739
      %vm741 = vweird.f32 %v649
      %vm742 = vweird.f32 %v735
      %vm743 = vmor %vm741, %vm742
      %v744 = vsel %vm743, %v735, %v740
      %v745 = vrsqrt.pop %v650
      %v746 = vmul.f32 %v745, %v650
      %v747 = vmul.f32 %v746, %v745
      %v748 = vmul.f32 0.5, %v747
      %v749 = vsub.f32 1.5, %v748
      %v750 = vmul.f32 %v745, %v749
      %vm751 = vweird.f32 %v650
      %vm752 = vweird.f32 %v745
      %vm753 = vmor %vm751, %vm752
      %v754 = vsel %vm753, %v745, %v750
      %v755 = vrsqrt.pop %v651
      %v756 = vmul.f32 %v755, %v651
      %v757 = vmul.f32 %v756, %v755
      %v758 = vmul.f32 0.5, %v757
      %v759 = vsub.f32 1.5, %v758
      %v760 = vmul.f32 %v755, %v759
      %vm761 = vweird.f32 %v651
      %vm762 = vweird.f32 %v755
      %vm763 = vmor %vm761, %vm762
      %v764 = vsel %vm763, %v755, %v760
      %v765 = vrsqrt.pop %v652
      %v766 = vmul.f32 %v765, %v652
      %v767 = vmul.f32 %v766, %v765
      %v768 = vmul.f32 0.5, %v767
      %v769 = vsub.f32 1.5, %v768
      %v770 = vmul.f32 %v765, %v769
      %vm771 = vweird.f32 %v652
      %vm772 = vweird.f32 %v765
      %vm773 = vmor %vm771, %vm772
      %v774 = vsel %vm773, %v765, %v770
      %v775 = vrsqrt.pop %v653
      %v776 = vmul.f32 %v775, %v653
      %v777 = vmul.f32 %v776, %v775
      %v778 = vmul.f32 0.5, %v777
      %v779 = vsub.f32 1.5, %v778
      %v780 = vmul.f32 %v775, %v779
      %vm781 = vweird.f32 %v653
      %vm782 = vweird.f32 %v775
      %vm783 = vmor %vm781, %vm782
      %v784 = vsel %vm783, %v775, %v780
      %v785 = vrsqrt.pop %v654
      %v786 = vmul.f32 %v785, %v654
      %v787 = vmul.f32 %v786, %v785
      %v788 = vmul.f32 0.5, %v787
      %v789 = vsub.f32 1.5, %v788
      %v790 = vmul.f32 %v785, %v789
      %vm791 = vweird.f32 %v654
      %vm792 = vweird.f32 %v785
      %vm793 = vmor %vm791, %vm792
      %v794 = vsel %vm793, %v785, %v790
      %v795 = vrsqrt.pop %v655
      %v796 = vmul.f32 %v795, %v655
      %v797 = vmul.f32 %v796, %v795
      %v798 = vmul.f32 0.5, %v797
      %v799 = vsub.f32 1.5, %v798
      %v800 = vmul.f32 %v795, %v799
      %vm801 = vweird.f32 %v655
      %vm802 = vweird.f32 %v795
      %vm803 = vmor %vm801, %vm802
      %v804 = vsel %vm803, %v795, %v800
      %v805 = vrsqrt.pop %v656
      %v806 = vmul.f32 %v805, %v656
      %v807 = vmul.f32 %v806, %v805
      %v808 = vmul.f32 0.5, %v807
      %v809 = vsub.f32 1.5, %v808
      %v810 = vmul.f32 %v805, %v809
      %vm811 = vweird.f32 %v656
      %vm812 = vweird.f32 %v805
      %vm813 = vmor %vm811, %vm812
      %v814 = vsel %vm813, %v805, %v810
      %v815 = vrsqrt.pop %v657
      %v816 = vmul.f32 %v815, %v657
      %v817 = vmul.f32 %v816, %v815
      %v818 = vmul.f32 0.5, %v817
      %v819 = vsub.f32 1.5, %v818
      %v820 = vmul.f32 %v815, %v819
      %vm821 = vweird.f32 %v657
      %vm822 = vweird.f32 %v815
      %vm823 = vmor %vm821, %vm822
      %v824 = vsel %vm823, %v815, %v820
      %v825 = vrsqrt.pop %v658
      %v826 = vmul.f32 %v825, %v658
      %v827 = vmul.f32 %v826, %v825
      %v828 = vmul.f32 0.5, %v827
      %v829 = vsub.f32 1.5, %v828
      %v830 = vmul.f32 %v825, %v829
      %vm831 = vweird.f32 %v658
      %vm832 = vweird.f32 %v825
      %vm833 = vmor %vm831, %vm832
      %v834 = vsel %vm833, %v825, %v830
      %v835 = vrsqrt.pop %v659
      %v836 = vmul.f32 %v835, %v659
      %v837 = vmul.f32 %v836, %v835
      %v838 = vmul.f32 0.5, %v837
      %v839 = vsub.f32 1.5, %v838
      %v840 = vmul.f32 %v835, %v839
      %vm841 = vweird.f32 %v659
      %vm842 = vweird.f32 %v835
      %vm843 = vmor %vm841, %vm842
      %v844 = vsel %vm843, %v835, %v840
      %v845 = vrsqrt.pop %v660
      %v846 = vmul.f32 %v845, %v660
      %v847 = vmul.f32 %v846, %v845
      %v848 = vmul.f32 0.5, %v847
      %v849 = vsub.f32 1.5, %v848
      %v850 = vmul.f32 %v845, %v849
      %vm851 = vweird.f32 %v660
      %vm852 = vweird.f32 %v845
      %vm853 = vmor %vm851, %vm852
      %v854 = vsel %vm853, %v845, %v850
      %v855 = vrsqrt.pop %v661
      %v856 = vmul.f32 %v855, %v661
      %v857 = vmul.f32 %v856, %v855
      %v858 = vmul.f32 0.5, %v857
      %v859 = vsub.f32 1.5, %v858
      %v860 = vmul.f32 %v855, %v859
      %vm861 = vweird.f32 %v661
      %vm862 = vweird.f32 %v855
      %vm863 = vmor %vm861, %vm862
      %v864 = vsel %vm863, %v855, %v860
      %v865 = vrsqrt.pop %v662
      %v866 = vmul.f32 %v865, %v662
      %v867 = vmul.f32 %v866, %v865
      %v868 = vmul.f32 0.5, %v867
      %v869 = vsub.f32 1.5, %v868
      %v870 = vmul.f32 %v865, %v869
      %vm871 = vweird.f32 %v662
      %vm872 = vweird.f32 %v865
      %vm873 = vmor %vm871, %vm872
      %v874 = vsel %vm873, %v865, %v870
      %v875 = vrsqrt.pop %v663
      %v876 = vmul.f32 %v875, %v663
      %v877 = vmul.f32 %v876, %v875
      %v878 = vmul.f32 0.5, %v877
      %v879 = vsub.f32 1.5, %v878
      %v880 = vmul.f32 %v875, %v879
      %vm881 = vweird.f32 %v663
      %vm882 = vweird.f32 %v875
      %vm883 = vmor %vm881, %vm882
      %v884 = vsel %vm883, %v875, %v880
      %v885 = vrsqrt.pop %v664
      %v886 = vmul.f32 %v885, %v664
      %v887 = vmul.f32 %v886, %v885
      %v888 = vmul.f32 0.5, %v887
      %v889 = vsub.f32 1.5, %v888
      %v890 = vmul.f32 %v885, %v889
      %vm891 = vweird.f32 %v664
      %vm892 = vweird.f32 %v885
      %vm893 = vmor %vm891, %vm892
      %v894 = vsel %vm893, %v885, %v890
      %v895 = vrsqrt.pop %v665
      %v896 = vmul.f32 %v895, %v665
      %v897 = vmul.f32 %v896, %v895
      %v898 = vmul.f32 0.5, %v897
      %v899 = vsub.f32 1.5, %v898
      %v900 = vmul.f32 %v895, %v899
      %vm901 = vweird.f32 %v665
      %vm902 = vweird.f32 %v895
      %vm903 = vmor %vm901, %vm902
      %v904 = vsel %vm903, %v895, %v900
      %v905 = vrsqrt.pop %v666
      %v906 = vmul.f32 %v905, %v666
      %v907 = vmul.f32 %v906, %v905
      %v908 = vmul.f32 0.5, %v907
      %v909 = vsub.f32 1.5, %v908
      %v910 = vmul.f32 %v905, %v909
      %vm911 = vweird.f32 %v666
      %vm912 = vweird.f32 %v905
      %vm913 = vmor %vm911, %vm912
      %v914 = vsel %vm913, %v905, %v910
      %v915 = vrsqrt.pop %v667
      %v916 = vmul.f32 %v915, %v667
      %v917 = vmul.f32 %v916, %v915
      %v918 = vmul.f32 0.5, %v917
      %v919 = vsub.f32 1.5, %v918
      %v920 = vmul.f32 %v915, %v919
      %vm921 = vweird.f32 %v667
      %vm922 = vweird.f32 %v915
      %vm923 = vmor %vm921, %vm922
      %v924 = vsel %vm923, %v915, %v920
      %v925 = vrsqrt.pop %v668
      %v926 = vmul.f32 %v925, %v668
      %v927 = vmul.f32 %v926, %v925
      %v928 = vmul.f32 0.5, %v927
      %v929 = vsub.f32 1.5, %v928
      %v930 = vmul.f32 %v925, %v929
      %vm931 = vweird.f32 %v668
      %vm932 = vweird.f32 %v925
      %vm933 = vmor %vm931, %vm932
      %v934 = vsel %vm933, %v925, %v930
      %v935 = vrsqrt.pop %v669
      %v936 = vmul.f32 %v935, %v669
      %v937 = vmul.f32 %v936, %v935
      %v938 = vmul.f32 0.5, %v937
      %v939 = vsub.f32 1.5, %v938
      %v940 = vmul.f32 %v935, %v939
      %vm941 = vweird.f32 %v669
      %vm942 = vweird.f32 %v935
      %vm943 = vmor %vm941, %vm942
      %v944 = vsel %vm943, %v935, %v940
      %v945 = vrsqrt.pop %v670
      %v946 = vmul.f32 %v945, %v670
      %v947 = vmul.f32 %v946, %v945
      %v948 = vmul.f32 0.5, %v947
      %v949 = vsub.f32 1.5, %v948
      %v950 = vmul.f32 %v945, %v949
      %vm951 = vweird.f32 %v670
      %vm952 = vweird.f32 %v945
      %vm953 = vmor %vm951, %vm952
      %v954 = vsel %vm953, %v945, %v950
      %v955 = vrsqrt.pop %v671
      %v956 = vmul.f32 %v955, %v671
      %v957 = vmul.f32 %v956, %v955
      %v958 = vmul.f32 0.5, %v957
      %v959 = vsub.f32 1.5, %v958
      %v960 = vmul.f32 %v955, %v959
      %vm961 = vweird.f32 %v671
      %vm962 = vweird.f32 %v955
      %vm963 = vmor %vm961, %vm962
      %v964 = vsel %vm963, %v955, %v960
      %v965 = vrsqrt.pop %v672
      %v966 = vmul.f32 %v965, %v672
      %v967 = vmul.f32 %v966, %v965
      %v968 = vmul.f32 0.5, %v967
      %v969 = vsub.f32 1.5, %v968
      %v970 = vmul.f32 %v965, %v969
      %vm971 = vweird.f32 %v672
      %vm972 = vweird.f32 %v965
      %vm973 = vmor %vm971, %vm972
      %v974 = vsel %vm973, %v965, %v970
      %v975 = vrsqrt.pop %v673
      %v976 = vmul.f32 %v975, %v673
      %v977 = vmul.f32 %v976, %v975
      %v978 = vmul.f32 0.5, %v977
      %v979 = vsub.f32 1.5, %v978
      %v980 = vmul.f32 %v975, %v979
      %vm981 = vweird.f32 %v673
      %vm982 = vweird.f32 %v975
      %vm983 = vmor %vm981, %vm982
      %v984 = vsel %vm983, %v975, %v980
      %v985 = vrsqrt.pop %v674
      %v986 = vmul.f32 %v985, %v674
      %v987 = vmul.f32 %v986, %v985
      %v988 = vmul.f32 0.5, %v987
      %v989 = vsub.f32 1.5, %v988
      %v990 = vmul.f32 %v985, %v989
      %vm991 = vweird.f32 %v674
      %vm992 = vweird.f32 %v985
      %vm993 = vmor %vm991, %vm992
      %v994 = vsel %vm993, %v985, %v990
      %v995 = vmul.f32 %v451, %v684
      %v996 = vmul.f32 %v452, %v694
      %v997 = vmul.f32 %v453, %v704
      %v998 = vmul.f32 %v454, %v714
      %v999 = vmul.f32 %v455, %v724
      %v1000 = vmul.f32 %v456, %v734
      %v1001 = vmul.f32 %v457, %v744
      %v1002 = vmul.f32 %v458, %v754
      %v1003 = vmul.f32 %v459, %v764
      %v1004 = vmul.f32 %v460, %v774
      %v1005 = vmul.f32 %v461, %v784
      %v1006 = vmul.f32 %v462, %v794
      %v1007 = vmul.f32 %v463, %v804
      %v1008 = vmul.f32 %v464, %v814
      %v1009 = vmul.f32 %v465, %v824
      %v1010 = vmul.f32 %v466, %v834
      %v1011 = vmul.f32 %v467, %v844
      %v1012 = vmul.f32 %v468, %v854
      %v1013 = vmul.f32 %v469, %v864
      %v1014 = vmul.f32 %v470, %v874
      %v1015 = vmul.f32 %v471, %v884
      %v1016 = vmul.f32 %v472, %v894
      %v1017 = vmul.f32 %v473, %v904
      %v1018 = vmul.f32 %v474, %v914
      %v1019 = vmul.f32 %v475, %v924
      %v1020 = vmul.f32 %v476, %v934
      %v1021 = vmul.f32 %v477, %v944
      %v1022 = vmul.f32 %v478, %v954
      %v1023 = vmul.f32 %v479, %v964
      %v1024 = vmul.f32 %v480, %v974
      %v1025 = vmul.f32 %v481, %v984
      %v1026 = vmul.f32 %v482, %v994
      %v1027 = vld [vmem:[%s1] sm:$0x1]
      %v1029 = vperm.slane %v1027, 0
      %v1031 = vmul.f32 %v995, %v1029
      %v1032 = vmul.f32 %v996, %v1029
      %v1033 = vmul.f32 %v997, %v1029
      %v1034 = vmul.f32 %v998, %v1029
      %v1035 = vmul.f32 %v999, %v1029
      %v1036 = vmul.f32 %v1000, %v1029
      %v1037 = vmul.f32 %v1001, %v1029
      %v1038 = vmul.f32 %v1002, %v1029
      %v1039 = vmul.f32 %v1003, %v1029
      %v1040 = vmul.f32 %v1004, %v1029
      %v1041 = vmul.f32 %v1005, %v1029
      %v1042 = vmul.f32 %v1006, %v1029
      %v1043 = vmul.f32 %v1007, %v1029
      %v1044 = vmul.f32 %v1008, %v1029
      %v1045 = vmul.f32 %v1009, %v1029
      %v1046 = vmul.f32 %v1010, %v1029
      %v1047 = vmul.f32 %v1011, %v1029
      %v1048 = vmul.f32 %v1012, %v1029
      %v1049 = vmul.f32 %v1013, %v1029
      %v1050 = vmul.f32 %v1014, %v1029
      %v1051 = vmul.f32 %v1015, %v1029
      %v1052 = vmul.f32 %v1016, %v1029
      %v1053 = vmul.f32 %v1017, %v1029
      %v1054 = vmul.f32 %v1018, %v1029
      %v1055 = vmul.f32 %v1019, %v1029
      %v1056 = vmul.f32 %v1020, %v1029
      %v1057 = vmul.f32 %v1021, %v1029
      %v1058 = vmul.f32 %v1022, %v1029
      %v1059 = vmul.f32 %v1023, %v1029
      %v1060 = vmul.f32 %v1024, %v1029
      %v1061 = vmul.f32 %v1025, %v1029
      %v1062 = vmul.f32 %v1026, %v1029
      %v1063 = vld [vmem:[%s2] sm:$0x1]
      %v1065 = vperm.slane %v1063, 0
      %v1067 = vadd.f32 %v1031, %v1065
      %v1068 = vadd.f32 %v1032, %v1065
      %v1069 = vadd.f32 %v1033, %v1065
      %v1070 = vadd.f32 %v1034, %v1065
      %v1071 = vadd.f32 %v1035, %v1065
      %v1072 = vadd.f32 %v1036, %v1065
      %v1073 = vadd.f32 %v1037, %v1065
      %v1074 = vadd.f32 %v1038, %v1065
      %v1075 = vadd.f32 %v1039, %v1065
      %v1076 = vadd.f32 %v1040, %v1065
      %v1077 = vadd.f32 %v1041, %v1065
      %v1078 = vadd.f32 %v1042, %v1065
      %v1079 = vadd.f32 %v1043, %v1065
      %v1080 = vadd.f32 %v1044, %v1065
      %v1081 = vadd.f32 %v1045, %v1065
      %v1082 = vadd.f32 %v1046, %v1065
      %v1083 = vadd.f32 %v1047, %v1065
      %v1084 = vadd.f32 %v1048, %v1065
      %v1085 = vadd.f32 %v1049, %v1065
      %v1086 = vadd.f32 %v1050, %v1065
      %v1087 = vadd.f32 %v1051, %v1065
      %v1088 = vadd.f32 %v1052, %v1065
      %v1089 = vadd.f32 %v1053, %v1065
      %v1090 = vadd.f32 %v1054, %v1065
      %v1091 = vadd.f32 %v1055, %v1065
      %v1092 = vadd.f32 %v1056, %v1065
      %v1093 = vadd.f32 %v1057, %v1065
      %v1094 = vadd.f32 %v1058, %v1065
      %v1095 = vadd.f32 %v1059, %v1065
      %v1096 = vadd.f32 %v1060, %v1065
      %v1097 = vadd.f32 %v1061, %v1065
      %v1098 = vadd.f32 %v1062, %v1065
      %v1099 = vpack.c.bf16 %v1068, %v1067
      %v1100 = vpack.c.bf16 %v1070, %v1069
      %v1101 = vpack.c.bf16 %v1072, %v1071
      %v1102 = vpack.c.bf16 %v1074, %v1073
      %v1103 = vpack.c.bf16 %v1076, %v1075
      %v1104 = vpack.c.bf16 %v1078, %v1077
      %v1105 = vpack.c.bf16 %v1080, %v1079
      %v1106 = vpack.c.bf16 %v1082, %v1081
      %v1107 = vpack.c.bf16 %v1084, %v1083
      %v1108 = vpack.c.bf16 %v1086, %v1085
      %v1109 = vpack.c.bf16 %v1088, %v1087
      %v1110 = vpack.c.bf16 %v1090, %v1089
      %v1111 = vpack.c.bf16 %v1092, %v1091
      %v1112 = vpack.c.bf16 %v1094, %v1093
      %v1113 = vpack.c.bf16 %v1096, %v1095
      %v1114 = vpack.c.bf16 %v1098, %v1097
      %v1115 = vld [vmem:[%s3] sm:$0xff]
      %v1116 = vld [vmem:[%s3 + $0x8] sm:$0xff]
      %v1117 = vpack.c.bf16 %v1116, %v1115
      %v1118 = vld [vmem:[%s4] sm:$0x1]
      %v1120 = vperm.slane %v1118, 0
      %v1123 = vsel %vm315, %v1099, 0
      %v1126 = vsel %vm315, %v1100, 0
      %v1129 = vsel %vm315, %v1101, 0
      %v1132 = vsel %vm315, %v1102, 0
      %v1135 = vsel %vm315, %v1103, 0
      %v1138 = vsel %vm315, %v1104, 0
      %v1141 = vsel %vm315, %v1105, 0
      %v1144 = vsel %vm315, %v1106, 0
      %v1147 = vsel %vm315, %v1107, 0
      %v1150 = vsel %vm315, %v1108, 0
      %v1153 = vsel %vm315, %v1109, 0
      %v1156 = vsel %vm315, %v1110, 0
      %v1159 = vsel %vm315, %v1111, 0
      %v1162 = vsel %vm315, %v1112, 0
      %v1165 = vsel %vm315, %v1113, 0
      %v1168 = vsel %vm315, %v1114, 0
      %1170 = vmatpush.bf16.msra.mxu0 0
      %1171 = vmatpush.bf16.msra.mxu0 0
      %1172 = vmatpush.bf16.msra.mxu0 0
      %1173 = vmatpush.bf16.msra.mxu0 0
      %1174 = vmatpush.bf16.msra.mxu0 0
      %1175 = vmatpush.bf16.msra.mxu0 0
      %1176 = vmatpush.bf16.msra.mxu0 0
      %1177 = vmatpush.bf16.msra.mxu0 %v1117
      %1178 = vmatmul.bf16.gmra.mxu0 %v1123
      %v1179 = vpop.f32.mrf.mxu0
      %v1180 = vadd.f32 %v1120, %v1179
      %v1181 = vpop.f32.mrf.mxu0
      %v1182 = vadd.f32 %v1120, %v1181
      %1183 = vmatmul.bf16.gmra.mxu0 %v1126
      %v1184 = vpop.f32.mrf.mxu0
      %v1185 = vadd.f32 %v1120, %v1184
      %v1186 = vpop.f32.mrf.mxu0
      %v1187 = vadd.f32 %v1120, %v1186
      %1188 = vmatmul.bf16.gmra.mxu0 %v1129
      %v1189 = vpop.f32.mrf.mxu0
      %v1190 = vadd.f32 %v1120, %v1189
      %v1191 = vpop.f32.mrf.mxu0
      %v1192 = vadd.f32 %v1120, %v1191
      %1193 = vmatmul.bf16.gmra.mxu0 %v1132
      %v1194 = vpop.f32.mrf.mxu0
      %v1195 = vadd.f32 %v1120, %v1194
      %v1196 = vpop.f32.mrf.mxu0
      %v1197 = vadd.f32 %v1120, %v1196
      %1198 = vmatmul.bf16.gmra.mxu0 %v1135
      %v1199 = vpop.f32.mrf.mxu0
      %v1200 = vadd.f32 %v1120, %v1199
      %v1201 = vpop.f32.mrf.mxu0
      %v1202 = vadd.f32 %v1120, %v1201
      %1203 = vmatmul.bf16.gmra.mxu0 %v1138
      %v1204 = vpop.f32.mrf.mxu0
      %v1205 = vadd.f32 %v1120, %v1204
      %v1206 = vpop.f32.mrf.mxu0
      %v1207 = vadd.f32 %v1120, %v1206
      %1208 = vmatmul.bf16.gmra.mxu0 %v1141
      %v1209 = vpop.f32.mrf.mxu0
      %v1210 = vadd.f32 %v1120, %v1209
      %v1211 = vpop.f32.mrf.mxu0
      %v1212 = vadd.f32 %v1120, %v1211
      %1213 = vmatmul.bf16.gmra.mxu0 %v1144
      %v1214 = vpop.f32.mrf.mxu0
      %v1215 = vadd.f32 %v1120, %v1214
      %v1216 = vpop.f32.mrf.mxu0
      %v1217 = vadd.f32 %v1120, %v1216
      %1218 = vmatmul.bf16.gmra.mxu0 %v1147
      %v1219 = vpop.f32.mrf.mxu0
      %v1220 = vadd.f32 %v1120, %v1219
      %v1221 = vpop.f32.mrf.mxu0
      %v1222 = vadd.f32 %v1120, %v1221
      %1223 = vmatmul.bf16.gmra.mxu0 %v1150
      %v1224 = vpop.f32.mrf.mxu0
      %v1225 = vadd.f32 %v1120, %v1224
      %v1226 = vpop.f32.mrf.mxu0
      %v1227 = vadd.f32 %v1120, %v1226
      %1228 = vmatmul.bf16.gmra.mxu0 %v1153
      %v1229 = vpop.f32.mrf.mxu0
      %v1230 = vadd.f32 %v1120, %v1229
      %v1231 = vpop.f32.mrf.mxu0
      %v1232 = vadd.f32 %v1120, %v1231
      %1233 = vmatmul.bf16.gmra.mxu0 %v1156
      %v1234 = vpop.f32.mrf.mxu0
      %v1235 = vadd.f32 %v1120, %v1234
      %v1236 = vpop.f32.mrf.mxu0
      %v1237 = vadd.f32 %v1120, %v1236
      %1238 = vmatmul.bf16.gmra.mxu0 %v1159
      %v1239 = vpop.f32.mrf.mxu0
      %v1240 = vadd.f32 %v1120, %v1239
      %v1241 = vpop.f32.mrf.mxu0
      %v1242 = vadd.f32 %v1120, %v1241
      %1243 = vmatmul.bf16.gmra.mxu0 %v1162
      %v1244 = vpop.f32.mrf.mxu0
      %v1245 = vadd.f32 %v1120, %v1244
      %v1246 = vpop.f32.mrf.mxu0
      %v1247 = vadd.f32 %v1120, %v1246
      %1248 = vmatmul.bf16.gmra.mxu0 %v1165
      %v1249 = vpop.f32.mrf.mxu0
      %v1250 = vadd.f32 %v1120, %v1249
      %v1251 = vpop.f32.mrf.mxu0
      %v1252 = vadd.f32 %v1120, %v1251
      %1253 = vmatmul.bf16.gmra.mxu0 %v1168
      %v1254 = vpop.f32.mrf.mxu0
      %v1255 = vadd.f32 %v1120, %v1254
      %v1256 = vpop.f32.mrf.mxu0
      %v1257 = vadd.f32 %v1120, %v1256
      %1258 = vdwg.mxu0
      %v1259 = vxor.u32 %v1180, 2147483648
      %v1260 = vxor.u32 %v1182, 2147483648
      %v1261 = vxor.u32 %v1185, 2147483648
      %v1262 = vxor.u32 %v1187, 2147483648
      %v1263 = vxor.u32 %v1190, 2147483648
      %v1264 = vxor.u32 %v1192, 2147483648
      %v1265 = vxor.u32 %v1195, 2147483648
      %v1266 = vxor.u32 %v1197, 2147483648
      %v1267 = vxor.u32 %v1200, 2147483648
      %v1268 = vxor.u32 %v1202, 2147483648
      %v1269 = vxor.u32 %v1205, 2147483648
      %v1270 = vxor.u32 %v1207, 2147483648
      %v1271 = vxor.u32 %v1210, 2147483648
      %v1272 = vxor.u32 %v1212, 2147483648
      %v1273 = vxor.u32 %v1215, 2147483648
      %v1274 = vxor.u32 %v1217, 2147483648
      %v1275 = vxor.u32 %v1220, 2147483648
      %v1276 = vxor.u32 %v1222, 2147483648
      %v1277 = vxor.u32 %v1225, 2147483648
      %v1278 = vxor.u32 %v1227, 2147483648
      %v1279 = vxor.u32 %v1230, 2147483648
      %v1280 = vxor.u32 %v1232, 2147483648
      %v1281 = vxor.u32 %v1235, 2147483648
      %v1282 = vxor.u32 %v1237, 2147483648
      %v1283 = vxor.u32 %v1240, 2147483648
      %v1284 = vxor.u32 %v1242, 2147483648
      %v1285 = vxor.u32 %v1245, 2147483648
      %v1286 = vxor.u32 %v1247, 2147483648
      %v1287 = vxor.u32 %v1250, 2147483648
      %v1288 = vxor.u32 %v1252, 2147483648
      %v1289 = vxor.u32 %v1255, 2147483648
      %v1290 = vxor.u32 %v1257, 2147483648
      %v1291 = vmul.f32 %v1259, 1.442695
      %v1292 = vpow.pop %v1291
      %v1293 = vmul.f32 %v1260, 1.442695
      %v1294 = vpow.pop %v1293
      %v1295 = vmul.f32 %v1261, 1.442695
      %v1296 = vpow.pop %v1295
      %v1297 = vmul.f32 %v1262, 1.442695
      %v1298 = vpow.pop %v1297
      %v1299 = vmul.f32 %v1263, 1.442695
      %v1300 = vpow.pop %v1299
      %v1301 = vmul.f32 %v1264, 1.442695
      %v1302 = vpow.pop %v1301
      %v1303 = vmul.f32 %v1265, 1.442695
      %v1304 = vpow.pop %v1303
      %v1305 = vmul.f32 %v1266, 1.442695
      %v1306 = vpow.pop %v1305
      %v1307 = vmul.f32 %v1267, 1.442695
      %v1308 = vpow.pop %v1307
      %v1309 = vmul.f32 %v1268, 1.442695
      %v1310 = vpow.pop %v1309
      %v1311 = vmul.f32 %v1269, 1.442695
      %v1312 = vpow.pop %v1311
      %v1313 = vmul.f32 %v1270, 1.442695
      %v1314 = vpow.pop %v1313
      %v1315 = vmul.f32 %v1271, 1.442695
      %v1316 = vpow.pop %v1315
      %v1317 = vmul.f32 %v1272, 1.442695
      %v1318 = vpow.pop %v1317
      %v1319 = vmul.f32 %v1273, 1.442695
      %v1320 = vpow.pop %v1319
      %v1321 = vmul.f32 %v1274, 1.442695
      %v1322 = vpow.pop %v1321
      %v1323 = vmul.f32 %v1275, 1.442695
      %v1324 = vpow.pop %v1323
      %v1325 = vmul.f32 %v1276, 1.442695
      %v1326 = vpow.pop %v1325
      %v1327 = vmul.f32 %v1277, 1.442695
      %v1328 = vpow.pop %v1327
      %v1329 = vmul.f32 %v1278, 1.442695
      %v1330 = vpow.pop %v1329
      %v1331 = vmul.f32 %v1279, 1.442695
      %v1332 = vpow.pop %v1331
      %v1333 = vmul.f32 %v1280, 1.442695
      %v1334 = vpow.pop %v1333
      %v1335 = vmul.f32 %v1281, 1.442695
      %v1336 = vpow.pop %v1335
      %v1337 = vmul.f32 %v1282, 1.442695
      %v1338 = vpow.pop %v1337
      %v1339 = vmul.f32 %v1283, 1.442695
      %v1340 = vpow.pop %v1339
      %v1341 = vmul.f32 %v1284, 1.442695
      %v1342 = vpow.pop %v1341
      %v1343 = vmul.f32 %v1285, 1.442695
      %v1344 = vpow.pop %v1343
      %v1345 = vmul.f32 %v1286, 1.442695
      %v1346 = vpow.pop %v1345
      %v1347 = vmul.f32 %v1287, 1.442695
      %v1348 = vpow.pop %v1347
      %v1349 = vmul.f32 %v1288, 1.442695
      %v1350 = vpow.pop %v1349
      %v1351 = vmul.f32 %v1289, 1.442695
      %v1352 = vpow.pop %v1351
      %v1353 = vmul.f32 %v1290, 1.442695
      %v1354 = vpow.pop %v1353
      %v1355 = vadd.f32 %v1292, 1.0
      %v1356 = vadd.f32 %v1294, 1.0
      %v1357 = vadd.f32 %v1296, 1.0
      %v1358 = vadd.f32 %v1298, 1.0
      %v1359 = vadd.f32 %v1300, 1.0
      %v1360 = vadd.f32 %v1302, 1.0
      %v1361 = vadd.f32 %v1304, 1.0
      %v1362 = vadd.f32 %v1306, 1.0
      %v1363 = vadd.f32 %v1308, 1.0
      %v1364 = vadd.f32 %v1310, 1.0
      %v1365 = vadd.f32 %v1312, 1.0
      %v1366 = vadd.f32 %v1314, 1.0
      %v1367 = vadd.f32 %v1316, 1.0
      %v1368 = vadd.f32 %v1318, 1.0
      %v1369 = vadd.f32 %v1320, 1.0
      %v1370 = vadd.f32 %v1322, 1.0
      %v1371 = vadd.f32 %v1324, 1.0
      %v1372 = vadd.f32 %v1326, 1.0
      %v1373 = vadd.f32 %v1328, 1.0
      %v1374 = vadd.f32 %v1330, 1.0
      %v1375 = vadd.f32 %v1332, 1.0
      %v1376 = vadd.f32 %v1334, 1.0
      %v1377 = vadd.f32 %v1336, 1.0
      %v1378 = vadd.f32 %v1338, 1.0
      %v1379 = vadd.f32 %v1340, 1.0
      %v1380 = vadd.f32 %v1342, 1.0
      %v1381 = vadd.f32 %v1344, 1.0
      %v1382 = vadd.f32 %v1346, 1.0
      %v1383 = vadd.f32 %v1348, 1.0
      %v1384 = vadd.f32 %v1350, 1.0
      %v1385 = vadd.f32 %v1352, 1.0
      %v1386 = vadd.f32 %v1354, 1.0
      %v1387 = vrcp.pop %v1355
      %v1388 = vmul.f32 %v1355, %v1387
      %v1389 = vsub.f32 1.0, %v1388
      %v1390 = vmul.f32 %v1387, %v1389
      %v1391 = vadd.f32 %v1387, %v1390
      %vm1392 = vweird.f32 %v1355
      %vm1393 = vweird.f32 %v1387
      %vm1394 = vmor %vm1392, %vm1393
      %v1395 = vsel %vm1394, %v1387, %v1391
      %v1396 = vand.u32 2147483647, %v1355
      %vm1397 = vcmp.eq.f32.partialorder %v1396, 8.507059e+37
      %v1398 = vand.u32 %v1355, 2147483648
      %v1399 = vor.u32 1.1754944e-38, %v1398
      %v1400 = vsel %vm1397, %v1399, %v1395
      %v1401 = vmul.f32 1.0, %v1400
      %v1402 = vrcp.pop %v1356
      %v1403 = vmul.f32 %v1356, %v1402
      %v1404 = vsub.f32 1.0, %v1403
      %v1405 = vmul.f32 %v1402, %v1404
      %v1406 = vadd.f32 %v1402, %v1405
      %vm1407 = vweird.f32 %v1356
      %vm1408 = vweird.f32 %v1402
      %vm1409 = vmor %vm1407, %vm1408
      %v1410 = vsel %vm1409, %v1402, %v1406
      %v1411 = vand.u32 2147483647, %v1356
      %vm1412 = vcmp.eq.f32.partialorder %v1411, 8.507059e+37
      %v1413 = vand.u32 %v1356, 2147483648
      %v1414 = vor.u32 1.1754944e-38, %v1413
      %v1415 = vsel %vm1412, %v1414, %v1410
      %v1416 = vmul.f32 1.0, %v1415
      %v1417 = vrcp.pop %v1357
      %v1418 = vmul.f32 %v1357, %v1417
      %v1419 = vsub.f32 1.0, %v1418
      %v1420 = vmul.f32 %v1417, %v1419
      %v1421 = vadd.f32 %v1417, %v1420
      %vm1422 = vweird.f32 %v1357
      %vm1423 = vweird.f32 %v1417
      %vm1424 = vmor %vm1422, %vm1423
      %v1425 = vsel %vm1424, %v1417, %v1421
      %v1426 = vand.u32 2147483647, %v1357
      %vm1427 = vcmp.eq.f32.partialorder %v1426, 8.507059e+37
      %v1428 = vand.u32 %v1357, 2147483648
      %v1429 = vor.u32 1.1754944e-38, %v1428
      %v1430 = vsel %vm1427, %v1429, %v1425
      %v1431 = vmul.f32 1.0, %v1430
      %v1432 = vrcp.pop %v1358
      %v1433 = vmul.f32 %v1358, %v1432
      %v1434 = vsub.f32 1.0, %v1433
      %v1435 = vmul.f32 %v1432, %v1434
      %v1436 = vadd.f32 %v1432, %v1435
      %vm1437 = vweird.f32 %v1358
      %vm1438 = vweird.f32 %v1432
      %vm1439 = vmor %vm1437, %vm1438
      %v1440 = vsel %vm1439, %v1432, %v1436
      %v1441 = vand.u32 2147483647, %v1358
      %vm1442 = vcmp.eq.f32.partialorder %v1441, 8.507059e+37
      %v1443 = vand.u32 %v1358, 2147483648
      %v1444 = vor.u32 1.1754944e-38, %v1443
      %v1445 = vsel %vm1442, %v1444, %v1440
      %v1446 = vmul.f32 1.0, %v1445
      %v1447 = vrcp.pop %v1359
      %v1448 = vmul.f32 %v1359, %v1447
      %v1449 = vsub.f32 1.0, %v1448
      %v1450 = vmul.f32 %v1447, %v1449
      %v1451 = vadd.f32 %v1447, %v1450
      %vm1452 = vweird.f32 %v1359
      %vm1453 = vweird.f32 %v1447
      %vm1454 = vmor %vm1452, %vm1453
      %v1455 = vsel %vm1454, %v1447, %v1451
      %v1456 = vand.u32 2147483647, %v1359
      %vm1457 = vcmp.eq.f32.partialorder %v1456, 8.507059e+37
      %v1458 = vand.u32 %v1359, 2147483648
      %v1459 = vor.u32 1.1754944e-38, %v1458
      %v1460 = vsel %vm1457, %v1459, %v1455
      %v1461 = vmul.f32 1.0, %v1460
      %v1462 = vrcp.pop %v1360
      %v1463 = vmul.f32 %v1360, %v1462
      %v1464 = vsub.f32 1.0, %v1463
      %v1465 = vmul.f32 %v1462, %v1464
      %v1466 = vadd.f32 %v1462, %v1465
      %vm1467 = vweird.f32 %v1360
      %vm1468 = vweird.f32 %v1462
      %vm1469 = vmor %vm1467, %vm1468
      %v1470 = vsel %vm1469, %v1462, %v1466
      %v1471 = vand.u32 2147483647, %v1360
      %vm1472 = vcmp.eq.f32.partialorder %v1471, 8.507059e+37
      %v1473 = vand.u32 %v1360, 2147483648
      %v1474 = vor.u32 1.1754944e-38, %v1473
      %v1475 = vsel %vm1472, %v1474, %v1470
      %v1476 = vmul.f32 1.0, %v1475
      %v1477 = vrcp.pop %v1361
      %v1478 = vmul.f32 %v1361, %v1477
      %v1479 = vsub.f32 1.0, %v1478
      %v1480 = vmul.f32 %v1477, %v1479
      %v1481 = vadd.f32 %v1477, %v1480
      %vm1482 = vweird.f32 %v1361
      %vm1483 = vweird.f32 %v1477
      %vm1484 = vmor %vm1482, %vm1483
      %v1485 = vsel %vm1484, %v1477, %v1481
      %v1486 = vand.u32 2147483647, %v1361
      %vm1487 = vcmp.eq.f32.partialorder %v1486, 8.507059e+37
      %v1488 = vand.u32 %v1361, 2147483648
      %v1489 = vor.u32 1.1754944e-38, %v1488
      %v1490 = vsel %vm1487, %v1489, %v1485
      %v1491 = vmul.f32 1.0, %v1490
      %v1492 = vrcp.pop %v1362
      %v1493 = vmul.f32 %v1362, %v1492
      %v1494 = vsub.f32 1.0, %v1493
      %v1495 = vmul.f32 %v1492, %v1494
      %v1496 = vadd.f32 %v1492, %v1495
      %vm1497 = vweird.f32 %v1362
      %vm1498 = vweird.f32 %v1492
      %vm1499 = vmor %vm1497, %vm1498
      %v1500 = vsel %vm1499, %v1492, %v1496
      %v1501 = vand.u32 2147483647, %v1362
      %vm1502 = vcmp.eq.f32.partialorder %v1501, 8.507059e+37
      %v1503 = vand.u32 %v1362, 2147483648
      %v1504 = vor.u32 1.1754944e-38, %v1503
      %v1505 = vsel %vm1502, %v1504, %v1500
      %v1506 = vmul.f32 1.0, %v1505
      %v1507 = vrcp.pop %v1363
      %v1508 = vmul.f32 %v1363, %v1507
      %v1509 = vsub.f32 1.0, %v1508
      %v1510 = vmul.f32 %v1507, %v1509
      %v1511 = vadd.f32 %v1507, %v1510
      %vm1512 = vweird.f32 %v1363
      %vm1513 = vweird.f32 %v1507
      %vm1514 = vmor %vm1512, %vm1513
      %v1515 = vsel %vm1514, %v1507, %v1511
      %v1516 = vand.u32 2147483647, %v1363
      %vm1517 = vcmp.eq.f32.partialorder %v1516, 8.507059e+37
      %v1518 = vand.u32 %v1363, 2147483648
      %v1519 = vor.u32 1.1754944e-38, %v1518
      %v1520 = vsel %vm1517, %v1519, %v1515
      %v1521 = vmul.f32 1.0, %v1520
      %v1522 = vrcp.pop %v1364
      %v1523 = vmul.f32 %v1364, %v1522
      %v1524 = vsub.f32 1.0, %v1523
      %v1525 = vmul.f32 %v1522, %v1524
      %v1526 = vadd.f32 %v1522, %v1525
      %vm1527 = vweird.f32 %v1364
      %vm1528 = vweird.f32 %v1522
      %vm1529 = vmor %vm1527, %vm1528
      %v1530 = vsel %vm1529, %v1522, %v1526
      %v1531 = vand.u32 2147483647, %v1364
      %vm1532 = vcmp.eq.f32.partialorder %v1531, 8.507059e+37
      %v1533 = vand.u32 %v1364, 2147483648
      %v1534 = vor.u32 1.1754944e-38, %v1533
      %v1535 = vsel %vm1532, %v1534, %v1530
      %v1536 = vmul.f32 1.0, %v1535
      %v1537 = vrcp.pop %v1365
      %v1538 = vmul.f32 %v1365, %v1537
      %v1539 = vsub.f32 1.0, %v1538
      %v1540 = vmul.f32 %v1537, %v1539
      %v1541 = vadd.f32 %v1537, %v1540
      %vm1542 = vweird.f32 %v1365
      %vm1543 = vweird.f32 %v1537
      %vm1544 = vmor %vm1542, %vm1543
      %v1545 = vsel %vm1544, %v1537, %v1541
      %v1546 = vand.u32 2147483647, %v1365
      %vm1547 = vcmp.eq.f32.partialorder %v1546, 8.507059e+37
      %v1548 = vand.u32 %v1365, 2147483648
      %v1549 = vor.u32 1.1754944e-38, %v1548
      %v1550 = vsel %vm1547, %v1549, %v1545
      %v1551 = vmul.f32 1.0, %v1550
      %v1552 = vrcp.pop %v1366
      %v1553 = vmul.f32 %v1366, %v1552
      %v1554 = vsub.f32 1.0, %v1553
      %v1555 = vmul.f32 %v1552, %v1554
      %v1556 = vadd.f32 %v1552, %v1555
      %vm1557 = vweird.f32 %v1366
      %vm1558 = vweird.f32 %v1552
      %vm1559 = vmor %vm1557, %vm1558
      %v1560 = vsel %vm1559, %v1552, %v1556
      %v1561 = vand.u32 2147483647, %v1366
      %vm1562 = vcmp.eq.f32.partialorder %v1561, 8.507059e+37
      %v1563 = vand.u32 %v1366, 2147483648
      %v1564 = vor.u32 1.1754944e-38, %v1563
      %v1565 = vsel %vm1562, %v1564, %v1560
      %v1566 = vmul.f32 1.0, %v1565
      %v1567 = vrcp.pop %v1367
      %v1568 = vmul.f32 %v1367, %v1567
      %v1569 = vsub.f32 1.0, %v1568
      %v1570 = vmul.f32 %v1567, %v1569
      %v1571 = vadd.f32 %v1567, %v1570
      %vm1572 = vweird.f32 %v1367
      %vm1573 = vweird.f32 %v1567
      %vm1574 = vmor %vm1572, %vm1573
      %v1575 = vsel %vm1574, %v1567, %v1571
      %v1576 = vand.u32 2147483647, %v1367
      %vm1577 = vcmp.eq.f32.partialorder %v1576, 8.507059e+37
      %v1578 = vand.u32 %v1367, 2147483648
      %v1579 = vor.u32 1.1754944e-38, %v1578
      %v1580 = vsel %vm1577, %v1579, %v1575
      %v1581 = vmul.f32 1.0, %v1580
      %v1582 = vrcp.pop %v1368
      %v1583 = vmul.f32 %v1368, %v1582
      %v1584 = vsub.f32 1.0, %v1583
      %v1585 = vmul.f32 %v1582, %v1584
      %v1586 = vadd.f32 %v1582, %v1585
      %vm1587 = vweird.f32 %v1368
      %vm1588 = vweird.f32 %v1582
      %vm1589 = vmor %vm1587, %vm1588
      %v1590 = vsel %vm1589, %v1582, %v1586
      %v1591 = vand.u32 2147483647, %v1368
      %vm1592 = vcmp.eq.f32.partialorder %v1591, 8.507059e+37
      %v1593 = vand.u32 %v1368, 2147483648
      %v1594 = vor.u32 1.1754944e-38, %v1593
      %v1595 = vsel %vm1592, %v1594, %v1590
      %v1596 = vmul.f32 1.0, %v1595
      %v1597 = vrcp.pop %v1369
      %v1598 = vmul.f32 %v1369, %v1597
      %v1599 = vsub.f32 1.0, %v1598
      %v1600 = vmul.f32 %v1597, %v1599
      %v1601 = vadd.f32 %v1597, %v1600
      %vm1602 = vweird.f32 %v1369
      %vm1603 = vweird.f32 %v1597
      %vm1604 = vmor %vm1602, %vm1603
      %v1605 = vsel %vm1604, %v1597, %v1601
      %v1606 = vand.u32 2147483647, %v1369
      %vm1607 = vcmp.eq.f32.partialorder %v1606, 8.507059e+37
      %v1608 = vand.u32 %v1369, 2147483648
      %v1609 = vor.u32 1.1754944e-38, %v1608
      %v1610 = vsel %vm1607, %v1609, %v1605
      %v1611 = vmul.f32 1.0, %v1610
      %v1612 = vrcp.pop %v1370
      %v1613 = vmul.f32 %v1370, %v1612
      %v1614 = vsub.f32 1.0, %v1613
      %v1615 = vmul.f32 %v1612, %v1614
      %v1616 = vadd.f32 %v1612, %v1615
      %vm1617 = vweird.f32 %v1370
      %vm1618 = vweird.f32 %v1612
      %vm1619 = vmor %vm1617, %vm1618
      %v1620 = vsel %vm1619, %v1612, %v1616
      %v1621 = vand.u32 2147483647, %v1370
      %vm1622 = vcmp.eq.f32.partialorder %v1621, 8.507059e+37
      %v1623 = vand.u32 %v1370, 2147483648
      %v1624 = vor.u32 1.1754944e-38, %v1623
      %v1625 = vsel %vm1622, %v1624, %v1620
      %v1626 = vmul.f32 1.0, %v1625
      %v1627 = vrcp.pop %v1371
      %v1628 = vmul.f32 %v1371, %v1627
      %v1629 = vsub.f32 1.0, %v1628
      %v1630 = vmul.f32 %v1627, %v1629
      %v1631 = vadd.f32 %v1627, %v1630
      %vm1632 = vweird.f32 %v1371
      %vm1633 = vweird.f32 %v1627
      %vm1634 = vmor %vm1632, %vm1633
      %v1635 = vsel %vm1634, %v1627, %v1631
      %v1636 = vand.u32 2147483647, %v1371
      %vm1637 = vcmp.eq.f32.partialorder %v1636, 8.507059e+37
      %v1638 = vand.u32 %v1371, 2147483648
      %v1639 = vor.u32 1.1754944e-38, %v1638
      %v1640 = vsel %vm1637, %v1639, %v1635
      %v1641 = vmul.f32 1.0, %v1640
      %v1642 = vrcp.pop %v1372
      %v1643 = vmul.f32 %v1372, %v1642
      %v1644 = vsub.f32 1.0, %v1643
      %v1645 = vmul.f32 %v1642, %v1644
      %v1646 = vadd.f32 %v1642, %v1645
      %vm1647 = vweird.f32 %v1372
      %vm1648 = vweird.f32 %v1642
      %vm1649 = vmor %vm1647, %vm1648
      %v1650 = vsel %vm1649, %v1642, %v1646
      %v1651 = vand.u32 2147483647, %v1372
      %vm1652 = vcmp.eq.f32.partialorder %v1651, 8.507059e+37
      %v1653 = vand.u32 %v1372, 2147483648
      %v1654 = vor.u32 1.1754944e-38, %v1653
      %v1655 = vsel %vm1652, %v1654, %v1650
      %v1656 = vmul.f32 1.0, %v1655
      %v1657 = vrcp.pop %v1373
      %v1658 = vmul.f32 %v1373, %v1657
      %v1659 = vsub.f32 1.0, %v1658
      %v1660 = vmul.f32 %v1657, %v1659
      %v1661 = vadd.f32 %v1657, %v1660
      %vm1662 = vweird.f32 %v1373
      %vm1663 = vweird.f32 %v1657
      %vm1664 = vmor %vm1662, %vm1663
      %v1665 = vsel %vm1664, %v1657, %v1661
      %v1666 = vand.u32 2147483647, %v1373
      %vm1667 = vcmp.eq.f32.partialorder %v1666, 8.507059e+37
      %v1668 = vand.u32 %v1373, 2147483648
      %v1669 = vor.u32 1.1754944e-38, %v1668
      %v1670 = vsel %vm1667, %v1669, %v1665
      %v1671 = vmul.f32 1.0, %v1670
      %v1672 = vrcp.pop %v1374
      %v1673 = vmul.f32 %v1374, %v1672
      %v1674 = vsub.f32 1.0, %v1673
      %v1675 = vmul.f32 %v1672, %v1674
      %v1676 = vadd.f32 %v1672, %v1675
      %vm1677 = vweird.f32 %v1374
      %vm1678 = vweird.f32 %v1672
      %vm1679 = vmor %vm1677, %vm1678
      %v1680 = vsel %vm1679, %v1672, %v1676
      %v1681 = vand.u32 2147483647, %v1374
      %vm1682 = vcmp.eq.f32.partialorder %v1681, 8.507059e+37
      %v1683 = vand.u32 %v1374, 2147483648
      %v1684 = vor.u32 1.1754944e-38, %v1683
      %v1685 = vsel %vm1682, %v1684, %v1680
      %v1686 = vmul.f32 1.0, %v1685
      %v1687 = vrcp.pop %v1375
      %v1688 = vmul.f32 %v1375, %v1687
      %v1689 = vsub.f32 1.0, %v1688
      %v1690 = vmul.f32 %v1687, %v1689
      %v1691 = vadd.f32 %v1687, %v1690
      %vm1692 = vweird.f32 %v1375
      %vm1693 = vweird.f32 %v1687
      %vm1694 = vmor %vm1692, %vm1693
      %v1695 = vsel %vm1694, %v1687, %v1691
      %v1696 = vand.u32 2147483647, %v1375
      %vm1697 = vcmp.eq.f32.partialorder %v1696, 8.507059e+37
      %v1698 = vand.u32 %v1375, 2147483648
      %v1699 = vor.u32 1.1754944e-38, %v1698
      %v1700 = vsel %vm1697, %v1699, %v1695
      %v1701 = vmul.f32 1.0, %v1700
      %v1702 = vrcp.pop %v1376
      %v1703 = vmul.f32 %v1376, %v1702
      %v1704 = vsub.f32 1.0, %v1703
      %v1705 = vmul.f32 %v1702, %v1704
      %v1706 = vadd.f32 %v1702, %v1705
      %vm1707 = vweird.f32 %v1376
      %vm1708 = vweird.f32 %v1702
      %vm1709 = vmor %vm1707, %vm1708
      %v1710 = vsel %vm1709, %v1702, %v1706
      %v1711 = vand.u32 2147483647, %v1376
      %vm1712 = vcmp.eq.f32.partialorder %v1711, 8.507059e+37
      %v1713 = vand.u32 %v1376, 2147483648
      %v1714 = vor.u32 1.1754944e-38, %v1713
      %v1715 = vsel %vm1712, %v1714, %v1710
      %v1716 = vmul.f32 1.0, %v1715
      %v1717 = vrcp.pop %v1377
      %v1718 = vmul.f32 %v1377, %v1717
      %v1719 = vsub.f32 1.0, %v1718
      %v1720 = vmul.f32 %v1717, %v1719
      %v1721 = vadd.f32 %v1717, %v1720
      %vm1722 = vweird.f32 %v1377
      %vm1723 = vweird.f32 %v1717
      %vm1724 = vmor %vm1722, %vm1723
      %v1725 = vsel %vm1724, %v1717, %v1721
      %v1726 = vand.u32 2147483647, %v1377
      %vm1727 = vcmp.eq.f32.partialorder %v1726, 8.507059e+37
      %v1728 = vand.u32 %v1377, 2147483648
      %v1729 = vor.u32 1.1754944e-38, %v1728
      %v1730 = vsel %vm1727, %v1729, %v1725
      %v1731 = vmul.f32 1.0, %v1730
      %v1732 = vrcp.pop %v1378
      %v1733 = vmul.f32 %v1378, %v1732
      %v1734 = vsub.f32 1.0, %v1733
      %v1735 = vmul.f32 %v1732, %v1734
      %v1736 = vadd.f32 %v1732, %v1735
      %vm1737 = vweird.f32 %v1378
      %vm1738 = vweird.f32 %v1732
      %vm1739 = vmor %vm1737, %vm1738
      %v1740 = vsel %vm1739, %v1732, %v1736
      %v1741 = vand.u32 2147483647, %v1378
      %vm1742 = vcmp.eq.f32.partialorder %v1741, 8.507059e+37
      %v1743 = vand.u32 %v1378, 2147483648
      %v1744 = vor.u32 1.1754944e-38, %v1743
      %v1745 = vsel %vm1742, %v1744, %v1740
      %v1746 = vmul.f32 1.0, %v1745
      %v1747 = vrcp.pop %v1379
      %v1748 = vmul.f32 %v1379, %v1747
      %v1749 = vsub.f32 1.0, %v1748
      %v1750 = vmul.f32 %v1747, %v1749
      %v1751 = vadd.f32 %v1747, %v1750
      %vm1752 = vweird.f32 %v1379
      %vm1753 = vweird.f32 %v1747
      %vm1754 = vmor %vm1752, %vm1753
      %v1755 = vsel %vm1754, %v1747, %v1751
      %v1756 = vand.u32 2147483647, %v1379
      %vm1757 = vcmp.eq.f32.partialorder %v1756, 8.507059e+37
      %v1758 = vand.u32 %v1379, 2147483648
      %v1759 = vor.u32 1.1754944e-38, %v1758
      %v1760 = vsel %vm1757, %v1759, %v1755
      %v1761 = vmul.f32 1.0, %v1760
      %v1762 = vrcp.pop %v1380
      %v1763 = vmul.f32 %v1380, %v1762
      %v1764 = vsub.f32 1.0, %v1763
      %v1765 = vmul.f32 %v1762, %v1764
      %v1766 = vadd.f32 %v1762, %v1765
      %vm1767 = vweird.f32 %v1380
      %vm1768 = vweird.f32 %v1762
      %vm1769 = vmor %vm1767, %vm1768
      %v1770 = vsel %vm1769, %v1762, %v1766
      %v1771 = vand.u32 2147483647, %v1380
      %vm1772 = vcmp.eq.f32.partialorder %v1771, 8.507059e+37
      %v1773 = vand.u32 %v1380, 2147483648
      %v1774 = vor.u32 1.1754944e-38, %v1773
      %v1775 = vsel %vm1772, %v1774, %v1770
      %v1776 = vmul.f32 1.0, %v1775
      %v1777 = vrcp.pop %v1381
      %v1778 = vmul.f32 %v1381, %v1777
      %v1779 = vsub.f32 1.0, %v1778
      %v1780 = vmul.f32 %v1777, %v1779
      %v1781 = vadd.f32 %v1777, %v1780
      %vm1782 = vweird.f32 %v1381
      %vm1783 = vweird.f32 %v1777
      %vm1784 = vmor %vm1782, %vm1783
      %v1785 = vsel %vm1784, %v1777, %v1781
      %v1786 = vand.u32 2147483647, %v1381
      %vm1787 = vcmp.eq.f32.partialorder %v1786, 8.507059e+37
      %v1788 = vand.u32 %v1381, 2147483648
      %v1789 = vor.u32 1.1754944e-38, %v1788
      %v1790 = vsel %vm1787, %v1789, %v1785
      %v1791 = vmul.f32 1.0, %v1790
      %v1792 = vrcp.pop %v1382
      %v1793 = vmul.f32 %v1382, %v1792
      %v1794 = vsub.f32 1.0, %v1793
      %v1795 = vmul.f32 %v1792, %v1794
      %v1796 = vadd.f32 %v1792, %v1795
      %vm1797 = vweird.f32 %v1382
      %vm1798 = vweird.f32 %v1792
      %vm1799 = vmor %vm1797, %vm1798
      %v1800 = vsel %vm1799, %v1792, %v1796
      %v1801 = vand.u32 2147483647, %v1382
      %vm1802 = vcmp.eq.f32.partialorder %v1801, 8.507059e+37
      %v1803 = vand.u32 %v1382, 2147483648
      %v1804 = vor.u32 1.1754944e-38, %v1803
      %v1805 = vsel %vm1802, %v1804, %v1800
      %v1806 = vmul.f32 1.0, %v1805
      %v1807 = vrcp.pop %v1383
      %v1808 = vmul.f32 %v1383, %v1807
      %v1809 = vsub.f32 1.0, %v1808
      %v1810 = vmul.f32 %v1807, %v1809
      %v1811 = vadd.f32 %v1807, %v1810
      %vm1812 = vweird.f32 %v1383
      %vm1813 = vweird.f32 %v1807
      %vm1814 = vmor %vm1812, %vm1813
      %v1815 = vsel %vm1814, %v1807, %v1811
      %v1816 = vand.u32 2147483647, %v1383
      %vm1817 = vcmp.eq.f32.partialorder %v1816, 8.507059e+37
      %v1818 = vand.u32 %v1383, 2147483648
      %v1819 = vor.u32 1.1754944e-38, %v1818
      %v1820 = vsel %vm1817, %v1819, %v1815
      %v1821 = vmul.f32 1.0, %v1820
      %v1822 = vrcp.pop %v1384
      %v1823 = vmul.f32 %v1384, %v1822
      %v1824 = vsub.f32 1.0, %v1823
      %v1825 = vmul.f32 %v1822, %v1824
      %v1826 = vadd.f32 %v1822, %v1825
      %vm1827 = vweird.f32 %v1384
      %vm1828 = vweird.f32 %v1822
      %vm1829 = vmor %vm1827, %vm1828
      %v1830 = vsel %vm1829, %v1822, %v1826
      %v1831 = vand.u32 2147483647, %v1384
      %vm1832 = vcmp.eq.f32.partialorder %v1831, 8.507059e+37
      %v1833 = vand.u32 %v1384, 2147483648
      %v1834 = vor.u32 1.1754944e-38, %v1833
      %v1835 = vsel %vm1832, %v1834, %v1830
      %v1836 = vmul.f32 1.0, %v1835
      %v1837 = vrcp.pop %v1385
      %v1838 = vmul.f32 %v1385, %v1837
      %v1839 = vsub.f32 1.0, %v1838
      %v1840 = vmul.f32 %v1837, %v1839
      %v1841 = vadd.f32 %v1837, %v1840
      %vm1842 = vweird.f32 %v1385
      %vm1843 = vweird.f32 %v1837
      %vm1844 = vmor %vm1842, %vm1843
      %v1845 = vsel %vm1844, %v1837, %v1841
      %v1846 = vand.u32 2147483647, %v1385
      %vm1847 = vcmp.eq.f32.partialorder %v1846, 8.507059e+37
      %v1848 = vand.u32 %v1385, 2147483648
      %v1849 = vor.u32 1.1754944e-38, %v1848
      %v1850 = vsel %vm1847, %v1849, %v1845
      %v1851 = vmul.f32 1.0, %v1850
      %v1852 = vrcp.pop %v1386
      %v1853 = vmul.f32 %v1386, %v1852
      %v1854 = vsub.f32 1.0, %v1853
      %v1855 = vmul.f32 %v1852, %v1854
      %v1856 = vadd.f32 %v1852, %v1855
      %vm1857 = vweird.f32 %v1386
      %vm1858 = vweird.f32 %v1852
      %vm1859 = vmor %vm1857, %vm1858
      %v1860 = vsel %vm1859, %v1852, %v1856
      %v1861 = vand.u32 2147483647, %v1386
      %vm1862 = vcmp.eq.f32.partialorder %v1861, 8.507059e+37
      %v1863 = vand.u32 %v1386, 2147483648
      %v1864 = vor.u32 1.1754944e-38, %v1863
      %v1865 = vsel %vm1862, %v1864, %v1860
      %v1866 = vmul.f32 1.0, %v1865
      %v1867 = vmul.f32 %v1180, %v1401
      %v1868 = vmul.f32 %v1182, %v1416
      %v1869 = vmul.f32 %v1185, %v1431
      %v1870 = vmul.f32 %v1187, %v1446
      %v1871 = vmul.f32 %v1190, %v1461
      %v1872 = vmul.f32 %v1192, %v1476
      %v1873 = vmul.f32 %v1195, %v1491
      %v1874 = vmul.f32 %v1197, %v1506
      %v1875 = vmul.f32 %v1200, %v1521
      %v1876 = vmul.f32 %v1202, %v1536
      %v1877 = vmul.f32 %v1205, %v1551
      %v1878 = vmul.f32 %v1207, %v1566
      %v1879 = vmul.f32 %v1210, %v1581
      %v1880 = vmul.f32 %v1212, %v1596
      %v1881 = vmul.f32 %v1215, %v1611
      %v1882 = vmul.f32 %v1217, %v1626
      %v1883 = vmul.f32 %v1220, %v1641
      %v1884 = vmul.f32 %v1222, %v1656
      %v1885 = vmul.f32 %v1225, %v1671
      %v1886 = vmul.f32 %v1227, %v1686
      %v1887 = vmul.f32 %v1230, %v1701
      %v1888 = vmul.f32 %v1232, %v1716
      %v1889 = vmul.f32 %v1235, %v1731
      %v1890 = vmul.f32 %v1237, %v1746
      %v1891 = vmul.f32 %v1240, %v1761
      %v1892 = vmul.f32 %v1242, %v1776
      %v1893 = vmul.f32 %v1245, %v1791
      %v1894 = vmul.f32 %v1247, %v1806
      %v1895 = vmul.f32 %v1250, %v1821
      %v1896 = vmul.f32 %v1252, %v1836
      %v1897 = vmul.f32 %v1255, %v1851
      %v1898 = vmul.f32 %v1257, %v1866
      %v1899 = vpack.c.bf16 %v1868, %v1867
      %v1900 = vpack.c.bf16 %v1870, %v1869
      %v1901 = vpack.c.bf16 %v1872, %v1871
      %v1902 = vpack.c.bf16 %v1874, %v1873
      %v1903 = vpack.c.bf16 %v1876, %v1875
      %v1904 = vpack.c.bf16 %v1878, %v1877
      %v1905 = vpack.c.bf16 %v1880, %v1879
      %v1906 = vpack.c.bf16 %v1882, %v1881
      %v1907 = vpack.c.bf16 %v1884, %v1883
      %v1908 = vpack.c.bf16 %v1886, %v1885
      %v1909 = vpack.c.bf16 %v1888, %v1887
      %v1910 = vpack.c.bf16 %v1890, %v1889
      %v1911 = vpack.c.bf16 %v1892, %v1891
      %v1912 = vpack.c.bf16 %v1894, %v1893
      %v1913 = vpack.c.bf16 %v1896, %v1895
      %v1914 = vpack.c.bf16 %v1898, %v1897
      %v1915 = vld [vmem:[%s5] sm:$0xff]
      %v1916 = vld [vmem:[%s5 + $0x8] sm:$0xff]
      %v1917 = vld [vmem:[%s5 + $0x10] sm:$0xff]
      %v1918 = vld [vmem:[%s5 + $0x18] sm:$0xff]
      %v1919 = vpack.c.bf16 %v1916, %v1915
      %v1920 = vpack.c.bf16 %v1918, %v1917
      %v1921 = vld [vmem:[%s6] sm:$0x1]
      %v1923 = vperm.slane %v1921, 0
      %vm1925 = vcmask 261120
      %v1927 = vsel %vm1925, %v1899, 0
      %v1930 = vsel %vm1925, %v1900, 0
      %v1933 = vsel %vm1925, %v1901, 0
      %v1936 = vsel %vm1925, %v1902, 0
      %v1939 = vsel %vm1925, %v1903, 0
      %v1942 = vsel %vm1925, %v1904, 0
      %v1945 = vsel %vm1925, %v1905, 0
      %v1948 = vsel %vm1925, %v1906, 0
      %v1951 = vsel %vm1925, %v1907, 0
      %v1954 = vsel %vm1925, %v1908, 0
      %v1957 = vsel %vm1925, %v1909, 0
      %v1960 = vsel %vm1925, %v1910, 0
      %v1963 = vsel %vm1925, %v1911, 0
      %v1966 = vsel %vm1925, %v1912, 0
      %v1969 = vsel %vm1925, %v1913, 0
      %v1972 = vsel %vm1925, %v1914, 0
      %1974 = vmatpush.bf16.msra.mxu0 0
      %1975 = vmatpush.bf16.msra.mxu0 0
      %1976 = vmatpush.bf16.msra.mxu0 0
      %1977 = vmatpush.bf16.msra.mxu0 0
      %1978 = vmatpush.bf16.msra.mxu0 0
      %1979 = vmatpush.bf16.msra.mxu0 0
      %1980 = vmatpush.bf16.msra.mxu0 %v1920
      %1981 = vmatpush.bf16.msra.mxu0 %v1919
      %1982 = vmatmul.bf16.gmra.mxu0 %v1927
      %v1983 = vpop.f32.mrf.mxu0
      %v1984 = vadd.f32 %v1923, %v1983
      %v1985 = vpop.f32.mrf.mxu0
      %v1986 = vadd.f32 %v1923, %v1985
      %1987 = vmatmul.bf16.gmra.mxu0 %v1930
      %v1988 = vpop.f32.mrf.mxu0
      %v1989 = vadd.f32 %v1923, %v1988
      %v1990 = vpop.f32.mrf.mxu0
      %v1991 = vadd.f32 %v1923, %v1990
      %1992 = vmatmul.bf16.gmra.mxu0 %v1933
      %v1993 = vpop.f32.mrf.mxu0
      %v1994 = vadd.f32 %v1923, %v1993
      %v1995 = vpop.f32.mrf.mxu0
      %v1996 = vadd.f32 %v1923, %v1995
      %1997 = vmatmul.bf16.gmra.mxu0 %v1936
      %v1998 = vpop.f32.mrf.mxu0
      %v1999 = vadd.f32 %v1923, %v1998
      %v2000 = vpop.f32.mrf.mxu0
      %v2001 = vadd.f32 %v1923, %v2000
      %2002 = vmatmul.bf16.gmra.mxu0 %v1939
      %v2003 = vpop.f32.mrf.mxu0
      %v2004 = vadd.f32 %v1923, %v2003
      %v2005 = vpop.f32.mrf.mxu0
      %v2006 = vadd.f32 %v1923, %v2005
      %2007 = vmatmul.bf16.gmra.mxu0 %v1942
      %v2008 = vpop.f32.mrf.mxu0
      %v2009 = vadd.f32 %v1923, %v2008
      %v2010 = vpop.f32.mrf.mxu0
      %v2011 = vadd.f32 %v1923, %v2010
      %2012 = vmatmul.bf16.gmra.mxu0 %v1945
      %v2013 = vpop.f32.mrf.mxu0
      %v2014 = vadd.f32 %v1923, %v2013
      %v2015 = vpop.f32.mrf.mxu0
      %v2016 = vadd.f32 %v1923, %v2015
      %2017 = vmatmul.bf16.gmra.mxu0 %v1948
      %v2018 = vpop.f32.mrf.mxu0
      %v2019 = vadd.f32 %v1923, %v2018
      %v2020 = vpop.f32.mrf.mxu0
      %v2021 = vadd.f32 %v1923, %v2020
      %2022 = vmatmul.bf16.gmra.mxu0 %v1951
      %v2023 = vpop.f32.mrf.mxu0
      %v2024 = vadd.f32 %v1923, %v2023
      %v2025 = vpop.f32.mrf.mxu0
      %v2026 = vadd.f32 %v1923, %v2025
      %2027 = vmatmul.bf16.gmra.mxu0 %v1954
      %v2028 = vpop.f32.mrf.mxu0
      %v2029 = vadd.f32 %v1923, %v2028
      %v2030 = vpop.f32.mrf.mxu0
      %v2031 = vadd.f32 %v1923, %v2030
      %2032 = vmatmul.bf16.gmra.mxu0 %v1957
      %v2033 = vpop.f32.mrf.mxu0
      %v2034 = vadd.f32 %v1923, %v2033
      %v2035 = vpop.f32.mrf.mxu0
      %v2036 = vadd.f32 %v1923, %v2035
      %2037 = vmatmul.bf16.gmra.mxu0 %v1960
      %v2038 = vpop.f32.mrf.mxu0
      %v2039 = vadd.f32 %v1923, %v2038
      %v2040 = vpop.f32.mrf.mxu0
      %v2041 = vadd.f32 %v1923, %v2040
      %2042 = vmatmul.bf16.gmra.mxu0 %v1963
      %v2043 = vpop.f32.mrf.mxu0
      %v2044 = vadd.f32 %v1923, %v2043
      %v2045 = vpop.f32.mrf.mxu0
      %v2046 = vadd.f32 %v1923, %v2045
      %2047 = vmatmul.bf16.gmra.mxu0 %v1966
      %v2048 = vpop.f32.mrf.mxu0
      %v2049 = vadd.f32 %v1923, %v2048
      %v2050 = vpop.f32.mrf.mxu0
      %v2051 = vadd.f32 %v1923, %v2050
      %2052 = vmatmul.bf16.gmra.mxu0 %v1969
      %v2053 = vpop.f32.mrf.mxu0
      %v2054 = vadd.f32 %v1923, %v2053
      %v2055 = vpop.f32.mrf.mxu0
      %v2056 = vadd.f32 %v1923, %v2055
      %2057 = vmatmul.bf16.gmra.mxu0 %v1972
      %v2058 = vpop.f32.mrf.mxu0
      %v2059 = vadd.f32 %v1923, %v2058
      %v2060 = vpop.f32.mrf.mxu0
      %v2061 = vadd.f32 %v1923, %v2060
      %2062 = vdwg.mxu0
      %v2063 = vadd.f32 %v283, %v1984
      %v2064 = vadd.f32 %v284, %v1986
      %v2065 = vadd.f32 %v285, %v1989
      %v2066 = vadd.f32 %v286, %v1991
      %v2067 = vadd.f32 %v287, %v1994
      %v2068 = vadd.f32 %v288, %v1996
      %v2069 = vadd.f32 %v289, %v1999
      %v2070 = vadd.f32 %v290, %v2001
      %v2071 = vadd.f32 %v291, %v2004
      %v2072 = vadd.f32 %v292, %v2006
      %v2073 = vadd.f32 %v293, %v2009
      %v2074 = vadd.f32 %v294, %v2011
      %v2075 = vadd.f32 %v295, %v2014
      %v2076 = vadd.f32 %v296, %v2016
      %v2077 = vadd.f32 %v297, %v2019
      %v2078 = vadd.f32 %v298, %v2021
      %v2079 = vadd.f32 %v299, %v2024
      %v2080 = vadd.f32 %v300, %v2026
      %v2081 = vadd.f32 %v301, %v2029
      %v2082 = vadd.f32 %v302, %v2031
      %v2083 = vadd.f32 %v303, %v2034
      %v2084 = vadd.f32 %v304, %v2036
      %v2085 = vadd.f32 %v305, %v2039
      %v2086 = vadd.f32 %v306, %v2041
      %v2087 = vadd.f32 %v307, %v2044
      %v2088 = vadd.f32 %v308, %v2046
      %v2089 = vadd.f32 %v309, %v2049
      %v2090 = vadd.f32 %v310, %v2051
      %v2091 = vadd.f32 %v311, %v2054
      %v2092 = vadd.f32 %v312, %v2056
      %v2093 = vadd.f32 %v313, %v2059
      %v2094 = vadd.f32 %v314, %v2061
      %2095 = vst.msk [vmem:[%s280] sm:$0xff] %vm315, %v2063
      %2096 = vst.msk [vmem:[%s280 + $0x8] sm:$0xff] %vm315, %v2064
      %2097 = vst.msk [vmem:[%s280 + $0x10] sm:$0xff] %vm315, %v2065
      %2098 = vst.msk [vmem:[%s280 + $0x18] sm:$0xff] %vm315, %v2066
      %2099 = vst.msk [vmem:[%s280 + $0x20] sm:$0xff] %vm315, %v2067
      %2100 = vst.msk [vmem:[%s280 + $0x28] sm:$0xff] %vm315, %v2068
      %2101 = vst.msk [vmem:[%s280 + $0x30] sm:$0xff] %vm315, %v2069
      %2102 = vst.msk [vmem:[%s280 + $0x38] sm:$0xff] %vm315, %v2070
      %2103 = vst.msk [vmem:[%s280 + $0x40] sm:$0xff] %vm315, %v2071
      %2104 = vst.msk [vmem:[%s280 + $0x48] sm:$0xff] %vm315, %v2072
      %2105 = vst.msk [vmem:[%s280 + $0x50] sm:$0xff] %vm315, %v2073
      %2106 = vst.msk [vmem:[%s280 + $0x58] sm:$0xff] %vm315, %v2074
      %2107 = vst.msk [vmem:[%s280 + $0x60] sm:$0xff] %vm315, %v2075
      %2108 = vst.msk [vmem:[%s280 + $0x68] sm:$0xff] %vm315, %v2076
      %2109 = vst.msk [vmem:[%s280 + $0x70] sm:$0xff] %vm315, %v2077
      %2110 = vst.msk [vmem:[%s280 + $0x78] sm:$0xff] %vm315, %v2078
      %2111 = vst.msk [vmem:[%s280 + $0x80] sm:$0xff] %vm315, %v2079
      %2112 = vst.msk [vmem:[%s280 + $0x88] sm:$0xff] %vm315, %v2080
      %2113 = vst.msk [vmem:[%s280 + $0x90] sm:$0xff] %vm315, %v2081
      %2114 = vst.msk [vmem:[%s280 + $0x98] sm:$0xff] %vm315, %v2082
      %2115 = vst.msk [vmem:[%s280 + $0xa0] sm:$0xff] %vm315, %v2083
      %2116 = vst.msk [vmem:[%s280 + $0xa8] sm:$0xff] %vm315, %v2084
      %2117 = vst.msk [vmem:[%s280 + $0xb0] sm:$0xff] %vm315, %v2085
      %2118 = vst.msk [vmem:[%s280 + $0xb8] sm:$0xff] %vm315, %v2086
      %2119 = vst.msk [vmem:[%s280 + $0xc0] sm:$0xff] %vm315, %v2087
      %2120 = vst.msk [vmem:[%s280 + $0xc8] sm:$0xff] %vm315, %v2088
      %2121 = vst.msk [vmem:[%s280 + $0xd0] sm:$0xff] %vm315, %v2089
      %2122 = vst.msk [vmem:[%s280 + $0xd8] sm:$0xff] %vm315, %v2090
      %2123 = vst.msk [vmem:[%s280 + $0xe0] sm:$0xff] %vm315, %v2091
      %2124 = vst.msk [vmem:[%s280 + $0xe8] sm:$0xff] %vm315, %v2092
      %2125 = vst.msk [vmem:[%s280 + $0xf0] sm:$0xff] %vm315, %v2093
      %2126 = vst.msk [vmem:[%s280 + $0xf8] sm:$0xff] %vm315, %v2094
      %s2127 = smul.u32 32, %s18
      %p2128 = scmp.lt.s32.totalorder %s2127, 63
      %s2129 = scalar_select %p2128, %s2127, 63
      %s2130 = smul.addr %s2129, 8
      %s2131 = scalar_lea.vmem %s7, %s2130
      // Predicated region
      $region49: #{mobilevit_block_forward.11} parent=47 // pred_check
        %p2132 = pneg %p188
      $region50: #{mobilevit_block_forward.11} parent=47 // pred_check_branch
        %2134 = sbr.rel (%p2132) target = $region52
      $region51: #{mobilevit_block_forward.11} parent=47 // pred_region
        %s2135 = smul.u32 32, %s18
      $region52: #{mobilevit_block_forward.11} parent=47 // pred_fallthru
        _
    $region48: #{mobilevit_block_forward.11} parent=5 // pred_fallthru
      _
    %p2136 = scmp.le.s32.totalorder 2, %s13
    // Predicated region
    $region53: #{mobilevit_block_forward.11} parent=5 // pred_check
      %p2137 = pneg %p2136
    $region54: #{mobilevit_block_forward.11} parent=5 // pred_check_branch
      %2139 = sbr.rel (%p2137) target = $region56
    $region55: #{mobilevit_block_forward.11} parent=5 // pred_region
      %s2140 = ssub.s32 %s13, 2
      // Predicated region
      $region57: #{mobilevit_block_forward.11} parent=55 // pred_check
        %p2141 = pneg %p194
      $region58: #{mobilevit_block_forward.11} parent=55 // pred_check_branch
        %2143 = sbr.rel (%p2141) target = $region60
      $region59: #{mobilevit_block_forward.11} parent=55 // pred_region
        %s2144 = smul.u32 32, %s19
        %p2145 = scmp.lt.s32.totalorder %s2144, 63
        %s2146 = scalar_select %p2145, %s2144, 63
        %s2147 = smul.addr %s2146, 8
        %s2148 = scalar_lea.vmem %s7, %s2147
      $region60: #{mobilevit_block_forward.11} parent=55 // pred_fallthru
        _
    $region56: #{mobilevit_block_forward.11} parent=5 // pred_fallthru
      _
  $region6: #{mobilevit_block_forward.11} parent=0 // loop_footer
    %s17 = sadd.s32 1, %s13
  $region7: #{mobilevit_block_forward.11} parent=0 // loop_footer_branch
    %12 = sbr.rel target = $region3
  $region8: #{mobilevit_block_forward.11} parent=0 // loop_exit
    _

// kernel: mobilevit_block_forward.10
$region0: #{mobilevit_block_forward.10}
  #allocation0 [shape = 'u32[]', space=smem, size = 0x4, offset = 0x4, fixed_abs, tag = 'smem constant byte address 0x4 - core index']
  #allocation1 [shape = 'u32[72,128]{1,0:T(1,128)}', space=vmem, size = 0x9000, scoped, tag = 'internal scratch']
  %s0 = inlined_call_operand.vmem [shape: f32[8,64,16], index: 0, kind: input, shape index: {}]
  %s1 = inlined_call_operand.vmem [shape: f32[1,16], index: 1, kind: input, shape index: {}]
  %s2 = inlined_call_operand.vmem [shape: f32[1,16], index: 2, kind: input, shape index: {}]
  %s3 = inlined_call_operand.vmem [shape: f32[16,48], index: 3, kind: input, shape index: {}]
  %s4 = inlined_call_operand.vmem [shape: f32[1,48], index: 4, kind: input, shape index: {}]
  %s5 = inlined_call_operand.vmem [shape: f32[16,16], index: 5, kind: input, shape index: {}]
  %s6 = inlined_call_operand.vmem [shape: f32[1,16], index: 6, kind: input, shape index: {}]
  %s7 = inlined_call_operand.vmem [shape: f32[8,64,16], index: 7, kind: output, shape index: {}]
  %s8 = sld [smem:[#allocation0]]
  $region61: #{mobilevit_block_forward.10} parent=0
    _
  %s10 = ssub.s32 1, %s8
  %s11 = scalar_select 0, %s10, %s8
  loop: start=0, step=1, limit=10
  $region2: #{mobilevit_block_forward.10} parent=0 // loop_pre_header
    _
  $region3: #{mobilevit_block_forward.10} parent=0 // loop_header
    %s13 = sphi 0, %s17
    %p14 = scmp.ge.s32.totalorder %s13, 10
    %s23 = sphi 0, %s25
    %s26 = sphi 0, %s23
    %s27 = sphi 0, %s26
    %s43 = sphi 0, %s27
    %s47 = sphi 0, %s47
    %s49 = sphi 0, %s47
    %s50 = sphi 0, %s49
    %s64 = sphi 0, %s50
    %s68 = sphi 0, %s68
    %s70 = sphi 0, %s68
    %s71 = sphi 0, %s70
    %s85 = sphi 0, %s71
    %s89 = sphi 0, %s89
    %s91 = sphi 0, %s89
    %s92 = sphi 0, %s91
    %s106 = sphi 0, %s92
    %s110 = sphi 0, %s110
    %s112 = sphi 0, %s110
    %s113 = sphi 0, %s112
    %s127 = sphi 0, %s113
    %s131 = sphi 0, %s131
    %s133 = sphi 0, %s131
    %s134 = sphi 0, %s133
    %s148 = sphi 0, %s134
    %s152 = sphi 0, %s152
    %s154 = sphi 0, %s152
    %s155 = sphi 0, %s154
    %s169 = sphi 0, %s155
    %s175 = sphi 0, %s177
    %s178 = sphi 0, %s175
    %s179 = sphi 0, %s178
    %s195 = sphi 0, %s179
  $region4: #{mobilevit_block_forward.10} parent=0 // loop_header_branch
    %16 = sbr.rel (%p14) target = $region8
  $region5: #{mobilevit_block_forward.10} parent=0 // loop_body
    %s18 = ssub.s32 %s13, 1
    %s19 = ssub.s32 %s13, 2
    %s20 = sadd.s32 %s13, 1
    %s21 = ssub.s32 %s13, %s20
    %p22 = scmp.eq.s32.totalorder %s21, 0
    %s24 = sadd.s32 %s23, 1
    %s25 = scalar_select %p22, %s23, %s24
    %p28 = pneg %p22
    %p29 = scmp.eq.s32.totalorder %s13, 7
    %p30 = por %p28, %p29
    %p31 = scmp.ne.s32.totalorder %s23, %s26
    %p32 = scmp.eq.s32.totalorder %s13, 0
    %p33 = por %p31, %p32
    %p34 = scmp.ne.s32.totalorder %s23, %s26
    %p35 = scmp.eq.s32.totalorder %s18, 7
    %p36 = por %p34, %p35
    %p37 = scmp.ne.s32.totalorder %s26, %s27
    %p38 = scmp.eq.s32.totalorder %s18, 0
    %p39 = por %p37, %p38
    %p40 = scmp.ne.s32.totalorder %s26, %s27
    %p41 = scmp.eq.s32.totalorder %s19, 7
    %p42 = por %p40, %p41
    %p44 = scmp.ne.s32.totalorder %s27, %s43
    %p45 = scmp.eq.s32.totalorder %s19, 0
    %p46 = por %p44, %p45
    %s48 = sadd.s32 %s47, 1
    %p51 = scmp.eq.s32.totalorder %s13, 7
    %p52 = scmp.ne.s32.totalorder %s47, %s49
    %p53 = scmp.eq.s32.totalorder %s13, 0
    %p54 = por %p52, %p53
    %p55 = scmp.ne.s32.totalorder %s47, %s49
    %p56 = scmp.eq.s32.totalorder %s18, 7
    %p57 = por %p55, %p56
    %p58 = scmp.ne.s32.totalorder %s49, %s50
    %p59 = scmp.eq.s32.totalorder %s18, 0
    %p60 = por %p58, %p59
    %p61 = scmp.ne.s32.totalorder %s49, %s50
    %p62 = scmp.eq.s32.totalorder %s19, 7
    %p63 = por %p61, %p62
    %p65 = scmp.ne.s32.totalorder %s50, %s64
    %p66 = scmp.eq.s32.totalorder %s19, 0
    %p67 = por %p65, %p66
    %s69 = sadd.s32 %s68, 1
    %p72 = scmp.eq.s32.totalorder %s13, 7
    %p73 = scmp.ne.s32.totalorder %s68, %s70
    %p74 = scmp.eq.s32.totalorder %s13, 0
    %p75 = por %p73, %p74
    %p76 = scmp.ne.s32.totalorder %s68, %s70
    %p77 = scmp.eq.s32.totalorder %s18, 7
    %p78 = por %p76, %p77
    %p79 = scmp.ne.s32.totalorder %s70, %s71
    %p80 = scmp.eq.s32.totalorder %s18, 0
    %p81 = por %p79, %p80
    %p82 = scmp.ne.s32.totalorder %s70, %s71
    %p83 = scmp.eq.s32.totalorder %s19, 7
    %p84 = por %p82, %p83
    %p86 = scmp.ne.s32.totalorder %s71, %s85
    %p87 = scmp.eq.s32.totalorder %s19, 0
    %p88 = por %p86, %p87
    %s90 = sadd.s32 %s89, 1
    %p93 = scmp.eq.s32.totalorder %s13, 7
    %p94 = scmp.ne.s32.totalorder %s89, %s91
    %p95 = scmp.eq.s32.totalorder %s13, 0
    %p96 = por %p94, %p95
    %p97 = scmp.ne.s32.totalorder %s89, %s91
    %p98 = scmp.eq.s32.totalorder %s18, 7
    %p99 = por %p97, %p98
    %p100 = scmp.ne.s32.totalorder %s91, %s92
    %p101 = scmp.eq.s32.totalorder %s18, 0
    %p102 = por %p100, %p101
    %p103 = scmp.ne.s32.totalorder %s91, %s92
    %p104 = scmp.eq.s32.totalorder %s19, 7
    %p105 = por %p103, %p104
    %p107 = scmp.ne.s32.totalorder %s92, %s106
    %p108 = scmp.eq.s32.totalorder %s19, 0
    %p109 = por %p107, %p108
    %s111 = sadd.s32 %s110, 1
    %p114 = scmp.eq.s32.totalorder %s13, 7
    %p115 = scmp.ne.s32.totalorder %s110, %s112
    %p116 = scmp.eq.s32.totalorder %s13, 0
    %p117 = por %p115, %p116
    %p118 = scmp.ne.s32.totalorder %s110, %s112
    %p119 = scmp.eq.s32.totalorder %s18, 7
    %p120 = por %p118, %p119
    %p121 = scmp.ne.s32.totalorder %s112, %s113
    %p122 = scmp.eq.s32.totalorder %s18, 0
    %p123 = por %p121, %p122
    %p124 = scmp.ne.s32.totalorder %s112, %s113
    %p125 = scmp.eq.s32.totalorder %s19, 7
    %p126 = por %p124, %p125
    %p128 = scmp.ne.s32.totalorder %s113, %s127
    %p129 = scmp.eq.s32.totalorder %s19, 0
    %p130 = por %p128, %p129
    %s132 = sadd.s32 %s131, 1
    %p135 = scmp.eq.s32.totalorder %s13, 7
    %p136 = scmp.ne.s32.totalorder %s131, %s133
    %p137 = scmp.eq.s32.totalorder %s13, 0
    %p138 = por %p136, %p137
    %p139 = scmp.ne.s32.totalorder %s131, %s133
    %p140 = scmp.eq.s32.totalorder %s18, 7
    %p141 = por %p139, %p140
    %p142 = scmp.ne.s32.totalorder %s133, %s134
    %p143 = scmp.eq.s32.totalorder %s18, 0
    %p144 = por %p142, %p143
    %p145 = scmp.ne.s32.totalorder %s133, %s134
    %p146 = scmp.eq.s32.totalorder %s19, 7
    %p147 = por %p145, %p146
    %p149 = scmp.ne.s32.totalorder %s134, %s148
    %p150 = scmp.eq.s32.totalorder %s19, 0
    %p151 = por %p149, %p150
    %s153 = sadd.s32 %s152, 1
    %p156 = scmp.eq.s32.totalorder %s13, 7
    %p157 = scmp.ne.s32.totalorder %s152, %s154
    %p158 = scmp.eq.s32.totalorder %s13, 0
    %p159 = por %p157, %p158
    %p160 = scmp.ne.s32.totalorder %s152, %s154
    %p161 = scmp.eq.s32.totalorder %s18, 7
    %p162 = por %p160, %p161
    %p163 = scmp.ne.s32.totalorder %s154, %s155
    %p164 = scmp.eq.s32.totalorder %s18, 0
    %p165 = por %p163, %p164
    %p166 = scmp.ne.s32.totalorder %s154, %s155
    %p167 = scmp.eq.s32.totalorder %s19, 7
    %p168 = por %p166, %p167
    %p170 = scmp.ne.s32.totalorder %s155, %s169
    %p171 = scmp.eq.s32.totalorder %s19, 0
    %p172 = por %p170, %p171
    %s173 = ssub.s32 %s13, %s20
    %p174 = scmp.eq.s32.totalorder %s173, 0
    %s176 = sadd.s32 %s175, 1
    %s177 = scalar_select %p174, %s175, %s176
    %p180 = pneg %p174
    %p181 = scmp.eq.s32.totalorder %s13, 7
    %p182 = por %p180, %p181
    %p183 = scmp.ne.s32.totalorder %s175, %s178
    %p184 = scmp.eq.s32.totalorder %s13, 0
    %p185 = por %p183, %p184
    %p186 = scmp.ne.s32.totalorder %s175, %s178
    %p187 = scmp.eq.s32.totalorder %s18, 7
    %p188 = por %p186, %p187
    %p189 = scmp.ne.s32.totalorder %s178, %s179
    %p190 = scmp.eq.s32.totalorder %s18, 0
    %p191 = por %p189, %p190
    %p192 = scmp.ne.s32.totalorder %s178, %s179
    %p193 = scmp.eq.s32.totalorder %s19, 7
    %p194 = por %p192, %p193
    %p196 = scmp.ne.s32.totalorder %s179, %s195
    %p197 = scmp.eq.s32.totalorder %s19, 0
    %p198 = por %p196, %p197
    %p199 = scmp.le.s32.totalorder 1, %s13
    %p200 = scmp.lt.s32.totalorder %s13, 9
    %p201 = pnand %p199, %p200
    %p202 = pneg %p201
    // Predicated region
    $region9: #{mobilevit_block_forward.10} parent=5 // pred_check
      _
    $region10: #{mobilevit_block_forward.10} parent=5 // pred_check_branch
      %204 = sbr.rel (%p201) target = $region12
    $region11: #{mobilevit_block_forward.10} parent=5 // pred_region
      %s205 = ssub.s32 %s13, 1
      // Predicated region
      $region13: #{mobilevit_block_forward.10} parent=11 // pred_check
        %p206 = pneg %p60
      $region14: #{mobilevit_block_forward.10} parent=11 // pred_check_branch
        %208 = sbr.rel (%p206) target = $region16
      $region15: #{mobilevit_block_forward.10} parent=11 // pred_region
        _
      $region16: #{mobilevit_block_forward.10} parent=11 // pred_fallthru
        _
      // Predicated region
      $region17: #{mobilevit_block_forward.10} parent=11 // pred_check
        %p209 = pneg %p81
      $region18: #{mobilevit_block_forward.10} parent=11 // pred_check_branch
        %211 = sbr.rel (%p209) target = $region20
      $region19: #{mobilevit_block_forward.10} parent=11 // pred_region
        _
      $region20: #{mobilevit_block_forward.10} parent=11 // pred_fallthru
        _
      // Predicated region
      $region21: #{mobilevit_block_forward.10} parent=11 // pred_check
        %p212 = pneg %p102
      $region22: #{mobilevit_block_forward.10} parent=11 // pred_check_branch
        %214 = sbr.rel (%p212) target = $region24
      $region23: #{mobilevit_block_forward.10} parent=11 // pred_region
        _
      $region24: #{mobilevit_block_forward.10} parent=11 // pred_fallthru
        _
      // Predicated region
      $region25: #{mobilevit_block_forward.10} parent=11 // pred_check
        %p215 = pneg %p123
      $region26: #{mobilevit_block_forward.10} parent=11 // pred_check_branch
        %217 = sbr.rel (%p215) target = $region28
      $region27: #{mobilevit_block_forward.10} parent=11 // pred_region
        _
      $region28: #{mobilevit_block_forward.10} parent=11 // pred_fallthru
        _
      // Predicated region
      $region29: #{mobilevit_block_forward.10} parent=11 // pred_check
        %p218 = pneg %p144
      $region30: #{mobilevit_block_forward.10} parent=11 // pred_check_branch
        %220 = sbr.rel (%p218) target = $region32
      $region31: #{mobilevit_block_forward.10} parent=11 // pred_region
        _
      $region32: #{mobilevit_block_forward.10} parent=11 // pred_fallthru
        _
      // Predicated region
      $region33: #{mobilevit_block_forward.10} parent=11 // pred_check
        %p221 = pneg %p165
      $region34: #{mobilevit_block_forward.10} parent=11 // pred_check_branch
        %223 = sbr.rel (%p221) target = $region36
      $region35: #{mobilevit_block_forward.10} parent=11 // pred_region
        _
      $region36: #{mobilevit_block_forward.10} parent=11 // pred_fallthru
        _
    $region12: #{mobilevit_block_forward.10} parent=5 // pred_fallthru
      _
    %p224 = scmp.lt.s32.totalorder %s13, 8
    // Predicated region
    $region37: #{mobilevit_block_forward.10} parent=5 // pred_check
      %p225 = pneg %p224
    $region38: #{mobilevit_block_forward.10} parent=5 // pred_check_branch
      %227 = sbr.rel (%p225) target = $region40
    $region39: #{mobilevit_block_forward.10} parent=5 // pred_region
      // Predicated region
      $region41: #{mobilevit_block_forward.10} parent=39 // pred_check
        %p228 = pneg %p33
      $region42: #{mobilevit_block_forward.10} parent=39 // pred_check_branch
        %230 = sbr.rel (%p228) target = $region44
      $region43: #{mobilevit_block_forward.10} parent=39 // pred_region
        %p231 = scmp.lt.s32.totalorder %s13, 7
        %s232 = scalar_select %p231, %s13, 7
        %s233 = smul.addr %s232, 8
        %s234 = smul.addr %s233, 8
        %s235 = scalar_lea.vmem %s0, %s234
      $region44: #{mobilevit_block_forward.10} parent=39 // pred_fallthru
        _
    $region40: #{mobilevit_block_forward.10} parent=5 // pred_fallthru
      _
    %p236 = scmp.le.s32.totalorder 1, %s13
    %p237 = scmp.lt.s32.totalorder %s13, 9
    %p238 = pnand %p236, %p237
    %p239 = pneg %p238
    // Predicated region
    $region45: #{mobilevit_block_forward.10} parent=5 // pred_check
      _
    $region46: #{mobilevit_block_forward.10} parent=5 // pred_check_branch
      %241 = sbr.rel (%p238) target = $region48
    $region47: #{mobilevit_block_forward.10} parent=5 // pred_region
      %s242 = ssub.s32 %s13, 1
      %p243 = scmp.lt.s32.totalorder %s18, 7
      %s244 = scalar_select %p243, %s18, 7
      %s245 = smul.addr %s244, 8
      %s246 = smul.addr %s245, 8
      %s247 = scalar_lea.vmem %s0, %s246
      %p248 = pneg %p39
      %p249 = pneg %p36
      %p250 = pneg %p60
      %p251 = pneg %p57
      %p252 = pneg %p81
      %p253 = pneg %p78
      %p254 = pneg %p102
      %p255 = pneg %p99
      %p256 = pneg %p123
      %p257 = pneg %p120
      %p258 = pneg %p144
      %p259 = pneg %p141
      %p260 = pneg %p165
      %p261 = pneg %p162
      %p262 = pneg %p191
      %p263 = pneg %p188
      %p264 = scmp.lt.s32.totalorder %s18, 7
      %s265 = scalar_select %p264, %s18, 7
      %s266 = smul.addr %s265, 8
      %s267 = smul.addr %s266, 8
      %s268 = scalar_lea.vmem %s7, %s267
      %p269 = scmp.lt.s32.totalorder %s18, 7
      %s270 = scalar_select %p269, %s18, 7
      %s271 = smul.addr %s270, 8
      %s272 = smul.addr %s271, 8
      %s273 = scalar_lea.vmem %s0, %s272
      %p274 = scmp.lt.s32.totalorder %s18, 7
      %s275 = scalar_select %p274, %s18, 7
      %s276 = smul.addr %s275, 8
      %s277 = smul.addr %s276, 8
      %s278 = scalar_lea.vmem %s7, %s277
      %v280 = vld [vmem:[%s273] sm:$0xff]
      %v281 = vld [vmem:[%s273 + $0x8] sm:$0xff]
      %v282 = vld [vmem:[%s273 + $0x10] sm:$0xff]
      %v283 = vld [vmem:[%s273 + $0x18] sm:$0xff]
      %v284 = vld [vmem:[%s273 + $0x20] sm:$0xff]
      %v285 = vld [vmem:[%s273 + $0x28] sm:$0xff]
      %v286 = vld [vmem:[%s273 + $0x30] sm:$0xff]
      %v287 = vld [vmem:[%s273 + $0x38] sm:$0xff]
      %vm288 = vcmask 130048
      %v289 = vsel %vm288, %v280, 0.0
      %290 = vadd.xlane.f32.xlu0 %v289
      %v291 = vpop.xlane.xlu0 %290
      %v292 = vsel %vm288, %v281, 0.0
      %293 = vadd.xlane.f32.xlu0 %v292
      %v294 = vpop.xlane.xlu0 %293
      %v295 = vsel %vm288, %v282, 0.0
      %296 = vadd.xlane.f32.xlu0 %v295
      %v297 = vpop.xlane.xlu0 %296
      %v298 = vsel %vm288, %v283, 0.0
      %299 = vadd.xlane.f32.xlu0 %v298
      %v300 = vpop.xlane.xlu0 %299
      %v301 = vsel %vm288, %v284, 0.0
      %302 = vadd.xlane.f32.xlu0 %v301
      %v303 = vpop.xlane.xlu0 %302
      %v304 = vsel %vm288, %v285, 0.0
      %305 = vadd.xlane.f32.xlu0 %v304
      %v306 = vpop.xlane.xlu0 %305
      %v307 = vsel %vm288, %v286, 0.0
      %308 = vadd.xlane.f32.xlu0 %v307
      %v309 = vpop.xlane.xlu0 %308
      %v310 = vsel %vm288, %v287, 0.0
      %311 = vadd.xlane.f32.xlu0 %v310
      %v312 = vpop.xlane.xlu0 %311
      %v313 = vrcp.pop 16.0
      %v314 = vmul.f32 16.0, %v313
      %v315 = vsub.f32 1.0, %v314
      %v316 = vmul.f32 %v313, %v315
      %v317 = vadd.f32 %v313, %v316
      %vm318 = vweird.f32 %v313
      %v319 = vsel %vm318, %v313, %v317
      %v320 = vmul.f32 %v291, %v319
      %v321 = vmul.f32 %v294, %v319
      %v322 = vmul.f32 %v297, %v319
      %v323 = vmul.f32 %v300, %v319
      %v324 = vmul.f32 %v303, %v319
      %v325 = vmul.f32 %v306, %v319
      %v326 = vmul.f32 %v309, %v319
      %v327 = vmul.f32 %v312, %v319
      %v328 = vsub.f32 %v280, %v320
      %v329 = vsub.f32 %v281, %v321
      %v330 = vsub.f32 %v282, %v322
      %v331 = vsub.f32 %v283, %v323
      %v332 = vsub.f32 %v284, %v324
      %v333 = vsub.f32 %v285, %v325
      %v334 = vsub.f32 %v286, %v326
      %v335 = vsub.f32 %v287, %v327
      %v336 = vmul.f32 %v328, %v328
      %v337 = vmul.f32 %v329, %v329
      %v338 = vmul.f32 %v330, %v330
      %v339 = vmul.f32 %v331, %v331
      %v340 = vmul.f32 %v332, %v332
      %v341 = vmul.f32 %v333, %v333
      %v342 = vmul.f32 %v334, %v334
      %v343 = vmul.f32 %v335, %v335
      %v344 = vsel %vm288, %v336, 0.0
      %345 = vadd.xlane.f32.xlu0 %v344
      %v346 = vpop.xlane.xlu0 %345
      %v347 = vsel %vm288, %v337, 0.0
      %348 = vadd.xlane.f32.xlu0 %v347
      %v349 = vpop.xlane.xlu0 %348
      %v350 = vsel %vm288, %v338, 0.0
      %351 = vadd.xlane.f32.xlu0 %v350
      %v352 = vpop.xlane.xlu0 %351
      %v353 = vsel %vm288, %v339, 0.0
      %354 = vadd.xlane.f32.xlu0 %v353
      %v355 = vpop.xlane.xlu0 %354
      %v356 = vsel %vm288, %v340, 0.0
      %357 = vadd.xlane.f32.xlu0 %v356
      %v358 = vpop.xlane.xlu0 %357
      %v359 = vsel %vm288, %v341, 0.0
      %360 = vadd.xlane.f32.xlu0 %v359
      %v361 = vpop.xlane.xlu0 %360
      %v362 = vsel %vm288, %v342, 0.0
      %363 = vadd.xlane.f32.xlu0 %v362
      %v364 = vpop.xlane.xlu0 %363
      %v365 = vsel %vm288, %v343, 0.0
      %366 = vadd.xlane.f32.xlu0 %v365
      %v367 = vpop.xlane.xlu0 %366
      %v368 = vmul.f32 %v346, %v319
      %v369 = vmul.f32 %v349, %v319
      %v370 = vmul.f32 %v352, %v319
      %v371 = vmul.f32 %v355, %v319
      %v372 = vmul.f32 %v358, %v319
      %v373 = vmul.f32 %v361, %v319
      %v374 = vmul.f32 %v364, %v319
      %v375 = vmul.f32 %v367, %v319
      %v376 = vadd.f32 %v368, 1e-05
      %v377 = vadd.f32 %v369, 1e-05
      %v378 = vadd.f32 %v370, 1e-05
      %v379 = vadd.f32 %v371, 1e-05
      %v380 = vadd.f32 %v372, 1e-05
      %v381 = vadd.f32 %v373, 1e-05
      %v382 = vadd.f32 %v374, 1e-05
      %v383 = vadd.f32 %v375, 1e-05
      %v384 = vrsqrt.pop %v376
      %v385 = vmul.f32 %v384, %v376
      %v386 = vmul.f32 %v385, %v384
      %v387 = vmul.f32 0.5, %v386
      %v388 = vsub.f32 1.5, %v387
      %v389 = vmul.f32 %v384, %v388
      %vm390 = vweird.f32 %v376
      %vm391 = vweird.f32 %v384
      %vm392 = vmor %vm390, %vm391
      %v393 = vsel %vm392, %v384, %v389
      %v394 = vrsqrt.pop %v377
      %v395 = vmul.f32 %v394, %v377
      %v396 = vmul.f32 %v395, %v394
      %v397 = vmul.f32 0.5, %v396
      %v398 = vsub.f32 1.5, %v397
      %v399 = vmul.f32 %v394, %v398
      %vm400 = vweird.f32 %v377
      %vm401 = vweird.f32 %v394
      %vm402 = vmor %vm400, %vm401
      %v403 = vsel %vm402, %v394, %v399
      %v404 = vrsqrt.pop %v378
      %v405 = vmul.f32 %v404, %v378
      %v406 = vmul.f32 %v405, %v404
      %v407 = vmul.f32 0.5, %v406
      %v408 = vsub.f32 1.5, %v407
      %v409 = vmul.f32 %v404, %v408
      %vm410 = vweird.f32 %v378
      %vm411 = vweird.f32 %v404
      %vm412 = vmor %vm410, %vm411
      %v413 = vsel %vm412, %v404, %v409
      %v414 = vrsqrt.pop %v379
      %v415 = vmul.f32 %v414, %v379
      %v416 = vmul.f32 %v415, %v414
      %v417 = vmul.f32 0.5, %v416
      %v418 = vsub.f32 1.5, %v417
      %v419 = vmul.f32 %v414, %v418
      %vm420 = vweird.f32 %v379
      %vm421 = vweird.f32 %v414
      %vm422 = vmor %vm420, %vm421
      %v423 = vsel %vm422, %v414, %v419
      %v424 = vrsqrt.pop %v380
      %v425 = vmul.f32 %v424, %v380
      %v426 = vmul.f32 %v425, %v424
      %v427 = vmul.f32 0.5, %v426
      %v428 = vsub.f32 1.5, %v427
      %v429 = vmul.f32 %v424, %v428
      %vm430 = vweird.f32 %v380
      %vm431 = vweird.f32 %v424
      %vm432 = vmor %vm430, %vm431
      %v433 = vsel %vm432, %v424, %v429
      %v434 = vrsqrt.pop %v381
      %v435 = vmul.f32 %v434, %v381
      %v436 = vmul.f32 %v435, %v434
      %v437 = vmul.f32 0.5, %v436
      %v438 = vsub.f32 1.5, %v437
      %v439 = vmul.f32 %v434, %v438
      %vm440 = vweird.f32 %v381
      %vm441 = vweird.f32 %v434
      %vm442 = vmor %vm440, %vm441
      %v443 = vsel %vm442, %v434, %v439
      %v444 = vrsqrt.pop %v382
      %v445 = vmul.f32 %v444, %v382
      %v446 = vmul.f32 %v445, %v444
      %v447 = vmul.f32 0.5, %v446
      %v448 = vsub.f32 1.5, %v447
      %v449 = vmul.f32 %v444, %v448
      %vm450 = vweird.f32 %v382
      %vm451 = vweird.f32 %v444
      %vm452 = vmor %vm450, %vm451
      %v453 = vsel %vm452, %v444, %v449
      %v454 = vrsqrt.pop %v383
      %v455 = vmul.f32 %v454, %v383
      %v456 = vmul.f32 %v455, %v454
      %v457 = vmul.f32 0.5, %v456
      %v458 = vsub.f32 1.5, %v457
      %v459 = vmul.f32 %v454, %v458
      %vm460 = vweird.f32 %v383
      %vm461 = vweird.f32 %v454
      %vm462 = vmor %vm460, %vm461
      %v463 = vsel %vm462, %v454, %v459
      %v464 = vmul.f32 %v328, %v393
      %v465 = vmul.f32 %v329, %v403
      %v466 = vmul.f32 %v330, %v413
      %v467 = vmul.f32 %v331, %v423
      %v468 = vmul.f32 %v332, %v433
      %v469 = vmul.f32 %v333, %v443
      %v470 = vmul.f32 %v334, %v453
      %v471 = vmul.f32 %v335, %v463
      %v472 = vld [vmem:[%s1] sm:$0x1]
      %v474 = vperm.slane %v472, 0
      %v476 = vmul.f32 %v464, %v474
      %v477 = vmul.f32 %v465, %v474
      %v478 = vmul.f32 %v466, %v474
      %v479 = vmul.f32 %v467, %v474
      %v480 = vmul.f32 %v468, %v474
      %v481 = vmul.f32 %v469, %v474
      %v482 = vmul.f32 %v470, %v474
      %v483 = vmul.f32 %v471, %v474
      %v484 = vld [vmem:[%s2] sm:$0x1]
      %v486 = vperm.slane %v484, 0
      %v488 = vadd.f32 %v476, %v486
      %v489 = vadd.f32 %v477, %v486
      %v490 = vadd.f32 %v478, %v486
      %v491 = vadd.f32 %v479, %v486
      %v492 = vadd.f32 %v480, %v486
      %v493 = vadd.f32 %v481, %v486
      %v494 = vadd.f32 %v482, %v486
      %v495 = vadd.f32 %v483, %v486
      %v496 = vpack.c.bf16 %v489, %v488
      %v497 = vpack.c.bf16 %v491, %v490
      %v498 = vpack.c.bf16 %v493, %v492
      %v499 = vpack.c.bf16 %v495, %v494
      %v500 = vld [vmem:[%s3] sm:$0xff]
      %v501 = vld [vmem:[%s3 + $0x8] sm:$0xff]
      %v502 = vpack.c.bf16 %v501, %v500
      %v503 = vld [vmem:[%s4] sm:$0x1]
      %v505 = vperm.slane %v503, 0
      %v508 = vsel %vm288, %v496, 0
      %v511 = vsel %vm288, %v497, 0
      %v514 = vsel %vm288, %v498, 0
      %v517 = vsel %vm288, %v499, 0
      %519 = vmatpush.bf16.msra.mxu0 0
      %520 = vmatpush.bf16.msra.mxu0 0
      %521 = vmatpush.bf16.msra.mxu0 0
      %522 = vmatpush.bf16.msra.mxu0 0
      %523 = vmatpush.bf16.msra.mxu0 0
      %524 = vmatpush.bf16.msra.mxu0 0
      %525 = vmatpush.bf16.msra.mxu0 0
      %526 = vmatpush.bf16.msra.mxu0 %v502
      %527 = vmatmul.bf16.gmra.mxu0 %v508
      %v528 = vpop.f32.mrf.mxu0
      %v529 = vadd.f32 %v505, %v528
      %v530 = vpop.f32.mrf.mxu0
      %v531 = vadd.f32 %v505, %v530
      %532 = vmatmul.bf16.gmra.mxu0 %v511
      %v533 = vpop.f32.mrf.mxu0
      %v534 = vadd.f32 %v505, %v533
      %v535 = vpop.f32.mrf.mxu0
      %v536 = vadd.f32 %v505, %v535
      %537 = vmatmul.bf16.gmra.mxu0 %v514
      %v538 = vpop.f32.mrf.mxu0
      %v539 = vadd.f32 %v505, %v538
      %v540 = vpop.f32.mrf.mxu0
      %v541 = vadd.f32 %v505, %v540
      %542 = vmatmul.bf16.gmra.mxu0 %v517
      %v543 = vpop.f32.mrf.mxu0
      %v544 = vadd.f32 %v505, %v543
      %v545 = vpop.f32.mrf.mxu0
      %v546 = vadd.f32 %v505, %v545
      %547 = vdwg.mxu0
      %v548 = vmul.f32 %v529, 0.5
      %v549 = vmul.f32 %v531, 0.5
      %v550 = vmul.f32 %v534, 0.5
      %v551 = vmul.f32 %v536, 0.5
      %v552 = vmul.f32 %v539, 0.5
      %v553 = vmul.f32 %v541, 0.5
      %v554 = vmul.f32 %v544, 0.5
      %v555 = vmul.f32 %v546, 0.5
      %564 = vrot.lane.b32.xlu0 %v529, 112
      %v565 = vpop.permute.xlu0 %564
      %566 = vrot.lane.b32.xlu0 %v531, 112
      %v567 = vpop.permute.xlu0 %566
      %568 = vrot.lane.b32.xlu0 %v534, 112
      %v569 = vpop.permute.xlu0 %568
      %570 = vrot.lane.b32.xlu0 %v536, 112
      %v571 = vpop.permute.xlu0 %570
      %572 = vrot.lane.b32.xlu0 %v539, 112
      %v573 = vpop.permute.xlu0 %572
      %574 = vrot.lane.b32.xlu0 %v541, 112
      %v575 = vpop.permute.xlu0 %574
      %576 = vrot.lane.b32.xlu0 %v544, 112
      %v577 = vpop.permute.xlu0 %576
      %578 = vrot.lane.b32.xlu0 %v546, 112
      %v579 = vpop.permute.xlu0 %578
      %vm580 = vcmask 31744
      %v582 = vsel %vm580, %v548, 0
      %v585 = vsel %vm580, %v549, 0
      %v588 = vsel %vm580, %v550, 0
      %v591 = vsel %vm580, %v551, 0
      %v594 = vsel %vm580, %v552, 0
      %v597 = vsel %vm580, %v553, 0
      %v600 = vsel %vm580, %v554, 0
      %v603 = vsel %vm580, %v555, 0
      %v605 = vsel %vm580, %v565, 0
      %v607 = vsel %vm580, %v567, 0
      %v609 = vsel %vm580, %v569, 0
      %v611 = vsel %vm580, %v571, 0
      %v613 = vsel %vm580, %v573, 0
      %v615 = vsel %vm580, %v575, 0
      %v617 = vsel %vm580, %v577, 0
      %v619 = vsel %vm580, %v579, 0
      %621 = vmatpush.xpose.msra.mxu0 0.0
      %622 = vmatpush.xpose.msra.mxu0 0.0
      %623 = vmatpush.xpose.msra.mxu0 0.0
      %624 = vmatpush.xpose.msra.mxu0 0.0
      %625 = vmatpush.xpose.msra.mxu0 0.0
      %626 = vmatpush.xpose.msra.mxu0 0.0
      %627 = vmatpush.xpose.msra.mxu0 0.0
      %628 = vmatpush.xpose.msra.mxu0 0.0
      %629 = vmatpush.xpose.msra.mxu0 %v619
      %630 = vmatpush.xpose.msra.mxu0 %v617
      %631 = vmatpush.xpose.msra.mxu0 %v615
      %632 = vmatpush.xpose.msra.mxu0 %v613
      %633 = vmatpush.xpose.msra.mxu0 %v611
      %634 = vmatpush.xpose.msra.mxu0 %v609
      %635 = vmatpush.xpose.msra.mxu0 %v607
      %636 = vmatpush.xpose.msra.mxu0 %v605
      %637 = vmatmul.f32.gmra.mxu0 %v582
      %v638 = vpop.f32.mrf.mxu0
      %v639 = vadd.f32 0.0, %v638
      %640 = vmatmul.f32.gmra.mxu0 %v585
      %v641 = vpop.f32.mrf.mxu0
      %v642 = vadd.f32 0.0, %v641
      %643 = vmatmul.f32.gmra.mxu0 %v588
      %v644 = vpop.f32.mrf.mxu0
      %v645 = vadd.f32 0.0, %v644
      %646 = vmatmul.f32.gmra.mxu0 %v591
      %v647 = vpop.f32.mrf.mxu0
      %v648 = vadd.f32 0.0, %v647
      %649 = vmatmul.f32.gmra.mxu0 %v594
      %v650 = vpop.f32.mrf.mxu0
      %v651 = vadd.f32 0.0, %v650
      %652 = vmatmul.f32.gmra.mxu0 %v597
      %v653 = vpop.f32.mrf.mxu0
      %v654 = vadd.f32 0.0, %v653
      %655 = vmatmul.f32.gmra.mxu0 %v600
      %v656 = vpop.f32.mrf.mxu0
      %v657 = vadd.f32 0.0, %v656
      %658 = vmatmul.f32.gmra.mxu0 %v603
      %v659 = vpop.f32.mrf.mxu0
      %v660 = vadd.f32 0.0, %v659
      %661 = vdwg.mxu0
      %vm662 = vcmask 523264
      %v663 = vsel %vm662, %v639, -inf
      %664 = vmax.xlane.f32.xlu0 %v663
      %v665 = vpop.xlane.xlu0 %664
      %v666 = vsel %vm662, %v642, -inf
      %667 = vmax.xlane.f32.xlu0 %v666
      %v668 = vpop.xlane.xlu0 %667
      %v669 = vsel %vm662, %v645, -inf
      %670 = vmax.xlane.f32.xlu0 %v669
      %v671 = vpop.xlane.xlu0 %670
      %v672 = vsel %vm662, %v648, -inf
      %673 = vmax.xlane.f32.xlu0 %v672
      %v674 = vpop.xlane.xlu0 %673
      %v675 = vsel %vm662, %v651, -inf
      %676 = vmax.xlane.f32.xlu0 %v675
      %v677 = vpop.xlane.xlu0 %676
      %v678 = vsel %vm662, %v654, -inf
      %679 = vmax.xlane.f32.xlu0 %v678
      %v680 = vpop.xlane.xlu0 %679
      %v681 = vsel %vm662, %v657, -inf
      %682 = vmax.xlane.f32.xlu0 %v681
      %v683 = vpop.xlane.xlu0 %682
      %v684 = vsel %vm662, %v660, -inf
      %685 = vmax.xlane.f32.xlu0 %v684
      %v686 = vpop.xlane.xlu0 %685
      %v687 = vsub.f32 %v639, %v665
      %v688 = vsub.f32 %v642, %v668
      %v689 = vsub.f32 %v645, %v671
      %v690 = vsub.f32 %v648, %v674
      %v691 = vsub.f32 %v651, %v677
      %v692 = vsub.f32 %v654, %v680
      %v693 = vsub.f32 %v657, %v683
      %v694 = vsub.f32 %v660, %v686
      %v695 = vmul.f32 %v687, 1.442695
      %v696 = vpow.pop %v695
      %v697 = vmul.f32 %v688, 1.442695
      %v698 = vpow.pop %v697
      %v699 = vmul.f32 %v689, 1.442695
      %v700 = vpow.pop %v699
      %v701 = vmul.f32 %v690, 1.442695
      %v702 = vpow.pop %v701
      %v703 = vmul.f32 %v691, 1.442695
      %v704 = vpow.pop %v703
      %v705 = vmul.f32 %v692, 1.442695
      %v706 = vpow.pop %v705
      %v707 = vmul.f32 %v693, 1.442695
      %v708 = vpow.pop %v707
      %v709 = vmul.f32 %v694, 1.442695
      %v710 = vpow.pop %v709
      %v711 = vsel %vm662, %v696, 0.0
      %712 = vadd.xlane.f32.xlu0 %v711
      %v713 = vpop.xlane.xlu0 %712
      %v714 = vsel %vm662, %v698, 0.0
      %715 = vadd.xlane.f32.xlu0 %v714
      %v716 = vpop.xlane.xlu0 %715
      %v717 = vsel %vm662, %v700, 0.0
      %718 = vadd.xlane.f32.xlu0 %v717
      %v719 = vpop.xlane.xlu0 %718
      %v720 = vsel %vm662, %v702, 0.0
      %721 = vadd.xlane.f32.xlu0 %v720
      %v722 = vpop.xlane.xlu0 %721
      %v723 = vsel %vm662, %v704, 0.0
      %724 = vadd.xlane.f32.xlu0 %v723
      %v725 = vpop.xlane.xlu0 %724
      %v726 = vsel %vm662, %v706, 0.0
      %727 = vadd.xlane.f32.xlu0 %v726
      %v728 = vpop.xlane.xlu0 %727
      %v729 = vsel %vm662, %v708, 0.0
      %730 = vadd.xlane.f32.xlu0 %v729
      %v731 = vpop.xlane.xlu0 %730
      %v732 = vsel %vm662, %v710, 0.0
      %733 = vadd.xlane.f32.xlu0 %v732
      %v734 = vpop.xlane.xlu0 %733
      %v735 = vrcp.pop %v713
      %v736 = vrcp.pop %v716
      %v737 = vrcp.pop %v719
      %v738 = vrcp.pop %v722
      %v739 = vrcp.pop %v725
      %v740 = vrcp.pop %v728
      %v741 = vrcp.pop %v731
      %v742 = vrcp.pop %v734
      %v743 = vmul.f32 %v696, %v735
      %v744 = vmul.f32 %v698, %v736
      %v745 = vmul.f32 %v700, %v737
      %v746 = vmul.f32 %v702, %v738
      %v747 = vmul.f32 %v704, %v739
      %v748 = vmul.f32 %v706, %v740
      %v749 = vmul.f32 %v708, %v741
      %v750 = vmul.f32 %v710, %v742
      %751 = vrot.lane.b32.xlu0 %v529, 96
      %v752 = vpop.permute.xlu0 %751
      %753 = vrot.lane.b32.xlu0 %v531, 96
      %v754 = vpop.permute.xlu0 %753
      %755 = vrot.lane.b32.xlu0 %v534, 96
      %v756 = vpop.permute.xlu0 %755
      %757 = vrot.lane.b32.xlu0 %v536, 96
      %v758 = vpop.permute.xlu0 %757
      %759 = vrot.lane.b32.xlu0 %v539, 96
      %v760 = vpop.permute.xlu0 %759
      %761 = vrot.lane.b32.xlu0 %v541, 96
      %v762 = vpop.permute.xlu0 %761
      %763 = vrot.lane.b32.xlu0 %v544, 96
      %v764 = vpop.permute.xlu0 %763
      %765 = vrot.lane.b32.xlu0 %v546, 96
      %v766 = vpop.permute.xlu0 %765
      %v776 = vsel %vm662, %v743, 0
      %v779 = vsel %vm662, %v744, 0
      %v782 = vsel %vm662, %v745, 0
      %v785 = vsel %vm662, %v746, 0
      %v788 = vsel %vm662, %v747, 0
      %v791 = vsel %vm662, %v748, 0
      %v794 = vsel %vm662, %v749, 0
      %v797 = vsel %vm662, %v750, 0
      %799 = vmatpush.msra.mxu0 0.0
      %800 = vmatpush.msra.mxu0 0.0
      %801 = vmatpush.msra.mxu0 0.0
      %802 = vmatpush.msra.mxu0 0.0
      %803 = vmatpush.msra.mxu0 0.0
      %804 = vmatpush.msra.mxu0 0.0
      %805 = vmatpush.msra.mxu0 0.0
      %806 = vmatpush.msra.mxu0 0.0
      %807 = vmatpush.msra.mxu0 %v766
      %808 = vmatpush.msra.mxu0 %v764
      %809 = vmatpush.msra.mxu0 %v762
      %810 = vmatpush.msra.mxu0 %v760
      %811 = vmatpush.msra.mxu0 %v758
      %812 = vmatpush.msra.mxu0 %v756
      %813 = vmatpush.msra.mxu0 %v754
      %814 = vmatpush.msra.mxu0 %v752
      %815 = vmatmul.f32.gmra.mxu0 %v776
      %v816 = vpop.f32.mrf.mxu0
      %v817 = vadd.f32 0.0, %v816
      %818 = vmatmul.f32.gmra.mxu0 %v779
      %v819 = vpop.f32.mrf.mxu0
      %v820 = vadd.f32 0.0, %v819
      %821 = vmatmul.f32.gmra.mxu0 %v782
      %v822 = vpop.f32.mrf.mxu0
      %v823 = vadd.f32 0.0, %v822
      %824 = vmatmul.f32.gmra.mxu0 %v785
      %v825 = vpop.f32.mrf.mxu0
      %v826 = vadd.f32 0.0, %v825
      %827 = vmatmul.f32.gmra.mxu0 %v788
      %v828 = vpop.f32.mrf.mxu0
      %v829 = vadd.f32 0.0, %v828
      %830 = vmatmul.f32.gmra.mxu0 %v791
      %v831 = vpop.f32.mrf.mxu0
      %v832 = vadd.f32 0.0, %v831
      %833 = vmatmul.f32.gmra.mxu0 %v794
      %v834 = vpop.f32.mrf.mxu0
      %v835 = vadd.f32 0.0, %v834
      %836 = vmatmul.f32.gmra.mxu0 %v797
      %v837 = vpop.f32.mrf.mxu0
      %v838 = vadd.f32 0.0, %v837
      %839 = vdwg.mxu0
      %840 = vrot.lane.b32.xlu0 %v548, 124
      %v841 = vpop.permute.xlu0 %840
      %842 = vrot.lane.b32.xlu0 %v549, 124
      %v843 = vpop.permute.xlu0 %842
      %844 = vrot.lane.b32.xlu0 %v550, 124
      %v845 = vpop.permute.xlu0 %844
      %846 = vrot.lane.b32.xlu0 %v551, 124
      %v847 = vpop.permute.xlu0 %846
      %848 = vrot.lane.b32.xlu0 %v552, 124
      %v849 = vpop.permute.xlu0 %848
      %850 = vrot.lane.b32.xlu0 %v553, 124
      %v851 = vpop.permute.xlu0 %850
      %852 = vrot.lane.b32.xlu0 %v554, 124
      %v853 = vpop.permute.xlu0 %852
      %854 = vrot.lane.b32.xlu0 %v555, 124
      %v855 = vpop.permute.xlu0 %854
      %856 = vrot.lane.b32.xlu0 %v529, 108
      %v857 = vpop.permute.xlu0 %856
      %858 = vrot.lane.b32.xlu0 %v531, 108
      %v859 = vpop.permute.xlu0 %858
      %860 = vrot.lane.b32.xlu0 %v534, 108
      %v861 = vpop.permute.xlu0 %860
      %862 = vrot.lane.b32.xlu0 %v536, 108
      %v863 = vpop.permute.xlu0 %862
      %864 = vrot.lane.b32.xlu0 %v539, 108
      %v865 = vpop.permute.xlu0 %864
      %866 = vrot.lane.b32.xlu0 %v541, 108
      %v867 = vpop.permute.xlu0 %866
      %868 = vrot.lane.b32.xlu0 %v544, 108
      %v869 = vpop.permute.xlu0 %868
      %870 = vrot.lane.b32.xlu0 %v546, 108
      %v871 = vpop.permute.xlu0 %870
      %v872 = vsel %vm580, %v841, 0
      %v874 = vsel %vm580, %v843, 0
      %v876 = vsel %vm580, %v845, 0
      %v878 = vsel %vm580, %v847, 0
      %v880 = vsel %vm580, %v849, 0
      %v882 = vsel %vm580, %v851, 0
      %v884 = vsel %vm580, %v853, 0
      %v886 = vsel %vm580, %v855, 0
      %v888 = vsel %vm580, %v857, 0
      %v890 = vsel %vm580, %v859, 0
      %v892 = vsel %vm580, %v861, 0
      %v894 = vsel %vm580, %v863, 0
      %v896 = vsel %vm580, %v865, 0
      %v898 = vsel %vm580, %v867, 0
      %v900 = vsel %vm580, %v869, 0
      %v902 = vsel %vm580, %v871, 0
      %904 = vmatpush.xpose.msra.mxu0 0.0
      %905 = vmatpush.xpose.msra.mxu0 0.0
      %906 = vmatpush.xpose.msra.mxu0 0.0
      %907 = vmatpush.xpose.msra.mxu0 0.0
      %908 = vmatpush.xpose.msra.mxu0 0.0
      %909 = vmatpush.xpose.msra.mxu0 0.0
      %910 = vmatpush.xpose.msra.mxu0 0.0
      %911 = vmatpush.xpose.msra.mxu0 0.0
      %912 = vmatpush.xpose.msra.mxu0 %v902
      %913 = vmatpush.xpose.msra.mxu0 %v900
      %914 = vmatpush.xpose.msra.mxu0 %v898
      %915 = vmatpush.xpose.msra.mxu0 %v896
      %916 = vmatpush.xpose.msra.mxu0 %v894
      %917 = vmatpush.xpose.msra.mxu0 %v892
      %918 = vmatpush.xpose.msra.mxu0 %v890
      %919 = vmatpush.xpose.msra.mxu0 %v888
      %920 = vmatmul.f32.gmra.mxu0 %v872
      %v921 = vpop.f32.mrf.mxu0
      %v922 = vadd.f32 0.0, %v921
      %923 = vmatmul.f32.gmra.mxu0 %v874
      %v924 = vpop.f32.mrf.mxu0
      %v925 = vadd.f32 0.0, %v924
      %926 = vmatmul.f32.gmra.mxu0 %v876
      %v927 = vpop.f32.mrf.mxu0
      %v928 = vadd.f32 0.0, %v927
      %929 = vmatmul.f32.gmra.mxu0 %v878
      %v930 = vpop.f32.mrf.mxu0
      %v931 = vadd.f32 0.0, %v930
      %932 = vmatmul.f32.gmra.mxu0 %v880
      %v933 = vpop.f32.mrf.mxu0
      %v934 = vadd.f32 0.0, %v933
      %935 = vmatmul.f32.gmra.mxu0 %v882
      %v936 = vpop.f32.mrf.mxu0
      %v937 = vadd.f32 0.0, %v936
      %938 = vmatmul.f32.gmra.mxu0 %v884
      %v939 = vpop.f32.mrf.mxu0
      %v940 = vadd.f32 0.0, %v939
      %941 = vmatmul.f32.gmra.mxu0 %v886
      %v942 = vpop.f32.mrf.mxu0
      %v943 = vadd.f32 0.0, %v942
      %944 = vdwg.mxu0
      %v945 = vsel %vm662, %v922, -inf
      %946 = vmax.xlane.f32.xlu0 %v945
      %v947 = vpop.xlane.xlu0 %946
      %v948 = vsel %vm662, %v925, -inf
      %949 = vmax.xlane.f32.xlu0 %v948
      %v950 = vpop.xlane.xlu0 %949
      %v951 = vsel %vm662, %v928, -inf
      %952 = vmax.xlane.f32.xlu0 %v951
      %v953 = vpop.xlane.xlu0 %952
      %v954 = vsel %vm662, %v931, -inf
      %955 = vmax.xlane.f32.xlu0 %v954
      %v956 = vpop.xlane.xlu0 %955
      %v957 = vsel %vm662, %v934, -inf
      %958 = vmax.xlane.f32.xlu0 %v957
      %v959 = vpop.xlane.xlu0 %958
      %v960 = vsel %vm662, %v937, -inf
      %961 = vmax.xlane.f32.xlu0 %v960
      %v962 = vpop.xlane.xlu0 %961
      %v963 = vsel %vm662, %v940, -inf
      %964 = vmax.xlane.f32.xlu0 %v963
      %v965 = vpop.xlane.xlu0 %964
      %v966 = vsel %vm662, %v943, -inf
      %967 = vmax.xlane.f32.xlu0 %v966
      %v968 = vpop.xlane.xlu0 %967
      %v969 = vsub.f32 %v922, %v947
      %v970 = vsub.f32 %v925, %v950
      %v971 = vsub.f32 %v928, %v953
      %v972 = vsub.f32 %v931, %v956
      %v973 = vsub.f32 %v934, %v959
      %v974 = vsub.f32 %v937, %v962
      %v975 = vsub.f32 %v940, %v965
      %v976 = vsub.f32 %v943, %v968
      %v977 = vmul.f32 %v969, 1.442695
      %v978 = vpow.pop %v977
      %v979 = vmul.f32 %v970, 1.442695
      %v980 = vpow.pop %v979
      %v981 = vmul.f32 %v971, 1.442695
      %v982 = vpow.pop %v981
      %v983 = vmul.f32 %v972, 1.442695
      %v984 = vpow.pop %v983
      %v985 = vmul.f32 %v973, 1.442695
      %v986 = vpow.pop %v985
      %v987 = vmul.f32 %v974, 1.442695
      %v988 = vpow.pop %v987
      %v989 = vmul.f32 %v975, 1.442695
      %v990 = vpow.pop %v989
      %v991 = vmul.f32 %v976, 1.442695
      %v992 = vpow.pop %v991
      %v993 = vsel %vm662, %v978, 0.0
      %994 = vadd.xlane.f32.xlu0 %v993
      %v995 = vpop.xlane.xlu0 %994
      %v996 = vsel %vm662, %v980, 0.0
      %997 = vadd.xlane.f32.xlu0 %v996
      %v998 = vpop.xlane.xlu0 %997
      %v999 = vsel %vm662, %v982, 0.0
      %1000 = vadd.xlane.f32.xlu0 %v999
      %v1001 = vpop.xlane.xlu0 %1000
      %v1002 = vsel %vm662, %v984, 0.0
      %1003 = vadd.xlane.f32.xlu0 %v1002
      %v1004 = vpop.xlane.xlu0 %1003
      %v1005 = vsel %vm662, %v986, 0.0
      %1006 = vadd.xlane.f32.xlu0 %v1005
      %v1007 = vpop.xlane.xlu0 %1006
      %v1008 = vsel %vm662, %v988, 0.0
      %1009 = vadd.xlane.f32.xlu0 %v1008
      %v1010 = vpop.xlane.xlu0 %1009
      %v1011 = vsel %vm662, %v990, 0.0
      %1012 = vadd.xlane.f32.xlu0 %v1011
      %v1013 = vpop.xlane.xlu0 %1012
      %v1014 = vsel %vm662, %v992, 0.0
      %1015 = vadd.xlane.f32.xlu0 %v1014
      %v1016 = vpop.xlane.xlu0 %1015
      %v1017 = vrcp.pop %v995
      %v1018 = vrcp.pop %v998
      %v1019 = vrcp.pop %v1001
      %v1020 = vrcp.pop %v1004
      %v1021 = vrcp.pop %v1007
      %v1022 = vrcp.pop %v1010
      %v1023 = vrcp.pop %v1013
      %v1024 = vrcp.pop %v1016
      %v1025 = vmul.f32 %v978, %v1017
      %v1026 = vmul.f32 %v980, %v1018
      %v1027 = vmul.f32 %v982, %v1019
      %v1028 = vmul.f32 %v984, %v1020
      %v1029 = vmul.f32 %v986, %v1021
      %v1030 = vmul.f32 %v988, %v1022
      %v1031 = vmul.f32 %v990, %v1023
      %v1032 = vmul.f32 %v992, %v1024
      %1033 = vrot.lane.b32.xlu0 %v529, 92
      %v1034 = vpop.permute.xlu0 %1033
      %1035 = vrot.lane.b32.xlu0 %v531, 92
      %v1036 = vpop.permute.xlu0 %1035
      %1037 = vrot.lane.b32.xlu0 %v534, 92
      %v1038 = vpop.permute.xlu0 %1037
      %1039 = vrot.lane.b32.xlu0 %v536, 92
      %v1040 = vpop.permute.xlu0 %1039
      %1041 = vrot.lane.b32.xlu0 %v539, 92
      %v1042 = vpop.permute.xlu0 %1041
      %1043 = vrot.lane.b32.xlu0 %v541, 92
      %v1044 = vpop.permute.xlu0 %1043
      %1045 = vrot.lane.b32.xlu0 %v544, 92
      %v1046 = vpop.permute.xlu0 %1045
      %1047 = vrot.lane.b32.xlu0 %v546, 92
      %v1048 = vpop.permute.xlu0 %1047
      %v1058 = vsel %vm662, %v1025, 0
      %v1061 = vsel %vm662, %v1026, 0
      %v1064 = vsel %vm662, %v1027, 0
      %v1067 = vsel %vm662, %v1028, 0
      %v1070 = vsel %vm662, %v1029, 0
      %v1073 = vsel %vm662, %v1030, 0
      %v1076 = vsel %vm662, %v1031, 0
      %v1079 = vsel %vm662, %v1032, 0
      %1081 = vmatpush.msra.mxu0 0.0
      %1082 = vmatpush.msra.mxu0 0.0
      %1083 = vmatpush.msra.mxu0 0.0
      %1084 = vmatpush.msra.mxu0 0.0
      %1085 = vmatpush.msra.mxu0 0.0
      %1086 = vmatpush.msra.mxu0 0.0
      %1087 = vmatpush.msra.mxu0 0.0
      %1088 = vmatpush.msra.mxu0 0.0
      %1089 = vmatpush.msra.mxu0 %v1048
      %1090 = vmatpush.msra.mxu0 %v1046
      %1091 = vmatpush.msra.mxu0 %v1044
      %1092 = vmatpush.msra.mxu0 %v1042
      %1093 = vmatpush.msra.mxu0 %v1040
      %1094 = vmatpush.msra.mxu0 %v1038
      %1095 = vmatpush.msra.mxu0 %v1036
      %1096 = vmatpush.msra.mxu0 %v1034
      %1097 = vmatmul.f32.gmra.mxu0 %v1058
      %v1098 = vpop.f32.mrf.mxu0
      %v1099 = vadd.f32 0.0, %v1098
      %1100 = vmatmul.f32.gmra.mxu0 %v1061
      %v1101 = vpop.f32.mrf.mxu0
      %v1102 = vadd.f32 0.0, %v1101
      %1103 = vmatmul.f32.gmra.mxu0 %v1064
      %v1104 = vpop.f32.mrf.mxu0
      %v1105 = vadd.f32 0.0, %v1104
      %1106 = vmatmul.f32.gmra.mxu0 %v1067
      %v1107 = vpop.f32.mrf.mxu0
      %v1108 = vadd.f32 0.0, %v1107
      %1109 = vmatmul.f32.gmra.mxu0 %v1070
      %v1110 = vpop.f32.mrf.mxu0
      %v1111 = vadd.f32 0.0, %v1110
      %1112 = vmatmul.f32.gmra.mxu0 %v1073
      %v1113 = vpop.f32.mrf.mxu0
      %v1114 = vadd.f32 0.0, %v1113
      %1115 = vmatmul.f32.gmra.mxu0 %v1076
      %v1116 = vpop.f32.mrf.mxu0
      %v1117 = vadd.f32 0.0, %v1116
      %1118 = vmatmul.f32.gmra.mxu0 %v1079
      %v1119 = vpop.f32.mrf.mxu0
      %v1120 = vadd.f32 0.0, %v1119
      %1121 = vdwg.mxu0
      %1122 = vrot.lane.b32.xlu0 %v548, 120
      %v1123 = vpop.permute.xlu0 %1122
      %1124 = vrot.lane.b32.xlu0 %v549, 120
      %v1125 = vpop.permute.xlu0 %1124
      %1126 = vrot.lane.b32.xlu0 %v550, 120
      %v1127 = vpop.permute.xlu0 %1126
      %1128 = vrot.lane.b32.xlu0 %v551, 120
      %v1129 = vpop.permute.xlu0 %1128
      %1130 = vrot.lane.b32.xlu0 %v552, 120
      %v1131 = vpop.permute.xlu0 %1130
      %1132 = vrot.lane.b32.xlu0 %v553, 120
      %v1133 = vpop.permute.xlu0 %1132
      %1134 = vrot.lane.b32.xlu0 %v554, 120
      %v1135 = vpop.permute.xlu0 %1134
      %1136 = vrot.lane.b32.xlu0 %v555, 120
      %v1137 = vpop.permute.xlu0 %1136
      %1138 = vrot.lane.b32.xlu0 %v529, 104
      %v1139 = vpop.permute.xlu0 %1138
      %1140 = vrot.lane.b32.xlu0 %v531, 104
      %v1141 = vpop.permute.xlu0 %1140
      %1142 = vrot.lane.b32.xlu0 %v534, 104
      %v1143 = vpop.permute.xlu0 %1142
      %1144 = vrot.lane.b32.xlu0 %v536, 104
      %v1145 = vpop.permute.xlu0 %1144
      %1146 = vrot.lane.b32.xlu0 %v539, 104
      %v1147 = vpop.permute.xlu0 %1146
      %1148 = vrot.lane.b32.xlu0 %v541, 104
      %v1149 = vpop.permute.xlu0 %1148
      %1150 = vrot.lane.b32.xlu0 %v544, 104
      %v1151 = vpop.permute.xlu0 %1150
      %1152 = vrot.lane.b32.xlu0 %v546, 104
      %v1153 = vpop.permute.xlu0 %1152
      %v1154 = vsel %vm580, %v1123, 0
      %v1156 = vsel %vm580, %v1125, 0
      %v1158 = vsel %vm580, %v1127, 0
      %v1160 = vsel %vm580, %v1129, 0
      %v1162 = vsel %vm580, %v1131, 0
      %v1164 = vsel %vm580, %v1133, 0
      %v1166 = vsel %vm580, %v1135, 0
      %v1168 = vsel %vm580, %v1137, 0
      %v1170 = vsel %vm580, %v1139, 0
      %v1172 = vsel %vm580, %v1141, 0
      %v1174 = vsel %vm580, %v1143, 0
      %v1176 = vsel %vm580, %v1145, 0
      %v1178 = vsel %vm580, %v1147, 0
      %v1180 = vsel %vm580, %v1149, 0
      %v1182 = vsel %vm580, %v1151, 0
      %v1184 = vsel %vm580, %v1153, 0
      %1186 = vmatpush.xpose.msra.mxu0 0.0
      %1187 = vmatpush.xpose.msra.mxu0 0.0
      %1188 = vmatpush.xpose.msra.mxu0 0.0
      %1189 = vmatpush.xpose.msra.mxu0 0.0
      %1190 = vmatpush.xpose.msra.mxu0 0.0
      %1191 = vmatpush.xpose.msra.mxu0 0.0
      %1192 = vmatpush.xpose.msra.mxu0 0.0
      %1193 = vmatpush.xpose.msra.mxu0 0.0
      %1194 = vmatpush.xpose.msra.mxu0 %v1184
      %1195 = vmatpush.xpose.msra.mxu0 %v1182
      %1196 = vmatpush.xpose.msra.mxu0 %v1180
      %1197 = vmatpush.xpose.msra.mxu0 %v1178
      %1198 = vmatpush.xpose.msra.mxu0 %v1176
      %1199 = vmatpush.xpose.msra.mxu0 %v1174
      %1200 = vmatpush.xpose.msra.mxu0 %v1172
      %1201 = vmatpush.xpose.msra.mxu0 %v1170
      %1202 = vmatmul.f32.gmra.mxu0 %v1154
      %v1203 = vpop.f32.mrf.mxu0
      %v1204 = vadd.f32 0.0, %v1203
      %1205 = vmatmul.f32.gmra.mxu0 %v1156
      %v1206 = vpop.f32.mrf.mxu0
      %v1207 = vadd.f32 0.0, %v1206
      %1208 = vmatmul.f32.gmra.mxu0 %v1158
      %v1209 = vpop.f32.mrf.mxu0
      %v1210 = vadd.f32 0.0, %v1209
      %1211 = vmatmul.f32.gmra.mxu0 %v1160
      %v1212 = vpop.f32.mrf.mxu0
      %v1213 = vadd.f32 0.0, %v1212
      %1214 = vmatmul.f32.gmra.mxu0 %v1162
      %v1215 = vpop.f32.mrf.mxu0
      %v1216 = vadd.f32 0.0, %v1215
      %1217 = vmatmul.f32.gmra.mxu0 %v1164
      %v1218 = vpop.f32.mrf.mxu0
      %v1219 = vadd.f32 0.0, %v1218
      %1220 = vmatmul.f32.gmra.mxu0 %v1166
      %v1221 = vpop.f32.mrf.mxu0
      %v1222 = vadd.f32 0.0, %v1221
      %1223 = vmatmul.f32.gmra.mxu0 %v1168
      %v1224 = vpop.f32.mrf.mxu0
      %v1225 = vadd.f32 0.0, %v1224
      %1226 = vdwg.mxu0
      %v1227 = vsel %vm662, %v1204, -inf
      %1228 = vmax.xlane.f32.xlu0 %v1227
      %v1229 = vpop.xlane.xlu0 %1228
      %v1230 = vsel %vm662, %v1207, -inf
      %1231 = vmax.xlane.f32.xlu0 %v1230
      %v1232 = vpop.xlane.xlu0 %1231
      %v1233 = vsel %vm662, %v1210, -inf
      %1234 = vmax.xlane.f32.xlu0 %v1233
      %v1235 = vpop.xlane.xlu0 %1234
      %v1236 = vsel %vm662, %v1213, -inf
      %1237 = vmax.xlane.f32.xlu0 %v1236
      %v1238 = vpop.xlane.xlu0 %1237
      %v1239 = vsel %vm662, %v1216, -inf
      %1240 = vmax.xlane.f32.xlu0 %v1239
      %v1241 = vpop.xlane.xlu0 %1240
      %v1242 = vsel %vm662, %v1219, -inf
      %1243 = vmax.xlane.f32.xlu0 %v1242
      %v1244 = vpop.xlane.xlu0 %1243
      %v1245 = vsel %vm662, %v1222, -inf
      %1246 = vmax.xlane.f32.xlu0 %v1245
      %v1247 = vpop.xlane.xlu0 %1246
      %v1248 = vsel %vm662, %v1225, -inf
      %1249 = vmax.xlane.f32.xlu0 %v1248
      %v1250 = vpop.xlane.xlu0 %1249
      %v1251 = vsub.f32 %v1204, %v1229
      %v1252 = vsub.f32 %v1207, %v1232
      %v1253 = vsub.f32 %v1210, %v1235
      %v1254 = vsub.f32 %v1213, %v1238
      %v1255 = vsub.f32 %v1216, %v1241
      %v1256 = vsub.f32 %v1219, %v1244
      %v1257 = vsub.f32 %v1222, %v1247
      %v1258 = vsub.f32 %v1225, %v1250
      %v1259 = vmul.f32 %v1251, 1.442695
      %v1260 = vpow.pop %v1259
      %v1261 = vmul.f32 %v1252, 1.442695
      %v1262 = vpow.pop %v1261
      %v1263 = vmul.f32 %v1253, 1.442695
      %v1264 = vpow.pop %v1263
      %v1265 = vmul.f32 %v1254, 1.442695
      %v1266 = vpow.pop %v1265
      %v1267 = vmul.f32 %v1255, 1.442695
      %v1268 = vpow.pop %v1267
      %v1269 = vmul.f32 %v1256, 1.442695
      %v1270 = vpow.pop %v1269
      %v1271 = vmul.f32 %v1257, 1.442695
      %v1272 = vpow.pop %v1271
      %v1273 = vmul.f32 %v1258, 1.442695
      %v1274 = vpow.pop %v1273
      %v1275 = vsel %vm662, %v1260, 0.0
      %1276 = vadd.xlane.f32.xlu0 %v1275
      %v1277 = vpop.xlane.xlu0 %1276
      %v1278 = vsel %vm662, %v1262, 0.0
      %1279 = vadd.xlane.f32.xlu0 %v1278
      %v1280 = vpop.xlane.xlu0 %1279
      %v1281 = vsel %vm662, %v1264, 0.0
      %1282 = vadd.xlane.f32.xlu0 %v1281
      %v1283 = vpop.xlane.xlu0 %1282
      %v1284 = vsel %vm662, %v1266, 0.0
      %1285 = vadd.xlane.f32.xlu0 %v1284
      %v1286 = vpop.xlane.xlu0 %1285
      %v1287 = vsel %vm662, %v1268, 0.0
      %1288 = vadd.xlane.f32.xlu0 %v1287
      %v1289 = vpop.xlane.xlu0 %1288
      %v1290 = vsel %vm662, %v1270, 0.0
      %1291 = vadd.xlane.f32.xlu0 %v1290
      %v1292 = vpop.xlane.xlu0 %1291
      %v1293 = vsel %vm662, %v1272, 0.0
      %1294 = vadd.xlane.f32.xlu0 %v1293
      %v1295 = vpop.xlane.xlu0 %1294
      %v1296 = vsel %vm662, %v1274, 0.0
      %1297 = vadd.xlane.f32.xlu0 %v1296
      %v1298 = vpop.xlane.xlu0 %1297
      %v1299 = vrcp.pop %v1277
      %v1300 = vrcp.pop %v1280
      %v1301 = vrcp.pop %v1283
      %v1302 = vrcp.pop %v1286
      %v1303 = vrcp.pop %v1289
      %v1304 = vrcp.pop %v1292
      %v1305 = vrcp.pop %v1295
      %v1306 = vrcp.pop %v1298
      %v1307 = vmul.f32 %v1260, %v1299
      %v1308 = vmul.f32 %v1262, %v1300
      %v1309 = vmul.f32 %v1264, %v1301
      %v1310 = vmul.f32 %v1266, %v1302
      %v1311 = vmul.f32 %v1268, %v1303
      %v1312 = vmul.f32 %v1270, %v1304
      %v1313 = vmul.f32 %v1272, %v1305
      %v1314 = vmul.f32 %v1274, %v1306
      %1315 = vrot.lane.b32.xlu0 %v529, 88
      %v1316 = vpop.permute.xlu0 %1315
      %1317 = vrot.lane.b32.xlu0 %v531, 88
      %v1318 = vpop.permute.xlu0 %1317
      %1319 = vrot.lane.b32.xlu0 %v534, 88
      %v1320 = vpop.permute.xlu0 %1319
      %1321 = vrot.lane.b32.xlu0 %v536, 88
      %v1322 = vpop.permute.xlu0 %1321
      %1323 = vrot.lane.b32.xlu0 %v539, 88
      %v1324 = vpop.permute.xlu0 %1323
      %1325 = vrot.lane.b32.xlu0 %v541, 88
      %v1326 = vpop.permute.xlu0 %1325
      %1327 = vrot.lane.b32.xlu0 %v544, 88
      %v1328 = vpop.permute.xlu0 %1327
      %1329 = vrot.lane.b32.xlu0 %v546, 88
      %v1330 = vpop.permute.xlu0 %1329
      %v1340 = vsel %vm662, %v1307, 0
      %v1343 = vsel %vm662, %v1308, 0
      %v1346 = vsel %vm662, %v1309, 0
      %v1349 = vsel %vm662, %v1310, 0
      %v1352 = vsel %vm662, %v1311, 0
      %v1355 = vsel %vm662, %v1312, 0
      %v1358 = vsel %vm662, %v1313, 0
      %v1361 = vsel %vm662, %v1314, 0
      %1363 = vmatpush.msra.mxu0 0.0
      %1364 = vmatpush.msra.mxu0 0.0
      %1365 = vmatpush.msra.mxu0 0.0
      %1366 = vmatpush.msra.mxu0 0.0
      %1367 = vmatpush.msra.mxu0 0.0
      %1368 = vmatpush.msra.mxu0 0.0
      %1369 = vmatpush.msra.mxu0 0.0
      %1370 = vmatpush.msra.mxu0 0.0
      %1371 = vmatpush.msra.mxu0 %v1330
      %1372 = vmatpush.msra.mxu0 %v1328
      %1373 = vmatpush.msra.mxu0 %v1326
      %1374 = vmatpush.msra.mxu0 %v1324
      %1375 = vmatpush.msra.mxu0 %v1322
      %1376 = vmatpush.msra.mxu0 %v1320
      %1377 = vmatpush.msra.mxu0 %v1318
      %1378 = vmatpush.msra.mxu0 %v1316
      %1379 = vmatmul.f32.gmra.mxu0 %v1340
      %v1380 = vpop.f32.mrf.mxu0
      %v1381 = vadd.f32 0.0, %v1380
      %1382 = vmatmul.f32.gmra.mxu0 %v1343
      %v1383 = vpop.f32.mrf.mxu0
      %v1384 = vadd.f32 0.0, %v1383
      %1385 = vmatmul.f32.gmra.mxu0 %v1346
      %v1386 = vpop.f32.mrf.mxu0
      %v1387 = vadd.f32 0.0, %v1386
      %1388 = vmatmul.f32.gmra.mxu0 %v1349
      %v1389 = vpop.f32.mrf.mxu0
      %v1390 = vadd.f32 0.0, %v1389
      %1391 = vmatmul.f32.gmra.mxu0 %v1352
      %v1392 = vpop.f32.mrf.mxu0
      %v1393 = vadd.f32 0.0, %v1392
      %1394 = vmatmul.f32.gmra.mxu0 %v1355
      %v1395 = vpop.f32.mrf.mxu0
      %v1396 = vadd.f32 0.0, %v1395
      %1397 = vmatmul.f32.gmra.mxu0 %v1358
      %v1398 = vpop.f32.mrf.mxu0
      %v1399 = vadd.f32 0.0, %v1398
      %1400 = vmatmul.f32.gmra.mxu0 %v1361
      %v1401 = vpop.f32.mrf.mxu0
      %v1402 = vadd.f32 0.0, %v1401
      %1403 = vdwg.mxu0
      %1404 = vrot.lane.b32.xlu0 %v548, 116
      %v1405 = vpop.permute.xlu0 %1404
      %1406 = vrot.lane.b32.xlu0 %v549, 116
      %v1407 = vpop.permute.xlu0 %1406
      %1408 = vrot.lane.b32.xlu0 %v550, 116
      %v1409 = vpop.permute.xlu0 %1408
      %1410 = vrot.lane.b32.xlu0 %v551, 116
      %v1411 = vpop.permute.xlu0 %1410
      %1412 = vrot.lane.b32.xlu0 %v552, 116
      %v1413 = vpop.permute.xlu0 %1412
      %1414 = vrot.lane.b32.xlu0 %v553, 116
      %v1415 = vpop.permute.xlu0 %1414
      %1416 = vrot.lane.b32.xlu0 %v554, 116
      %v1417 = vpop.permute.xlu0 %1416
      %1418 = vrot.lane.b32.xlu0 %v555, 116
      %v1419 = vpop.permute.xlu0 %1418
      %1420 = vrot.lane.b32.xlu0 %v529, 100
      %v1421 = vpop.permute.xlu0 %1420
      %1422 = vrot.lane.b32.xlu0 %v531, 100
      %v1423 = vpop.permute.xlu0 %1422
      %1424 = vrot.lane.b32.xlu0 %v534, 100
      %v1425 = vpop.permute.xlu0 %1424
      %1426 = vrot.lane.b32.xlu0 %v536, 100
      %v1427 = vpop.permute.xlu0 %1426
      %1428 = vrot.lane.b32.xlu0 %v539, 100
      %v1429 = vpop.permute.xlu0 %1428
      %1430 = vrot.lane.b32.xlu0 %v541, 100
      %v1431 = vpop.permute.xlu0 %1430
      %1432 = vrot.lane.b32.xlu0 %v544, 100
      %v1433 = vpop.permute.xlu0 %1432
      %1434 = vrot.lane.b32.xlu0 %v546, 100
      %v1435 = vpop.permute.xlu0 %1434
      %v1436 = vsel %vm580, %v1405, 0
      %v1438 = vsel %vm580, %v1407, 0
      %v1440 = vsel %vm580, %v1409, 0
      %v1442 = vsel %vm580, %v1411, 0
      %v1444 = vsel %vm580, %v1413, 0
      %v1446 = vsel %vm580, %v1415, 0
      %v1448 = vsel %vm580, %v1417, 0
      %v1450 = vsel %vm580, %v1419, 0
      %v1452 = vsel %vm580, %v1421, 0
      %v1454 = vsel %vm580, %v1423, 0
      %v1456 = vsel %vm580, %v1425, 0
      %v1458 = vsel %vm580, %v1427, 0
      %v1460 = vsel %vm580, %v1429, 0
      %v1462 = vsel %vm580, %v1431, 0
      %v1464 = vsel %vm580, %v1433, 0
      %v1466 = vsel %vm580, %v1435, 0
      %1468 = vmatpush.xpose.msra.mxu0 0.0
      %1469 = vmatpush.xpose.msra.mxu0 0.0
      %1470 = vmatpush.xpose.msra.mxu0 0.0
      %1471 = vmatpush.xpose.msra.mxu0 0.0
      %1472 = vmatpush.xpose.msra.mxu0 0.0
      %1473 = vmatpush.xpose.msra.mxu0 0.0
      %1474 = vmatpush.xpose.msra.mxu0 0.0
      %1475 = vmatpush.xpose.msra.mxu0 0.0
      %1476 = vmatpush.xpose.msra.mxu0 %v1466
      %1477 = vmatpush.xpose.msra.mxu0 %v1464
      %1478 = vmatpush.xpose.msra.mxu0 %v1462
      %1479 = vmatpush.xpose.msra.mxu0 %v1460
      %1480 = vmatpush.xpose.msra.mxu0 %v1458
      %1481 = vmatpush.xpose.msra.mxu0 %v1456
      %1482 = vmatpush.xpose.msra.mxu0 %v1454
      %1483 = vmatpush.xpose.msra.mxu0 %v1452
      %1484 = vmatmul.f32.gmra.mxu0 %v1436
      %v1485 = vpop.f32.mrf.mxu0
      %v1486 = vadd.f32 0.0, %v1485
      %1487 = vmatmul.f32.gmra.mxu0 %v1438
      %v1488 = vpop.f32.mrf.mxu0
      %v1489 = vadd.f32 0.0, %v1488
      %1490 = vmatmul.f32.gmra.mxu0 %v1440
      %v1491 = vpop.f32.mrf.mxu0
      %v1492 = vadd.f32 0.0, %v1491
      %1493 = vmatmul.f32.gmra.mxu0 %v1442
      %v1494 = vpop.f32.mrf.mxu0
      %v1495 = vadd.f32 0.0, %v1494
      %1496 = vmatmul.f32.gmra.mxu0 %v1444
      %v1497 = vpop.f32.mrf.mxu0
      %v1498 = vadd.f32 0.0, %v1497
      %1499 = vmatmul.f32.gmra.mxu0 %v1446
      %v1500 = vpop.f32.mrf.mxu0
      %v1501 = vadd.f32 0.0, %v1500
      %1502 = vmatmul.f32.gmra.mxu0 %v1448
      %v1503 = vpop.f32.mrf.mxu0
      %v1504 = vadd.f32 0.0, %v1503
      %1505 = vmatmul.f32.gmra.mxu0 %v1450
      %v1506 = vpop.f32.mrf.mxu0
      %v1507 = vadd.f32 0.0, %v1506
      %1508 = vdwg.mxu0
      %v1509 = vsel %vm662, %v1486, -inf
      %1510 = vmax.xlane.f32.xlu0 %v1509
      %v1511 = vpop.xlane.xlu0 %1510
      %v1512 = vsel %vm662, %v1489, -inf
      %1513 = vmax.xlane.f32.xlu0 %v1512
      %v1514 = vpop.xlane.xlu0 %1513
      %v1515 = vsel %vm662, %v1492, -inf
      %1516 = vmax.xlane.f32.xlu0 %v1515
      %v1517 = vpop.xlane.xlu0 %1516
      %v1518 = vsel %vm662, %v1495, -inf
      %1519 = vmax.xlane.f32.xlu0 %v1518
      %v1520 = vpop.xlane.xlu0 %1519
      %v1521 = vsel %vm662, %v1498, -inf
      %1522 = vmax.xlane.f32.xlu0 %v1521
      %v1523 = vpop.xlane.xlu0 %1522
      %v1524 = vsel %vm662, %v1501, -inf
      %1525 = vmax.xlane.f32.xlu0 %v1524
      %v1526 = vpop.xlane.xlu0 %1525
      %v1527 = vsel %vm662, %v1504, -inf
      %1528 = vmax.xlane.f32.xlu0 %v1527
      %v1529 = vpop.xlane.xlu0 %1528
      %v1530 = vsel %vm662, %v1507, -inf
      %1531 = vmax.xlane.f32.xlu0 %v1530
      %v1532 = vpop.xlane.xlu0 %1531
      %v1533 = vsub.f32 %v1486, %v1511
      %v1534 = vsub.f32 %v1489, %v1514
      %v1535 = vsub.f32 %v1492, %v1517
      %v1536 = vsub.f32 %v1495, %v1520
      %v1537 = vsub.f32 %v1498, %v1523
      %v1538 = vsub.f32 %v1501, %v1526
      %v1539 = vsub.f32 %v1504, %v1529
      %v1540 = vsub.f32 %v1507, %v1532
      %v1541 = vmul.f32 %v1533, 1.442695
      %v1542 = vpow.pop %v1541
      %v1543 = vmul.f32 %v1534, 1.442695
      %v1544 = vpow.pop %v1543
      %v1545 = vmul.f32 %v1535, 1.442695
      %v1546 = vpow.pop %v1545
      %v1547 = vmul.f32 %v1536, 1.442695
      %v1548 = vpow.pop %v1547
      %v1549 = vmul.f32 %v1537, 1.442695
      %v1550 = vpow.pop %v1549
      %v1551 = vmul.f32 %v1538, 1.442695
      %v1552 = vpow.pop %v1551
      %v1553 = vmul.f32 %v1539, 1.442695
      %v1554 = vpow.pop %v1553
      %v1555 = vmul.f32 %v1540, 1.442695
      %v1556 = vpow.pop %v1555
      %v1557 = vsel %vm662, %v1542, 0.0
      %1558 = vadd.xlane.f32.xlu0 %v1557
      %v1559 = vpop.xlane.xlu0 %1558
      %v1560 = vsel %vm662, %v1544, 0.0
      %1561 = vadd.xlane.f32.xlu0 %v1560
      %v1562 = vpop.xlane.xlu0 %1561
      %v1563 = vsel %vm662, %v1546, 0.0
      %1564 = vadd.xlane.f32.xlu0 %v1563
      %v1565 = vpop.xlane.xlu0 %1564
      %v1566 = vsel %vm662, %v1548, 0.0
      %1567 = vadd.xlane.f32.xlu0 %v1566
      %v1568 = vpop.xlane.xlu0 %1567
      %v1569 = vsel %vm662, %v1550, 0.0
      %1570 = vadd.xlane.f32.xlu0 %v1569
      %v1571 = vpop.xlane.xlu0 %1570
      %v1572 = vsel %vm662, %v1552, 0.0
      %1573 = vadd.xlane.f32.xlu0 %v1572
      %v1574 = vpop.xlane.xlu0 %1573
      %v1575 = vsel %vm662, %v1554, 0.0
      %1576 = vadd.xlane.f32.xlu0 %v1575
      %v1577 = vpop.xlane.xlu0 %1576
      %v1578 = vsel %vm662, %v1556, 0.0
      %1579 = vadd.xlane.f32.xlu0 %v1578
      %v1580 = vpop.xlane.xlu0 %1579
      %v1581 = vrcp.pop %v1559
      %v1582 = vrcp.pop %v1562
      %v1583 = vrcp.pop %v1565
      %v1584 = vrcp.pop %v1568
      %v1585 = vrcp.pop %v1571
      %v1586 = vrcp.pop %v1574
      %v1587 = vrcp.pop %v1577
      %v1588 = vrcp.pop %v1580
      %v1589 = vmul.f32 %v1542, %v1581
      %v1590 = vmul.f32 %v1544, %v1582
      %v1591 = vmul.f32 %v1546, %v1583
      %v1592 = vmul.f32 %v1548, %v1584
      %v1593 = vmul.f32 %v1550, %v1585
      %v1594 = vmul.f32 %v1552, %v1586
      %v1595 = vmul.f32 %v1554, %v1587
      %v1596 = vmul.f32 %v1556, %v1588
      %1597 = vrot.lane.b32.xlu0 %v529, 84
      %v1598 = vpop.permute.xlu0 %1597
      %1599 = vrot.lane.b32.xlu0 %v531, 84
      %v1600 = vpop.permute.xlu0 %1599
      %1601 = vrot.lane.b32.xlu0 %v534, 84
      %v1602 = vpop.permute.xlu0 %1601
      %1603 = vrot.lane.b32.xlu0 %v536, 84
      %v1604 = vpop.permute.xlu0 %1603
      %1605 = vrot.lane.b32.xlu0 %v539, 84
      %v1606 = vpop.permute.xlu0 %1605
      %1607 = vrot.lane.b32.xlu0 %v541, 84
      %v1608 = vpop.permute.xlu0 %1607
      %1609 = vrot.lane.b32.xlu0 %v544, 84
      %v1610 = vpop.permute.xlu0 %1609
      %1611 = vrot.lane.b32.xlu0 %v546, 84
      %v1612 = vpop.permute.xlu0 %1611
      %v1622 = vsel %vm662, %v1589, 0
      %v1625 = vsel %vm662, %v1590, 0
      %v1628 = vsel %vm662, %v1591, 0
      %v1631 = vsel %vm662, %v1592, 0
      %v1634 = vsel %vm662, %v1593, 0
      %v1637 = vsel %vm662, %v1594, 0
      %v1640 = vsel %vm662, %v1595, 0
      %v1643 = vsel %vm662, %v1596, 0
      %1645 = vmatpush.msra.mxu0 0.0
      %1646 = vmatpush.msra.mxu0 0.0
      %1647 = vmatpush.msra.mxu0 0.0
      %1648 = vmatpush.msra.mxu0 0.0
      %1649 = vmatpush.msra.mxu0 0.0
      %1650 = vmatpush.msra.mxu0 0.0
      %1651 = vmatpush.msra.mxu0 0.0
      %1652 = vmatpush.msra.mxu0 0.0
      %1653 = vmatpush.msra.mxu0 %v1612
      %1654 = vmatpush.msra.mxu0 %v1610
      %1655 = vmatpush.msra.mxu0 %v1608
      %1656 = vmatpush.msra.mxu0 %v1606
      %1657 = vmatpush.msra.mxu0 %v1604
      %1658 = vmatpush.msra.mxu0 %v1602
      %1659 = vmatpush.msra.mxu0 %v1600
      %1660 = vmatpush.msra.mxu0 %v1598
      %1661 = vmatmul.f32.gmra.mxu0 %v1622
      %v1662 = vpop.f32.mrf.mxu0
      %v1663 = vadd.f32 0.0, %v1662
      %1664 = vmatmul.f32.gmra.mxu0 %v1625
      %v1665 = vpop.f32.mrf.mxu0
      %v1666 = vadd.f32 0.0, %v1665
      %1667 = vmatmul.f32.gmra.mxu0 %v1628
      %v1668 = vpop.f32.mrf.mxu0
      %v1669 = vadd.f32 0.0, %v1668
      %1670 = vmatmul.f32.gmra.mxu0 %v1631
      %v1671 = vpop.f32.mrf.mxu0
      %v1672 = vadd.f32 0.0, %v1671
      %1673 = vmatmul.f32.gmra.mxu0 %v1634
      %v1674 = vpop.f32.mrf.mxu0
      %v1675 = vadd.f32 0.0, %v1674
      %1676 = vmatmul.f32.gmra.mxu0 %v1637
      %v1677 = vpop.f32.mrf.mxu0
      %v1678 = vadd.f32 0.0, %v1677
      %1679 = vmatmul.f32.gmra.mxu0 %v1640
      %v1680 = vpop.f32.mrf.mxu0
      %v1681 = vadd.f32 0.0, %v1680
      %1682 = vmatmul.f32.gmra.mxu0 %v1643
      %v1683 = vpop.f32.mrf.mxu0
      %v1684 = vadd.f32 0.0, %v1683
      %1685 = vdwg.mxu0
      %1694 = vrot.lane.b32.xlu0 %v1099, 4
      %v1695 = vpop.permute.xlu0 %1694
      %1696 = vrot.lane.b32.xlu0 %v1102, 4
      %v1697 = vpop.permute.xlu0 %1696
      %1698 = vrot.lane.b32.xlu0 %v1105, 4
      %v1699 = vpop.permute.xlu0 %1698
      %1700 = vrot.lane.b32.xlu0 %v1108, 4
      %v1701 = vpop.permute.xlu0 %1700
      %1702 = vrot.lane.b32.xlu0 %v1111, 4
      %v1703 = vpop.permute.xlu0 %1702
      %1704 = vrot.lane.b32.xlu0 %v1114, 4
      %v1705 = vpop.permute.xlu0 %1704
      %1706 = vrot.lane.b32.xlu0 %v1117, 4
      %v1707 = vpop.permute.xlu0 %1706
      %1708 = vrot.lane.b32.xlu0 %v1120, 4
      %v1709 = vpop.permute.xlu0 %1708
      %1726 = vrot.lane.b32.xlu0 %v1381, 8
      %v1727 = vpop.permute.xlu0 %1726
      %1728 = vrot.lane.b32.xlu0 %v1384, 8
      %v1729 = vpop.permute.xlu0 %1728
      %1730 = vrot.lane.b32.xlu0 %v1387, 8
      %v1731 = vpop.permute.xlu0 %1730
      %1732 = vrot.lane.b32.xlu0 %v1390, 8
      %v1733 = vpop.permute.xlu0 %1732
      %1734 = vrot.lane.b32.xlu0 %v1393, 8
      %v1735 = vpop.permute.xlu0 %1734
      %1736 = vrot.lane.b32.xlu0 %v1396, 8
      %v1737 = vpop.permute.xlu0 %1736
      %1738 = vrot.lane.b32.xlu0 %v1399, 8
      %v1739 = vpop.permute.xlu0 %1738
      %1740 = vrot.lane.b32.xlu0 %v1402, 8
      %v1741 = vpop.permute.xlu0 %1740
      %1758 = vrot.lane.b32.xlu0 %v1663, 12
      %v1759 = vpop.permute.xlu0 %1758
      %1760 = vrot.lane.b32.xlu0 %v1666, 12
      %v1761 = vpop.permute.xlu0 %1760
      %1762 = vrot.lane.b32.xlu0 %v1669, 12
      %v1763 = vpop.permute.xlu0 %1762
      %1764 = vrot.lane.b32.xlu0 %v1672, 12
      %v1765 = vpop.permute.xlu0 %1764
      %1766 = vrot.lane.b32.xlu0 %v1675, 12
      %v1767 = vpop.permute.xlu0 %1766
      %1768 = vrot.lane.b32.xlu0 %v1678, 12
      %v1769 = vpop.permute.xlu0 %1768
      %1770 = vrot.lane.b32.xlu0 %v1681, 12
      %v1771 = vpop.permute.xlu0 %1770
      %1772 = vrot.lane.b32.xlu0 %v1684, 12
      %v1773 = vpop.permute.xlu0 %1772
      %v1782 = vsel %vm580, %v817, %v1695
      %v1783 = vsel %vm580, %v820, %v1697
      %v1784 = vsel %vm580, %v823, %v1699
      %v1785 = vsel %vm580, %v826, %v1701
      %v1786 = vsel %vm580, %v829, %v1703
      %v1787 = vsel %vm580, %v832, %v1705
      %v1788 = vsel %vm580, %v835, %v1707
      %v1789 = vsel %vm580, %v838, %v1709
      %vm1790 = vcmask 64512
      %v1791 = vsel %vm1790, %v1782, %v1727
      %v1792 = vsel %vm1790, %v1783, %v1729
      %v1793 = vsel %vm1790, %v1784, %v1731
      %v1794 = vsel %vm1790, %v1785, %v1733
      %v1795 = vsel %vm1790, %v1786, %v1735
      %v1796 = vsel %vm1790, %v1787, %v1737
      %v1797 = vsel %vm1790, %v1788, %v1739
      %v1798 = vsel %vm1790, %v1789, %v1741
      %vm1799 = vcmask 97280
      %v1800 = vsel %vm1799, %v1791, %v1759
      %v1801 = vsel %vm1799, %v1792, %v1761
      %v1802 = vsel %vm1799, %v1793, %v1763
      %v1803 = vsel %vm1799, %v1794, %v1765
      %v1804 = vsel %vm1799, %v1795, %v1767
      %v1805 = vsel %vm1799, %v1796, %v1769
      %v1806 = vsel %vm1799, %v1797, %v1771
      %v1807 = vsel %vm1799, %v1798, %v1773
      %v1808 = vpack.c.bf16 %v1801, %v1800
      %v1809 = vpack.c.bf16 %v1803, %v1802
      %v1810 = vpack.c.bf16 %v1805, %v1804
      %v1811 = vpack.c.bf16 %v1807, %v1806
      %v1812 = vld [vmem:[%s5] sm:$0xff]
      %v1813 = vld [vmem:[%s5 + $0x8] sm:$0xff]
      %v1814 = vpack.c.bf16 %v1813, %v1812
      %v1815 = vld [vmem:[%s6] sm:$0x1]
      %v1817 = vperm.slane %v1815, 0
      %v1820 = vsel %vm288, %v1808, 0
      %v1823 = vsel %vm288, %v1809, 0
      %v1826 = vsel %vm288, %v1810, 0
      %v1829 = vsel %vm288, %v1811, 0
      %1831 = vmatpush.bf16.msra.mxu0 0
      %1832 = vmatpush.bf16.msra.mxu0 0
      %1833 = vmatpush.bf16.msra.mxu0 0
      %1834 = vmatpush.bf16.msra.mxu0 0
      %1835 = vmatpush.bf16.msra.mxu0 0
      %1836 = vmatpush.bf16.msra.mxu0 0
      %1837 = vmatpush.bf16.msra.mxu0 0
      %1838 = vmatpush.bf16.msra.mxu0 %v1814
      %1839 = vmatmul.bf16.gmra.mxu0 %v1820
      %v1840 = vpop.f32.mrf.mxu0
      %v1841 = vadd.f32 %v1817, %v1840
      %v1842 = vpop.f32.mrf.mxu0
      %v1843 = vadd.f32 %v1817, %v1842
      %1844 = vmatmul.bf16.gmra.mxu0 %v1823
      %v1845 = vpop.f32.mrf.mxu0
      %v1846 = vadd.f32 %v1817, %v1845
      %v1847 = vpop.f32.mrf.mxu0
      %v1848 = vadd.f32 %v1817, %v1847
      %1849 = vmatmul.bf16.gmra.mxu0 %v1826
      %v1850 = vpop.f32.mrf.mxu0
      %v1851 = vadd.f32 %v1817, %v1850
      %v1852 = vpop.f32.mrf.mxu0
      %v1853 = vadd.f32 %v1817, %v1852
      %1854 = vmatmul.bf16.gmra.mxu0 %v1829
      %v1855 = vpop.f32.mrf.mxu0
      %v1856 = vadd.f32 %v1817, %v1855
      %v1857 = vpop.f32.mrf.mxu0
      %v1858 = vadd.f32 %v1817, %v1857
      %1859 = vdwg.mxu0
      %v1860 = vadd.f32 %v280, %v1841
      %v1861 = vadd.f32 %v281, %v1843
      %v1862 = vadd.f32 %v282, %v1846
      %v1863 = vadd.f32 %v283, %v1848
      %v1864 = vadd.f32 %v284, %v1851
      %v1865 = vadd.f32 %v285, %v1853
      %v1866 = vadd.f32 %v286, %v1856
      %v1867 = vadd.f32 %v287, %v1858
      %1868 = vst.msk [vmem:[%s278] sm:$0xff] %vm288, %v1860
      %1869 = vst.msk [vmem:[%s278 + $0x8] sm:$0xff] %vm288, %v1861
      %1870 = vst.msk [vmem:[%s278 + $0x10] sm:$0xff] %vm288, %v1862
      %1871 = vst.msk [vmem:[%s278 + $0x18] sm:$0xff] %vm288, %v1863
      %1872 = vst.msk [vmem:[%s278 + $0x20] sm:$0xff] %vm288, %v1864
      %1873 = vst.msk [vmem:[%s278 + $0x28] sm:$0xff] %vm288, %v1865
      %1874 = vst.msk [vmem:[%s278 + $0x30] sm:$0xff] %vm288, %v1866
      %1875 = vst.msk [vmem:[%s278 + $0x38] sm:$0xff] %vm288, %v1867
      %p1876 = scmp.lt.s32.totalorder %s18, 7
      %s1877 = scalar_select %p1876, %s18, 7
      %s1878 = smul.addr %s1877, 8
      %s1879 = smul.addr %s1878, 8
      %s1880 = scalar_lea.vmem %s7, %s1879
      // Predicated region
      $region49: #{mobilevit_block_forward.10} parent=47 // pred_check
        %p1881 = pneg %p188
      $region50: #{mobilevit_block_forward.10} parent=47 // pred_check_branch
        %1883 = sbr.rel (%p1881) target = $region52
      $region51: #{mobilevit_block_forward.10} parent=47 // pred_region
        _
      $region52: #{mobilevit_block_forward.10} parent=47 // pred_fallthru
        _
    $region48: #{mobilevit_block_forward.10} parent=5 // pred_fallthru
      _
    %p1884 = scmp.le.s32.totalorder 2, %s13
    // Predicated region
    $region53: #{mobilevit_block_forward.10} parent=5 // pred_check
      %p1885 = pneg %p1884
    $region54: #{mobilevit_block_forward.10} parent=5 // pred_check_branch
      %1887 = sbr.rel (%p1885) target = $region56
    $region55: #{mobilevit_block_forward.10} parent=5 // pred_region
      %s1888 = ssub.s32 %s13, 2
      // Predicated region
      $region57: #{mobilevit_block_forward.10} parent=55 // pred_check
        %p1889 = pneg %p194
      $region58: #{mobilevit_block_forward.10} parent=55 // pred_check_branch
        %1891 = sbr.rel (%p1889) target = $region60
      $region59: #{mobilevit_block_forward.10} parent=55 // pred_region
        %p1892 = scmp.lt.s32.totalorder %s19, 7
        %s1893 = scalar_select %p1892, %s19, 7
        %s1894 = smul.addr %s1893, 8
        %s1895 = smul.addr %s1894, 8
        %s1896 = scalar_lea.vmem %s7, %s1895
      $region60: #{mobilevit_block_forward.10} parent=55 // pred_fallthru
        _
    $region56: #{mobilevit_block_forward.10} parent=5 // pred_fallthru
      _
  $region6: #{mobilevit_block_forward.10} parent=0 // loop_footer
    %s17 = sadd.s32 1, %s13
  $region7: #{mobilevit_block_forward.10} parent=0 // loop_footer_branch
    %12 = sbr.rel target = $region3
  $region8: #{mobilevit_block_forward.10} parent=0 // loop_exit
    _

// kernel: mobilevit_block_forward.8
$region0: #{mobilevit_block_forward.8}
  #allocation0 [shape = 'u32[]', space=smem, size = 0x4, offset = 0x4, fixed_abs, tag = 'smem constant byte address 0x4 - core index']
  #allocation1 [shape = 'u32[72,128]{1,0:T(1,128)}', space=vmem, size = 0x9000, scoped, tag = 'internal scratch']
  %s0 = inlined_call_operand.vmem [shape: f32[2,18,18,4], index: 0, kind: input, shape index: {}]
  %s1 = inlined_call_operand.vmem [shape: f32[9,4,4], index: 1, kind: input, shape index: {}]
  %s2 = inlined_call_operand.vmem [shape: f32[1,4], index: 2, kind: input, shape index: {}]
  %s3 = inlined_call_operand.vmem [shape: f32[1,4], index: 3, kind: input, shape index: {}]
  %s4 = inlined_call_operand.vmem [shape: f32[2,16,16,4], index: 4, kind: output, shape index: {}]
  %s5 = sld [smem:[#allocation0]]
  $region49: #{mobilevit_block_forward.8} parent=0
    _
  %s7 = ssub.s32 1, %s5
  %s8 = scalar_select 0, %s7, %s5
  loop: start=0, step=1, limit=4
  $region2: #{mobilevit_block_forward.8} parent=0 // loop_pre_header
    _
  $region3: #{mobilevit_block_forward.8} parent=0 // loop_header
    %s10 = sphi 0, %s14
    %p11 = scmp.ge.s32.totalorder %s10, 4
    %s20 = sphi 0, %s22
    %s23 = sphi 0, %s20
    %s24 = sphi 0, %s23
    %s40 = sphi 0, %s24
    %s44 = sphi 0, %s44
    %s46 = sphi 0, %s44
    %s47 = sphi 0, %s46
    %s61 = sphi 0, %s47
    %s65 = sphi 0, %s65
    %s67 = sphi 0, %s65
    %s68 = sphi 0, %s67
    %s82 = sphi 0, %s68
    %s86 = sphi 0, %s86
    %s88 = sphi 0, %s86
    %s89 = sphi 0, %s88
    %s103 = sphi 0, %s89
    %s109 = sphi 0, %s111
    %s112 = sphi 0, %s109
    %s113 = sphi 0, %s112
    %s129 = sphi 0, %s113
  $region4: #{mobilevit_block_forward.8} parent=0 // loop_header_branch
    %13 = sbr.rel (%p11) target = $region8
  $region5: #{mobilevit_block_forward.8} parent=0 // loop_body
    %s15 = ssub.s32 %s10, 1
    %s16 = ssub.s32 %s10, 2
    %s17 = sadd.s32 %s10, 1
    %s18 = ssub.s32 %s10, %s17
    %p19 = scmp.eq.s32.totalorder %s18, 0
    %s21 = sadd.s32 %s20, 1
    %s22 = scalar_select %p19, %s20, %s21
    %p25 = pneg %p19
    %p26 = scmp.eq.s32.totalorder %s10, 1
    %p27 = por %p25, %p26
    %p28 = scmp.ne.s32.totalorder %s20, %s23
    %p29 = scmp.eq.s32.totalorder %s10, 0
    %p30 = por %p28, %p29
    %p31 = scmp.ne.s32.totalorder %s20, %s23
    %p32 = scmp.eq.s32.totalorder %s15, 1
    %p33 = por %p31, %p32
    %p34 = scmp.ne.s32.totalorder %s23, %s24
    %p35 = scmp.eq.s32.totalorder %s15, 0
    %p36 = por %p34, %p35
    %p37 = scmp.ne.s32.totalorder %s23, %s24
    %p38 = scmp.eq.s32.totalorder %s16, 1
    %p39 = por %p37, %p38
    %p41 = scmp.ne.s32.totalorder %s24, %s40
    %p42 = scmp.eq.s32.totalorder %s16, 0
    %p43 = por %p41, %p42
    %s45 = sadd.s32 %s44, 1
    %p48 = scmp.eq.s32.totalorder %s10, 1
    %p49 = scmp.ne.s32.totalorder %s44, %s46
    %p50 = scmp.eq.s32.totalorder %s10, 0
    %p51 = por %p49, %p50
    %p52 = scmp.ne.s32.totalorder %s44, %s46
    %p53 = scmp.eq.s32.totalorder %s15, 1
    %p54 = por %p52, %p53
    %p55 = scmp.ne.s32.totalorder %s46, %s47
    %p56 = scmp.eq.s32.totalorder %s15, 0
    %p57 = por %p55, %p56
    %p58 = scmp.ne.s32.totalorder %s46, %s47
    %p59 = scmp.eq.s32.totalorder %s16, 1
    %p60 = por %p58, %p59
    %p62 = scmp.ne.s32.totalorder %s47, %s61
    %p63 = scmp.eq.s32.totalorder %s16, 0
    %p64 = por %p62, %p63
    %s66 = sadd.s32 %s65, 1
    %p69 = scmp.eq.s32.totalorder %s10, 1
    %p70 = scmp.ne.s32.totalorder %s65, %s67
    %p71 = scmp.eq.s32.totalorder %s10, 0
    %p72 = por %p70, %p71
    %p73 = scmp.ne.s32.totalorder %s65, %s67
    %p74 = scmp.eq.s32.totalorder %s15, 1
    %p75 = por %p73, %p74
    %p76 = scmp.ne.s32.totalorder %s67, %s68
    %p77 = scmp.eq.s32.totalorder %s15, 0
    %p78 = por %p76, %p77
    %p79 = scmp.ne.s32.totalorder %s67, %s68
    %p80 = scmp.eq.s32.totalorder %s16, 1
    %p81 = por %p79, %p80
    %p83 = scmp.ne.s32.totalorder %s68, %s82
    %p84 = scmp.eq.s32.totalorder %s16, 0
    %p85 = por %p83, %p84
    %s87 = sadd.s32 %s86, 1
    %p90 = scmp.eq.s32.totalorder %s10, 1
    %p91 = scmp.ne.s32.totalorder %s86, %s88
    %p92 = scmp.eq.s32.totalorder %s10, 0
    %p93 = por %p91, %p92
    %p94 = scmp.ne.s32.totalorder %s86, %s88
    %p95 = scmp.eq.s32.totalorder %s15, 1
    %p96 = por %p94, %p95
    %p97 = scmp.ne.s32.totalorder %s88, %s89
    %p98 = scmp.eq.s32.totalorder %s15, 0
    %p99 = por %p97, %p98
    %p100 = scmp.ne.s32.totalorder %s88, %s89
    %p101 = scmp.eq.s32.totalorder %s16, 1
    %p102 = por %p100, %p101
    %p104 = scmp.ne.s32.totalorder %s89, %s103
    %p105 = scmp.eq.s32.totalorder %s16, 0
    %p106 = por %p104, %p105
    %s107 = ssub.s32 %s10, %s17
    %p108 = scmp.eq.s32.totalorder %s107, 0
    %s110 = sadd.s32 %s109, 1
    %s111 = scalar_select %p108, %s109, %s110
    %p114 = pneg %p108
    %p115 = scmp.eq.s32.totalorder %s10, 1
    %p116 = por %p114, %p115
    %p117 = scmp.ne.s32.totalorder %s109, %s112
    %p118 = scmp.eq.s32.totalorder %s10, 0
    %p119 = por %p117, %p118
    %p120 = scmp.ne.s32.totalorder %s109, %s112
    %p121 = scmp.eq.s32.totalorder %s15, 1
    %p122 = por %p120, %p121
    %p123 = scmp.ne.s32.totalorder %s112, %s113
    %p124 = scmp.eq.s32.totalorder %s15, 0
    %p125 = por %p123, %p124
    %p126 = scmp.ne.s32.totalorder %s112, %s113
    %p127 = scmp.eq.s32.totalorder %s16, 1
    %p128 = por %p126, %p127
    %p130 = scmp.ne.s32.totalorder %s113, %s129
    %p131 = scmp.eq.s32.totalorder %s16, 0
    %p132 = por %p130, %p131
    %p133 = scmp.le.s32.totalorder 1, %s10
    %p134 = scmp.lt.s32.totalorder %s10, 3
    %p135 = pnand %p133, %p134
    %p136 = pneg %p135
    // Predicated region
    $region9: #{mobilevit_block_forward.8} parent=5 // pred_check
      _
    $region10: #{mobilevit_block_forward.8} parent=5 // pred_check_branch
      %138 = sbr.rel (%p135) target = $region12
    $region11: #{mobilevit_block_forward.8} parent=5 // pred_region
      %s139 = ssub.s32 %s10, 1
      // Predicated region
      $region13: #{mobilevit_block_forward.8} parent=11 // pred_check
        %p140 = pneg %p57
      $region14: #{mobilevit_block_forward.8} parent=11 // pred_check_branch
        %142 = sbr.rel (%p140) target = $region16
      $region15: #{mobilevit_block_forward.8} parent=11 // pred_region
        _
      $region16: #{mobilevit_block_forward.8} parent=11 // pred_fallthru
        _
      // Predicated region
      $region17: #{mobilevit_block_forward.8} parent=11 // pred_check
        %p143 = pneg %p78
      $region18: #{mobilevit_block_forward.8} parent=11 // pred_check_branch
        %145 = sbr.rel (%p143) target = $region20
      $region19: #{mobilevit_block_forward.8} parent=11 // pred_region
        _
      $region20: #{mobilevit_block_forward.8} parent=11 // pred_fallthru
        _
      // Predicated region
      $region21: #{mobilevit_block_forward.8} parent=11 // pred_check
        %p146 = pneg %p99
      $region22: #{mobilevit_block_forward.8} parent=11 // pred_check_branch
        %148 = sbr.rel (%p146) target = $region24
      $region23: #{mobilevit_block_forward.8} parent=11 // pred_region
        _
      $region24: #{mobilevit_block_forward.8} parent=11 // pred_fallthru
        _
    $region12: #{mobilevit_block_forward.8} parent=5 // pred_fallthru
      _
    %p149 = scmp.lt.s32.totalorder %s10, 2
    // Predicated region
    $region25: #{mobilevit_block_forward.8} parent=5 // pred_check
      %p150 = pneg %p149
    $region26: #{mobilevit_block_forward.8} parent=5 // pred_check_branch
      %152 = sbr.rel (%p150) target = $region28
    $region27: #{mobilevit_block_forward.8} parent=5 // pred_region
      // Predicated region
      $region29: #{mobilevit_block_forward.8} parent=27 // pred_check
        %p153 = pneg %p30
      $region30: #{mobilevit_block_forward.8} parent=27 // pred_check_branch
        %155 = sbr.rel (%p153) target = $region32
      $region31: #{mobilevit_block_forward.8} parent=27 // pred_region
        %p156 = scmp.lt.s32.totalorder %s10, 1
        %s157 = scalar_select %p156, %s10, 1
        %s158 = smul.addr %s157, 54
        %s159 = smul.addr %s158, 8
        %s160 = scalar_lea.vmem %s0, %s159
      $region32: #{mobilevit_block_forward.8} parent=27 // pred_fallthru
        _
    $region28: #{mobilevit_block_forward.8} parent=5 // pred_fallthru
      _
    %p161 = scmp.le.s32.totalorder 1, %s10
    %p162 = scmp.lt.s32.totalorder %s10, 3
    %p163 = pnand %p161, %p162
    %p164 = pneg %p163
    // Predicated region
    $region33: #{mobilevit_block_forward.8} parent=5 // pred_check
      _
    $region34: #{mobilevit_block_forward.8} parent=5 // pred_check_branch
      %166 = sbr.rel (%p163) target = $region36
    $region35: #{mobilevit_block_forward.8} parent=5 // pred_region
      %s167 = ssub.s32 %s10, 1
      %p168 = scmp.lt.s32.totalorder %s15, 1
      %s169 = scalar_select %p168, %s15, 1
      %s170 = smul.addr %s169, 54
      %s171 = smul.addr %s170, 8
      %s172 = scalar_lea.vmem %s0, %s171
      %p173 = pneg %p36
      %p174 = pneg %p33
      %p175 = pneg %p57
      %p176 = pneg %p54
      %p177 = pneg %p78
      %p178 = pneg %p75
      %p179 = pneg %p99
      %p180 = pneg %p96
      %p181 = pneg %p125
      %p182 = pneg %p122
      %p183 = scmp.lt.s32.totalorder %s15, 1
      %s184 = scalar_select %p183, %s15, 1
      %s185 = smul.addr %s184, 32
      %s186 = smul.addr %s185, 8
      %s187 = scalar_lea.vmem %s4, %s186
      %p188 = scmp.lt.s32.totalorder %s15, 1
      %s189 = scalar_select %p188, %s15, 1
      %s190 = smul.addr %s189, 54
      %s191 = smul.addr %s190, 8
      %s192 = scalar_lea.vmem %s0, %s191
      %p193 = scmp.lt.s32.totalorder %s15, 1
      %s194 = scalar_select %p193, %s15, 1
      %s195 = smul.addr %s194, 32
      %s196 = smul.addr %s195, 8
      %s197 = scalar_lea.vmem %s4, %s196
      %v199 = vld [vmem:[%s192] sm:$0xff]
      %v200 = vld [vmem:[%s192 + $0x8] sm:$0xff]
      %v201 = vld [vmem:[%s192 + $0x10] sm:$0x3]
      %v202 = vld [vmem:[%s192 + $0x18] sm:$0xff]
      %v203 = vld [vmem:[%s192 + $0x20] sm:$0xff]
      %v204 = vld [vmem:[%s192 + $0x28] sm:$0x3]
      %v205 = vld [vmem:[%s192 + $0x30] sm:$0xff]
      %v206 = vld [vmem:[%s192 + $0x38] sm:$0xff]
      %v207 = vld [vmem:[%s192 + $0x40] sm:$0x3]
      %v208 = vld [vmem:[%s192 + $0x48] sm:$0xff]
      %v209 = vld [vmem:[%s192 + $0x50] sm:$0xff]
      %v210 = vld [vmem:[%s192 + $0x58] sm:$0x3]
      %v211 = vld [vmem:[%s192 + $0x60] sm:$0xff]
      %v212 = vld [vmem:[%s192 + $0x68] sm:$0xff]
      %v213 = vld [vmem:[%s192 + $0x70] sm:$0x3]
      %v214 = vld [vmem:[%s192 + $0x78] sm:$0xff]
      %v215 = vld [vmem:[%s192 + $0x80] sm:$0xff]
      %v216 = vld [vmem:[%s192 + $0x88] sm:$0x3]
      %v217 = vld [vmem:[%s192 + $0x90] sm:$0xff]
      %v218 = vld [vmem:[%s192 + $0x98] sm:$0xff]
      %v219 = vld [vmem:[%s192 + $0xa0] sm:$0x3]
      %v220 = vld [vmem:[%s192 + $0xa8] sm:$0xff]
      %v221 = vld [vmem:[%s192 + $0xb0] sm:$0xff]
      %v222 = vld [vmem:[%s192 + $0xb8] sm:$0x3]
      %v223 = vld [vmem:[%s192 + $0xc0] sm:$0xff]
      %v224 = vld [vmem:[%s192 + $0xc8] sm:$0xff]
      %v225 = vld [vmem:[%s192 + $0xd0] sm:$0x3]
      %v226 = vld [vmem:[%s192 + $0xd8] sm:$0xff]
      %v227 = vld [vmem:[%s192 + $0xe0] sm:$0xff]
      %v228 = vld [vmem:[%s192 + $0xe8] sm:$0x3]
      %v229 = vld [vmem:[%s192 + $0xf0] sm:$0xff]
      %v230 = vld [vmem:[%s192 + $0xf8] sm:$0xff]
      %v231 = vld [vmem:[%s192 + $0x100] sm:$0x3]
      %v232 = vld [vmem:[%s192 + $0x108] sm:$0xff]
      %v233 = vld [vmem:[%s192 + $0x110] sm:$0xff]
      %v234 = vld [vmem:[%s192 + $0x118] sm:$0x3]
      %v235 = vld [vmem:[%s192 + $0x120] sm:$0xff]
      %v236 = vld [vmem:[%s192 + $0x128] sm:$0xff]
      %v237 = vld [vmem:[%s192 + $0x130] sm:$0x3]
      %v238 = vld [vmem:[%s192 + $0x138] sm:$0xff]
      %v239 = vld [vmem:[%s192 + $0x140] sm:$0xff]
      %v240 = vld [vmem:[%s192 + $0x148] sm:$0x3]
      %v241 = vld [vmem:[%s192 + $0x150] sm:$0xff]
      %v242 = vld [vmem:[%s192 + $0x158] sm:$0xff]
      %v243 = vld [vmem:[%s192 + $0x160] sm:$0x3]
      %v244 = vld [vmem:[%s192 + $0x168] sm:$0xff]
      %v245 = vld [vmem:[%s192 + $0x170] sm:$0xff]
      %v246 = vld [vmem:[%s192 + $0x178] sm:$0x3]
      %v247 = vld [vmem:[%s192 + $0x180] sm:$0xff]
      %v248 = vld [vmem:[%s192 + $0x188] sm:$0xff]
      %v249 = vld [vmem:[%s192 + $0x190] sm:$0x3]
      %v250 = vld [vmem:[%s192 + $0x198] sm:$0xff]
      %v251 = vld [vmem:[%s192 + $0x1a0] sm:$0xff]
      %v252 = vld [vmem:[%s192 + $0x1a8] sm:$0x3]
      %v253 = vpack.c.bf16 %v200, %v199
      %v254 = vpack.c.bf16 %v203, %v202
      %v255 = vpack.c.bf16 %v206, %v205
      %v256 = vpack.c.bf16 %v209, %v208
      %v257 = vpack.c.bf16 %v212, %v211
      %v258 = vpack.c.bf16 %v215, %v214
      %v259 = vpack.c.bf16 %v218, %v217
      %v260 = vpack.c.bf16 %v221, %v220
      %v261 = vpack.c.bf16 %v224, %v223
      %v262 = vpack.c.bf16 %v227, %v226
      %v263 = vpack.c.bf16 %v230, %v229
      %v264 = vpack.c.bf16 %v233, %v232
      %v265 = vpack.c.bf16 %v236, %v235
      %v266 = vpack.c.bf16 %v239, %v238
      %v267 = vpack.c.bf16 %v242, %v241
      %v268 = vpack.c.bf16 %v245, %v244
      %v269 = vld [vmem:[%s1] sm:$0xf]
      %v270 = vpack.c.bf16 %v269, %v269
      %vm319 = vcmask 1046528
      %v320 = vrot.slane %v199, 1
      %v321 = vrot.slane %v200, 1
      %v322 = vsel %vm319, %v320, %v321
      %v323 = vrot.slane %v201, 1
      %v324 = vsel %vm319, %v321, %v323
      %v325 = vrot.slane %v202, 1
      %v326 = vrot.slane %v203, 1
      %v327 = vsel %vm319, %v325, %v326
      %v328 = vrot.slane %v204, 1
      %v329 = vsel %vm319, %v326, %v328
      %v330 = vrot.slane %v205, 1
      %v331 = vrot.slane %v206, 1
      %v332 = vsel %vm319, %v330, %v331
      %v333 = vrot.slane %v207, 1
      %v334 = vsel %vm319, %v331, %v333
      %v335 = vrot.slane %v208, 1
      %v336 = vrot.slane %v209, 1
      %v337 = vsel %vm319, %v335, %v336
      %v338 = vrot.slane %v210, 1
      %v339 = vsel %vm319, %v336, %v338
      %v340 = vrot.slane %v211, 1
      %v341 = vrot.slane %v212, 1
      %v342 = vsel %vm319, %v340, %v341
      %v343 = vrot.slane %v213, 1
      %v344 = vsel %vm319, %v341, %v343
      %v345 = vrot.slane %v214, 1
      %v346 = vrot.slane %v215, 1
      %v347 = vsel %vm319, %v345, %v346
      %v348 = vrot.slane %v216, 1
      %v349 = vsel %vm319, %v346, %v348
      %v350 = vrot.slane %v217, 1
      %v351 = vrot.slane %v218, 1
      %v352 = vsel %vm319, %v350, %v351
      %v353 = vrot.slane %v219, 1
      %v354 = vsel %vm319, %v351, %v353
      %v355 = vrot.slane %v220, 1
      %v356 = vrot.slane %v221, 1
      %v357 = vsel %vm319, %v355, %v356
      %v358 = vrot.slane %v222, 1
      %v359 = vsel %vm319, %v356, %v358
      %v360 = vrot.slane %v223, 1
      %v361 = vrot.slane %v224, 1
      %v362 = vsel %vm319, %v360, %v361
      %v363 = vrot.slane %v225, 1
      %v364 = vsel %vm319, %v361, %v363
      %v365 = vrot.slane %v226, 1
      %v366 = vrot.slane %v227, 1
      %v367 = vsel %vm319, %v365, %v366
      %v368 = vrot.slane %v228, 1
      %v369 = vsel %vm319, %v366, %v368
      %v370 = vrot.slane %v229, 1
      %v371 = vrot.slane %v230, 1
      %v372 = vsel %vm319, %v370, %v371
      %v373 = vrot.slane %v231, 1
      %v374 = vsel %vm319, %v371, %v373
      %v375 = vrot.slane %v232, 1
      %v376 = vrot.slane %v233, 1
      %v377 = vsel %vm319, %v375, %v376
      %v378 = vrot.slane %v234, 1
      %v379 = vsel %vm319, %v376, %v378
      %v380 = vrot.slane %v235, 1
      %v381 = vrot.slane %v236, 1
      %v382 = vsel %vm319, %v380, %v381
      %v383 = vrot.slane %v237, 1
      %v384 = vsel %vm319, %v381, %v383
      %v385 = vrot.slane %v238, 1
      %v386 = vrot.slane %v239, 1
      %v387 = vsel %vm319, %v385, %v386
      %v388 = vrot.slane %v240, 1
      %v389 = vsel %vm319, %v386, %v388
      %v390 = vrot.slane %v241, 1
      %v391 = vrot.slane %v242, 1
      %v392 = vsel %vm319, %v390, %v391
      %v393 = vrot.slane %v243, 1
      %v394 = vsel %vm319, %v391, %v393
      %v395 = vrot.slane %v244, 1
      %v396 = vrot.slane %v245, 1
      %v397 = vsel %vm319, %v395, %v396
      %v398 = vrot.slane %v246, 1
      %v399 = vsel %vm319, %v396, %v398
      %v432 = vpack.c.bf16 %v324, %v322
      %v433 = vpack.c.bf16 %v329, %v327
      %v434 = vpack.c.bf16 %v334, %v332
      %v435 = vpack.c.bf16 %v339, %v337
      %v436 = vpack.c.bf16 %v344, %v342
      %v437 = vpack.c.bf16 %v349, %v347
      %v438 = vpack.c.bf16 %v354, %v352
      %v439 = vpack.c.bf16 %v359, %v357
      %v440 = vpack.c.bf16 %v364, %v362
      %v441 = vpack.c.bf16 %v369, %v367
      %v442 = vpack.c.bf16 %v374, %v372
      %v443 = vpack.c.bf16 %v379, %v377
      %v444 = vpack.c.bf16 %v384, %v382
      %v445 = vpack.c.bf16 %v389, %v387
      %v446 = vpack.c.bf16 %v394, %v392
      %v447 = vpack.c.bf16 %v399, %v397
      %s448 = scalar_lea.vmem %s1, 4
      %v449 = vld [vmem:[%s448] sm:$0xf]
      %v450 = vpack.c.bf16 %v449, %v449
      %vm451 = vcmask 31744
      %v453 = vsel %vm451, %v432, 0
      %v456 = vsel %vm451, %v433, 0
      %v459 = vsel %vm451, %v434, 0
      %v462 = vsel %vm451, %v435, 0
      %v465 = vsel %vm451, %v436, 0
      %v468 = vsel %vm451, %v437, 0
      %v471 = vsel %vm451, %v438, 0
      %v474 = vsel %vm451, %v439, 0
      %v477 = vsel %vm451, %v440, 0
      %v480 = vsel %vm451, %v441, 0
      %v483 = vsel %vm451, %v442, 0
      %v486 = vsel %vm451, %v443, 0
      %v489 = vsel %vm451, %v444, 0
      %v492 = vsel %vm451, %v445, 0
      %v495 = vsel %vm451, %v446, 0
      %v498 = vsel %vm451, %v447, 0
      %vm500 = vcmask 1041408
      %v502 = vsel %vm500, %v450, 0
      %504 = vmatpush.bf16.msra.mxu0 0
      %505 = vmatpush.bf16.msra.mxu0 0
      %506 = vmatpush.bf16.msra.mxu0 0
      %507 = vmatpush.bf16.msra.mxu0 0
      %508 = vmatpush.bf16.msra.mxu0 0
      %509 = vmatpush.bf16.msra.mxu0 0
      %510 = vmatpush.bf16.msra.mxu0 0
      %511 = vmatpush.bf16.msra.mxu0 %v502
      %512 = vmatmul.bf16.gmra.mxu0 %v453
      %v513 = vpop.f32.mrf.mxu0
      %v514 = vadd.f32 0.0, %v513
      %v515 = vpop.f32.mrf.mxu0
      %v516 = vadd.f32 0.0, %v515
      %517 = vmatmul.bf16.gmra.mxu0 %v456
      %v518 = vpop.f32.mrf.mxu0
      %v519 = vadd.f32 0.0, %v518
      %v520 = vpop.f32.mrf.mxu0
      %v521 = vadd.f32 0.0, %v520
      %522 = vmatmul.bf16.gmra.mxu0 %v459
      %v523 = vpop.f32.mrf.mxu0
      %v524 = vadd.f32 0.0, %v523
      %v525 = vpop.f32.mrf.mxu0
      %v526 = vadd.f32 0.0, %v525
      %527 = vmatmul.bf16.gmra.mxu0 %v462
      %v528 = vpop.f32.mrf.mxu0
      %v529 = vadd.f32 0.0, %v528
      %v530 = vpop.f32.mrf.mxu0
      %v531 = vadd.f32 0.0, %v530
      %532 = vmatmul.bf16.gmra.mxu0 %v465
      %v533 = vpop.f32.mrf.mxu0
      %v534 = vadd.f32 0.0, %v533
      %v535 = vpop.f32.mrf.mxu0
      %v536 = vadd.f32 0.0, %v535
      %537 = vmatmul.bf16.gmra.mxu0 %v468
      %v538 = vpop.f32.mrf.mxu0
      %v539 = vadd.f32 0.0, %v538
      %v540 = vpop.f32.mrf.mxu0
      %v541 = vadd.f32 0.0, %v540
      %542 = vmatmul.bf16.gmra.mxu0 %v471
      %v543 = vpop.f32.mrf.mxu0
      %v544 = vadd.f32 0.0, %v543
      %v545 = vpop.f32.mrf.mxu0
      %v546 = vadd.f32 0.0, %v545
      %547 = vmatmul.bf16.gmra.mxu0 %v474
      %v548 = vpop.f32.mrf.mxu0
      %v549 = vadd.f32 0.0, %v548
      %v550 = vpop.f32.mrf.mxu0
      %v551 = vadd.f32 0.0, %v550
      %552 = vmatmul.bf16.gmra.mxu0 %v477
      %v553 = vpop.f32.mrf.mxu0
      %v554 = vadd.f32 0.0, %v553
      %v555 = vpop.f32.mrf.mxu0
      %v556 = vadd.f32 0.0, %v555
      %557 = vmatmul.bf16.gmra.mxu0 %v480
      %v558 = vpop.f32.mrf.mxu0
      %v559 = vadd.f32 0.0, %v558
      %v560 = vpop.f32.mrf.mxu0
      %v561 = vadd.f32 0.0, %v560
      %562 = vmatmul.bf16.gmra.mxu0 %v483
      %v563 = vpop.f32.mrf.mxu0
      %v564 = vadd.f32 0.0, %v563
      %v565 = vpop.f32.mrf.mxu0
      %v566 = vadd.f32 0.0, %v565
      %567 = vmatmul.bf16.gmra.mxu0 %v486
      %v568 = vpop.f32.mrf.mxu0
      %v569 = vadd.f32 0.0, %v568
      %v570 = vpop.f32.mrf.mxu0
      %v571 = vadd.f32 0.0, %v570
      %572 = vmatmul.bf16.gmra.mxu0 %v489
      %v573 = vpop.f32.mrf.mxu0
      %v574 = vadd.f32 0.0, %v573
      %v575 = vpop.f32.mrf.mxu0
      %v576 = vadd.f32 0.0, %v575
      %577 = vmatmul.bf16.gmra.mxu0 %v492
      %v578 = vpop.f32.mrf.mxu0
      %v579 = vadd.f32 0.0, %v578
      %v580 = vpop.f32.mrf.mxu0
      %v581 = vadd.f32 0.0, %v580
      %582 = vmatmul.bf16.gmra.mxu0 %v495
      %v583 = vpop.f32.mrf.mxu0
      %v584 = vadd.f32 0.0, %v583
      %v585 = vpop.f32.mrf.mxu0
      %v586 = vadd.f32 0.0, %v585
      %587 = vmatmul.bf16.gmra.mxu0 %v498
      %v588 = vpop.f32.mrf.mxu0
      %v589 = vadd.f32 0.0, %v588
      %v590 = vpop.f32.mrf.mxu0
      %v591 = vadd.f32 0.0, %v590
      %592 = vdwg.mxu0
      %v594 = vsel %vm451, %v253, 0
      %v597 = vsel %vm451, %v254, 0
      %v600 = vsel %vm451, %v255, 0
      %v603 = vsel %vm451, %v256, 0
      %v606 = vsel %vm451, %v257, 0
      %v609 = vsel %vm451, %v258, 0
      %v612 = vsel %vm451, %v259, 0
      %v615 = vsel %vm451, %v260, 0
      %v618 = vsel %vm451, %v261, 0
      %v621 = vsel %vm451, %v262, 0
      %v624 = vsel %vm451, %v263, 0
      %v627 = vsel %vm451, %v264, 0
      %v630 = vsel %vm451, %v265, 0
      %v633 = vsel %vm451, %v266, 0
      %v636 = vsel %vm451, %v267, 0
      %v639 = vsel %vm451, %v268, 0
      %v642 = vsel %vm500, %v270, 0
      %644 = vmatpush.bf16.msra.mxu0 0
      %645 = vmatpush.bf16.msra.mxu0 0
      %646 = vmatpush.bf16.msra.mxu0 0
      %647 = vmatpush.bf16.msra.mxu0 0
      %648 = vmatpush.bf16.msra.mxu0 0
      %649 = vmatpush.bf16.msra.mxu0 0
      %650 = vmatpush.bf16.msra.mxu0 0
      %651 = vmatpush.bf16.msra.mxu0 %v642
      %652 = vmatmul.bf16.gmra.mxu0 %v594
      %v653 = vpop.f32.mrf.mxu0
      %v654 = vadd.f32 %v514, %v653
      %v655 = vpop.f32.mrf.mxu0
      %v656 = vadd.f32 %v516, %v655
      %657 = vmatmul.bf16.gmra.mxu0 %v597
      %v658 = vpop.f32.mrf.mxu0
      %v659 = vadd.f32 %v519, %v658
      %v660 = vpop.f32.mrf.mxu0
      %v661 = vadd.f32 %v521, %v660
      %662 = vmatmul.bf16.gmra.mxu0 %v600
      %v663 = vpop.f32.mrf.mxu0
      %v664 = vadd.f32 %v524, %v663
      %v665 = vpop.f32.mrf.mxu0
      %v666 = vadd.f32 %v526, %v665
      %667 = vmatmul.bf16.gmra.mxu0 %v603
      %v668 = vpop.f32.mrf.mxu0
      %v669 = vadd.f32 %v529, %v668
      %v670 = vpop.f32.mrf.mxu0
      %v671 = vadd.f32 %v531, %v670
      %672 = vmatmul.bf16.gmra.mxu0 %v606
      %v673 = vpop.f32.mrf.mxu0
      %v674 = vadd.f32 %v534, %v673
      %v675 = vpop.f32.mrf.mxu0
      %v676 = vadd.f32 %v536, %v675
      %677 = vmatmul.bf16.gmra.mxu0 %v609
      %v678 = vpop.f32.mrf.mxu0
      %v679 = vadd.f32 %v539, %v678
      %v680 = vpop.f32.mrf.mxu0
      %v681 = vadd.f32 %v541, %v680
      %682 = vmatmul.bf16.gmra.mxu0 %v612
      %v683 = vpop.f32.mrf.mxu0
      %v684 = vadd.f32 %v544, %v683
      %v685 = vpop.f32.mrf.mxu0
      %v686 = vadd.f32 %v546, %v685
      %687 = vmatmul.bf16.gmra.mxu0 %v615
      %v688 = vpop.f32.mrf.mxu0
      %v689 = vadd.f32 %v549, %v688
      %v690 = vpop.f32.mrf.mxu0
      %v691 = vadd.f32 %v551, %v690
      %692 = vmatmul.bf16.gmra.mxu0 %v618
      %v693 = vpop.f32.mrf.mxu0
      %v694 = vadd.f32 %v554, %v693
      %v695 = vpop.f32.mrf.mxu0
      %v696 = vadd.f32 %v556, %v695
      %697 = vmatmul.bf16.gmra.mxu0 %v621
      %v698 = vpop.f32.mrf.mxu0
      %v699 = vadd.f32 %v559, %v698
      %v700 = vpop.f32.mrf.mxu0
      %v701 = vadd.f32 %v561, %v700
      %702 = vmatmul.bf16.gmra.mxu0 %v624
      %v703 = vpop.f32.mrf.mxu0
      %v704 = vadd.f32 %v564, %v703
      %v705 = vpop.f32.mrf.mxu0
      %v706 = vadd.f32 %v566, %v705
      %707 = vmatmul.bf16.gmra.mxu0 %v627
      %v708 = vpop.f32.mrf.mxu0
      %v709 = vadd.f32 %v569, %v708
      %v710 = vpop.f32.mrf.mxu0
      %v711 = vadd.f32 %v571, %v710
      %712 = vmatmul.bf16.gmra.mxu0 %v630
      %v713 = vpop.f32.mrf.mxu0
      %v714 = vadd.f32 %v574, %v713
      %v715 = vpop.f32.mrf.mxu0
      %v716 = vadd.f32 %v576, %v715
      %717 = vmatmul.bf16.gmra.mxu0 %v633
      %v718 = vpop.f32.mrf.mxu0
      %v719 = vadd.f32 %v579, %v718
      %v720 = vpop.f32.mrf.mxu0
      %v721 = vadd.f32 %v581, %v720
      %722 = vmatmul.bf16.gmra.mxu0 %v636
      %v723 = vpop.f32.mrf.mxu0
      %v724 = vadd.f32 %v584, %v723
      %v725 = vpop.f32.mrf.mxu0
      %v726 = vadd.f32 %v586, %v725
      %727 = vmatmul.bf16.gmra.mxu0 %v639
      %v728 = vpop.f32.mrf.mxu0
      %v729 = vadd.f32 %v589, %v728
      %v730 = vpop.f32.mrf.mxu0
      %v731 = vadd.f32 %v591, %v730
      %732 = vdwg.mxu0
      %vm733 = vcmask 1045504
      %v734 = vrot.slane %v199, 2
      %v735 = vrot.slane %v200, 2
      %v736 = vsel %vm733, %v734, %v735
      %v737 = vrot.slane %v201, 2
      %v738 = vsel %vm733, %v735, %v737
      %v739 = vrot.slane %v202, 2
      %v740 = vrot.slane %v203, 2
      %v741 = vsel %vm733, %v739, %v740
      %v742 = vrot.slane %v204, 2
      %v743 = vsel %vm733, %v740, %v742
      %v744 = vrot.slane %v205, 2
      %v745 = vrot.slane %v206, 2
      %v746 = vsel %vm733, %v744, %v745
      %v747 = vrot.slane %v207, 2
      %v748 = vsel %vm733, %v745, %v747
      %v749 = vrot.slane %v208, 2
      %v750 = vrot.slane %v209, 2
      %v751 = vsel %vm733, %v749, %v750
      %v752 = vrot.slane %v210, 2
      %v753 = vsel %vm733, %v750, %v752
      %v754 = vrot.slane %v211, 2
      %v755 = vrot.slane %v212, 2
      %v756 = vsel %vm733, %v754, %v755
      %v757 = vrot.slane %v213, 2
      %v758 = vsel %vm733, %v755, %v757
      %v759 = vrot.slane %v214, 2
      %v760 = vrot.slane %v215, 2
      %v761 = vsel %vm733, %v759, %v760
      %v762 = vrot.slane %v216, 2
      %v763 = vsel %vm733, %v760, %v762
      %v764 = vrot.slane %v217, 2
      %v765 = vrot.slane %v218, 2
      %v766 = vsel %vm733, %v764, %v765
      %v767 = vrot.slane %v219, 2
      %v768 = vsel %vm733, %v765, %v767
      %v769 = vrot.slane %v220, 2
      %v770 = vrot.slane %v221, 2
      %v771 = vsel %vm733, %v769, %v770
      %v772 = vrot.slane %v222, 2
      %v773 = vsel %vm733, %v770, %v772
      %v774 = vrot.slane %v223, 2
      %v775 = vrot.slane %v224, 2
      %v776 = vsel %vm733, %v774, %v775
      %v777 = vrot.slane %v225, 2
      %v778 = vsel %vm733, %v775, %v777
      %v779 = vrot.slane %v226, 2
      %v780 = vrot.slane %v227, 2
      %v781 = vsel %vm733, %v779, %v780
      %v782 = vrot.slane %v228, 2
      %v783 = vsel %vm733, %v780, %v782
      %v784 = vrot.slane %v229, 2
      %v785 = vrot.slane %v230, 2
      %v786 = vsel %vm733, %v784, %v785
      %v787 = vrot.slane %v231, 2
      %v788 = vsel %vm733, %v785, %v787
      %v789 = vrot.slane %v232, 2
      %v790 = vrot.slane %v233, 2
      %v791 = vsel %vm733, %v789, %v790
      %v792 = vrot.slane %v234, 2
      %v793 = vsel %vm733, %v790, %v792
      %v794 = vrot.slane %v235, 2
      %v795 = vrot.slane %v236, 2
      %v796 = vsel %vm733, %v794, %v795
      %v797 = vrot.slane %v237, 2
      %v798 = vsel %vm733, %v795, %v797
      %v799 = vrot.slane %v238, 2
      %v800 = vrot.slane %v239, 2
      %v801 = vsel %vm733, %v799, %v800
      %v802 = vrot.slane %v240, 2
      %v803 = vsel %vm733, %v800, %v802
      %v804 = vrot.slane %v241, 2
      %v805 = vrot.slane %v242, 2
      %v806 = vsel %vm733, %v804, %v805
      %v807 = vrot.slane %v243, 2
      %v808 = vsel %vm733, %v805, %v807
      %v809 = vrot.slane %v244, 2
      %v810 = vrot.slane %v245, 2
      %v811 = vsel %vm733, %v809, %v810
      %v812 = vrot.slane %v246, 2
      %v813 = vsel %vm733, %v810, %v812
      %v846 = vpack.c.bf16 %v738, %v736
      %v847 = vpack.c.bf16 %v743, %v741
      %v848 = vpack.c.bf16 %v748, %v746
      %v849 = vpack.c.bf16 %v753, %v751
      %v850 = vpack.c.bf16 %v758, %v756
      %v851 = vpack.c.bf16 %v763, %v761
      %v852 = vpack.c.bf16 %v768, %v766
      %v853 = vpack.c.bf16 %v773, %v771
      %v854 = vpack.c.bf16 %v778, %v776
      %v855 = vpack.c.bf16 %v783, %v781
      %v856 = vpack.c.bf16 %v788, %v786
      %v857 = vpack.c.bf16 %v793, %v791
      %v858 = vpack.c.bf16 %v798, %v796
      %v859 = vpack.c.bf16 %v803, %v801
      %v860 = vpack.c.bf16 %v808, %v806
      %v861 = vpack.c.bf16 %v813, %v811
      %s862 = scalar_lea.vmem %s1, 8
      %v863 = vld [vmem:[%s862] sm:$0xf]
      %v864 = vpack.c.bf16 %v863, %v863
      %v866 = vsel %vm451, %v846, 0
      %v869 = vsel %vm451, %v847, 0
      %v872 = vsel %vm451, %v848, 0
      %v875 = vsel %vm451, %v849, 0
      %v878 = vsel %vm451, %v850, 0
      %v881 = vsel %vm451, %v851, 0
      %v884 = vsel %vm451, %v852, 0
      %v887 = vsel %vm451, %v853, 0
      %v890 = vsel %vm451, %v854, 0
      %v893 = vsel %vm451, %v855, 0
      %v896 = vsel %vm451, %v856, 0
      %v899 = vsel %vm451, %v857, 0
      %v902 = vsel %vm451, %v858, 0
      %v905 = vsel %vm451, %v859, 0
      %v908 = vsel %vm451, %v860, 0
      %v911 = vsel %vm451, %v861, 0
      %v914 = vsel %vm500, %v864, 0
      %916 = vmatpush.bf16.msra.mxu0 0
      %917 = vmatpush.bf16.msra.mxu0 0
      %918 = vmatpush.bf16.msra.mxu0 0
      %919 = vmatpush.bf16.msra.mxu0 0
      %920 = vmatpush.bf16.msra.mxu0 0
      %921 = vmatpush.bf16.msra.mxu0 0
      %922 = vmatpush.bf16.msra.mxu0 0
      %923 = vmatpush.bf16.msra.mxu0 %v914
      %924 = vmatmul.bf16.gmra.mxu0 %v866
      %v925 = vpop.f32.mrf.mxu0
      %v926 = vadd.f32 0.0, %v925
      %v927 = vpop.f32.mrf.mxu0
      %v928 = vadd.f32 0.0, %v927
      %929 = vmatmul.bf16.gmra.mxu0 %v869
      %v930 = vpop.f32.mrf.mxu0
      %v931 = vadd.f32 0.0, %v930
      %v932 = vpop.f32.mrf.mxu0
      %v933 = vadd.f32 0.0, %v932
      %934 = vmatmul.bf16.gmra.mxu0 %v872
      %v935 = vpop.f32.mrf.mxu0
      %v936 = vadd.f32 0.0, %v935
      %v937 = vpop.f32.mrf.mxu0
      %v938 = vadd.f32 0.0, %v937
      %939 = vmatmul.bf16.gmra.mxu0 %v875
      %v940 = vpop.f32.mrf.mxu0
      %v941 = vadd.f32 0.0, %v940
      %v942 = vpop.f32.mrf.mxu0
      %v943 = vadd.f32 0.0, %v942
      %944 = vmatmul.bf16.gmra.mxu0 %v878
      %v945 = vpop.f32.mrf.mxu0
      %v946 = vadd.f32 0.0, %v945
      %v947 = vpop.f32.mrf.mxu0
      %v948 = vadd.f32 0.0, %v947
      %949 = vmatmul.bf16.gmra.mxu0 %v881
      %v950 = vpop.f32.mrf.mxu0
      %v951 = vadd.f32 0.0, %v950
      %v952 = vpop.f32.mrf.mxu0
      %v953 = vadd.f32 0.0, %v952
      %954 = vmatmul.bf16.gmra.mxu0 %v884
      %v955 = vpop.f32.mrf.mxu0
      %v956 = vadd.f32 0.0, %v955
      %v957 = vpop.f32.mrf.mxu0
      %v958 = vadd.f32 0.0, %v957
      %959 = vmatmul.bf16.gmra.mxu0 %v887
      %v960 = vpop.f32.mrf.mxu0
      %v961 = vadd.f32 0.0, %v960
      %v962 = vpop.f32.mrf.mxu0
      %v963 = vadd.f32 0.0, %v962
      %964 = vmatmul.bf16.gmra.mxu0 %v890
      %v965 = vpop.f32.mrf.mxu0
      %v966 = vadd.f32 0.0, %v965
      %v967 = vpop.f32.mrf.mxu0
      %v968 = vadd.f32 0.0, %v967
      %969 = vmatmul.bf16.gmra.mxu0 %v893
      %v970 = vpop.f32.mrf.mxu0
      %v971 = vadd.f32 0.0, %v970
      %v972 = vpop.f32.mrf.mxu0
      %v973 = vadd.f32 0.0, %v972
      %974 = vmatmul.bf16.gmra.mxu0 %v896
      %v975 = vpop.f32.mrf.mxu0
      %v976 = vadd.f32 0.0, %v975
      %v977 = vpop.f32.mrf.mxu0
      %v978 = vadd.f32 0.0, %v977
      %979 = vmatmul.bf16.gmra.mxu0 %v899
      %v980 = vpop.f32.mrf.mxu0
      %v981 = vadd.f32 0.0, %v980
      %v982 = vpop.f32.mrf.mxu0
      %v983 = vadd.f32 0.0, %v982
      %984 = vmatmul.bf16.gmra.mxu0 %v902
      %v985 = vpop.f32.mrf.mxu0
      %v986 = vadd.f32 0.0, %v985
      %v987 = vpop.f32.mrf.mxu0
      %v988 = vadd.f32 0.0, %v987
      %989 = vmatmul.bf16.gmra.mxu0 %v905
      %v990 = vpop.f32.mrf.mxu0
      %v991 = vadd.f32 0.0, %v990
      %v992 = vpop.f32.mrf.mxu0
      %v993 = vadd.f32 0.0, %v992
      %994 = vmatmul.bf16.gmra.mxu0 %v908
      %v995 = vpop.f32.mrf.mxu0
      %v996 = vadd.f32 0.0, %v995
      %v997 = vpop.f32.mrf.mxu0
      %v998 = vadd.f32 0.0, %v997
      %999 = vmatmul.bf16.gmra.mxu0 %v911
      %v1000 = vpop.f32.mrf.mxu0
      %v1001 = vadd.f32 0.0, %v1000
      %v1002 = vpop.f32.mrf.mxu0
      %v1003 = vadd.f32 0.0, %v1002
      %1004 = vdwg.mxu0
      %v1005 = vadd.f32 %v654, %v926
      %v1006 = vadd.f32 %v656, %v928
      %v1007 = vadd.f32 %v659, %v931
      %v1008 = vadd.f32 %v661, %v933
      %v1009 = vadd.f32 %v664, %v936
      %v1010 = vadd.f32 %v666, %v938
      %v1011 = vadd.f32 %v669, %v941
      %v1012 = vadd.f32 %v671, %v943
      %v1013 = vadd.f32 %v674, %v946
      %v1014 = vadd.f32 %v676, %v948
      %v1015 = vadd.f32 %v679, %v951
      %v1016 = vadd.f32 %v681, %v953
      %v1017 = vadd.f32 %v684, %v956
      %v1018 = vadd.f32 %v686, %v958
      %v1019 = vadd.f32 %v689, %v961
      %v1020 = vadd.f32 %v691, %v963
      %v1021 = vadd.f32 %v694, %v966
      %v1022 = vadd.f32 %v696, %v968
      %v1023 = vadd.f32 %v699, %v971
      %v1024 = vadd.f32 %v701, %v973
      %v1025 = vadd.f32 %v704, %v976
      %v1026 = vadd.f32 %v706, %v978
      %v1027 = vadd.f32 %v709, %v981
      %v1028 = vadd.f32 %v711, %v983
      %v1029 = vadd.f32 %v714, %v986
      %v1030 = vadd.f32 %v716, %v988
      %v1031 = vadd.f32 %v719, %v991
      %v1032 = vadd.f32 %v721, %v993
      %v1033 = vadd.f32 %v724, %v996
      %v1034 = vadd.f32 %v726, %v998
      %v1035 = vadd.f32 %v729, %v1001
      %v1036 = vadd.f32 %v731, %v1003
      %v1037 = vpack.c.bf16 %v248, %v247
      %s1038 = scalar_lea.vmem %s1, 12
      %v1039 = vld [vmem:[%s1038] sm:$0xf]
      %v1040 = vpack.c.bf16 %v1039, %v1039
      %v1042 = vsel %vm451, %v1037, 0
      %v1045 = vsel %vm500, %v1040, 0
      %1047 = vmatpush.bf16.msra.mxu0 0
      %1048 = vmatpush.bf16.msra.mxu0 0
      %1049 = vmatpush.bf16.msra.mxu0 0
      %1050 = vmatpush.bf16.msra.mxu0 0
      %1051 = vmatpush.bf16.msra.mxu0 0
      %1052 = vmatpush.bf16.msra.mxu0 0
      %1053 = vmatpush.bf16.msra.mxu0 0
      %1054 = vmatpush.bf16.msra.mxu0 %v1045
      %1055 = vmatmul.bf16.gmra.mxu0 %v597
      %v1056 = vpop.f32.mrf.mxu0
      %v1057 = vadd.f32 0.0, %v1056
      %v1058 = vpop.f32.mrf.mxu0
      %v1059 = vadd.f32 0.0, %v1058
      %1060 = vmatmul.bf16.gmra.mxu0 %v600
      %v1061 = vpop.f32.mrf.mxu0
      %v1062 = vadd.f32 0.0, %v1061
      %v1063 = vpop.f32.mrf.mxu0
      %v1064 = vadd.f32 0.0, %v1063
      %1065 = vmatmul.bf16.gmra.mxu0 %v603
      %v1066 = vpop.f32.mrf.mxu0
      %v1067 = vadd.f32 0.0, %v1066
      %v1068 = vpop.f32.mrf.mxu0
      %v1069 = vadd.f32 0.0, %v1068
      %1070 = vmatmul.bf16.gmra.mxu0 %v606
      %v1071 = vpop.f32.mrf.mxu0
      %v1072 = vadd.f32 0.0, %v1071
      %v1073 = vpop.f32.mrf.mxu0
      %v1074 = vadd.f32 0.0, %v1073
      %1075 = vmatmul.bf16.gmra.mxu0 %v609
      %v1076 = vpop.f32.mrf.mxu0
      %v1077 = vadd.f32 0.0, %v1076
      %v1078 = vpop.f32.mrf.mxu0
      %v1079 = vadd.f32 0.0, %v1078
      %1080 = vmatmul.bf16.gmra.mxu0 %v612
      %v1081 = vpop.f32.mrf.mxu0
      %v1082 = vadd.f32 0.0, %v1081
      %v1083 = vpop.f32.mrf.mxu0
      %v1084 = vadd.f32 0.0, %v1083
      %1085 = vmatmul.bf16.gmra.mxu0 %v615
      %v1086 = vpop.f32.mrf.mxu0
      %v1087 = vadd.f32 0.0, %v1086
      %v1088 = vpop.f32.mrf.mxu0
      %v1089 = vadd.f32 0.0, %v1088
      %1090 = vmatmul.bf16.gmra.mxu0 %v618
      %v1091 = vpop.f32.mrf.mxu0
      %v1092 = vadd.f32 0.0, %v1091
      %v1093 = vpop.f32.mrf.mxu0
      %v1094 = vadd.f32 0.0, %v1093
      %1095 = vmatmul.bf16.gmra.mxu0 %v621
      %v1096 = vpop.f32.mrf.mxu0
      %v1097 = vadd.f32 0.0, %v1096
      %v1098 = vpop.f32.mrf.mxu0
      %v1099 = vadd.f32 0.0, %v1098
      %1100 = vmatmul.bf16.gmra.mxu0 %v624
      %v1101 = vpop.f32.mrf.mxu0
      %v1102 = vadd.f32 0.0, %v1101
      %v1103 = vpop.f32.mrf.mxu0
      %v1104 = vadd.f32 0.0, %v1103
      %1105 = vmatmul.bf16.gmra.mxu0 %v627
      %v1106 = vpop.f32.mrf.mxu0
      %v1107 = vadd.f32 0.0, %v1106
      %v1108 = vpop.f32.mrf.mxu0
      %v1109 = vadd.f32 0.0, %v1108
      %1110 = vmatmul.bf16.gmra.mxu0 %v630
      %v1111 = vpop.f32.mrf.mxu0
      %v1112 = vadd.f32 0.0, %v1111
      %v1113 = vpop.f32.mrf.mxu0
      %v1114 = vadd.f32 0.0, %v1113
      %1115 = vmatmul.bf16.gmra.mxu0 %v633
      %v1116 = vpop.f32.mrf.mxu0
      %v1117 = vadd.f32 0.0, %v1116
      %v1118 = vpop.f32.mrf.mxu0
      %v1119 = vadd.f32 0.0, %v1118
      %1120 = vmatmul.bf16.gmra.mxu0 %v636
      %v1121 = vpop.f32.mrf.mxu0
      %v1122 = vadd.f32 0.0, %v1121
      %v1123 = vpop.f32.mrf.mxu0
      %v1124 = vadd.f32 0.0, %v1123
      %1125 = vmatmul.bf16.gmra.mxu0 %v639
      %v1126 = vpop.f32.mrf.mxu0
      %v1127 = vadd.f32 0.0, %v1126
      %v1128 = vpop.f32.mrf.mxu0
      %v1129 = vadd.f32 0.0, %v1128
      %1130 = vmatmul.bf16.gmra.mxu0 %v1042
      %v1131 = vpop.f32.mrf.mxu0
      %v1132 = vadd.f32 0.0, %v1131
      %v1133 = vpop.f32.mrf.mxu0
      %v1134 = vadd.f32 0.0, %v1133
      %1135 = vdwg.mxu0
      %v1136 = vadd.f32 %v1005, %v1057
      %v1137 = vadd.f32 %v1006, %v1059
      %v1138 = vadd.f32 %v1007, %v1062
      %v1139 = vadd.f32 %v1008, %v1064
      %v1140 = vadd.f32 %v1009, %v1067
      %v1141 = vadd.f32 %v1010, %v1069
      %v1142 = vadd.f32 %v1011, %v1072
      %v1143 = vadd.f32 %v1012, %v1074
      %v1144 = vadd.f32 %v1013, %v1077
      %v1145 = vadd.f32 %v1014, %v1079
      %v1146 = vadd.f32 %v1015, %v1082
      %v1147 = vadd.f32 %v1016, %v1084
      %v1148 = vadd.f32 %v1017, %v1087
      %v1149 = vadd.f32 %v1018, %v1089
      %v1150 = vadd.f32 %v1019, %v1092
      %v1151 = vadd.f32 %v1020, %v1094
      %v1152 = vadd.f32 %v1021, %v1097
      %v1153 = vadd.f32 %v1022, %v1099
      %v1154 = vadd.f32 %v1023, %v1102
      %v1155 = vadd.f32 %v1024, %v1104
      %v1156 = vadd.f32 %v1025, %v1107
      %v1157 = vadd.f32 %v1026, %v1109
      %v1158 = vadd.f32 %v1027, %v1112
      %v1159 = vadd.f32 %v1028, %v1114
      %v1160 = vadd.f32 %v1029, %v1117
      %v1161 = vadd.f32 %v1030, %v1119
      %v1162 = vadd.f32 %v1031, %v1122
      %v1163 = vadd.f32 %v1032, %v1124
      %v1164 = vadd.f32 %v1033, %v1127
      %v1165 = vadd.f32 %v1034, %v1129
      %v1166 = vadd.f32 %v1035, %v1132
      %v1167 = vadd.f32 %v1036, %v1134
      %v1171 = vrot.slane %v247, 1
      %v1172 = vrot.slane %v248, 1
      %v1173 = vsel %vm319, %v1171, %v1172
      %v1174 = vrot.slane %v249, 1
      %v1175 = vsel %vm319, %v1172, %v1174
      %v1178 = vpack.c.bf16 %v1175, %v1173
      %s1179 = scalar_lea.vmem %s1, 16
      %v1180 = vld [vmem:[%s1179] sm:$0xf]
      %v1181 = vpack.c.bf16 %v1180, %v1180
      %v1183 = vsel %vm451, %v1178, 0
      %v1186 = vsel %vm500, %v1181, 0
      %1188 = vmatpush.bf16.msra.mxu0 0
      %1189 = vmatpush.bf16.msra.mxu0 0
      %1190 = vmatpush.bf16.msra.mxu0 0
      %1191 = vmatpush.bf16.msra.mxu0 0
      %1192 = vmatpush.bf16.msra.mxu0 0
      %1193 = vmatpush.bf16.msra.mxu0 0
      %1194 = vmatpush.bf16.msra.mxu0 0
      %1195 = vmatpush.bf16.msra.mxu0 %v1186
      %1196 = vmatmul.bf16.gmra.mxu0 %v456
      %v1197 = vpop.f32.mrf.mxu0
      %v1198 = vadd.f32 0.0, %v1197
      %v1199 = vpop.f32.mrf.mxu0
      %v1200 = vadd.f32 0.0, %v1199
      %1201 = vmatmul.bf16.gmra.mxu0 %v459
      %v1202 = vpop.f32.mrf.mxu0
      %v1203 = vadd.f32 0.0, %v1202
      %v1204 = vpop.f32.mrf.mxu0
      %v1205 = vadd.f32 0.0, %v1204
      %1206 = vmatmul.bf16.gmra.mxu0 %v462
      %v1207 = vpop.f32.mrf.mxu0
      %v1208 = vadd.f32 0.0, %v1207
      %v1209 = vpop.f32.mrf.mxu0
      %v1210 = vadd.f32 0.0, %v1209
      %1211 = vmatmul.bf16.gmra.mxu0 %v465
      %v1212 = vpop.f32.mrf.mxu0
      %v1213 = vadd.f32 0.0, %v1212
      %v1214 = vpop.f32.mrf.mxu0
      %v1215 = vadd.f32 0.0, %v1214
      %1216 = vmatmul.bf16.gmra.mxu0 %v468
      %v1217 = vpop.f32.mrf.mxu0
      %v1218 = vadd.f32 0.0, %v1217
      %v1219 = vpop.f32.mrf.mxu0
      %v1220 = vadd.f32 0.0, %v1219
      %1221 = vmatmul.bf16.gmra.mxu0 %v471
      %v1222 = vpop.f32.mrf.mxu0
      %v1223 = vadd.f32 0.0, %v1222
      %v1224 = vpop.f32.mrf.mxu0
      %v1225 = vadd.f32 0.0, %v1224
      %1226 = vmatmul.bf16.gmra.mxu0 %v474
      %v1227 = vpop.f32.mrf.mxu0
      %v1228 = vadd.f32 0.0, %v1227
      %v1229 = vpop.f32.mrf.mxu0
      %v1230 = vadd.f32 0.0, %v1229
      %1231 = vmatmul.bf16.gmra.mxu0 %v477
      %v1232 = vpop.f32.mrf.mxu0
      %v1233 = vadd.f32 0.0, %v1232
      %v1234 = vpop.f32.mrf.mxu0
      %v1235 = vadd.f32 0.0, %v1234
      %1236 = vmatmul.bf16.gmra.mxu0 %v480
      %v1237 = vpop.f32.mrf.mxu0
      %v1238 = vadd.f32 0.0, %v1237
      %v1239 = vpop.f32.mrf.mxu0
      %v1240 = vadd.f32 0.0, %v1239
      %1241 = vmatmul.bf16.gmra.mxu0 %v483
      %v1242 = vpop.f32.mrf.mxu0
      %v1243 = vadd.f32 0.0, %v1242
      %v1244 = vpop.f32.mrf.mxu0
      %v1245 = vadd.f32 0.0, %v1244
      %1246 = vmatmul.bf16.gmra.mxu0 %v486
      %v1247 = vpop.f32.mrf.mxu0
      %v1248 = vadd.f32 0.0, %v1247
      %v1249 = vpop.f32.mrf.mxu0
      %v1250 = vadd.f32 0.0, %v1249
      %1251 = vmatmul.bf16.gmra.mxu0 %v489
      %v1252 = vpop.f32.mrf.mxu0
      %v1253 = vadd.f32 0.0, %v1252
      %v1254 = vpop.f32.mrf.mxu0
      %v1255 = vadd.f32 0.0, %v1254
      %1256 = vmatmul.bf16.gmra.mxu0 %v492
      %v1257 = vpop.f32.mrf.mxu0
      %v1258 = vadd.f32 0.0, %v1257
      %v1259 = vpop.f32.mrf.mxu0
      %v1260 = vadd.f32 0.0, %v1259
      %1261 = vmatmul.bf16.gmra.mxu0 %v495
      %v1262 = vpop.f32.mrf.mxu0
      %v1263 = vadd.f32 0.0, %v1262
      %v1264 = vpop.f32.mrf.mxu0
      %v1265 = vadd.f32 0.0, %v1264
      %1266 = vmatmul.bf16.gmra.mxu0 %v498
      %v1267 = vpop.f32.mrf.mxu0
      %v1268 = vadd.f32 0.0, %v1267
      %v1269 = vpop.f32.mrf.mxu0
      %v1270 = vadd.f32 0.0, %v1269
      %1271 = vmatmul.bf16.gmra.mxu0 %v1183
      %v1272 = vpop.f32.mrf.mxu0
      %v1273 = vadd.f32 0.0, %v1272
      %v1274 = vpop.f32.mrf.mxu0
      %v1275 = vadd.f32 0.0, %v1274
      %1276 = vdwg.mxu0
      %v1277 = vadd.f32 %v1136, %v1198
      %v1278 = vadd.f32 %v1137, %v1200
      %v1279 = vadd.f32 %v1138, %v1203
      %v1280 = vadd.f32 %v1139, %v1205
      %v1281 = vadd.f32 %v1140, %v1208
      %v1282 = vadd.f32 %v1141, %v1210
      %v1283 = vadd.f32 %v1142, %v1213
      %v1284 = vadd.f32 %v1143, %v1215
      %v1285 = vadd.f32 %v1144, %v1218
      %v1286 = vadd.f32 %v1145, %v1220
      %v1287 = vadd.f32 %v1146, %v1223
      %v1288 = vadd.f32 %v1147, %v1225
      %v1289 = vadd.f32 %v1148, %v1228
      %v1290 = vadd.f32 %v1149, %v1230
      %v1291 = vadd.f32 %v1150, %v1233
      %v1292 = vadd.f32 %v1151, %v1235
      %v1293 = vadd.f32 %v1152, %v1238
      %v1294 = vadd.f32 %v1153, %v1240
      %v1295 = vadd.f32 %v1154, %v1243
      %v1296 = vadd.f32 %v1155, %v1245
      %v1297 = vadd.f32 %v1156, %v1248
      %v1298 = vadd.f32 %v1157, %v1250
      %v1299 = vadd.f32 %v1158, %v1253
      %v1300 = vadd.f32 %v1159, %v1255
      %v1301 = vadd.f32 %v1160, %v1258
      %v1302 = vadd.f32 %v1161, %v1260
      %v1303 = vadd.f32 %v1162, %v1263
      %v1304 = vadd.f32 %v1163, %v1265
      %v1305 = vadd.f32 %v1164, %v1268
      %v1306 = vadd.f32 %v1165, %v1270
      %v1307 = vadd.f32 %v1166, %v1273
      %v1308 = vadd.f32 %v1167, %v1275
      %v1309 = vrot.slane %v247, 2
      %v1310 = vrot.slane %v248, 2
      %v1311 = vsel %vm733, %v1309, %v1310
      %v1312 = vrot.slane %v249, 2
      %v1313 = vsel %vm733, %v1310, %v1312
      %v1316 = vpack.c.bf16 %v1313, %v1311
      %s1317 = scalar_lea.vmem %s1, 20
      %v1318 = vld [vmem:[%s1317] sm:$0xf]
      %v1319 = vpack.c.bf16 %v1318, %v1318
      %v1321 = vsel %vm451, %v1316, 0
      %v1324 = vsel %vm500, %v1319, 0
      %1326 = vmatpush.bf16.msra.mxu0 0
      %1327 = vmatpush.bf16.msra.mxu0 0
      %1328 = vmatpush.bf16.msra.mxu0 0
      %1329 = vmatpush.bf16.msra.mxu0 0
      %1330 = vmatpush.bf16.msra.mxu0 0
      %1331 = vmatpush.bf16.msra.mxu0 0
      %1332 = vmatpush.bf16.msra.mxu0 0
      %1333 = vmatpush.bf16.msra.mxu0 %v1324
      %1334 = vmatmul.bf16.gmra.mxu0 %v869
      %v1335 = vpop.f32.mrf.mxu0
      %v1336 = vadd.f32 0.0, %v1335
      %v1337 = vpop.f32.mrf.mxu0
      %v1338 = vadd.f32 0.0, %v1337
      %1339 = vmatmul.bf16.gmra.mxu0 %v872
      %v1340 = vpop.f32.mrf.mxu0
      %v1341 = vadd.f32 0.0, %v1340
      %v1342 = vpop.f32.mrf.mxu0
      %v1343 = vadd.f32 0.0, %v1342
      %1344 = vmatmul.bf16.gmra.mxu0 %v875
      %v1345 = vpop.f32.mrf.mxu0
      %v1346 = vadd.f32 0.0, %v1345
      %v1347 = vpop.f32.mrf.mxu0
      %v1348 = vadd.f32 0.0, %v1347
      %1349 = vmatmul.bf16.gmra.mxu0 %v878
      %v1350 = vpop.f32.mrf.mxu0
      %v1351 = vadd.f32 0.0, %v1350
      %v1352 = vpop.f32.mrf.mxu0
      %v1353 = vadd.f32 0.0, %v1352
      %1354 = vmatmul.bf16.gmra.mxu0 %v881
      %v1355 = vpop.f32.mrf.mxu0
      %v1356 = vadd.f32 0.0, %v1355
      %v1357 = vpop.f32.mrf.mxu0
      %v1358 = vadd.f32 0.0, %v1357
      %1359 = vmatmul.bf16.gmra.mxu0 %v884
      %v1360 = vpop.f32.mrf.mxu0
      %v1361 = vadd.f32 0.0, %v1360
      %v1362 = vpop.f32.mrf.mxu0
      %v1363 = vadd.f32 0.0, %v1362
      %1364 = vmatmul.bf16.gmra.mxu0 %v887
      %v1365 = vpop.f32.mrf.mxu0
      %v1366 = vadd.f32 0.0, %v1365
      %v1367 = vpop.f32.mrf.mxu0
      %v1368 = vadd.f32 0.0, %v1367
      %1369 = vmatmul.bf16.gmra.mxu0 %v890
      %v1370 = vpop.f32.mrf.mxu0
      %v1371 = vadd.f32 0.0, %v1370
      %v1372 = vpop.f32.mrf.mxu0
      %v1373 = vadd.f32 0.0, %v1372
      %1374 = vmatmul.bf16.gmra.mxu0 %v893
      %v1375 = vpop.f32.mrf.mxu0
      %v1376 = vadd.f32 0.0, %v1375
      %v1377 = vpop.f32.mrf.mxu0
      %v1378 = vadd.f32 0.0, %v1377
      %1379 = vmatmul.bf16.gmra.mxu0 %v896
      %v1380 = vpop.f32.mrf.mxu0
      %v1381 = vadd.f32 0.0, %v1380
      %v1382 = vpop.f32.mrf.mxu0
      %v1383 = vadd.f32 0.0, %v1382
      %1384 = vmatmul.bf16.gmra.mxu0 %v899
      %v1385 = vpop.f32.mrf.mxu0
      %v1386 = vadd.f32 0.0, %v1385
      %v1387 = vpop.f32.mrf.mxu0
      %v1388 = vadd.f32 0.0, %v1387
      %1389 = vmatmul.bf16.gmra.mxu0 %v902
      %v1390 = vpop.f32.mrf.mxu0
      %v1391 = vadd.f32 0.0, %v1390
      %v1392 = vpop.f32.mrf.mxu0
      %v1393 = vadd.f32 0.0, %v1392
      %1394 = vmatmul.bf16.gmra.mxu0 %v905
      %v1395 = vpop.f32.mrf.mxu0
      %v1396 = vadd.f32 0.0, %v1395
      %v1397 = vpop.f32.mrf.mxu0
      %v1398 = vadd.f32 0.0, %v1397
      %1399 = vmatmul.bf16.gmra.mxu0 %v908
      %v1400 = vpop.f32.mrf.mxu0
      %v1401 = vadd.f32 0.0, %v1400
      %v1402 = vpop.f32.mrf.mxu0
      %v1403 = vadd.f32 0.0, %v1402
      %1404 = vmatmul.bf16.gmra.mxu0 %v911
      %v1405 = vpop.f32.mrf.mxu0
      %v1406 = vadd.f32 0.0, %v1405
      %v1407 = vpop.f32.mrf.mxu0
      %v1408 = vadd.f32 0.0, %v1407
      %1409 = vmatmul.bf16.gmra.mxu0 %v1321
      %v1410 = vpop.f32.mrf.mxu0
      %v1411 = vadd.f32 0.0, %v1410
      %v1412 = vpop.f32.mrf.mxu0
      %v1413 = vadd.f32 0.0, %v1412
      %1414 = vdwg.mxu0
      %v1415 = vadd.f32 %v1277, %v1336
      %v1416 = vadd.f32 %v1278, %v1338
      %v1417 = vadd.f32 %v1279, %v1341
      %v1418 = vadd.f32 %v1280, %v1343
      %v1419 = vadd.f32 %v1281, %v1346
      %v1420 = vadd.f32 %v1282, %v1348
      %v1421 = vadd.f32 %v1283, %v1351
      %v1422 = vadd.f32 %v1284, %v1353
      %v1423 = vadd.f32 %v1285, %v1356
      %v1424 = vadd.f32 %v1286, %v1358
      %v1425 = vadd.f32 %v1287, %v1361
      %v1426 = vadd.f32 %v1288, %v1363
      %v1427 = vadd.f32 %v1289, %v1366
      %v1428 = vadd.f32 %v1290, %v1368
      %v1429 = vadd.f32 %v1291, %v1371
      %v1430 = vadd.f32 %v1292, %v1373
      %v1431 = vadd.f32 %v1293, %v1376
      %v1432 = vadd.f32 %v1294, %v1378
      %v1433 = vadd.f32 %v1295, %v1381
      %v1434 = vadd.f32 %v1296, %v1383
      %v1435 = vadd.f32 %v1297, %v1386
      %v1436 = vadd.f32 %v1298, %v1388
      %v1437 = vadd.f32 %v1299, %v1391
      %v1438 = vadd.f32 %v1300, %v1393
      %v1439 = vadd.f32 %v1301, %v1396
      %v1440 = vadd.f32 %v1302, %v1398
      %v1441 = vadd.f32 %v1303, %v1401
      %v1442 = vadd.f32 %v1304, %v1403
      %v1443 = vadd.f32 %v1305, %v1406
      %v1444 = vadd.f32 %v1306, %v1408
      %v1445 = vadd.f32 %v1307, %v1411
      %v1446 = vadd.f32 %v1308, %v1413
      %v1447 = vpack.c.bf16 %v251, %v250
      %s1448 = scalar_lea.vmem %s1, 24
      %v1449 = vld [vmem:[%s1448] sm:$0xf]
      %v1450 = vpack.c.bf16 %v1449, %v1449
      %v1452 = vsel %vm451, %v1447, 0
      %v1455 = vsel %vm500, %v1450, 0
      %1457 = vmatpush.bf16.msra.mxu0 0
      %1458 = vmatpush.bf16.msra.mxu0 0
      %1459 = vmatpush.bf16.msra.mxu0 0
      %1460 = vmatpush.bf16.msra.mxu0 0
      %1461 = vmatpush.bf16.msra.mxu0 0
      %1462 = vmatpush.bf16.msra.mxu0 0
      %1463 = vmatpush.bf16.msra.mxu0 0
      %1464 = vmatpush.bf16.msra.mxu0 %v1455
      %1465 = vmatmul.bf16.gmra.mxu0 %v600
      %v1466 = vpop.f32.mrf.mxu0
      %v1467 = vadd.f32 0.0, %v1466
      %v1468 = vpop.f32.mrf.mxu0
      %v1469 = vadd.f32 0.0, %v1468
      %1470 = vmatmul.bf16.gmra.mxu0 %v603
      %v1471 = vpop.f32.mrf.mxu0
      %v1472 = vadd.f32 0.0, %v1471
      %v1473 = vpop.f32.mrf.mxu0
      %v1474 = vadd.f32 0.0, %v1473
      %1475 = vmatmul.bf16.gmra.mxu0 %v606
      %v1476 = vpop.f32.mrf.mxu0
      %v1477 = vadd.f32 0.0, %v1476
      %v1478 = vpop.f32.mrf.mxu0
      %v1479 = vadd.f32 0.0, %v1478
      %1480 = vmatmul.bf16.gmra.mxu0 %v609
      %v1481 = vpop.f32.mrf.mxu0
      %v1482 = vadd.f32 0.0, %v1481
      %v1483 = vpop.f32.mrf.mxu0
      %v1484 = vadd.f32 0.0, %v1483
      %1485 = vmatmul.bf16.gmra.mxu0 %v612
      %v1486 = vpop.f32.mrf.mxu0
      %v1487 = vadd.f32 0.0, %v1486
      %v1488 = vpop.f32.mrf.mxu0
      %v1489 = vadd.f32 0.0, %v1488
      %1490 = vmatmul.bf16.gmra.mxu0 %v615
      %v1491 = vpop.f32.mrf.mxu0
      %v1492 = vadd.f32 0.0, %v1491
      %v1493 = vpop.f32.mrf.mxu0
      %v1494 = vadd.f32 0.0, %v1493
      %1495 = vmatmul.bf16.gmra.mxu0 %v618
      %v1496 = vpop.f32.mrf.mxu0
      %v1497 = vadd.f32 0.0, %v1496
      %v1498 = vpop.f32.mrf.mxu0
      %v1499 = vadd.f32 0.0, %v1498
      %1500 = vmatmul.bf16.gmra.mxu0 %v621
      %v1501 = vpop.f32.mrf.mxu0
      %v1502 = vadd.f32 0.0, %v1501
      %v1503 = vpop.f32.mrf.mxu0
      %v1504 = vadd.f32 0.0, %v1503
      %1505 = vmatmul.bf16.gmra.mxu0 %v624
      %v1506 = vpop.f32.mrf.mxu0
      %v1507 = vadd.f32 0.0, %v1506
      %v1508 = vpop.f32.mrf.mxu0
      %v1509 = vadd.f32 0.0, %v1508
      %1510 = vmatmul.bf16.gmra.mxu0 %v627
      %v1511 = vpop.f32.mrf.mxu0
      %v1512 = vadd.f32 0.0, %v1511
      %v1513 = vpop.f32.mrf.mxu0
      %v1514 = vadd.f32 0.0, %v1513
      %1515 = vmatmul.bf16.gmra.mxu0 %v630
      %v1516 = vpop.f32.mrf.mxu0
      %v1517 = vadd.f32 0.0, %v1516
      %v1518 = vpop.f32.mrf.mxu0
      %v1519 = vadd.f32 0.0, %v1518
      %1520 = vmatmul.bf16.gmra.mxu0 %v633
      %v1521 = vpop.f32.mrf.mxu0
      %v1522 = vadd.f32 0.0, %v1521
      %v1523 = vpop.f32.mrf.mxu0
      %v1524 = vadd.f32 0.0, %v1523
      %1525 = vmatmul.bf16.gmra.mxu0 %v636
      %v1526 = vpop.f32.mrf.mxu0
      %v1527 = vadd.f32 0.0, %v1526
      %v1528 = vpop.f32.mrf.mxu0
      %v1529 = vadd.f32 0.0, %v1528
      %1530 = vmatmul.bf16.gmra.mxu0 %v639
      %v1531 = vpop.f32.mrf.mxu0
      %v1532 = vadd.f32 0.0, %v1531
      %v1533 = vpop.f32.mrf.mxu0
      %v1534 = vadd.f32 0.0, %v1533
      %1535 = vmatmul.bf16.gmra.mxu0 %v1042
      %v1536 = vpop.f32.mrf.mxu0
      %v1537 = vadd.f32 0.0, %v1536
      %v1538 = vpop.f32.mrf.mxu0
      %v1539 = vadd.f32 0.0, %v1538
      %1540 = vmatmul.bf16.gmra.mxu0 %v1452
      %v1541 = vpop.f32.mrf.mxu0
      %v1542 = vadd.f32 0.0, %v1541
      %v1543 = vpop.f32.mrf.mxu0
      %v1544 = vadd.f32 0.0, %v1543
      %1545 = vdwg.mxu0
      %v1546 = vadd.f32 %v1415, %v1467
      %v1547 = vadd.f32 %v1416, %v1469
      %v1548 = vadd.f32 %v1417, %v1472
      %v1549 = vadd.f32 %v1418, %v1474
      %v1550 = vadd.f32 %v1419, %v1477
      %v1551 = vadd.f32 %v1420, %v1479
      %v1552 = vadd.f32 %v1421, %v1482
      %v1553 = vadd.f32 %v1422, %v1484
      %v1554 = vadd.f32 %v1423, %v1487
      %v1555 = vadd.f32 %v1424, %v1489
      %v1556 = vadd.f32 %v1425, %v1492
      %v1557 = vadd.f32 %v1426, %v1494
      %v1558 = vadd.f32 %v1427, %v1497
      %v1559 = vadd.f32 %v1428, %v1499
      %v1560 = vadd.f32 %v1429, %v1502
      %v1561 = vadd.f32 %v1430, %v1504
      %v1562 = vadd.f32 %v1431, %v1507
      %v1563 = vadd.f32 %v1432, %v1509
      %v1564 = vadd.f32 %v1433, %v1512
      %v1565 = vadd.f32 %v1434, %v1514
      %v1566 = vadd.f32 %v1435, %v1517
      %v1567 = vadd.f32 %v1436, %v1519
      %v1568 = vadd.f32 %v1437, %v1522
      %v1569 = vadd.f32 %v1438, %v1524
      %v1570 = vadd.f32 %v1439, %v1527
      %v1571 = vadd.f32 %v1440, %v1529
      %v1572 = vadd.f32 %v1441, %v1532
      %v1573 = vadd.f32 %v1442, %v1534
      %v1574 = vadd.f32 %v1443, %v1537
      %v1575 = vadd.f32 %v1444, %v1539
      %v1576 = vadd.f32 %v1445, %v1542
      %v1577 = vadd.f32 %v1446, %v1544
      %v1581 = vrot.slane %v250, 1
      %v1582 = vrot.slane %v251, 1
      %v1583 = vsel %vm319, %v1581, %v1582
      %v1584 = vrot.slane %v252, 1
      %v1585 = vsel %vm319, %v1582, %v1584
      %v1588 = vpack.c.bf16 %v1585, %v1583
      %s1589 = scalar_lea.vmem %s1, 28
      %v1590 = vld [vmem:[%s1589] sm:$0xf]
      %v1591 = vpack.c.bf16 %v1590, %v1590
      %v1593 = vsel %vm451, %v1588, 0
      %v1596 = vsel %vm500, %v1591, 0
      %1598 = vmatpush.bf16.msra.mxu0 0
      %1599 = vmatpush.bf16.msra.mxu0 0
      %1600 = vmatpush.bf16.msra.mxu0 0
      %1601 = vmatpush.bf16.msra.mxu0 0
      %1602 = vmatpush.bf16.msra.mxu0 0
      %1603 = vmatpush.bf16.msra.mxu0 0
      %1604 = vmatpush.bf16.msra.mxu0 0
      %1605 = vmatpush.bf16.msra.mxu0 %v1596
      %1606 = vmatmul.bf16.gmra.mxu0 %v459
      %v1607 = vpop.f32.mrf.mxu0
      %v1608 = vadd.f32 0.0, %v1607
      %v1609 = vpop.f32.mrf.mxu0
      %v1610 = vadd.f32 0.0, %v1609
      %1611 = vmatmul.bf16.gmra.mxu0 %v462
      %v1612 = vpop.f32.mrf.mxu0
      %v1613 = vadd.f32 0.0, %v1612
      %v1614 = vpop.f32.mrf.mxu0
      %v1615 = vadd.f32 0.0, %v1614
      %1616 = vmatmul.bf16.gmra.mxu0 %v465
      %v1617 = vpop.f32.mrf.mxu0
      %v1618 = vadd.f32 0.0, %v1617
      %v1619 = vpop.f32.mrf.mxu0
      %v1620 = vadd.f32 0.0, %v1619
      %1621 = vmatmul.bf16.gmra.mxu0 %v468
      %v1622 = vpop.f32.mrf.mxu0
      %v1623 = vadd.f32 0.0, %v1622
      %v1624 = vpop.f32.mrf.mxu0
      %v1625 = vadd.f32 0.0, %v1624
      %1626 = vmatmul.bf16.gmra.mxu0 %v471
      %v1627 = vpop.f32.mrf.mxu0
      %v1628 = vadd.f32 0.0, %v1627
      %v1629 = vpop.f32.mrf.mxu0
      %v1630 = vadd.f32 0.0, %v1629
      %1631 = vmatmul.bf16.gmra.mxu0 %v474
      %v1632 = vpop.f32.mrf.mxu0
      %v1633 = vadd.f32 0.0, %v1632
      %v1634 = vpop.f32.mrf.mxu0
      %v1635 = vadd.f32 0.0, %v1634
      %1636 = vmatmul.bf16.gmra.mxu0 %v477
      %v1637 = vpop.f32.mrf.mxu0
      %v1638 = vadd.f32 0.0, %v1637
      %v1639 = vpop.f32.mrf.mxu0
      %v1640 = vadd.f32 0.0, %v1639
      %1641 = vmatmul.bf16.gmra.mxu0 %v480
      %v1642 = vpop.f32.mrf.mxu0
      %v1643 = vadd.f32 0.0, %v1642
      %v1644 = vpop.f32.mrf.mxu0
      %v1645 = vadd.f32 0.0, %v1644
      %1646 = vmatmul.bf16.gmra.mxu0 %v483
      %v1647 = vpop.f32.mrf.mxu0
      %v1648 = vadd.f32 0.0, %v1647
      %v1649 = vpop.f32.mrf.mxu0
      %v1650 = vadd.f32 0.0, %v1649
      %1651 = vmatmul.bf16.gmra.mxu0 %v486
      %v1652 = vpop.f32.mrf.mxu0
      %v1653 = vadd.f32 0.0, %v1652
      %v1654 = vpop.f32.mrf.mxu0
      %v1655 = vadd.f32 0.0, %v1654
      %1656 = vmatmul.bf16.gmra.mxu0 %v489
      %v1657 = vpop.f32.mrf.mxu0
      %v1658 = vadd.f32 0.0, %v1657
      %v1659 = vpop.f32.mrf.mxu0
      %v1660 = vadd.f32 0.0, %v1659
      %1661 = vmatmul.bf16.gmra.mxu0 %v492
      %v1662 = vpop.f32.mrf.mxu0
      %v1663 = vadd.f32 0.0, %v1662
      %v1664 = vpop.f32.mrf.mxu0
      %v1665 = vadd.f32 0.0, %v1664
      %1666 = vmatmul.bf16.gmra.mxu0 %v495
      %v1667 = vpop.f32.mrf.mxu0
      %v1668 = vadd.f32 0.0, %v1667
      %v1669 = vpop.f32.mrf.mxu0
      %v1670 = vadd.f32 0.0, %v1669
      %1671 = vmatmul.bf16.gmra.mxu0 %v498
      %v1672 = vpop.f32.mrf.mxu0
      %v1673 = vadd.f32 0.0, %v1672
      %v1674 = vpop.f32.mrf.mxu0
      %v1675 = vadd.f32 0.0, %v1674
      %1676 = vmatmul.bf16.gmra.mxu0 %v1183
      %v1677 = vpop.f32.mrf.mxu0
      %v1678 = vadd.f32 0.0, %v1677
      %v1679 = vpop.f32.mrf.mxu0
      %v1680 = vadd.f32 0.0, %v1679
      %1681 = vmatmul.bf16.gmra.mxu0 %v1593
      %v1682 = vpop.f32.mrf.mxu0
      %v1683 = vadd.f32 0.0, %v1682
      %v1684 = vpop.f32.mrf.mxu0
      %v1685 = vadd.f32 0.0, %v1684
      %1686 = vdwg.mxu0
      %v1687 = vadd.f32 %v1546, %v1608
      %v1688 = vadd.f32 %v1547, %v1610
      %v1689 = vadd.f32 %v1548, %v1613
      %v1690 = vadd.f32 %v1549, %v1615
      %v1691 = vadd.f32 %v1550, %v1618
      %v1692 = vadd.f32 %v1551, %v1620
      %v1693 = vadd.f32 %v1552, %v1623
      %v1694 = vadd.f32 %v1553, %v1625
      %v1695 = vadd.f32 %v1554, %v1628
      %v1696 = vadd.f32 %v1555, %v1630
      %v1697 = vadd.f32 %v1556, %v1633
      %v1698 = vadd.f32 %v1557, %v1635
      %v1699 = vadd.f32 %v1558, %v1638
      %v1700 = vadd.f32 %v1559, %v1640
      %v1701 = vadd.f32 %v1560, %v1643
      %v1702 = vadd.f32 %v1561, %v1645
      %v1703 = vadd.f32 %v1562, %v1648
      %v1704 = vadd.f32 %v1563, %v1650
      %v1705 = vadd.f32 %v1564, %v1653
      %v1706 = vadd.f32 %v1565, %v1655
      %v1707 = vadd.f32 %v1566, %v1658
      %v1708 = vadd.f32 %v1567, %v1660
      %v1709 = vadd.f32 %v1568, %v1663
      %v1710 = vadd.f32 %v1569, %v1665
      %v1711 = vadd.f32 %v1570, %v1668
      %v1712 = vadd.f32 %v1571, %v1670
      %v1713 = vadd.f32 %v1572, %v1673
      %v1714 = vadd.f32 %v1573, %v1675
      %v1715 = vadd.f32 %v1574, %v1678
      %v1716 = vadd.f32 %v1575, %v1680
      %v1717 = vadd.f32 %v1576, %v1683
      %v1718 = vadd.f32 %v1577, %v1685
      %v1719 = vrot.slane %v250, 2
      %v1720 = vrot.slane %v251, 2
      %v1721 = vsel %vm733, %v1719, %v1720
      %v1722 = vrot.slane %v252, 2
      %v1723 = vsel %vm733, %v1720, %v1722
      %v1726 = vpack.c.bf16 %v1723, %v1721
      %s1727 = scalar_lea.vmem %s1, 32
      %v1728 = vld [vmem:[%s1727] sm:$0xf]
      %v1729 = vpack.c.bf16 %v1728, %v1728
      %v1731 = vsel %vm451, %v1726, 0
      %v1734 = vsel %vm500, %v1729, 0
      %1736 = vmatpush.bf16.msra.mxu0 0
      %1737 = vmatpush.bf16.msra.mxu0 0
      %1738 = vmatpush.bf16.msra.mxu0 0
      %1739 = vmatpush.bf16.msra.mxu0 0
      %1740 = vmatpush.bf16.msra.mxu0 0
      %1741 = vmatpush.bf16.msra.mxu0 0
      %1742 = vmatpush.bf16.msra.mxu0 0
      %1743 = vmatpush.bf16.msra.mxu0 %v1734
      %1744 = vmatmul.bf16.gmra.mxu0 %v872
      %v1745 = vpop.f32.mrf.mxu0
      %v1746 = vadd.f32 0.0, %v1745
      %v1747 = vpop.f32.mrf.mxu0
      %v1748 = vadd.f32 0.0, %v1747
      %1749 = vmatmul.bf16.gmra.mxu0 %v875
      %v1750 = vpop.f32.mrf.mxu0
      %v1751 = vadd.f32 0.0, %v1750
      %v1752 = vpop.f32.mrf.mxu0
      %v1753 = vadd.f32 0.0, %v1752
      %1754 = vmatmul.bf16.gmra.mxu0 %v878
      %v1755 = vpop.f32.mrf.mxu0
      %v1756 = vadd.f32 0.0, %v1755
      %v1757 = vpop.f32.mrf.mxu0
      %v1758 = vadd.f32 0.0, %v1757
      %1759 = vmatmul.bf16.gmra.mxu0 %v881
      %v1760 = vpop.f32.mrf.mxu0
      %v1761 = vadd.f32 0.0, %v1760
      %v1762 = vpop.f32.mrf.mxu0
      %v1763 = vadd.f32 0.0, %v1762
      %1764 = vmatmul.bf16.gmra.mxu0 %v884
      %v1765 = vpop.f32.mrf.mxu0
      %v1766 = vadd.f32 0.0, %v1765
      %v1767 = vpop.f32.mrf.mxu0
      %v1768 = vadd.f32 0.0, %v1767
      %1769 = vmatmul.bf16.gmra.mxu0 %v887
      %v1770 = vpop.f32.mrf.mxu0
      %v1771 = vadd.f32 0.0, %v1770
      %v1772 = vpop.f32.mrf.mxu0
      %v1773 = vadd.f32 0.0, %v1772
      %1774 = vmatmul.bf16.gmra.mxu0 %v890
      %v1775 = vpop.f32.mrf.mxu0
      %v1776 = vadd.f32 0.0, %v1775
      %v1777 = vpop.f32.mrf.mxu0
      %v1778 = vadd.f32 0.0, %v1777
      %1779 = vmatmul.bf16.gmra.mxu0 %v893
      %v1780 = vpop.f32.mrf.mxu0
      %v1781 = vadd.f32 0.0, %v1780
      %v1782 = vpop.f32.mrf.mxu0
      %v1783 = vadd.f32 0.0, %v1782
      %1784 = vmatmul.bf16.gmra.mxu0 %v896
      %v1785 = vpop.f32.mrf.mxu0
      %v1786 = vadd.f32 0.0, %v1785
      %v1787 = vpop.f32.mrf.mxu0
      %v1788 = vadd.f32 0.0, %v1787
      %1789 = vmatmul.bf16.gmra.mxu0 %v899
      %v1790 = vpop.f32.mrf.mxu0
      %v1791 = vadd.f32 0.0, %v1790
      %v1792 = vpop.f32.mrf.mxu0
      %v1793 = vadd.f32 0.0, %v1792
      %1794 = vmatmul.bf16.gmra.mxu0 %v902
      %v1795 = vpop.f32.mrf.mxu0
      %v1796 = vadd.f32 0.0, %v1795
      %v1797 = vpop.f32.mrf.mxu0
      %v1798 = vadd.f32 0.0, %v1797
      %1799 = vmatmul.bf16.gmra.mxu0 %v905
      %v1800 = vpop.f32.mrf.mxu0
      %v1801 = vadd.f32 0.0, %v1800
      %v1802 = vpop.f32.mrf.mxu0
      %v1803 = vadd.f32 0.0, %v1802
      %1804 = vmatmul.bf16.gmra.mxu0 %v908
      %v1805 = vpop.f32.mrf.mxu0
      %v1806 = vadd.f32 0.0, %v1805
      %v1807 = vpop.f32.mrf.mxu0
      %v1808 = vadd.f32 0.0, %v1807
      %1809 = vmatmul.bf16.gmra.mxu0 %v911
      %v1810 = vpop.f32.mrf.mxu0
      %v1811 = vadd.f32 0.0, %v1810
      %v1812 = vpop.f32.mrf.mxu0
      %v1813 = vadd.f32 0.0, %v1812
      %1814 = vmatmul.bf16.gmra.mxu0 %v1321
      %v1815 = vpop.f32.mrf.mxu0
      %v1816 = vadd.f32 0.0, %v1815
      %v1817 = vpop.f32.mrf.mxu0
      %v1818 = vadd.f32 0.0, %v1817
      %1819 = vmatmul.bf16.gmra.mxu0 %v1731
      %v1820 = vpop.f32.mrf.mxu0
      %v1821 = vadd.f32 0.0, %v1820
      %v1822 = vpop.f32.mrf.mxu0
      %v1823 = vadd.f32 0.0, %v1822
      %1824 = vdwg.mxu0
      %v1825 = vadd.f32 %v1687, %v1746
      %v1826 = vadd.f32 %v1688, %v1748
      %v1827 = vadd.f32 %v1689, %v1751
      %v1828 = vadd.f32 %v1690, %v1753
      %v1829 = vadd.f32 %v1691, %v1756
      %v1830 = vadd.f32 %v1692, %v1758
      %v1831 = vadd.f32 %v1693, %v1761
      %v1832 = vadd.f32 %v1694, %v1763
      %v1833 = vadd.f32 %v1695, %v1766
      %v1834 = vadd.f32 %v1696, %v1768
      %v1835 = vadd.f32 %v1697, %v1771
      %v1836 = vadd.f32 %v1698, %v1773
      %v1837 = vadd.f32 %v1699, %v1776
      %v1838 = vadd.f32 %v1700, %v1778
      %v1839 = vadd.f32 %v1701, %v1781
      %v1840 = vadd.f32 %v1702, %v1783
      %v1841 = vadd.f32 %v1703, %v1786
      %v1842 = vadd.f32 %v1704, %v1788
      %v1843 = vadd.f32 %v1705, %v1791
      %v1844 = vadd.f32 %v1706, %v1793
      %v1845 = vadd.f32 %v1707, %v1796
      %v1846 = vadd.f32 %v1708, %v1798
      %v1847 = vadd.f32 %v1709, %v1801
      %v1848 = vadd.f32 %v1710, %v1803
      %v1849 = vadd.f32 %v1711, %v1806
      %v1850 = vadd.f32 %v1712, %v1808
      %v1851 = vadd.f32 %v1713, %v1811
      %v1852 = vadd.f32 %v1714, %v1813
      %v1853 = vadd.f32 %v1715, %v1816
      %v1854 = vadd.f32 %v1716, %v1818
      %v1855 = vadd.f32 %v1717, %v1821
      %v1856 = vadd.f32 %v1718, %v1823
      %v1857 = vld [vmem:[%s2] sm:$0x1]
      %v1859 = vperm.slane %v1857, 0
      %v1861 = vmul.f32 %v1825, %v1859
      %v1862 = vmul.f32 %v1826, %v1859
      %v1863 = vmul.f32 %v1827, %v1859
      %v1864 = vmul.f32 %v1828, %v1859
      %v1865 = vmul.f32 %v1829, %v1859
      %v1866 = vmul.f32 %v1830, %v1859
      %v1867 = vmul.f32 %v1831, %v1859
      %v1868 = vmul.f32 %v1832, %v1859
      %v1869 = vmul.f32 %v1833, %v1859
      %v1870 = vmul.f32 %v1834, %v1859
      %v1871 = vmul.f32 %v1835, %v1859
      %v1872 = vmul.f32 %v1836, %v1859
      %v1873 = vmul.f32 %v1837, %v1859
      %v1874 = vmul.f32 %v1838, %v1859
      %v1875 = vmul.f32 %v1839, %v1859
      %v1876 = vmul.f32 %v1840, %v1859
      %v1877 = vmul.f32 %v1841, %v1859
      %v1878 = vmul.f32 %v1842, %v1859
      %v1879 = vmul.f32 %v1843, %v1859
      %v1880 = vmul.f32 %v1844, %v1859
      %v1881 = vmul.f32 %v1845, %v1859
      %v1882 = vmul.f32 %v1846, %v1859
      %v1883 = vmul.f32 %v1847, %v1859
      %v1884 = vmul.f32 %v1848, %v1859
      %v1885 = vmul.f32 %v1849, %v1859
      %v1886 = vmul.f32 %v1850, %v1859
      %v1887 = vmul.f32 %v1851, %v1859
      %v1888 = vmul.f32 %v1852, %v1859
      %v1889 = vmul.f32 %v1853, %v1859
      %v1890 = vmul.f32 %v1854, %v1859
      %v1891 = vmul.f32 %v1855, %v1859
      %v1892 = vmul.f32 %v1856, %v1859
      %v1893 = vld [vmem:[%s3] sm:$0x1]
      %v1895 = vperm.slane %v1893, 0
      %v1897 = vadd.f32 %v1861, %v1895
      %v1898 = vadd.f32 %v1862, %v1895
      %v1899 = vadd.f32 %v1863, %v1895
      %v1900 = vadd.f32 %v1864, %v1895
      %v1901 = vadd.f32 %v1865, %v1895
      %v1902 = vadd.f32 %v1866, %v1895
      %v1903 = vadd.f32 %v1867, %v1895
      %v1904 = vadd.f32 %v1868, %v1895
      %v1905 = vadd.f32 %v1869, %v1895
      %v1906 = vadd.f32 %v1870, %v1895
      %v1907 = vadd.f32 %v1871, %v1895
      %v1908 = vadd.f32 %v1872, %v1895
      %v1909 = vadd.f32 %v1873, %v1895
      %v1910 = vadd.f32 %v1874, %v1895
      %v1911 = vadd.f32 %v1875, %v1895
      %v1912 = vadd.f32 %v1876, %v1895
      %v1913 = vadd.f32 %v1877, %v1895
      %v1914 = vadd.f32 %v1878, %v1895
      %v1915 = vadd.f32 %v1879, %v1895
      %v1916 = vadd.f32 %v1880, %v1895
      %v1917 = vadd.f32 %v1881, %v1895
      %v1918 = vadd.f32 %v1882, %v1895
      %v1919 = vadd.f32 %v1883, %v1895
      %v1920 = vadd.f32 %v1884, %v1895
      %v1921 = vadd.f32 %v1885, %v1895
      %v1922 = vadd.f32 %v1886, %v1895
      %v1923 = vadd.f32 %v1887, %v1895
      %v1924 = vadd.f32 %v1888, %v1895
      %v1925 = vadd.f32 %v1889, %v1895
      %v1926 = vadd.f32 %v1890, %v1895
      %v1927 = vadd.f32 %v1891, %v1895
      %v1928 = vadd.f32 %v1892, %v1895
      %v1929 = vxor.u32 %v1897, 2147483648
      %v1930 = vxor.u32 %v1898, 2147483648
      %v1931 = vxor.u32 %v1899, 2147483648
      %v1932 = vxor.u32 %v1900, 2147483648
      %v1933 = vxor.u32 %v1901, 2147483648
      %v1934 = vxor.u32 %v1902, 2147483648
      %v1935 = vxor.u32 %v1903, 2147483648
      %v1936 = vxor.u32 %v1904, 2147483648
      %v1937 = vxor.u32 %v1905, 2147483648
      %v1938 = vxor.u32 %v1906, 2147483648
      %v1939 = vxor.u32 %v1907, 2147483648
      %v1940 = vxor.u32 %v1908, 2147483648
      %v1941 = vxor.u32 %v1909, 2147483648
      %v1942 = vxor.u32 %v1910, 2147483648
      %v1943 = vxor.u32 %v1911, 2147483648
      %v1944 = vxor.u32 %v1912, 2147483648
      %v1945 = vxor.u32 %v1913, 2147483648
      %v1946 = vxor.u32 %v1914, 2147483648
      %v1947 = vxor.u32 %v1915, 2147483648
      %v1948 = vxor.u32 %v1916, 2147483648
      %v1949 = vxor.u32 %v1917, 2147483648
      %v1950 = vxor.u32 %v1918, 2147483648
      %v1951 = vxor.u32 %v1919, 2147483648
      %v1952 = vxor.u32 %v1920, 2147483648
      %v1953 = vxor.u32 %v1921, 2147483648
      %v1954 = vxor.u32 %v1922, 2147483648
      %v1955 = vxor.u32 %v1923, 2147483648
      %v1956 = vxor.u32 %v1924, 2147483648
      %v1957 = vxor.u32 %v1925, 2147483648
      %v1958 = vxor.u32 %v1926, 2147483648
      %v1959 = vxor.u32 %v1927, 2147483648
      %v1960 = vxor.u32 %v1928, 2147483648
      %v1961 = vmul.f32 %v1929, 1.442695
      %v1962 = vpow.pop %v1961
      %v1963 = vmul.f32 %v1930, 1.442695
      %v1964 = vpow.pop %v1963
      %v1965 = vmul.f32 %v1931, 1.442695
      %v1966 = vpow.pop %v1965
      %v1967 = vmul.f32 %v1932, 1.442695
      %v1968 = vpow.pop %v1967
      %v1969 = vmul.f32 %v1933, 1.442695
      %v1970 = vpow.pop %v1969
      %v1971 = vmul.f32 %v1934, 1.442695
      %v1972 = vpow.pop %v1971
      %v1973 = vmul.f32 %v1935, 1.442695
      %v1974 = vpow.pop %v1973
      %v1975 = vmul.f32 %v1936, 1.442695
      %v1976 = vpow.pop %v1975
      %v1977 = vmul.f32 %v1937, 1.442695
      %v1978 = vpow.pop %v1977
      %v1979 = vmul.f32 %v1938, 1.442695
      %v1980 = vpow.pop %v1979
      %v1981 = vmul.f32 %v1939, 1.442695
      %v1982 = vpow.pop %v1981
      %v1983 = vmul.f32 %v1940, 1.442695
      %v1984 = vpow.pop %v1983
      %v1985 = vmul.f32 %v1941, 1.442695
      %v1986 = vpow.pop %v1985
      %v1987 = vmul.f32 %v1942, 1.442695
      %v1988 = vpow.pop %v1987
      %v1989 = vmul.f32 %v1943, 1.442695
      %v1990 = vpow.pop %v1989
      %v1991 = vmul.f32 %v1944, 1.442695
      %v1992 = vpow.pop %v1991
      %v1993 = vmul.f32 %v1945, 1.442695
      %v1994 = vpow.pop %v1993
      %v1995 = vmul.f32 %v1946, 1.442695
      %v1996 = vpow.pop %v1995
      %v1997 = vmul.f32 %v1947, 1.442695
      %v1998 = vpow.pop %v1997
      %v1999 = vmul.f32 %v1948, 1.442695
      %v2000 = vpow.pop %v1999
      %v2001 = vmul.f32 %v1949, 1.442695
      %v2002 = vpow.pop %v2001
      %v2003 = vmul.f32 %v1950, 1.442695
      %v2004 = vpow.pop %v2003
      %v2005 = vmul.f32 %v1951, 1.442695
      %v2006 = vpow.pop %v2005
      %v2007 = vmul.f32 %v1952, 1.442695
      %v2008 = vpow.pop %v2007
      %v2009 = vmul.f32 %v1953, 1.442695
      %v2010 = vpow.pop %v2009
      %v2011 = vmul.f32 %v1954, 1.442695
      %v2012 = vpow.pop %v2011
      %v2013 = vmul.f32 %v1955, 1.442695
      %v2014 = vpow.pop %v2013
      %v2015 = vmul.f32 %v1956, 1.442695
      %v2016 = vpow.pop %v2015
      %v2017 = vmul.f32 %v1957, 1.442695
      %v2018 = vpow.pop %v2017
      %v2019 = vmul.f32 %v1958, 1.442695
      %v2020 = vpow.pop %v2019
      %v2021 = vmul.f32 %v1959, 1.442695
      %v2022 = vpow.pop %v2021
      %v2023 = vmul.f32 %v1960, 1.442695
      %v2024 = vpow.pop %v2023
      %v2025 = vadd.f32 %v1962, 1.0
      %v2026 = vadd.f32 %v1964, 1.0
      %v2027 = vadd.f32 %v1966, 1.0
      %v2028 = vadd.f32 %v1968, 1.0
      %v2029 = vadd.f32 %v1970, 1.0
      %v2030 = vadd.f32 %v1972, 1.0
      %v2031 = vadd.f32 %v1974, 1.0
      %v2032 = vadd.f32 %v1976, 1.0
      %v2033 = vadd.f32 %v1978, 1.0
      %v2034 = vadd.f32 %v1980, 1.0
      %v2035 = vadd.f32 %v1982, 1.0
      %v2036 = vadd.f32 %v1984, 1.0
      %v2037 = vadd.f32 %v1986, 1.0
      %v2038 = vadd.f32 %v1988, 1.0
      %v2039 = vadd.f32 %v1990, 1.0
      %v2040 = vadd.f32 %v1992, 1.0
      %v2041 = vadd.f32 %v1994, 1.0
      %v2042 = vadd.f32 %v1996, 1.0
      %v2043 = vadd.f32 %v1998, 1.0
      %v2044 = vadd.f32 %v2000, 1.0
      %v2045 = vadd.f32 %v2002, 1.0
      %v2046 = vadd.f32 %v2004, 1.0
      %v2047 = vadd.f32 %v2006, 1.0
      %v2048 = vadd.f32 %v2008, 1.0
      %v2049 = vadd.f32 %v2010, 1.0
      %v2050 = vadd.f32 %v2012, 1.0
      %v2051 = vadd.f32 %v2014, 1.0
      %v2052 = vadd.f32 %v2016, 1.0
      %v2053 = vadd.f32 %v2018, 1.0
      %v2054 = vadd.f32 %v2020, 1.0
      %v2055 = vadd.f32 %v2022, 1.0
      %v2056 = vadd.f32 %v2024, 1.0
      %v2057 = vrcp.pop %v2025
      %v2058 = vmul.f32 %v2025, %v2057
      %v2059 = vsub.f32 1.0, %v2058
      %v2060 = vmul.f32 %v2057, %v2059
      %v2061 = vadd.f32 %v2057, %v2060
      %vm2062 = vweird.f32 %v2025
      %vm2063 = vweird.f32 %v2057
      %vm2064 = vmor %vm2062, %vm2063
      %v2065 = vsel %vm2064, %v2057, %v2061
      %v2066 = vand.u32 2147483647, %v2025
      %vm2067 = vcmp.eq.f32.partialorder %v2066, 8.507059e+37
      %v2068 = vand.u32 %v2025, 2147483648
      %v2069 = vor.u32 1.1754944e-38, %v2068
      %v2070 = vsel %vm2067, %v2069, %v2065
      %v2071 = vmul.f32 1.0, %v2070
      %v2072 = vrcp.pop %v2026
      %v2073 = vmul.f32 %v2026, %v2072
      %v2074 = vsub.f32 1.0, %v2073
      %v2075 = vmul.f32 %v2072, %v2074
      %v2076 = vadd.f32 %v2072, %v2075
      %vm2077 = vweird.f32 %v2026
      %vm2078 = vweird.f32 %v2072
      %vm2079 = vmor %vm2077, %vm2078
      %v2080 = vsel %vm2079, %v2072, %v2076
      %v2081 = vand.u32 2147483647, %v2026
      %vm2082 = vcmp.eq.f32.partialorder %v2081, 8.507059e+37
      %v2083 = vand.u32 %v2026, 2147483648
      %v2084 = vor.u32 1.1754944e-38, %v2083
      %v2085 = vsel %vm2082, %v2084, %v2080
      %v2086 = vmul.f32 1.0, %v2085
      %v2087 = vrcp.pop %v2027
      %v2088 = vmul.f32 %v2027, %v2087
      %v2089 = vsub.f32 1.0, %v2088
      %v2090 = vmul.f32 %v2087, %v2089
      %v2091 = vadd.f32 %v2087, %v2090
      %vm2092 = vweird.f32 %v2027
      %vm2093 = vweird.f32 %v2087
      %vm2094 = vmor %vm2092, %vm2093
      %v2095 = vsel %vm2094, %v2087, %v2091
      %v2096 = vand.u32 2147483647, %v2027
      %vm2097 = vcmp.eq.f32.partialorder %v2096, 8.507059e+37
      %v2098 = vand.u32 %v2027, 2147483648
      %v2099 = vor.u32 1.1754944e-38, %v2098
      %v2100 = vsel %vm2097, %v2099, %v2095
      %v2101 = vmul.f32 1.0, %v2100
      %v2102 = vrcp.pop %v2028
      %v2103 = vmul.f32 %v2028, %v2102
      %v2104 = vsub.f32 1.0, %v2103
      %v2105 = vmul.f32 %v2102, %v2104
      %v2106 = vadd.f32 %v2102, %v2105
      %vm2107 = vweird.f32 %v2028
      %vm2108 = vweird.f32 %v2102
      %vm2109 = vmor %vm2107, %vm2108
      %v2110 = vsel %vm2109, %v2102, %v2106
      %v2111 = vand.u32 2147483647, %v2028
      %vm2112 = vcmp.eq.f32.partialorder %v2111, 8.507059e+37
      %v2113 = vand.u32 %v2028, 2147483648
      %v2114 = vor.u32 1.1754944e-38, %v2113
      %v2115 = vsel %vm2112, %v2114, %v2110
      %v2116 = vmul.f32 1.0, %v2115
      %v2117 = vrcp.pop %v2029
      %v2118 = vmul.f32 %v2029, %v2117
      %v2119 = vsub.f32 1.0, %v2118
      %v2120 = vmul.f32 %v2117, %v2119
      %v2121 = vadd.f32 %v2117, %v2120
      %vm2122 = vweird.f32 %v2029
      %vm2123 = vweird.f32 %v2117
      %vm2124 = vmor %vm2122, %vm2123
      %v2125 = vsel %vm2124, %v2117, %v2121
      %v2126 = vand.u32 2147483647, %v2029
      %vm2127 = vcmp.eq.f32.partialorder %v2126, 8.507059e+37
      %v2128 = vand.u32 %v2029, 2147483648
      %v2129 = vor.u32 1.1754944e-38, %v2128
      %v2130 = vsel %vm2127, %v2129, %v2125
      %v2131 = vmul.f32 1.0, %v2130
      %v2132 = vrcp.pop %v2030
      %v2133 = vmul.f32 %v2030, %v2132
      %v2134 = vsub.f32 1.0, %v2133
      %v2135 = vmul.f32 %v2132, %v2134
      %v2136 = vadd.f32 %v2132, %v2135
      %vm2137 = vweird.f32 %v2030
      %vm2138 = vweird.f32 %v2132
      %vm2139 = vmor %vm2137, %vm2138
      %v2140 = vsel %vm2139, %v2132, %v2136
      %v2141 = vand.u32 2147483647, %v2030
      %vm2142 = vcmp.eq.f32.partialorder %v2141, 8.507059e+37
      %v2143 = vand.u32 %v2030, 2147483648
      %v2144 = vor.u32 1.1754944e-38, %v2143
      %v2145 = vsel %vm2142, %v2144, %v2140
      %v2146 = vmul.f32 1.0, %v2145
      %v2147 = vrcp.pop %v2031
      %v2148 = vmul.f32 %v2031, %v2147
      %v2149 = vsub.f32 1.0, %v2148
      %v2150 = vmul.f32 %v2147, %v2149
      %v2151 = vadd.f32 %v2147, %v2150
      %vm2152 = vweird.f32 %v2031
      %vm2153 = vweird.f32 %v2147
      %vm2154 = vmor %vm2152, %vm2153
      %v2155 = vsel %vm2154, %v2147, %v2151
      %v2156 = vand.u32 2147483647, %v2031
      %vm2157 = vcmp.eq.f32.partialorder %v2156, 8.507059e+37
      %v2158 = vand.u32 %v2031, 2147483648
      %v2159 = vor.u32 1.1754944e-38, %v2158
      %v2160 = vsel %vm2157, %v2159, %v2155
      %v2161 = vmul.f32 1.0, %v2160
      %v2162 = vrcp.pop %v2032
      %v2163 = vmul.f32 %v2032, %v2162
      %v2164 = vsub.f32 1.0, %v2163
      %v2165 = vmul.f32 %v2162, %v2164
      %v2166 = vadd.f32 %v2162, %v2165
      %vm2167 = vweird.f32 %v2032
      %vm2168 = vweird.f32 %v2162
      %vm2169 = vmor %vm2167, %vm2168
      %v2170 = vsel %vm2169, %v2162, %v2166
      %v2171 = vand.u32 2147483647, %v2032
      %vm2172 = vcmp.eq.f32.partialorder %v2171, 8.507059e+37
      %v2173 = vand.u32 %v2032, 2147483648
      %v2174 = vor.u32 1.1754944e-38, %v2173
      %v2175 = vsel %vm2172, %v2174, %v2170
      %v2176 = vmul.f32 1.0, %v2175
      %v2177 = vrcp.pop %v2033
      %v2178 = vmul.f32 %v2033, %v2177
      %v2179 = vsub.f32 1.0, %v2178
      %v2180 = vmul.f32 %v2177, %v2179
      %v2181 = vadd.f32 %v2177, %v2180
      %vm2182 = vweird.f32 %v2033
      %vm2183 = vweird.f32 %v2177
      %vm2184 = vmor %vm2182, %vm2183
      %v2185 = vsel %vm2184, %v2177, %v2181
      %v2186 = vand.u32 2147483647, %v2033
      %vm2187 = vcmp.eq.f32.partialorder %v2186, 8.507059e+37
      %v2188 = vand.u32 %v2033, 2147483648
      %v2189 = vor.u32 1.1754944e-38, %v2188
      %v2190 = vsel %vm2187, %v2189, %v2185
      %v2191 = vmul.f32 1.0, %v2190
      %v2192 = vrcp.pop %v2034
      %v2193 = vmul.f32 %v2034, %v2192
      %v2194 = vsub.f32 1.0, %v2193
      %v2195 = vmul.f32 %v2192, %v2194
      %v2196 = vadd.f32 %v2192, %v2195
      %vm2197 = vweird.f32 %v2034
      %vm2198 = vweird.f32 %v2192
      %vm2199 = vmor %vm2197, %vm2198
      %v2200 = vsel %vm2199, %v2192, %v2196
      %v2201 = vand.u32 2147483647, %v2034
      %vm2202 = vcmp.eq.f32.partialorder %v2201, 8.507059e+37
      %v2203 = vand.u32 %v2034, 2147483648
      %v2204 = vor.u32 1.1754944e-38, %v2203
      %v2205 = vsel %vm2202, %v2204, %v2200
      %v2206 = vmul.f32 1.0, %v2205
      %v2207 = vrcp.pop %v2035
      %v2208 = vmul.f32 %v2035, %v2207
      %v2209 = vsub.f32 1.0, %v2208
      %v2210 = vmul.f32 %v2207, %v2209
      %v2211 = vadd.f32 %v2207, %v2210
      %vm2212 = vweird.f32 %v2035
      %vm2213 = vweird.f32 %v2207
      %vm2214 = vmor %vm2212, %vm2213
      %v2215 = vsel %vm2214, %v2207, %v2211
      %v2216 = vand.u32 2147483647, %v2035
      %vm2217 = vcmp.eq.f32.partialorder %v2216, 8.507059e+37
      %v2218 = vand.u32 %v2035, 2147483648
      %v2219 = vor.u32 1.1754944e-38, %v2218
      %v2220 = vsel %vm2217, %v2219, %v2215
      %v2221 = vmul.f32 1.0, %v2220
      %v2222 = vrcp.pop %v2036
      %v2223 = vmul.f32 %v2036, %v2222
      %v2224 = vsub.f32 1.0, %v2223
      %v2225 = vmul.f32 %v2222, %v2224
      %v2226 = vadd.f32 %v2222, %v2225
      %vm2227 = vweird.f32 %v2036
      %vm2228 = vweird.f32 %v2222
      %vm2229 = vmor %vm2227, %vm2228
      %v2230 = vsel %vm2229, %v2222, %v2226
      %v2231 = vand.u32 2147483647, %v2036
      %vm2232 = vcmp.eq.f32.partialorder %v2231, 8.507059e+37
      %v2233 = vand.u32 %v2036, 2147483648
      %v2234 = vor.u32 1.1754944e-38, %v2233
      %v2235 = vsel %vm2232, %v2234, %v2230
      %v2236 = vmul.f32 1.0, %v2235
      %v2237 = vrcp.pop %v2037
      %v2238 = vmul.f32 %v2037, %v2237
      %v2239 = vsub.f32 1.0, %v2238
      %v2240 = vmul.f32 %v2237, %v2239
      %v2241 = vadd.f32 %v2237, %v2240
      %vm2242 = vweird.f32 %v2037
      %vm2243 = vweird.f32 %v2237
      %vm2244 = vmor %vm2242, %vm2243
      %v2245 = vsel %vm2244, %v2237, %v2241
      %v2246 = vand.u32 2147483647, %v2037
      %vm2247 = vcmp.eq.f32.partialorder %v2246, 8.507059e+37
      %v2248 = vand.u32 %v2037, 2147483648
      %v2249 = vor.u32 1.1754944e-38, %v2248
      %v2250 = vsel %vm2247, %v2249, %v2245
      %v2251 = vmul.f32 1.0, %v2250
      %v2252 = vrcp.pop %v2038
      %v2253 = vmul.f32 %v2038, %v2252
      %v2254 = vsub.f32 1.0, %v2253
      %v2255 = vmul.f32 %v2252, %v2254
      %v2256 = vadd.f32 %v2252, %v2255
      %vm2257 = vweird.f32 %v2038
      %vm2258 = vweird.f32 %v2252
      %vm2259 = vmor %vm2257, %vm2258
      %v2260 = vsel %vm2259, %v2252, %v2256
      %v2261 = vand.u32 2147483647, %v2038
      %vm2262 = vcmp.eq.f32.partialorder %v2261, 8.507059e+37
      %v2263 = vand.u32 %v2038, 2147483648
      %v2264 = vor.u32 1.1754944e-38, %v2263
      %v2265 = vsel %vm2262, %v2264, %v2260
      %v2266 = vmul.f32 1.0, %v2265
      %v2267 = vrcp.pop %v2039
      %v2268 = vmul.f32 %v2039, %v2267
      %v2269 = vsub.f32 1.0, %v2268
      %v2270 = vmul.f32 %v2267, %v2269
      %v2271 = vadd.f32 %v2267, %v2270
      %vm2272 = vweird.f32 %v2039
      %vm2273 = vweird.f32 %v2267
      %vm2274 = vmor %vm2272, %vm2273
      %v2275 = vsel %vm2274, %v2267, %v2271
      %v2276 = vand.u32 2147483647, %v2039
      %vm2277 = vcmp.eq.f32.partialorder %v2276, 8.507059e+37
      %v2278 = vand.u32 %v2039, 2147483648
      %v2279 = vor.u32 1.1754944e-38, %v2278
      %v2280 = vsel %vm2277, %v2279, %v2275
      %v2281 = vmul.f32 1.0, %v2280
      %v2282 = vrcp.pop %v2040
      %v2283 = vmul.f32 %v2040, %v2282
      %v2284 = vsub.f32 1.0, %v2283
      %v2285 = vmul.f32 %v2282, %v2284
      %v2286 = vadd.f32 %v2282, %v2285
      %vm2287 = vweird.f32 %v2040
      %vm2288 = vweird.f32 %v2282
      %vm2289 = vmor %vm2287, %vm2288
      %v2290 = vsel %vm2289, %v2282, %v2286
      %v2291 = vand.u32 2147483647, %v2040
      %vm2292 = vcmp.eq.f32.partialorder %v2291, 8.507059e+37
      %v2293 = vand.u32 %v2040, 2147483648
      %v2294 = vor.u32 1.1754944e-38, %v2293
      %v2295 = vsel %vm2292, %v2294, %v2290
      %v2296 = vmul.f32 1.0, %v2295
      %v2297 = vrcp.pop %v2041
      %v2298 = vmul.f32 %v2041, %v2297
      %v2299 = vsub.f32 1.0, %v2298
      %v2300 = vmul.f32 %v2297, %v2299
      %v2301 = vadd.f32 %v2297, %v2300
      %vm2302 = vweird.f32 %v2041
      %vm2303 = vweird.f32 %v2297
      %vm2304 = vmor %vm2302, %vm2303
      %v2305 = vsel %vm2304, %v2297, %v2301
      %v2306 = vand.u32 2147483647, %v2041
      %vm2307 = vcmp.eq.f32.partialorder %v2306, 8.507059e+37
      %v2308 = vand.u32 %v2041, 2147483648
      %v2309 = vor.u32 1.1754944e-38, %v2308
      %v2310 = vsel %vm2307, %v2309, %v2305
      %v2311 = vmul.f32 1.0, %v2310
      %v2312 = vrcp.pop %v2042
      %v2313 = vmul.f32 %v2042, %v2312
      %v2314 = vsub.f32 1.0, %v2313
      %v2315 = vmul.f32 %v2312, %v2314
      %v2316 = vadd.f32 %v2312, %v2315
      %vm2317 = vweird.f32 %v2042
      %vm2318 = vweird.f32 %v2312
      %vm2319 = vmor %vm2317, %vm2318
      %v2320 = vsel %vm2319, %v2312, %v2316
      %v2321 = vand.u32 2147483647, %v2042
      %vm2322 = vcmp.eq.f32.partialorder %v2321, 8.507059e+37
      %v2323 = vand.u32 %v2042, 2147483648
      %v2324 = vor.u32 1.1754944e-38, %v2323
      %v2325 = vsel %vm2322, %v2324, %v2320
      %v2326 = vmul.f32 1.0, %v2325
      %v2327 = vrcp.pop %v2043
      %v2328 = vmul.f32 %v2043, %v2327
      %v2329 = vsub.f32 1.0, %v2328
      %v2330 = vmul.f32 %v2327, %v2329
      %v2331 = vadd.f32 %v2327, %v2330
      %vm2332 = vweird.f32 %v2043
      %vm2333 = vweird.f32 %v2327
      %vm2334 = vmor %vm2332, %vm2333
      %v2335 = vsel %vm2334, %v2327, %v2331
      %v2336 = vand.u32 2147483647, %v2043
      %vm2337 = vcmp.eq.f32.partialorder %v2336, 8.507059e+37
      %v2338 = vand.u32 %v2043, 2147483648
      %v2339 = vor.u32 1.1754944e-38, %v2338
      %v2340 = vsel %vm2337, %v2339, %v2335
      %v2341 = vmul.f32 1.0, %v2340
      %v2342 = vrcp.pop %v2044
      %v2343 = vmul.f32 %v2044, %v2342
      %v2344 = vsub.f32 1.0, %v2343
      %v2345 = vmul.f32 %v2342, %v2344
      %v2346 = vadd.f32 %v2342, %v2345
      %vm2347 = vweird.f32 %v2044
      %vm2348 = vweird.f32 %v2342
      %vm2349 = vmor %vm2347, %vm2348
      %v2350 = vsel %vm2349, %v2342, %v2346
      %v2351 = vand.u32 2147483647, %v2044
      %vm2352 = vcmp.eq.f32.partialorder %v2351, 8.507059e+37
      %v2353 = vand.u32 %v2044, 2147483648
      %v2354 = vor.u32 1.1754944e-38, %v2353
      %v2355 = vsel %vm2352, %v2354, %v2350
      %v2356 = vmul.f32 1.0, %v2355
      %v2357 = vrcp.pop %v2045
      %v2358 = vmul.f32 %v2045, %v2357
      %v2359 = vsub.f32 1.0, %v2358
      %v2360 = vmul.f32 %v2357, %v2359
      %v2361 = vadd.f32 %v2357, %v2360
      %vm2362 = vweird.f32 %v2045
      %vm2363 = vweird.f32 %v2357
      %vm2364 = vmor %vm2362, %vm2363
      %v2365 = vsel %vm2364, %v2357, %v2361
      %v2366 = vand.u32 2147483647, %v2045
      %vm2367 = vcmp.eq.f32.partialorder %v2366, 8.507059e+37
      %v2368 = vand.u32 %v2045, 2147483648
      %v2369 = vor.u32 1.1754944e-38, %v2368
      %v2370 = vsel %vm2367, %v2369, %v2365
      %v2371 = vmul.f32 1.0, %v2370
      %v2372 = vrcp.pop %v2046
      %v2373 = vmul.f32 %v2046, %v2372
      %v2374 = vsub.f32 1.0, %v2373
      %v2375 = vmul.f32 %v2372, %v2374
      %v2376 = vadd.f32 %v2372, %v2375
      %vm2377 = vweird.f32 %v2046
      %vm2378 = vweird.f32 %v2372
      %vm2379 = vmor %vm2377, %vm2378
      %v2380 = vsel %vm2379, %v2372, %v2376
      %v2381 = vand.u32 2147483647, %v2046
      %vm2382 = vcmp.eq.f32.partialorder %v2381, 8.507059e+37
      %v2383 = vand.u32 %v2046, 2147483648
      %v2384 = vor.u32 1.1754944e-38, %v2383
      %v2385 = vsel %vm2382, %v2384, %v2380
      %v2386 = vmul.f32 1.0, %v2385
      %v2387 = vrcp.pop %v2047
      %v2388 = vmul.f32 %v2047, %v2387
      %v2389 = vsub.f32 1.0, %v2388
      %v2390 = vmul.f32 %v2387, %v2389
      %v2391 = vadd.f32 %v2387, %v2390
      %vm2392 = vweird.f32 %v2047
      %vm2393 = vweird.f32 %v2387
      %vm2394 = vmor %vm2392, %vm2393
      %v2395 = vsel %vm2394, %v2387, %v2391
      %v2396 = vand.u32 2147483647, %v2047
      %vm2397 = vcmp.eq.f32.partialorder %v2396, 8.507059e+37
      %v2398 = vand.u32 %v2047, 2147483648
      %v2399 = vor.u32 1.1754944e-38, %v2398
      %v2400 = vsel %vm2397, %v2399, %v2395
      %v2401 = vmul.f32 1.0, %v2400
      %v2402 = vrcp.pop %v2048
      %v2403 = vmul.f32 %v2048, %v2402
      %v2404 = vsub.f32 1.0, %v2403
      %v2405 = vmul.f32 %v2402, %v2404
      %v2406 = vadd.f32 %v2402, %v2405
      %vm2407 = vweird.f32 %v2048
      %vm2408 = vweird.f32 %v2402
      %vm2409 = vmor %vm2407, %vm2408
      %v2410 = vsel %vm2409, %v2402, %v2406
      %v2411 = vand.u32 2147483647, %v2048
      %vm2412 = vcmp.eq.f32.partialorder %v2411, 8.507059e+37
      %v2413 = vand.u32 %v2048, 2147483648
      %v2414 = vor.u32 1.1754944e-38, %v2413
      %v2415 = vsel %vm2412, %v2414, %v2410
      %v2416 = vmul.f32 1.0, %v2415
      %v2417 = vrcp.pop %v2049
      %v2418 = vmul.f32 %v2049, %v2417
      %v2419 = vsub.f32 1.0, %v2418
      %v2420 = vmul.f32 %v2417, %v2419
      %v2421 = vadd.f32 %v2417, %v2420
      %vm2422 = vweird.f32 %v2049
      %vm2423 = vweird.f32 %v2417
      %vm2424 = vmor %vm2422, %vm2423
      %v2425 = vsel %vm2424, %v2417, %v2421
      %v2426 = vand.u32 2147483647, %v2049
      %vm2427 = vcmp.eq.f32.partialorder %v2426, 8.507059e+37
      %v2428 = vand.u32 %v2049, 2147483648
      %v2429 = vor.u32 1.1754944e-38, %v2428
      %v2430 = vsel %vm2427, %v2429, %v2425
      %v2431 = vmul.f32 1.0, %v2430
      %v2432 = vrcp.pop %v2050
      %v2433 = vmul.f32 %v2050, %v2432
      %v2434 = vsub.f32 1.0, %v2433
      %v2435 = vmul.f32 %v2432, %v2434
      %v2436 = vadd.f32 %v2432, %v2435
      %vm2437 = vweird.f32 %v2050
      %vm2438 = vweird.f32 %v2432
      %vm2439 = vmor %vm2437, %vm2438
      %v2440 = vsel %vm2439, %v2432, %v2436
      %v2441 = vand.u32 2147483647, %v2050
      %vm2442 = vcmp.eq.f32.partialorder %v2441, 8.507059e+37
      %v2443 = vand.u32 %v2050, 2147483648
      %v2444 = vor.u32 1.1754944e-38, %v2443
      %v2445 = vsel %vm2442, %v2444, %v2440
      %v2446 = vmul.f32 1.0, %v2445
      %v2447 = vrcp.pop %v2051
      %v2448 = vmul.f32 %v2051, %v2447
      %v2449 = vsub.f32 1.0, %v2448
      %v2450 = vmul.f32 %v2447, %v2449
      %v2451 = vadd.f32 %v2447, %v2450
      %vm2452 = vweird.f32 %v2051
      %vm2453 = vweird.f32 %v2447
      %vm2454 = vmor %vm2452, %vm2453
      %v2455 = vsel %vm2454, %v2447, %v2451
      %v2456 = vand.u32 2147483647, %v2051
      %vm2457 = vcmp.eq.f32.partialorder %v2456, 8.507059e+37
      %v2458 = vand.u32 %v2051, 2147483648
      %v2459 = vor.u32 1.1754944e-38, %v2458
      %v2460 = vsel %vm2457, %v2459, %v2455
      %v2461 = vmul.f32 1.0, %v2460
      %v2462 = vrcp.pop %v2052
      %v2463 = vmul.f32 %v2052, %v2462
      %v2464 = vsub.f32 1.0, %v2463
      %v2465 = vmul.f32 %v2462, %v2464
      %v2466 = vadd.f32 %v2462, %v2465
      %vm2467 = vweird.f32 %v2052
      %vm2468 = vweird.f32 %v2462
      %vm2469 = vmor %vm2467, %vm2468
      %v2470 = vsel %vm2469, %v2462, %v2466
      %v2471 = vand.u32 2147483647, %v2052
      %vm2472 = vcmp.eq.f32.partialorder %v2471, 8.507059e+37
      %v2473 = vand.u32 %v2052, 2147483648
      %v2474 = vor.u32 1.1754944e-38, %v2473
      %v2475 = vsel %vm2472, %v2474, %v2470
      %v2476 = vmul.f32 1.0, %v2475
      %v2477 = vrcp.pop %v2053
      %v2478 = vmul.f32 %v2053, %v2477
      %v2479 = vsub.f32 1.0, %v2478
      %v2480 = vmul.f32 %v2477, %v2479
      %v2481 = vadd.f32 %v2477, %v2480
      %vm2482 = vweird.f32 %v2053
      %vm2483 = vweird.f32 %v2477
      %vm2484 = vmor %vm2482, %vm2483
      %v2485 = vsel %vm2484, %v2477, %v2481
      %v2486 = vand.u32 2147483647, %v2053
      %vm2487 = vcmp.eq.f32.partialorder %v2486, 8.507059e+37
      %v2488 = vand.u32 %v2053, 2147483648
      %v2489 = vor.u32 1.1754944e-38, %v2488
      %v2490 = vsel %vm2487, %v2489, %v2485
      %v2491 = vmul.f32 1.0, %v2490
      %v2492 = vrcp.pop %v2054
      %v2493 = vmul.f32 %v2054, %v2492
      %v2494 = vsub.f32 1.0, %v2493
      %v2495 = vmul.f32 %v2492, %v2494
      %v2496 = vadd.f32 %v2492, %v2495
      %vm2497 = vweird.f32 %v2054
      %vm2498 = vweird.f32 %v2492
      %vm2499 = vmor %vm2497, %vm2498
      %v2500 = vsel %vm2499, %v2492, %v2496
      %v2501 = vand.u32 2147483647, %v2054
      %vm2502 = vcmp.eq.f32.partialorder %v2501, 8.507059e+37
      %v2503 = vand.u32 %v2054, 2147483648
      %v2504 = vor.u32 1.1754944e-38, %v2503
      %v2505 = vsel %vm2502, %v2504, %v2500
      %v2506 = vmul.f32 1.0, %v2505
      %v2507 = vrcp.pop %v2055
      %v2508 = vmul.f32 %v2055, %v2507
      %v2509 = vsub.f32 1.0, %v2508
      %v2510 = vmul.f32 %v2507, %v2509
      %v2511 = vadd.f32 %v2507, %v2510
      %vm2512 = vweird.f32 %v2055
      %vm2513 = vweird.f32 %v2507
      %vm2514 = vmor %vm2512, %vm2513
      %v2515 = vsel %vm2514, %v2507, %v2511
      %v2516 = vand.u32 2147483647, %v2055
      %vm2517 = vcmp.eq.f32.partialorder %v2516, 8.507059e+37
      %v2518 = vand.u32 %v2055, 2147483648
      %v2519 = vor.u32 1.1754944e-38, %v2518
      %v2520 = vsel %vm2517, %v2519, %v2515
      %v2521 = vmul.f32 1.0, %v2520
      %v2522 = vrcp.pop %v2056
      %v2523 = vmul.f32 %v2056, %v2522
      %v2524 = vsub.f32 1.0, %v2523
      %v2525 = vmul.f32 %v2522, %v2524
      %v2526 = vadd.f32 %v2522, %v2525
      %vm2527 = vweird.f32 %v2056
      %vm2528 = vweird.f32 %v2522
      %vm2529 = vmor %vm2527, %vm2528
      %v2530 = vsel %vm2529, %v2522, %v2526
      %v2531 = vand.u32 2147483647, %v2056
      %vm2532 = vcmp.eq.f32.partialorder %v2531, 8.507059e+37
      %v2533 = vand.u32 %v2056, 2147483648
      %v2534 = vor.u32 1.1754944e-38, %v2533
      %v2535 = vsel %vm2532, %v2534, %v2530
      %v2536 = vmul.f32 1.0, %v2535
      %v2537 = vmul.f32 %v1897, %v2071
      %v2538 = vmul.f32 %v1898, %v2086
      %v2539 = vmul.f32 %v1899, %v2101
      %v2540 = vmul.f32 %v1900, %v2116
      %v2541 = vmul.f32 %v1901, %v2131
      %v2542 = vmul.f32 %v1902, %v2146
      %v2543 = vmul.f32 %v1903, %v2161
      %v2544 = vmul.f32 %v1904, %v2176
      %v2545 = vmul.f32 %v1905, %v2191
      %v2546 = vmul.f32 %v1906, %v2206
      %v2547 = vmul.f32 %v1907, %v2221
      %v2548 = vmul.f32 %v1908, %v2236
      %v2549 = vmul.f32 %v1909, %v2251
      %v2550 = vmul.f32 %v1910, %v2266
      %v2551 = vmul.f32 %v1911, %v2281
      %v2552 = vmul.f32 %v1912, %v2296
      %v2553 = vmul.f32 %v1913, %v2311
      %v2554 = vmul.f32 %v1914, %v2326
      %v2555 = vmul.f32 %v1915, %v2341
      %v2556 = vmul.f32 %v1916, %v2356
      %v2557 = vmul.f32 %v1917, %v2371
      %v2558 = vmul.f32 %v1918, %v2386
      %v2559 = vmul.f32 %v1919, %v2401
      %v2560 = vmul.f32 %v1920, %v2416
      %v2561 = vmul.f32 %v1921, %v2431
      %v2562 = vmul.f32 %v1922, %v2446
      %v2563 = vmul.f32 %v1923, %v2461
      %v2564 = vmul.f32 %v1924, %v2476
      %v2565 = vmul.f32 %v1925, %v2491
      %v2566 = vmul.f32 %v1926, %v2506
      %v2567 = vmul.f32 %v1927, %v2521
      %v2568 = vmul.f32 %v1928, %v2536
      %2569 = vst.msk [vmem:[%s197] sm:$0xff] %vm451, %v2537
      %2570 = vst.msk [vmem:[%s197 + $0x8] sm:$0xff] %vm451, %v2538
      %2571 = vst.msk [vmem:[%s197 + $0x10] sm:$0xff] %vm451, %v2539
      %2572 = vst.msk [vmem:[%s197 + $0x18] sm:$0xff] %vm451, %v2540
      %2573 = vst.msk [vmem:[%s197 + $0x20] sm:$0xff] %vm451, %v2541
      %2574 = vst.msk [vmem:[%s197 + $0x28] sm:$0xff] %vm451, %v2542
      %2575 = vst.msk [vmem:[%s197 + $0x30] sm:$0xff] %vm451, %v2543
      %2576 = vst.msk [vmem:[%s197 + $0x38] sm:$0xff] %vm451, %v2544
      %2577 = vst.msk [vmem:[%s197 + $0x40] sm:$0xff] %vm451, %v2545
      %2578 = vst.msk [vmem:[%s197 + $0x48] sm:$0xff] %vm451, %v2546
      %2579 = vst.msk [vmem:[%s197 + $0x50] sm:$0xff] %vm451, %v2547
      %2580 = vst.msk [vmem:[%s197 + $0x58] sm:$0xff] %vm451, %v2548
      %2581 = vst.msk [vmem:[%s197 + $0x60] sm:$0xff] %vm451, %v2549
      %2582 = vst.msk [vmem:[%s197 + $0x68] sm:$0xff] %vm451, %v2550
      %2583 = vst.msk [vmem:[%s197 + $0x70] sm:$0xff] %vm451, %v2551
      %2584 = vst.msk [vmem:[%s197 + $0x78] sm:$0xff] %vm451, %v2552
      %2585 = vst.msk [vmem:[%s197 + $0x80] sm:$0xff] %vm451, %v2553
      %2586 = vst.msk [vmem:[%s197 + $0x88] sm:$0xff] %vm451, %v2554
      %2587 = vst.msk [vmem:[%s197 + $0x90] sm:$0xff] %vm451, %v2555
      %2588 = vst.msk [vmem:[%s197 + $0x98] sm:$0xff] %vm451, %v2556
      %2589 = vst.msk [vmem:[%s197 + $0xa0] sm:$0xff] %vm451, %v2557
      %2590 = vst.msk [vmem:[%s197 + $0xa8] sm:$0xff] %vm451, %v2558
      %2591 = vst.msk [vmem:[%s197 + $0xb0] sm:$0xff] %vm451, %v2559
      %2592 = vst.msk [vmem:[%s197 + $0xb8] sm:$0xff] %vm451, %v2560
      %2593 = vst.msk [vmem:[%s197 + $0xc0] sm:$0xff] %vm451, %v2561
      %2594 = vst.msk [vmem:[%s197 + $0xc8] sm:$0xff] %vm451, %v2562
      %2595 = vst.msk [vmem:[%s197 + $0xd0] sm:$0xff] %vm451, %v2563
      %2596 = vst.msk [vmem:[%s197 + $0xd8] sm:$0xff] %vm451, %v2564
      %2597 = vst.msk [vmem:[%s197 + $0xe0] sm:$0xff] %vm451, %v2565
      %2598 = vst.msk [vmem:[%s197 + $0xe8] sm:$0xff] %vm451, %v2566
      %2599 = vst.msk [vmem:[%s197 + $0xf0] sm:$0xff] %vm451, %v2567
      %2600 = vst.msk [vmem:[%s197 + $0xf8] sm:$0xff] %vm451, %v2568
      %p2601 = scmp.lt.s32.totalorder %s15, 1
      %s2602 = scalar_select %p2601, %s15, 1
      %s2603 = smul.addr %s2602, 32
      %s2604 = smul.addr %s2603, 8
      %s2605 = scalar_lea.vmem %s4, %s2604
      // Predicated region
      $region37: #{mobilevit_block_forward.8} parent=35 // pred_check
        %p2606 = pneg %p122
      $region38: #{mobilevit_block_forward.8} parent=35 // pred_check_branch
        %2608 = sbr.rel (%p2606) target = $region40
      $region39: #{mobilevit_block_forward.8} parent=35 // pred_region
        _
      $region40: #{mobilevit_block_forward.8} parent=35 // pred_fallthru
        _
    $region36: #{mobilevit_block_forward.8} parent=5 // pred_fallthru
      _
    %p2609 = scmp.le.s32.totalorder 2, %s10
    // Predicated region
    $region41: #{mobilevit_block_forward.8} parent=5 // pred_check
      %p2610 = pneg %p2609
    $region42: #{mobilevit_block_forward.8} parent=5 // pred_check_branch
      %2612 = sbr.rel (%p2610) target = $region44
    $region43: #{mobilevit_block_forward.8} parent=5 // pred_region
      %s2613 = ssub.s32 %s10, 2
      // Predicated region
      $region45: #{mobilevit_block_forward.8} parent=43 // pred_check
        %p2614 = pneg %p128
      $region46: #{mobilevit_block_forward.8} parent=43 // pred_check_branch
        %2616 = sbr.rel (%p2614) target = $region48
      $region47: #{mobilevit_block_forward.8} parent=43 // pred_region
        %p2617 = scmp.lt.s32.totalorder %s16, 1
        %s2618 = scalar_select %p2617, %s16, 1
        %s2619 = smul.addr %s2618, 32
        %s2620 = smul.addr %s2619, 8
        %s2621 = scalar_lea.vmem %s4, %s2620
      $region48: #{mobilevit_block_forward.8} parent=43 // pred_fallthru
        _
    $region44: #{mobilevit_block_forward.8} parent=5 // pred_fallthru
      _
  $region6: #{mobilevit_block_forward.8} parent=0 // loop_footer
    %s14 = sadd.s32 1, %s10
  $region7: #{mobilevit_block_forward.8} parent=0 // loop_footer_branch
    %9 = sbr.rel target = $region3
  $region8: #{mobilevit_block_forward.8} parent=0 // loop_exit
    _

// kernel: mobilevit_block_forward.14
$region0: #{mobilevit_block_forward.14}
  #allocation0 [shape = 'u32[]', space=smem, size = 0x4, offset = 0x4, fixed_abs, tag = 'smem constant byte address 0x4 - core index']
  #allocation1 [shape = 'u32[72,128]{1,0:T(1,128)}', space=vmem, size = 0x9000, scoped, tag = 'internal scratch']
  %s0 = inlined_call_operand.vmem [shape: f32[512,16], index: 0, kind: input, shape index: {}]
  %s1 = inlined_call_operand.vmem [shape: f32[16,8], index: 1, kind: input, shape index: {}]
  %s2 = inlined_call_operand.vmem [shape: f32[1,16], index: 2, kind: input, shape index: {}]
  %s3 = inlined_call_operand.vmem [shape: f32[1,16], index: 3, kind: input, shape index: {}]
  %s4 = inlined_call_operand.vmem [shape: f32[1,8], index: 4, kind: input, shape index: {}]
  %s5 = inlined_call_operand.vmem [shape: f32[1,8], index: 5, kind: input, shape index: {}]
  %s6 = inlined_call_operand.vmem [shape: f32[512,8], index: 6, kind: output, shape index: {}]
  %s7 = sld [smem:[#allocation0]]
  $region57: #{mobilevit_block_forward.14} parent=0
    _
  %s9 = ssub.s32 1, %s7
  %s10 = scalar_select 0, %s9, %s7
  loop: start=0, step=1, limit=4
  $region2: #{mobilevit_block_forward.14} parent=0 // loop_pre_header
    _
  $region3: #{mobilevit_block_forward.14} parent=0 // loop_header
    %s12 = sphi 0, %s16
    %p13 = scmp.ge.s32.totalorder %s12, 4
    %s19 = sphi 0, %s31
    %s20 = sphi 0, %s27
    %s21 = sphi 0, %s19
    %s22 = sphi 0, %s20
    %s23 = sphi 0, %s21
    %s24 = sphi 0, %s22
    %s34 = sphi 0, %s36
    %s37 = sphi 0, %s34
    %s38 = sphi 0, %s37
    %s54 = sphi 0, %s38
    %s60 = sphi 0, %s62
    %s63 = sphi 0, %s60
    %s64 = sphi 0, %s63
    %s80 = sphi 0, %s64
    %s84 = sphi 0, %s84
    %s86 = sphi 0, %s84
    %s87 = sphi 0, %s86
    %s101 = sphi 0, %s87
    %s105 = sphi 0, %s105
    %s107 = sphi 0, %s105
    %s108 = sphi 0, %s107
    %s122 = sphi 0, %s108
    %s128 = sphi 0, %s130
    %s131 = sphi 0, %s128
    %s132 = sphi 0, %s131
    %s148 = sphi 0, %s132
    %s154 = sphi 0, %s156
    %s157 = sphi 0, %s154
    %s158 = sphi 0, %s157
    %s174 = sphi 0, %s158
    %s182 = sphi 0, %s184
    %s185 = sphi 0, %s182
    %s186 = sphi 0, %s185
    %s202 = sphi 0, %s186
  $region4: #{mobilevit_block_forward.14} parent=0 // loop_header_branch
    %15 = sbr.rel (%p13) target = $region8
  $region5: #{mobilevit_block_forward.14} parent=0 // loop_body
    %s17 = ssub.s32 %s12, 1
    %s18 = ssub.s32 %s12, 2
    %s25 = sadd.s32 1, %s20
    %p26 = scmp.ge.s32.totalorder %s25, 1
    %s27 = scalar_select %p26, 0, %s25
    %s28 = sadd.s32 1, %s19
    %s29 = scalar_select %p26, %s28, %s19
    %p30 = scmp.ge.s32.totalorder %s29, 2
    %s31 = scalar_select %p30, 0, %s29
    %s32 = ssub.s32 %s19, %s31
    %p33 = scmp.eq.s32.totalorder %s32, 0
    %s35 = sadd.s32 %s34, 1
    %s36 = scalar_select %p33, %s34, %s35
    %p39 = pneg %p33
    %p40 = scmp.eq.s32.totalorder %s12, 1
    %p41 = por %p39, %p40
    %p42 = scmp.ne.s32.totalorder %s34, %s37
    %p43 = scmp.eq.s32.totalorder %s12, 0
    %p44 = por %p42, %p43
    %p45 = scmp.ne.s32.totalorder %s34, %s37
    %p46 = scmp.eq.s32.totalorder %s17, 1
    %p47 = por %p45, %p46
    %p48 = scmp.ne.s32.totalorder %s37, %s38
    %p49 = scmp.eq.s32.totalorder %s17, 0
    %p50 = por %p48, %p49
    %p51 = scmp.ne.s32.totalorder %s37, %s38
    %p52 = scmp.eq.s32.totalorder %s18, 1
    %p53 = por %p51, %p52
    %p55 = scmp.ne.s32.totalorder %s38, %s54
    %p56 = scmp.eq.s32.totalorder %s18, 0
    %p57 = por %p55, %p56
    %s58 = ssub.s32 %s20, %s27
    %p59 = scmp.eq.s32.totalorder %s58, 0
    %s61 = sadd.s32 %s60, 1
    %s62 = scalar_select %p59, %s60, %s61
    %p65 = pneg %p59
    %p66 = scmp.eq.s32.totalorder %s12, 1
    %p67 = por %p65, %p66
    %p68 = scmp.ne.s32.totalorder %s60, %s63
    %p69 = scmp.eq.s32.totalorder %s12, 0
    %p70 = por %p68, %p69
    %p71 = scmp.ne.s32.totalorder %s60, %s63
    %p72 = scmp.eq.s32.totalorder %s17, 1
    %p73 = por %p71, %p72
    %p74 = scmp.ne.s32.totalorder %s63, %s64
    %p75 = scmp.eq.s32.totalorder %s17, 0
    %p76 = por %p74, %p75
    %p77 = scmp.ne.s32.totalorder %s63, %s64
    %p78 = scmp.eq.s32.totalorder %s18, 1
    %p79 = por %p77, %p78
    %p81 = scmp.ne.s32.totalorder %s64, %s80
    %p82 = scmp.eq.s32.totalorder %s18, 0
    %p83 = por %p81, %p82
    %s85 = sadd.s32 %s84, 1
    %p88 = scmp.eq.s32.totalorder %s12, 1
    %p89 = scmp.ne.s32.totalorder %s84, %s86
    %p90 = scmp.eq.s32.totalorder %s12, 0
    %p91 = por %p89, %p90
    %p92 = scmp.ne.s32.totalorder %s84, %s86
    %p93 = scmp.eq.s32.totalorder %s17, 1
    %p94 = por %p92, %p93
    %p95 = scmp.ne.s32.totalorder %s86, %s87
    %p96 = scmp.eq.s32.totalorder %s17, 0
    %p97 = por %p95, %p96
    %p98 = scmp.ne.s32.totalorder %s86, %s87
    %p99 = scmp.eq.s32.totalorder %s18, 1
    %p100 = por %p98, %p99
    %p102 = scmp.ne.s32.totalorder %s87, %s101
    %p103 = scmp.eq.s32.totalorder %s18, 0
    %p104 = por %p102, %p103
    %s106 = sadd.s32 %s105, 1
    %p109 = scmp.eq.s32.totalorder %s12, 1
    %p110 = scmp.ne.s32.totalorder %s105, %s107
    %p111 = scmp.eq.s32.totalorder %s12, 0
    %p112 = por %p110, %p111
    %p113 = scmp.ne.s32.totalorder %s105, %s107
    %p114 = scmp.eq.s32.totalorder %s17, 1
    %p115 = por %p113, %p114
    %p116 = scmp.ne.s32.totalorder %s107, %s108
    %p117 = scmp.eq.s32.totalorder %s17, 0
    %p118 = por %p116, %p117
    %p119 = scmp.ne.s32.totalorder %s107, %s108
    %p120 = scmp.eq.s32.totalorder %s18, 1
    %p121 = por %p119, %p120
    %p123 = scmp.ne.s32.totalorder %s108, %s122
    %p124 = scmp.eq.s32.totalorder %s18, 0
    %p125 = por %p123, %p124
    %s126 = ssub.s32 %s20, %s27
    %p127 = scmp.eq.s32.totalorder %s126, 0
    %s129 = sadd.s32 %s128, 1
    %s130 = scalar_select %p127, %s128, %s129
    %p133 = pneg %p127
    %p134 = scmp.eq.s32.totalorder %s12, 1
    %p135 = por %p133, %p134
    %p136 = scmp.ne.s32.totalorder %s128, %s131
    %p137 = scmp.eq.s32.totalorder %s12, 0
    %p138 = por %p136, %p137
    %p139 = scmp.ne.s32.totalorder %s128, %s131
    %p140 = scmp.eq.s32.totalorder %s17, 1
    %p141 = por %p139, %p140
    %p142 = scmp.ne.s32.totalorder %s131, %s132
    %p143 = scmp.eq.s32.totalorder %s17, 0
    %p144 = por %p142, %p143
    %p145 = scmp.ne.s32.totalorder %s131, %s132
    %p146 = scmp.eq.s32.totalorder %s18, 1
    %p147 = por %p145, %p146
    %p149 = scmp.ne.s32.totalorder %s132, %s148
    %p150 = scmp.eq.s32.totalorder %s18, 0
    %p151 = por %p149, %p150
    %s152 = ssub.s32 %s20, %s27
    %p153 = scmp.eq.s32.totalorder %s152, 0
    %s155 = sadd.s32 %s154, 1
    %s156 = scalar_select %p153, %s154, %s155
    %p159 = pneg %p153
    %p160 = scmp.eq.s32.totalorder %s12, 1
    %p161 = por %p159, %p160
    %p162 = scmp.ne.s32.totalorder %s154, %s157
    %p163 = scmp.eq.s32.totalorder %s12, 0
    %p164 = por %p162, %p163
    %p165 = scmp.ne.s32.totalorder %s154, %s157
    %p166 = scmp.eq.s32.totalorder %s17, 1
    %p167 = por %p165, %p166
    %p168 = scmp.ne.s32.totalorder %s157, %s158
    %p169 = scmp.eq.s32.totalorder %s17, 0
    %p170 = por %p168, %p169
    %p171 = scmp.ne.s32.totalorder %s157, %s158
    %p172 = scmp.eq.s32.totalorder %s18, 1
    %p173 = por %p171, %p172
    %p175 = scmp.ne.s32.totalorder %s158, %s174
    %p176 = scmp.eq.s32.totalorder %s18, 0
    %p177 = por %p175, %p176
    %s178 = ssub.s32 %s19, %s31
    %s179 = ssub.s32 %s20, %s27
    %s180 = sor.u32 %s178, %s179
    %p181 = scmp.eq.s32.totalorder %s180, 0
    %s183 = sadd.s32 %s182, 1
    %s184 = scalar_select %p181, %s182, %s183
    %p187 = pneg %p181
    %p188 = scmp.eq.s32.totalorder %s12, 1
    %p189 = por %p187, %p188
    %p190 = scmp.ne.s32.totalorder %s182, %s185
    %p191 = scmp.eq.s32.totalorder %s12, 0
    %p192 = por %p190, %p191
    %p193 = scmp.ne.s32.totalorder %s182, %s185
    %p194 = scmp.eq.s32.totalorder %s17, 1
    %p195 = por %p193, %p194
    %p196 = scmp.ne.s32.totalorder %s185, %s186
    %p197 = scmp.eq.s32.totalorder %s17, 0
    %p198 = por %p196, %p197
    %p199 = scmp.ne.s32.totalorder %s185, %s186
    %p200 = scmp.eq.s32.totalorder %s18, 1
    %p201 = por %p199, %p200
    %p203 = scmp.ne.s32.totalorder %s186, %s202
    %p204 = scmp.eq.s32.totalorder %s18, 0
    %p205 = por %p203, %p204
    %p206 = scmp.le.s32.totalorder 1, %s12
    %p207 = scmp.lt.s32.totalorder %s12, 3
    %p208 = pnand %p206, %p207
    %p209 = pneg %p208
    // Predicated region
    $region9: #{mobilevit_block_forward.14} parent=5 // pred_check
      _
    $region10: #{mobilevit_block_forward.14} parent=5 // pred_check_branch
      %211 = sbr.rel (%p208) target = $region12
    $region11: #{mobilevit_block_forward.14} parent=5 // pred_region
      %s212 = ssub.s32 %s12, 1
      // Predicated region
      $region13: #{mobilevit_block_forward.14} parent=11 // pred_check
        %p213 = pneg %p76
      $region14: #{mobilevit_block_forward.14} parent=11 // pred_check_branch
        %215 = sbr.rel (%p213) target = $region16
      $region15: #{mobilevit_block_forward.14} parent=11 // pred_region
        %p216 = scmp.lt.s32.totalorder %s22, 0
        %s217 = scalar_select %p216, %s22, 0
        %s218 = smul.addr %s217, 8
        %s219 = scalar_lea.vmem %s1, %s218
      $region16: #{mobilevit_block_forward.14} parent=11 // pred_fallthru
        _
      // Predicated region
      $region17: #{mobilevit_block_forward.14} parent=11 // pred_check
        %p220 = pneg %p97
      $region18: #{mobilevit_block_forward.14} parent=11 // pred_check_branch
        %222 = sbr.rel (%p220) target = $region20
      $region19: #{mobilevit_block_forward.14} parent=11 // pred_region
        _
      $region20: #{mobilevit_block_forward.14} parent=11 // pred_fallthru
        _
      // Predicated region
      $region21: #{mobilevit_block_forward.14} parent=11 // pred_check
        %p223 = pneg %p118
      $region22: #{mobilevit_block_forward.14} parent=11 // pred_check_branch
        %225 = sbr.rel (%p223) target = $region24
      $region23: #{mobilevit_block_forward.14} parent=11 // pred_region
        _
      $region24: #{mobilevit_block_forward.14} parent=11 // pred_fallthru
        _
      // Predicated region
      $region25: #{mobilevit_block_forward.14} parent=11 // pred_check
        %p226 = pneg %p144
      $region26: #{mobilevit_block_forward.14} parent=11 // pred_check_branch
        %228 = sbr.rel (%p226) target = $region28
      $region27: #{mobilevit_block_forward.14} parent=11 // pred_region
        %p229 = scmp.lt.s32.totalorder %s22, 0
        %s230 = scalar_select %p229, %s22, 0
        %s231 = scalar_lea.vmem %s4, %s230
      $region28: #{mobilevit_block_forward.14} parent=11 // pred_fallthru
        _
      // Predicated region
      $region29: #{mobilevit_block_forward.14} parent=11 // pred_check
        %p232 = pneg %p170
      $region30: #{mobilevit_block_forward.14} parent=11 // pred_check_branch
        %234 = sbr.rel (%p232) target = $region32
      $region31: #{mobilevit_block_forward.14} parent=11 // pred_region
        %p235 = scmp.lt.s32.totalorder %s22, 0
        %s236 = scalar_select %p235, %s22, 0
        %s237 = scalar_lea.vmem %s5, %s236
      $region32: #{mobilevit_block_forward.14} parent=11 // pred_fallthru
        _
    $region12: #{mobilevit_block_forward.14} parent=5 // pred_fallthru
      _
    %p238 = scmp.lt.s32.totalorder %s12, 2
    // Predicated region
    $region33: #{mobilevit_block_forward.14} parent=5 // pred_check
      %p239 = pneg %p238
    $region34: #{mobilevit_block_forward.14} parent=5 // pred_check_branch
      %241 = sbr.rel (%p239) target = $region36
    $region35: #{mobilevit_block_forward.14} parent=5 // pred_region
      // Predicated region
      $region37: #{mobilevit_block_forward.14} parent=35 // pred_check
        %p242 = pneg %p44
      $region38: #{mobilevit_block_forward.14} parent=35 // pred_check_branch
        %244 = sbr.rel (%p242) target = $region40
      $region39: #{mobilevit_block_forward.14} parent=35 // pred_region
        %s245 = smul.u32 32, %s19
        %p246 = scmp.lt.s32.totalorder %s245, 63
        %s247 = scalar_select %p246, %s245, 63
        %s248 = smul.addr %s247, 8
        %s249 = scalar_lea.vmem %s0, %s248
        %s250 = smul.u32 32, %s19
      $region40: #{mobilevit_block_forward.14} parent=35 // pred_fallthru
        _
    $region36: #{mobilevit_block_forward.14} parent=5 // pred_fallthru
      _
    %p251 = scmp.le.s32.totalorder 1, %s12
    %p252 = scmp.lt.s32.totalorder %s12, 3
    %p253 = pnand %p251, %p252
    %p254 = pneg %p253
    // Predicated region
    $region41: #{mobilevit_block_forward.14} parent=5 // pred_check
      _
    $region42: #{mobilevit_block_forward.14} parent=5 // pred_check_branch
      %256 = sbr.rel (%p253) target = $region44
    $region43: #{mobilevit_block_forward.14} parent=5 // pred_region
      %s257 = ssub.s32 %s12, 1
      %s258 = smul.u32 32, %s21
      %p259 = scmp.lt.s32.totalorder %s258, 63
      %s260 = scalar_select %p259, %s258, 63
      %s261 = smul.addr %s260, 8
      %s262 = scalar_lea.vmem %s0, %s261
      %p263 = pneg %p50
      %p264 = pneg %p47
      %p265 = scmp.lt.s32.totalorder %s22, 0
      %s266 = scalar_select %p265, %s22, 0
      %s267 = smul.addr %s266, 8
      %s268 = scalar_lea.vmem %s1, %s267
      %p269 = pneg %p76
      %p270 = pneg %p73
      %p271 = pneg %p97
      %p272 = pneg %p94
      %p273 = pneg %p118
      %p274 = pneg %p115
      %p275 = scmp.lt.s32.totalorder %s22, 0
      %s276 = scalar_select %p275, %s22, 0
      %s277 = scalar_lea.vmem %s4, %s276
      %p278 = pneg %p144
      %p279 = pneg %p141
      %p280 = scmp.lt.s32.totalorder %s22, 0
      %s281 = scalar_select %p280, %s22, 0
      %s282 = scalar_lea.vmem %s5, %s281
      %p283 = pneg %p170
      %p284 = pneg %p167
      %p285 = pneg %p198
      %p286 = pneg %p195
      %s287 = smul.u32 32, %s21
      %p288 = scmp.lt.s32.totalorder %s287, 63
      %s289 = scalar_select %p288, %s287, 63
      %p290 = scmp.lt.s32.totalorder %s22, 0
      %s291 = scalar_select %p290, %s22, 0
      %s292 = sadd.s32 %s291, %s289
      %s293 = smul.addr %s292, 8
      %s294 = scalar_lea.vmem %s6, %s293
      %s295 = smul.u32 32, %s21
      %p296 = scmp.lt.s32.totalorder %s295, 63
      %s297 = scalar_select %p296, %s295, 63
      %s298 = smul.addr %s297, 8
      %s299 = scalar_lea.vmem %s0, %s298
      %s300 = smul.u32 32, %s21
      %p301 = scmp.lt.s32.totalorder %s22, 0
      %s302 = scalar_select %p301, %s22, 0
      %s303 = smul.addr %s302, 8
      %s304 = scalar_lea.vmem %s1, %s303
      %p305 = scmp.lt.s32.totalorder %s22, 0
      %s306 = scalar_select %p305, %s22, 0
      %s307 = scalar_lea.vmem %s4, %s306
      %p308 = scmp.lt.s32.totalorder %s22, 0
      %s309 = scalar_select %p308, %s22, 0
      %s310 = scalar_lea.vmem %s5, %s309
      %s311 = smul.u32 32, %s21
      %p312 = scmp.lt.s32.totalorder %s311, 63
      %s313 = scalar_select %p312, %s311, 63
      %p314 = scmp.lt.s32.totalorder %s22, 0
      %s315 = scalar_select %p314, %s22, 0
      %s316 = sadd.s32 %s315, %s313
      %s317 = smul.addr %s316, 8
      %s318 = scalar_lea.vmem %s6, %s317
      %s319 = smul.u32 32, %s21
      %v321 = vld [vmem:[%s299] sm:$0xff]
      %v322 = vld [vmem:[%s299 + $0x8] sm:$0xff]
      %v323 = vld [vmem:[%s299 + $0x10] sm:$0xff]
      %v324 = vld [vmem:[%s299 + $0x18] sm:$0xff]
      %v325 = vld [vmem:[%s299 + $0x20] sm:$0xff]
      %v326 = vld [vmem:[%s299 + $0x28] sm:$0xff]
      %v327 = vld [vmem:[%s299 + $0x30] sm:$0xff]
      %v328 = vld [vmem:[%s299 + $0x38] sm:$0xff]
      %v329 = vld [vmem:[%s299 + $0x40] sm:$0xff]
      %v330 = vld [vmem:[%s299 + $0x48] sm:$0xff]
      %v331 = vld [vmem:[%s299 + $0x50] sm:$0xff]
      %v332 = vld [vmem:[%s299 + $0x58] sm:$0xff]
      %v333 = vld [vmem:[%s299 + $0x60] sm:$0xff]
      %v334 = vld [vmem:[%s299 + $0x68] sm:$0xff]
      %v335 = vld [vmem:[%s299 + $0x70] sm:$0xff]
      %v336 = vld [vmem:[%s299 + $0x78] sm:$0xff]
      %v337 = vld [vmem:[%s299 + $0x80] sm:$0xff]
      %v338 = vld [vmem:[%s299 + $0x88] sm:$0xff]
      %v339 = vld [vmem:[%s299 + $0x90] sm:$0xff]
      %v340 = vld [vmem:[%s299 + $0x98] sm:$0xff]
      %v341 = vld [vmem:[%s299 + $0xa0] sm:$0xff]
      %v342 = vld [vmem:[%s299 + $0xa8] sm:$0xff]
      %v343 = vld [vmem:[%s299 + $0xb0] sm:$0xff]
      %v344 = vld [vmem:[%s299 + $0xb8] sm:$0xff]
      %v345 = vld [vmem:[%s299 + $0xc0] sm:$0xff]
      %v346 = vld [vmem:[%s299 + $0xc8] sm:$0xff]
      %v347 = vld [vmem:[%s299 + $0xd0] sm:$0xff]
      %v348 = vld [vmem:[%s299 + $0xd8] sm:$0xff]
      %v349 = vld [vmem:[%s299 + $0xe0] sm:$0xff]
      %v350 = vld [vmem:[%s299 + $0xe8] sm:$0xff]
      %v351 = vld [vmem:[%s299 + $0xf0] sm:$0xff]
      %v352 = vld [vmem:[%s299 + $0xf8] sm:$0xff]
      %vm353 = vcmask 130048
      %v354 = vsel %vm353, %v321, 0.0
      %355 = vadd.xlane.f32.xlu0 %v354
      %v356 = vpop.xlane.xlu0 %355
      %v357 = vsel %vm353, %v322, 0.0
      %358 = vadd.xlane.f32.xlu0 %v357
      %v359 = vpop.xlane.xlu0 %358
      %v360 = vsel %vm353, %v323, 0.0
      %361 = vadd.xlane.f32.xlu0 %v360
      %v362 = vpop.xlane.xlu0 %361
      %v363 = vsel %vm353, %v324, 0.0
      %364 = vadd.xlane.f32.xlu0 %v363
      %v365 = vpop.xlane.xlu0 %364
      %v366 = vsel %vm353, %v325, 0.0
      %367 = vadd.xlane.f32.xlu0 %v366
      %v368 = vpop.xlane.xlu0 %367
      %v369 = vsel %vm353, %v326, 0.0
      %370 = vadd.xlane.f32.xlu0 %v369
      %v371 = vpop.xlane.xlu0 %370
      %v372 = vsel %vm353, %v327, 0.0
      %373 = vadd.xlane.f32.xlu0 %v372
      %v374 = vpop.xlane.xlu0 %373
      %v375 = vsel %vm353, %v328, 0.0
      %376 = vadd.xlane.f32.xlu0 %v375
      %v377 = vpop.xlane.xlu0 %376
      %v378 = vsel %vm353, %v329, 0.0
      %379 = vadd.xlane.f32.xlu0 %v378
      %v380 = vpop.xlane.xlu0 %379
      %v381 = vsel %vm353, %v330, 0.0
      %382 = vadd.xlane.f32.xlu0 %v381
      %v383 = vpop.xlane.xlu0 %382
      %v384 = vsel %vm353, %v331, 0.0
      %385 = vadd.xlane.f32.xlu0 %v384
      %v386 = vpop.xlane.xlu0 %385
      %v387 = vsel %vm353, %v332, 0.0
      %388 = vadd.xlane.f32.xlu0 %v387
      %v389 = vpop.xlane.xlu0 %388
      %v390 = vsel %vm353, %v333, 0.0
      %391 = vadd.xlane.f32.xlu0 %v390
      %v392 = vpop.xlane.xlu0 %391
      %v393 = vsel %vm353, %v334, 0.0
      %394 = vadd.xlane.f32.xlu0 %v393
      %v395 = vpop.xlane.xlu0 %394
      %v396 = vsel %vm353, %v335, 0.0
      %397 = vadd.xlane.f32.xlu0 %v396
      %v398 = vpop.xlane.xlu0 %397
      %v399 = vsel %vm353, %v336, 0.0
      %400 = vadd.xlane.f32.xlu0 %v399
      %v401 = vpop.xlane.xlu0 %400
      %v402 = vsel %vm353, %v337, 0.0
      %403 = vadd.xlane.f32.xlu0 %v402
      %v404 = vpop.xlane.xlu0 %403
      %v405 = vsel %vm353, %v338, 0.0
      %406 = vadd.xlane.f32.xlu0 %v405
      %v407 = vpop.xlane.xlu0 %406
      %v408 = vsel %vm353, %v339, 0.0
      %409 = vadd.xlane.f32.xlu0 %v408
      %v410 = vpop.xlane.xlu0 %409
      %v411 = vsel %vm353, %v340, 0.0
      %412 = vadd.xlane.f32.xlu0 %v411
      %v413 = vpop.xlane.xlu0 %412
      %v414 = vsel %vm353, %v341, 0.0
      %415 = vadd.xlane.f32.xlu0 %v414
      %v416 = vpop.xlane.xlu0 %415
      %v417 = vsel %vm353, %v342, 0.0
      %418 = vadd.xlane.f32.xlu0 %v417
      %v419 = vpop.xlane.xlu0 %418
      %v420 = vsel %vm353, %v343, 0.0
      %421 = vadd.xlane.f32.xlu0 %v420
      %v422 = vpop.xlane.xlu0 %421
      %v423 = vsel %vm353, %v344, 0.0
      %424 = vadd.xlane.f32.xlu0 %v423
      %v425 = vpop.xlane.xlu0 %424
      %v426 = vsel %vm353, %v345, 0.0
      %427 = vadd.xlane.f32.xlu0 %v426
      %v428 = vpop.xlane.xlu0 %427
      %v429 = vsel %vm353, %v346, 0.0
      %430 = vadd.xlane.f32.xlu0 %v429
      %v431 = vpop.xlane.xlu0 %430
      %v432 = vsel %vm353, %v347, 0.0
      %433 = vadd.xlane.f32.xlu0 %v432
      %v434 = vpop.xlane.xlu0 %433
      %v435 = vsel %vm353, %v348, 0.0
      %436 = vadd.xlane.f32.xlu0 %v435
      %v437 = vpop.xlane.xlu0 %436
      %v438 = vsel %vm353, %v349, 0.0
      %439 = vadd.xlane.f32.xlu0 %v438
      %v440 = vpop.xlane.xlu0 %439
      %v441 = vsel %vm353, %v350, 0.0
      %442 = vadd.xlane.f32.xlu0 %v441
      %v443 = vpop.xlane.xlu0 %442
      %v444 = vsel %vm353, %v351, 0.0
      %445 = vadd.xlane.f32.xlu0 %v444
      %v446 = vpop.xlane.xlu0 %445
      %v447 = vsel %vm353, %v352, 0.0
      %448 = vadd.xlane.f32.xlu0 %v447
      %v449 = vpop.xlane.xlu0 %448
      %v450 = vrcp.pop 16.0
      %v451 = vmul.f32 16.0, %v450
      %v452 = vsub.f32 1.0, %v451
      %v453 = vmul.f32 %v450, %v452
      %v454 = vadd.f32 %v450, %v453
      %vm455 = vweird.f32 %v450
      %v456 = vsel %vm455, %v450, %v454
      %v457 = vmul.f32 %v356, %v456
      %v458 = vmul.f32 %v359, %v456
      %v459 = vmul.f32 %v362, %v456
      %v460 = vmul.f32 %v365, %v456
      %v461 = vmul.f32 %v368, %v456
      %v462 = vmul.f32 %v371, %v456
      %v463 = vmul.f32 %v374, %v456
      %v464 = vmul.f32 %v377, %v456
      %v465 = vmul.f32 %v380, %v456
      %v466 = vmul.f32 %v383, %v456
      %v467 = vmul.f32 %v386, %v456
      %v468 = vmul.f32 %v389, %v456
      %v469 = vmul.f32 %v392, %v456
      %v470 = vmul.f32 %v395, %v456
      %v471 = vmul.f32 %v398, %v456
      %v472 = vmul.f32 %v401, %v456
      %v473 = vmul.f32 %v404, %v456
      %v474 = vmul.f32 %v407, %v456
      %v475 = vmul.f32 %v410, %v456
      %v476 = vmul.f32 %v413, %v456
      %v477 = vmul.f32 %v416, %v456
      %v478 = vmul.f32 %v419, %v456
      %v479 = vmul.f32 %v422, %v456
      %v480 = vmul.f32 %v425, %v456
      %v481 = vmul.f32 %v428, %v456
      %v482 = vmul.f32 %v431, %v456
      %v483 = vmul.f32 %v434, %v456
      %v484 = vmul.f32 %v437, %v456
      %v485 = vmul.f32 %v440, %v456
      %v486 = vmul.f32 %v443, %v456
      %v487 = vmul.f32 %v446, %v456
      %v488 = vmul.f32 %v449, %v456
      %v489 = vsub.f32 %v321, %v457
      %v490 = vsub.f32 %v322, %v458
      %v491 = vsub.f32 %v323, %v459
      %v492 = vsub.f32 %v324, %v460
      %v493 = vsub.f32 %v325, %v461
      %v494 = vsub.f32 %v326, %v462
      %v495 = vsub.f32 %v327, %v463
      %v496 = vsub.f32 %v328, %v464
      %v497 = vsub.f32 %v329, %v465
      %v498 = vsub.f32 %v330, %v466
      %v499 = vsub.f32 %v331, %v467
      %v500 = vsub.f32 %v332, %v468
      %v501 = vsub.f32 %v333, %v469
      %v502 = vsub.f32 %v334, %v470
      %v503 = vsub.f32 %v335, %v471
      %v504 = vsub.f32 %v336, %v472
      %v505 = vsub.f32 %v337, %v473
      %v506 = vsub.f32 %v338, %v474
      %v507 = vsub.f32 %v339, %v475
      %v508 = vsub.f32 %v340, %v476
      %v509 = vsub.f32 %v341, %v477
      %v510 = vsub.f32 %v342, %v478
      %v511 = vsub.f32 %v343, %v479
      %v512 = vsub.f32 %v344, %v480
      %v513 = vsub.f32 %v345, %v481
      %v514 = vsub.f32 %v346, %v482
      %v515 = vsub.f32 %v347, %v483
      %v516 = vsub.f32 %v348, %v484
      %v517 = vsub.f32 %v349, %v485
      %v518 = vsub.f32 %v350, %v486
      %v519 = vsub.f32 %v351, %v487
      %v520 = vsub.f32 %v352, %v488
      %v521 = vmul.f32 %v489, %v489
      %v522 = vmul.f32 %v490, %v490
      %v523 = vmul.f32 %v491, %v491
      %v524 = vmul.f32 %v492, %v492
      %v525 = vmul.f32 %v493, %v493
      %v526 = vmul.f32 %v494, %v494
      %v527 = vmul.f32 %v495, %v495
      %v528 = vmul.f32 %v496, %v496
      %v529 = vmul.f32 %v497, %v497
      %v530 = vmul.f32 %v498, %v498
      %v531 = vmul.f32 %v499, %v499
      %v532 = vmul.f32 %v500, %v500
      %v533 = vmul.f32 %v501, %v501
      %v534 = vmul.f32 %v502, %v502
      %v535 = vmul.f32 %v503, %v503
      %v536 = vmul.f32 %v504, %v504
      %v537 = vmul.f32 %v505, %v505
      %v538 = vmul.f32 %v506, %v506
      %v539 = vmul.f32 %v507, %v507
      %v540 = vmul.f32 %v508, %v508
      %v541 = vmul.f32 %v509, %v509
      %v542 = vmul.f32 %v510, %v510
      %v543 = vmul.f32 %v511, %v511
      %v544 = vmul.f32 %v512, %v512
      %v545 = vmul.f32 %v513, %v513
      %v546 = vmul.f32 %v514, %v514
      %v547 = vmul.f32 %v515, %v515
      %v548 = vmul.f32 %v516, %v516
      %v549 = vmul.f32 %v517, %v517
      %v550 = vmul.f32 %v518, %v518
      %v551 = vmul.f32 %v519, %v519
      %v552 = vmul.f32 %v520, %v520
      %v553 = vsel %vm353, %v521, 0.0
      %554 = vadd.xlane.f32.xlu0 %v553
      %v555 = vpop.xlane.xlu0 %554
      %v556 = vsel %vm353, %v522, 0.0
      %557 = vadd.xlane.f32.xlu0 %v556
      %v558 = vpop.xlane.xlu0 %557
      %v559 = vsel %vm353, %v523, 0.0
      %560 = vadd.xlane.f32.xlu0 %v559
      %v561 = vpop.xlane.xlu0 %560
      %v562 = vsel %vm353, %v524, 0.0
      %563 = vadd.xlane.f32.xlu0 %v562
      %v564 = vpop.xlane.xlu0 %563
      %v565 = vsel %vm353, %v525, 0.0
      %566 = vadd.xlane.f32.xlu0 %v565
      %v567 = vpop.xlane.xlu0 %566
      %v568 = vsel %vm353, %v526, 0.0
      %569 = vadd.xlane.f32.xlu0 %v568
      %v570 = vpop.xlane.xlu0 %569
      %v571 = vsel %vm353, %v527, 0.0
      %572 = vadd.xlane.f32.xlu0 %v571
      %v573 = vpop.xlane.xlu0 %572
      %v574 = vsel %vm353, %v528, 0.0
      %575 = vadd.xlane.f32.xlu0 %v574
      %v576 = vpop.xlane.xlu0 %575
      %v577 = vsel %vm353, %v529, 0.0
      %578 = vadd.xlane.f32.xlu0 %v577
      %v579 = vpop.xlane.xlu0 %578
      %v580 = vsel %vm353, %v530, 0.0
      %581 = vadd.xlane.f32.xlu0 %v580
      %v582 = vpop.xlane.xlu0 %581
      %v583 = vsel %vm353, %v531, 0.0
      %584 = vadd.xlane.f32.xlu0 %v583
      %v585 = vpop.xlane.xlu0 %584
      %v586 = vsel %vm353, %v532, 0.0
      %587 = vadd.xlane.f32.xlu0 %v586
      %v588 = vpop.xlane.xlu0 %587
      %v589 = vsel %vm353, %v533, 0.0
      %590 = vadd.xlane.f32.xlu0 %v589
      %v591 = vpop.xlane.xlu0 %590
      %v592 = vsel %vm353, %v534, 0.0
      %593 = vadd.xlane.f32.xlu0 %v592
      %v594 = vpop.xlane.xlu0 %593
      %v595 = vsel %vm353, %v535, 0.0
      %596 = vadd.xlane.f32.xlu0 %v595
      %v597 = vpop.xlane.xlu0 %596
      %v598 = vsel %vm353, %v536, 0.0
      %599 = vadd.xlane.f32.xlu0 %v598
      %v600 = vpop.xlane.xlu0 %599
      %v601 = vsel %vm353, %v537, 0.0
      %602 = vadd.xlane.f32.xlu0 %v601
      %v603 = vpop.xlane.xlu0 %602
      %v604 = vsel %vm353, %v538, 0.0
      %605 = vadd.xlane.f32.xlu0 %v604
      %v606 = vpop.xlane.xlu0 %605
      %v607 = vsel %vm353, %v539, 0.0
      %608 = vadd.xlane.f32.xlu0 %v607
      %v609 = vpop.xlane.xlu0 %608
      %v610 = vsel %vm353, %v540, 0.0
      %611 = vadd.xlane.f32.xlu0 %v610
      %v612 = vpop.xlane.xlu0 %611
      %v613 = vsel %vm353, %v541, 0.0
      %614 = vadd.xlane.f32.xlu0 %v613
      %v615 = vpop.xlane.xlu0 %614
      %v616 = vsel %vm353, %v542, 0.0
      %617 = vadd.xlane.f32.xlu0 %v616
      %v618 = vpop.xlane.xlu0 %617
      %v619 = vsel %vm353, %v543, 0.0
      %620 = vadd.xlane.f32.xlu0 %v619
      %v621 = vpop.xlane.xlu0 %620
      %v622 = vsel %vm353, %v544, 0.0
      %623 = vadd.xlane.f32.xlu0 %v622
      %v624 = vpop.xlane.xlu0 %623
      %v625 = vsel %vm353, %v545, 0.0
      %626 = vadd.xlane.f32.xlu0 %v625
      %v627 = vpop.xlane.xlu0 %626
      %v628 = vsel %vm353, %v546, 0.0
      %629 = vadd.xlane.f32.xlu0 %v628
      %v630 = vpop.xlane.xlu0 %629
      %v631 = vsel %vm353, %v547, 0.0
      %632 = vadd.xlane.f32.xlu0 %v631
      %v633 = vpop.xlane.xlu0 %632
      %v634 = vsel %vm353, %v548, 0.0
      %635 = vadd.xlane.f32.xlu0 %v634
      %v636 = vpop.xlane.xlu0 %635
      %v637 = vsel %vm353, %v549, 0.0
      %638 = vadd.xlane.f32.xlu0 %v637
      %v639 = vpop.xlane.xlu0 %638
      %v640 = vsel %vm353, %v550, 0.0
      %641 = vadd.xlane.f32.xlu0 %v640
      %v642 = vpop.xlane.xlu0 %641
      %v643 = vsel %vm353, %v551, 0.0
      %644 = vadd.xlane.f32.xlu0 %v643
      %v645 = vpop.xlane.xlu0 %644
      %v646 = vsel %vm353, %v552, 0.0
      %647 = vadd.xlane.f32.xlu0 %v646
      %v648 = vpop.xlane.xlu0 %647
      %v649 = vmul.f32 %v555, %v456
      %v650 = vmul.f32 %v558, %v456
      %v651 = vmul.f32 %v561, %v456
      %v652 = vmul.f32 %v564, %v456
      %v653 = vmul.f32 %v567, %v456
      %v654 = vmul.f32 %v570, %v456
      %v655 = vmul.f32 %v573, %v456
      %v656 = vmul.f32 %v576, %v456
      %v657 = vmul.f32 %v579, %v456
      %v658 = vmul.f32 %v582, %v456
      %v659 = vmul.f32 %v585, %v456
      %v660 = vmul.f32 %v588, %v456
      %v661 = vmul.f32 %v591, %v456
      %v662 = vmul.f32 %v594, %v456
      %v663 = vmul.f32 %v597, %v456
      %v664 = vmul.f32 %v600, %v456
      %v665 = vmul.f32 %v603, %v456
      %v666 = vmul.f32 %v606, %v456
      %v667 = vmul.f32 %v609, %v456
      %v668 = vmul.f32 %v612, %v456
      %v669 = vmul.f32 %v615, %v456
      %v670 = vmul.f32 %v618, %v456
      %v671 = vmul.f32 %v621, %v456
      %v672 = vmul.f32 %v624, %v456
      %v673 = vmul.f32 %v627, %v456
      %v674 = vmul.f32 %v630, %v456
      %v675 = vmul.f32 %v633, %v456
      %v676 = vmul.f32 %v636, %v456
      %v677 = vmul.f32 %v639, %v456
      %v678 = vmul.f32 %v642, %v456
      %v679 = vmul.f32 %v645, %v456
      %v680 = vmul.f32 %v648, %v456
      %v681 = vadd.f32 %v649, 1e-05
      %v682 = vadd.f32 %v650, 1e-05
      %v683 = vadd.f32 %v651, 1e-05
      %v684 = vadd.f32 %v652, 1e-05
      %v685 = vadd.f32 %v653, 1e-05
      %v686 = vadd.f32 %v654, 1e-05
      %v687 = vadd.f32 %v655, 1e-05
      %v688 = vadd.f32 %v656, 1e-05
      %v689 = vadd.f32 %v657, 1e-05
      %v690 = vadd.f32 %v658, 1e-05
      %v691 = vadd.f32 %v659, 1e-05
      %v692 = vadd.f32 %v660, 1e-05
      %v693 = vadd.f32 %v661, 1e-05
      %v694 = vadd.f32 %v662, 1e-05
      %v695 = vadd.f32 %v663, 1e-05
      %v696 = vadd.f32 %v664, 1e-05
      %v697 = vadd.f32 %v665, 1e-05
      %v698 = vadd.f32 %v666, 1e-05
      %v699 = vadd.f32 %v667, 1e-05
      %v700 = vadd.f32 %v668, 1e-05
      %v701 = vadd.f32 %v669, 1e-05
      %v702 = vadd.f32 %v670, 1e-05
      %v703 = vadd.f32 %v671, 1e-05
      %v704 = vadd.f32 %v672, 1e-05
      %v705 = vadd.f32 %v673, 1e-05
      %v706 = vadd.f32 %v674, 1e-05
      %v707 = vadd.f32 %v675, 1e-05
      %v708 = vadd.f32 %v676, 1e-05
      %v709 = vadd.f32 %v677, 1e-05
      %v710 = vadd.f32 %v678, 1e-05
      %v711 = vadd.f32 %v679, 1e-05
      %v712 = vadd.f32 %v680, 1e-05
      %v713 = vrsqrt.pop %v681
      %v714 = vmul.f32 %v713, %v681
      %v715 = vmul.f32 %v714, %v713
      %v716 = vmul.f32 0.5, %v715
      %v717 = vsub.f32 1.5, %v716
      %v718 = vmul.f32 %v713, %v717
      %vm719 = vweird.f32 %v681
      %vm720 = vweird.f32 %v713
      %vm721 = vmor %vm719, %vm720
      %v722 = vsel %vm721, %v713, %v718
      %v723 = vrsqrt.pop %v682
      %v724 = vmul.f32 %v723, %v682
      %v725 = vmul.f32 %v724, %v723
      %v726 = vmul.f32 0.5, %v725
      %v727 = vsub.f32 1.5, %v726
      %v728 = vmul.f32 %v723, %v727
      %vm729 = vweird.f32 %v682
      %vm730 = vweird.f32 %v723
      %vm731 = vmor %vm729, %vm730
      %v732 = vsel %vm731, %v723, %v728
      %v733 = vrsqrt.pop %v683
      %v734 = vmul.f32 %v733, %v683
      %v735 = vmul.f32 %v734, %v733
      %v736 = vmul.f32 0.5, %v735
      %v737 = vsub.f32 1.5, %v736
      %v738 = vmul.f32 %v733, %v737
      %vm739 = vweird.f32 %v683
      %vm740 = vweird.f32 %v733
      %vm741 = vmor %vm739, %vm740
      %v742 = vsel %vm741, %v733, %v738
      %v743 = vrsqrt.pop %v684
      %v744 = vmul.f32 %v743, %v684
      %v745 = vmul.f32 %v744, %v743
      %v746 = vmul.f32 0.5, %v745
      %v747 = vsub.f32 1.5, %v746
      %v748 = vmul.f32 %v743, %v747
      %vm749 = vweird.f32 %v684
      %vm750 = vweird.f32 %v743
      %vm751 = vmor %vm749, %vm750
      %v752 = vsel %vm751, %v743, %v748
      %v753 = vrsqrt.pop %v685
      %v754 = vmul.f32 %v753, %v685
      %v755 = vmul.f32 %v754, %v753
      %v756 = vmul.f32 0.5, %v755
      %v757 = vsub.f32 1.5, %v756
      %v758 = vmul.f32 %v753, %v757
      %vm759 = vweird.f32 %v685
      %vm760 = vweird.f32 %v753
      %vm761 = vmor %vm759, %vm760
      %v762 = vsel %vm761, %v753, %v758
      %v763 = vrsqrt.pop %v686
      %v764 = vmul.f32 %v763, %v686
      %v765 = vmul.f32 %v764, %v763
      %v766 = vmul.f32 0.5, %v765
      %v767 = vsub.f32 1.5, %v766
      %v768 = vmul.f32 %v763, %v767
      %vm769 = vweird.f32 %v686
      %vm770 = vweird.f32 %v763
      %vm771 = vmor %vm769, %vm770
      %v772 = vsel %vm771, %v763, %v768
      %v773 = vrsqrt.pop %v687
      %v774 = vmul.f32 %v773, %v687
      %v775 = vmul.f32 %v774, %v773
      %v776 = vmul.f32 0.5, %v775
      %v777 = vsub.f32 1.5, %v776
      %v778 = vmul.f32 %v773, %v777
      %vm779 = vweird.f32 %v687
      %vm780 = vweird.f32 %v773
      %vm781 = vmor %vm779, %vm780
      %v782 = vsel %vm781, %v773, %v778
      %v783 = vrsqrt.pop %v688
      %v784 = vmul.f32 %v783, %v688
      %v785 = vmul.f32 %v784, %v783
      %v786 = vmul.f32 0.5, %v785
      %v787 = vsub.f32 1.5, %v786
      %v788 = vmul.f32 %v783, %v787
      %vm789 = vweird.f32 %v688
      %vm790 = vweird.f32 %v783
      %vm791 = vmor %vm789, %vm790
      %v792 = vsel %vm791, %v783, %v788
      %v793 = vrsqrt.pop %v689
      %v794 = vmul.f32 %v793, %v689
      %v795 = vmul.f32 %v794, %v793
      %v796 = vmul.f32 0.5, %v795
      %v797 = vsub.f32 1.5, %v796
      %v798 = vmul.f32 %v793, %v797
      %vm799 = vweird.f32 %v689
      %vm800 = vweird.f32 %v793
      %vm801 = vmor %vm799, %vm800
      %v802 = vsel %vm801, %v793, %v798
      %v803 = vrsqrt.pop %v690
      %v804 = vmul.f32 %v803, %v690
      %v805 = vmul.f32 %v804, %v803
      %v806 = vmul.f32 0.5, %v805
      %v807 = vsub.f32 1.5, %v806
      %v808 = vmul.f32 %v803, %v807
      %vm809 = vweird.f32 %v690
      %vm810 = vweird.f32 %v803
      %vm811 = vmor %vm809, %vm810
      %v812 = vsel %vm811, %v803, %v808
      %v813 = vrsqrt.pop %v691
      %v814 = vmul.f32 %v813, %v691
      %v815 = vmul.f32 %v814, %v813
      %v816 = vmul.f32 0.5, %v815
      %v817 = vsub.f32 1.5, %v816
      %v818 = vmul.f32 %v813, %v817
      %vm819 = vweird.f32 %v691
      %vm820 = vweird.f32 %v813
      %vm821 = vmor %vm819, %vm820
      %v822 = vsel %vm821, %v813, %v818
      %v823 = vrsqrt.pop %v692
      %v824 = vmul.f32 %v823, %v692
      %v825 = vmul.f32 %v824, %v823
      %v826 = vmul.f32 0.5, %v825
      %v827 = vsub.f32 1.5, %v826
      %v828 = vmul.f32 %v823, %v827
      %vm829 = vweird.f32 %v692
      %vm830 = vweird.f32 %v823
      %vm831 = vmor %vm829, %vm830
      %v832 = vsel %vm831, %v823, %v828
      %v833 = vrsqrt.pop %v693
      %v834 = vmul.f32 %v833, %v693
      %v835 = vmul.f32 %v834, %v833
      %v836 = vmul.f32 0.5, %v835
      %v837 = vsub.f32 1.5, %v836
      %v838 = vmul.f32 %v833, %v837
      %vm839 = vweird.f32 %v693
      %vm840 = vweird.f32 %v833
      %vm841 = vmor %vm839, %vm840
      %v842 = vsel %vm841, %v833, %v838
      %v843 = vrsqrt.pop %v694
      %v844 = vmul.f32 %v843, %v694
      %v845 = vmul.f32 %v844, %v843
      %v846 = vmul.f32 0.5, %v845
      %v847 = vsub.f32 1.5, %v846
      %v848 = vmul.f32 %v843, %v847
      %vm849 = vweird.f32 %v694
      %vm850 = vweird.f32 %v843
      %vm851 = vmor %vm849, %vm850
      %v852 = vsel %vm851, %v843, %v848
      %v853 = vrsqrt.pop %v695
      %v854 = vmul.f32 %v853, %v695
      %v855 = vmul.f32 %v854, %v853
      %v856 = vmul.f32 0.5, %v855
      %v857 = vsub.f32 1.5, %v856
      %v858 = vmul.f32 %v853, %v857
      %vm859 = vweird.f32 %v695
      %vm860 = vweird.f32 %v853
      %vm861 = vmor %vm859, %vm860
      %v862 = vsel %vm861, %v853, %v858
      %v863 = vrsqrt.pop %v696
      %v864 = vmul.f32 %v863, %v696
      %v865 = vmul.f32 %v864, %v863
      %v866 = vmul.f32 0.5, %v865
      %v867 = vsub.f32 1.5, %v866
      %v868 = vmul.f32 %v863, %v867
      %vm869 = vweird.f32 %v696
      %vm870 = vweird.f32 %v863
      %vm871 = vmor %vm869, %vm870
      %v872 = vsel %vm871, %v863, %v868
      %v873 = vrsqrt.pop %v697
      %v874 = vmul.f32 %v873, %v697
      %v875 = vmul.f32 %v874, %v873
      %v876 = vmul.f32 0.5, %v875
      %v877 = vsub.f32 1.5, %v876
      %v878 = vmul.f32 %v873, %v877
      %vm879 = vweird.f32 %v697
      %vm880 = vweird.f32 %v873
      %vm881 = vmor %vm879, %vm880
      %v882 = vsel %vm881, %v873, %v878
      %v883 = vrsqrt.pop %v698
      %v884 = vmul.f32 %v883, %v698
      %v885 = vmul.f32 %v884, %v883
      %v886 = vmul.f32 0.5, %v885
      %v887 = vsub.f32 1.5, %v886
      %v888 = vmul.f32 %v883, %v887
      %vm889 = vweird.f32 %v698
      %vm890 = vweird.f32 %v883
      %vm891 = vmor %vm889, %vm890
      %v892 = vsel %vm891, %v883, %v888
      %v893 = vrsqrt.pop %v699
      %v894 = vmul.f32 %v893, %v699
      %v895 = vmul.f32 %v894, %v893
      %v896 = vmul.f32 0.5, %v895
      %v897 = vsub.f32 1.5, %v896
      %v898 = vmul.f32 %v893, %v897
      %vm899 = vweird.f32 %v699
      %vm900 = vweird.f32 %v893
      %vm901 = vmor %vm899, %vm900
      %v902 = vsel %vm901, %v893, %v898
      %v903 = vrsqrt.pop %v700
      %v904 = vmul.f32 %v903, %v700
      %v905 = vmul.f32 %v904, %v903
      %v906 = vmul.f32 0.5, %v905
      %v907 = vsub.f32 1.5, %v906
      %v908 = vmul.f32 %v903, %v907
      %vm909 = vweird.f32 %v700
      %vm910 = vweird.f32 %v903
      %vm911 = vmor %vm909, %vm910
      %v912 = vsel %vm911, %v903, %v908
      %v913 = vrsqrt.pop %v701
      %v914 = vmul.f32 %v913, %v701
      %v915 = vmul.f32 %v914, %v913
      %v916 = vmul.f32 0.5, %v915
      %v917 = vsub.f32 1.5, %v916
      %v918 = vmul.f32 %v913, %v917
      %vm919 = vweird.f32 %v701
      %vm920 = vweird.f32 %v913
      %vm921 = vmor %vm919, %vm920
      %v922 = vsel %vm921, %v913, %v918
      %v923 = vrsqrt.pop %v702
      %v924 = vmul.f32 %v923, %v702
      %v925 = vmul.f32 %v924, %v923
      %v926 = vmul.f32 0.5, %v925
      %v927 = vsub.f32 1.5, %v926
      %v928 = vmul.f32 %v923, %v927
      %vm929 = vweird.f32 %v702
      %vm930 = vweird.f32 %v923
      %vm931 = vmor %vm929, %vm930
      %v932 = vsel %vm931, %v923, %v928
      %v933 = vrsqrt.pop %v703
      %v934 = vmul.f32 %v933, %v703
      %v935 = vmul.f32 %v934, %v933
      %v936 = vmul.f32 0.5, %v935
      %v937 = vsub.f32 1.5, %v936
      %v938 = vmul.f32 %v933, %v937
      %vm939 = vweird.f32 %v703
      %vm940 = vweird.f32 %v933
      %vm941 = vmor %vm939, %vm940
      %v942 = vsel %vm941, %v933, %v938
      %v943 = vrsqrt.pop %v704
      %v944 = vmul.f32 %v943, %v704
      %v945 = vmul.f32 %v944, %v943
      %v946 = vmul.f32 0.5, %v945
      %v947 = vsub.f32 1.5, %v946
      %v948 = vmul.f32 %v943, %v947
      %vm949 = vweird.f32 %v704
      %vm950 = vweird.f32 %v943
      %vm951 = vmor %vm949, %vm950
      %v952 = vsel %vm951, %v943, %v948
      %v953 = vrsqrt.pop %v705
      %v954 = vmul.f32 %v953, %v705
      %v955 = vmul.f32 %v954, %v953
      %v956 = vmul.f32 0.5, %v955
      %v957 = vsub.f32 1.5, %v956
      %v958 = vmul.f32 %v953, %v957
      %vm959 = vweird.f32 %v705
      %vm960 = vweird.f32 %v953
      %vm961 = vmor %vm959, %vm960
      %v962 = vsel %vm961, %v953, %v958
      %v963 = vrsqrt.pop %v706
      %v964 = vmul.f32 %v963, %v706
      %v965 = vmul.f32 %v964, %v963
      %v966 = vmul.f32 0.5, %v965
      %v967 = vsub.f32 1.5, %v966
      %v968 = vmul.f32 %v963, %v967
      %vm969 = vweird.f32 %v706
      %vm970 = vweird.f32 %v963
      %vm971 = vmor %vm969, %vm970
      %v972 = vsel %vm971, %v963, %v968
      %v973 = vrsqrt.pop %v707
      %v974 = vmul.f32 %v973, %v707
      %v975 = vmul.f32 %v974, %v973
      %v976 = vmul.f32 0.5, %v975
      %v977 = vsub.f32 1.5, %v976
      %v978 = vmul.f32 %v973, %v977
      %vm979 = vweird.f32 %v707
      %vm980 = vweird.f32 %v973
      %vm981 = vmor %vm979, %vm980
      %v982 = vsel %vm981, %v973, %v978
      %v983 = vrsqrt.pop %v708
      %v984 = vmul.f32 %v983, %v708
      %v985 = vmul.f32 %v984, %v983
      %v986 = vmul.f32 0.5, %v985
      %v987 = vsub.f32 1.5, %v986
      %v988 = vmul.f32 %v983, %v987
      %vm989 = vweird.f32 %v708
      %vm990 = vweird.f32 %v983
      %vm991 = vmor %vm989, %vm990
      %v992 = vsel %vm991, %v983, %v988
      %v993 = vrsqrt.pop %v709
      %v994 = vmul.f32 %v993, %v709
      %v995 = vmul.f32 %v994, %v993
      %v996 = vmul.f32 0.5, %v995
      %v997 = vsub.f32 1.5, %v996
      %v998 = vmul.f32 %v993, %v997
      %vm999 = vweird.f32 %v709
      %vm1000 = vweird.f32 %v993
      %vm1001 = vmor %vm999, %vm1000
      %v1002 = vsel %vm1001, %v993, %v998
      %v1003 = vrsqrt.pop %v710
      %v1004 = vmul.f32 %v1003, %v710
      %v1005 = vmul.f32 %v1004, %v1003
      %v1006 = vmul.f32 0.5, %v1005
      %v1007 = vsub.f32 1.5, %v1006
      %v1008 = vmul.f32 %v1003, %v1007
      %vm1009 = vweird.f32 %v710
      %vm1010 = vweird.f32 %v1003
      %vm1011 = vmor %vm1009, %vm1010
      %v1012 = vsel %vm1011, %v1003, %v1008
      %v1013 = vrsqrt.pop %v711
      %v1014 = vmul.f32 %v1013, %v711
      %v1015 = vmul.f32 %v1014, %v1013
      %v1016 = vmul.f32 0.5, %v1015
      %v1017 = vsub.f32 1.5, %v1016
      %v1018 = vmul.f32 %v1013, %v1017
      %vm1019 = vweird.f32 %v711
      %vm1020 = vweird.f32 %v1013
      %vm1021 = vmor %vm1019, %vm1020
      %v1022 = vsel %vm1021, %v1013, %v1018
      %v1023 = vrsqrt.pop %v712
      %v1024 = vmul.f32 %v1023, %v712
      %v1025 = vmul.f32 %v1024, %v1023
      %v1026 = vmul.f32 0.5, %v1025
      %v1027 = vsub.f32 1.5, %v1026
      %v1028 = vmul.f32 %v1023, %v1027
      %vm1029 = vweird.f32 %v712
      %vm1030 = vweird.f32 %v1023
      %vm1031 = vmor %vm1029, %vm1030
      %v1032 = vsel %vm1031, %v1023, %v1028
      %v1033 = vmul.f32 %v489, %v722
      %v1034 = vmul.f32 %v490, %v732
      %v1035 = vmul.f32 %v491, %v742
      %v1036 = vmul.f32 %v492, %v752
      %v1037 = vmul.f32 %v493, %v762
      %v1038 = vmul.f32 %v494, %v772
      %v1039 = vmul.f32 %v495, %v782
      %v1040 = vmul.f32 %v496, %v792
      %v1041 = vmul.f32 %v497, %v802
      %v1042 = vmul.f32 %v498, %v812
      %v1043 = vmul.f32 %v499, %v822
      %v1044 = vmul.f32 %v500, %v832
      %v1045 = vmul.f32 %v501, %v842
      %v1046 = vmul.f32 %v502, %v852
      %v1047 = vmul.f32 %v503, %v862
      %v1048 = vmul.f32 %v504, %v872
      %v1049 = vmul.f32 %v505, %v882
      %v1050 = vmul.f32 %v506, %v892
      %v1051 = vmul.f32 %v507, %v902
      %v1052 = vmul.f32 %v508, %v912
      %v1053 = vmul.f32 %v509, %v922
      %v1054 = vmul.f32 %v510, %v932
      %v1055 = vmul.f32 %v511, %v942
      %v1056 = vmul.f32 %v512, %v952
      %v1057 = vmul.f32 %v513, %v962
      %v1058 = vmul.f32 %v514, %v972
      %v1059 = vmul.f32 %v515, %v982
      %v1060 = vmul.f32 %v516, %v992
      %v1061 = vmul.f32 %v517, %v1002
      %v1062 = vmul.f32 %v518, %v1012
      %v1063 = vmul.f32 %v519, %v1022
      %v1064 = vmul.f32 %v520, %v1032
      %v1065 = vld [vmem:[%s2] sm:$0x1]
      %v1067 = vperm.slane %v1065, 0
      %v1069 = vmul.f32 %v1033, %v1067
      %v1070 = vmul.f32 %v1034, %v1067
      %v1071 = vmul.f32 %v1035, %v1067
      %v1072 = vmul.f32 %v1036, %v1067
      %v1073 = vmul.f32 %v1037, %v1067
      %v1074 = vmul.f32 %v1038, %v1067
      %v1075 = vmul.f32 %v1039, %v1067
      %v1076 = vmul.f32 %v1040, %v1067
      %v1077 = vmul.f32 %v1041, %v1067
      %v1078 = vmul.f32 %v1042, %v1067
      %v1079 = vmul.f32 %v1043, %v1067
      %v1080 = vmul.f32 %v1044, %v1067
      %v1081 = vmul.f32 %v1045, %v1067
      %v1082 = vmul.f32 %v1046, %v1067
      %v1083 = vmul.f32 %v1047, %v1067
      %v1084 = vmul.f32 %v1048, %v1067
      %v1085 = vmul.f32 %v1049, %v1067
      %v1086 = vmul.f32 %v1050, %v1067
      %v1087 = vmul.f32 %v1051, %v1067
      %v1088 = vmul.f32 %v1052, %v1067
      %v1089 = vmul.f32 %v1053, %v1067
      %v1090 = vmul.f32 %v1054, %v1067
      %v1091 = vmul.f32 %v1055, %v1067
      %v1092 = vmul.f32 %v1056, %v1067
      %v1093 = vmul.f32 %v1057, %v1067
      %v1094 = vmul.f32 %v1058, %v1067
      %v1095 = vmul.f32 %v1059, %v1067
      %v1096 = vmul.f32 %v1060, %v1067
      %v1097 = vmul.f32 %v1061, %v1067
      %v1098 = vmul.f32 %v1062, %v1067
      %v1099 = vmul.f32 %v1063, %v1067
      %v1100 = vmul.f32 %v1064, %v1067
      %v1101 = vld [vmem:[%s3] sm:$0x1]
      %v1103 = vperm.slane %v1101, 0
      %v1105 = vadd.f32 %v1069, %v1103
      %v1106 = vadd.f32 %v1070, %v1103
      %v1107 = vadd.f32 %v1071, %v1103
      %v1108 = vadd.f32 %v1072, %v1103
      %v1109 = vadd.f32 %v1073, %v1103
      %v1110 = vadd.f32 %v1074, %v1103
      %v1111 = vadd.f32 %v1075, %v1103
      %v1112 = vadd.f32 %v1076, %v1103
      %v1113 = vadd.f32 %v1077, %v1103
      %v1114 = vadd.f32 %v1078, %v1103
      %v1115 = vadd.f32 %v1079, %v1103
      %v1116 = vadd.f32 %v1080, %v1103
      %v1117 = vadd.f32 %v1081, %v1103
      %v1118 = vadd.f32 %v1082, %v1103
      %v1119 = vadd.f32 %v1083, %v1103
      %v1120 = vadd.f32 %v1084, %v1103
      %v1121 = vadd.f32 %v1085, %v1103
      %v1122 = vadd.f32 %v1086, %v1103
      %v1123 = vadd.f32 %v1087, %v1103
      %v1124 = vadd.f32 %v1088, %v1103
      %v1125 = vadd.f32 %v1089, %v1103
      %v1126 = vadd.f32 %v1090, %v1103
      %v1127 = vadd.f32 %v1091, %v1103
      %v1128 = vadd.f32 %v1092, %v1103
      %v1129 = vadd.f32 %v1093, %v1103
      %v1130 = vadd.f32 %v1094, %v1103
      %v1131 = vadd.f32 %v1095, %v1103
      %v1132 = vadd.f32 %v1096, %v1103
      %v1133 = vadd.f32 %v1097, %v1103
      %v1134 = vadd.f32 %v1098, %v1103
      %v1135 = vadd.f32 %v1099, %v1103
      %v1136 = vadd.f32 %v1100, %v1103
      %v1137 = vpack.c.bf16 %v1106, %v1105
      %v1138 = vpack.c.bf16 %v1108, %v1107
      %v1139 = vpack.c.bf16 %v1110, %v1109
      %v1140 = vpack.c.bf16 %v1112, %v1111
      %v1141 = vpack.c.bf16 %v1114, %v1113
      %v1142 = vpack.c.bf16 %v1116, %v1115
      %v1143 = vpack.c.bf16 %v1118, %v1117
      %v1144 = vpack.c.bf16 %v1120, %v1119
      %v1145 = vpack.c.bf16 %v1122, %v1121
      %v1146 = vpack.c.bf16 %v1124, %v1123
      %v1147 = vpack.c.bf16 %v1126, %v1125
      %v1148 = vpack.c.bf16 %v1128, %v1127
      %v1149 = vpack.c.bf16 %v1130, %v1129
      %v1150 = vpack.c.bf16 %v1132, %v1131
      %v1151 = vpack.c.bf16 %v1134, %v1133
      %v1152 = vpack.c.bf16 %v1136, %v1135
      %v1153 = vld [vmem:[%s304] sm:$0xff]
      %v1154 = vld [vmem:[%s304 + $0x8] sm:$0xff]
      %v1155 = vpack.c.bf16 %v1154, %v1153
      %v1157 = vsel %vm353, %v1137, 0
      %v1160 = vsel %vm353, %v1138, 0
      %v1163 = vsel %vm353, %v1139, 0
      %v1166 = vsel %vm353, %v1140, 0
      %v1169 = vsel %vm353, %v1141, 0
      %v1172 = vsel %vm353, %v1142, 0
      %v1175 = vsel %vm353, %v1143, 0
      %v1178 = vsel %vm353, %v1144, 0
      %v1181 = vsel %vm353, %v1145, 0
      %v1184 = vsel %vm353, %v1146, 0
      %v1187 = vsel %vm353, %v1147, 0
      %v1190 = vsel %vm353, %v1148, 0
      %v1193 = vsel %vm353, %v1149, 0
      %v1196 = vsel %vm353, %v1150, 0
      %v1199 = vsel %vm353, %v1151, 0
      %v1202 = vsel %vm353, %v1152, 0
      %1204 = vmatpush.bf16.msra.mxu0 0
      %1205 = vmatpush.bf16.msra.mxu0 0
      %1206 = vmatpush.bf16.msra.mxu0 0
      %1207 = vmatpush.bf16.msra.mxu0 0
      %1208 = vmatpush.bf16.msra.mxu0 0
      %1209 = vmatpush.bf16.msra.mxu0 0
      %1210 = vmatpush.bf16.msra.mxu0 0
      %1211 = vmatpush.bf16.msra.mxu0 %v1155
      %1212 = vmatmul.bf16.gmra.mxu0 %v1157
      %v1213 = vpop.f32.mrf.mxu0
      %v1214 = vadd.f32 0.0, %v1213
      %v1215 = vpop.f32.mrf.mxu0
      %v1216 = vadd.f32 0.0, %v1215
      %1217 = vmatmul.bf16.gmra.mxu0 %v1160
      %v1218 = vpop.f32.mrf.mxu0
      %v1219 = vadd.f32 0.0, %v1218
      %v1220 = vpop.f32.mrf.mxu0
      %v1221 = vadd.f32 0.0, %v1220
      %1222 = vmatmul.bf16.gmra.mxu0 %v1163
      %v1223 = vpop.f32.mrf.mxu0
      %v1224 = vadd.f32 0.0, %v1223
      %v1225 = vpop.f32.mrf.mxu0
      %v1226 = vadd.f32 0.0, %v1225
      %1227 = vmatmul.bf16.gmra.mxu0 %v1166
      %v1228 = vpop.f32.mrf.mxu0
      %v1229 = vadd.f32 0.0, %v1228
      %v1230 = vpop.f32.mrf.mxu0
      %v1231 = vadd.f32 0.0, %v1230
      %1232 = vmatmul.bf16.gmra.mxu0 %v1169
      %v1233 = vpop.f32.mrf.mxu0
      %v1234 = vadd.f32 0.0, %v1233
      %v1235 = vpop.f32.mrf.mxu0
      %v1236 = vadd.f32 0.0, %v1235
      %1237 = vmatmul.bf16.gmra.mxu0 %v1172
      %v1238 = vpop.f32.mrf.mxu0
      %v1239 = vadd.f32 0.0, %v1238
      %v1240 = vpop.f32.mrf.mxu0
      %v1241 = vadd.f32 0.0, %v1240
      %1242 = vmatmul.bf16.gmra.mxu0 %v1175
      %v1243 = vpop.f32.mrf.mxu0
      %v1244 = vadd.f32 0.0, %v1243
      %v1245 = vpop.f32.mrf.mxu0
      %v1246 = vadd.f32 0.0, %v1245
      %1247 = vmatmul.bf16.gmra.mxu0 %v1178
      %v1248 = vpop.f32.mrf.mxu0
      %v1249 = vadd.f32 0.0, %v1248
      %v1250 = vpop.f32.mrf.mxu0
      %v1251 = vadd.f32 0.0, %v1250
      %1252 = vmatmul.bf16.gmra.mxu0 %v1181
      %v1253 = vpop.f32.mrf.mxu0
      %v1254 = vadd.f32 0.0, %v1253
      %v1255 = vpop.f32.mrf.mxu0
      %v1256 = vadd.f32 0.0, %v1255
      %1257 = vmatmul.bf16.gmra.mxu0 %v1184
      %v1258 = vpop.f32.mrf.mxu0
      %v1259 = vadd.f32 0.0, %v1258
      %v1260 = vpop.f32.mrf.mxu0
      %v1261 = vadd.f32 0.0, %v1260
      %1262 = vmatmul.bf16.gmra.mxu0 %v1187
      %v1263 = vpop.f32.mrf.mxu0
      %v1264 = vadd.f32 0.0, %v1263
      %v1265 = vpop.f32.mrf.mxu0
      %v1266 = vadd.f32 0.0, %v1265
      %1267 = vmatmul.bf16.gmra.mxu0 %v1190
      %v1268 = vpop.f32.mrf.mxu0
      %v1269 = vadd.f32 0.0, %v1268
      %v1270 = vpop.f32.mrf.mxu0
      %v1271 = vadd.f32 0.0, %v1270
      %1272 = vmatmul.bf16.gmra.mxu0 %v1193
      %v1273 = vpop.f32.mrf.mxu0
      %v1274 = vadd.f32 0.0, %v1273
      %v1275 = vpop.f32.mrf.mxu0
      %v1276 = vadd.f32 0.0, %v1275
      %1277 = vmatmul.bf16.gmra.mxu0 %v1196
      %v1278 = vpop.f32.mrf.mxu0
      %v1279 = vadd.f32 0.0, %v1278
      %v1280 = vpop.f32.mrf.mxu0
      %v1281 = vadd.f32 0.0, %v1280
      %1282 = vmatmul.bf16.gmra.mxu0 %v1199
      %v1283 = vpop.f32.mrf.mxu0
      %v1284 = vadd.f32 0.0, %v1283
      %v1285 = vpop.f32.mrf.mxu0
      %v1286 = vadd.f32 0.0, %v1285
      %1287 = vmatmul.bf16.gmra.mxu0 %v1202
      %v1288 = vpop.f32.mrf.mxu0
      %v1289 = vadd.f32 0.0, %v1288
      %v1290 = vpop.f32.mrf.mxu0
      %v1291 = vadd.f32 0.0, %v1290
      %1292 = vdwg.mxu0
      %v1293 = vld [vmem:[%s307] sm:$0x1]
      %v1295 = vperm.slane %v1293, 0
      %v1297 = vmul.f32 %v1214, %v1295
      %v1298 = vmul.f32 %v1216, %v1295
      %v1299 = vmul.f32 %v1219, %v1295
      %v1300 = vmul.f32 %v1221, %v1295
      %v1301 = vmul.f32 %v1224, %v1295
      %v1302 = vmul.f32 %v1226, %v1295
      %v1303 = vmul.f32 %v1229, %v1295
      %v1304 = vmul.f32 %v1231, %v1295
      %v1305 = vmul.f32 %v1234, %v1295
      %v1306 = vmul.f32 %v1236, %v1295
      %v1307 = vmul.f32 %v1239, %v1295
      %v1308 = vmul.f32 %v1241, %v1295
      %v1309 = vmul.f32 %v1244, %v1295
      %v1310 = vmul.f32 %v1246, %v1295
      %v1311 = vmul.f32 %v1249, %v1295
      %v1312 = vmul.f32 %v1251, %v1295
      %v1313 = vmul.f32 %v1254, %v1295
      %v1314 = vmul.f32 %v1256, %v1295
      %v1315 = vmul.f32 %v1259, %v1295
      %v1316 = vmul.f32 %v1261, %v1295
      %v1317 = vmul.f32 %v1264, %v1295
      %v1318 = vmul.f32 %v1266, %v1295
      %v1319 = vmul.f32 %v1269, %v1295
      %v1320 = vmul.f32 %v1271, %v1295
      %v1321 = vmul.f32 %v1274, %v1295
      %v1322 = vmul.f32 %v1276, %v1295
      %v1323 = vmul.f32 %v1279, %v1295
      %v1324 = vmul.f32 %v1281, %v1295
      %v1325 = vmul.f32 %v1284, %v1295
      %v1326 = vmul.f32 %v1286, %v1295
      %v1327 = vmul.f32 %v1289, %v1295
      %v1328 = vmul.f32 %v1291, %v1295
      %v1329 = vld [vmem:[%s310] sm:$0x1]
      %v1331 = vperm.slane %v1329, 0
      %v1333 = vadd.f32 %v1297, %v1331
      %v1334 = vadd.f32 %v1298, %v1331
      %v1335 = vadd.f32 %v1299, %v1331
      %v1336 = vadd.f32 %v1300, %v1331
      %v1337 = vadd.f32 %v1301, %v1331
      %v1338 = vadd.f32 %v1302, %v1331
      %v1339 = vadd.f32 %v1303, %v1331
      %v1340 = vadd.f32 %v1304, %v1331
      %v1341 = vadd.f32 %v1305, %v1331
      %v1342 = vadd.f32 %v1306, %v1331
      %v1343 = vadd.f32 %v1307, %v1331
      %v1344 = vadd.f32 %v1308, %v1331
      %v1345 = vadd.f32 %v1309, %v1331
      %v1346 = vadd.f32 %v1310, %v1331
      %v1347 = vadd.f32 %v1311, %v1331
      %v1348 = vadd.f32 %v1312, %v1331
      %v1349 = vadd.f32 %v1313, %v1331
      %v1350 = vadd.f32 %v1314, %v1331
      %v1351 = vadd.f32 %v1315, %v1331
      %v1352 = vadd.f32 %v1316, %v1331
      %v1353 = vadd.f32 %v1317, %v1331
      %v1354 = vadd.f32 %v1318, %v1331
      %v1355 = vadd.f32 %v1319, %v1331
      %v1356 = vadd.f32 %v1320, %v1331
      %v1357 = vadd.f32 %v1321, %v1331
      %v1358 = vadd.f32 %v1322, %v1331
      %v1359 = vadd.f32 %v1323, %v1331
      %v1360 = vadd.f32 %v1324, %v1331
      %v1361 = vadd.f32 %v1325, %v1331
      %v1362 = vadd.f32 %v1326, %v1331
      %v1363 = vadd.f32 %v1327, %v1331
      %v1364 = vadd.f32 %v1328, %v1331
      %vm1365 = vcmask 64512
      %1366 = vst.msk [vmem:[%s318] sm:$0xff] %vm1365, %v1333
      %1367 = vst.msk [vmem:[%s318 + $0x8] sm:$0xff] %vm1365, %v1334
      %1368 = vst.msk [vmem:[%s318 + $0x10] sm:$0xff] %vm1365, %v1335
      %1369 = vst.msk [vmem:[%s318 + $0x18] sm:$0xff] %vm1365, %v1336
      %1370 = vst.msk [vmem:[%s318 + $0x20] sm:$0xff] %vm1365, %v1337
      %1371 = vst.msk [vmem:[%s318 + $0x28] sm:$0xff] %vm1365, %v1338
      %1372 = vst.msk [vmem:[%s318 + $0x30] sm:$0xff] %vm1365, %v1339
      %1373 = vst.msk [vmem:[%s318 + $0x38] sm:$0xff] %vm1365, %v1340
      %1374 = vst.msk [vmem:[%s318 + $0x40] sm:$0xff] %vm1365, %v1341
      %1375 = vst.msk [vmem:[%s318 + $0x48] sm:$0xff] %vm1365, %v1342
      %1376 = vst.msk [vmem:[%s318 + $0x50] sm:$0xff] %vm1365, %v1343
      %1377 = vst.msk [vmem:[%s318 + $0x58] sm:$0xff] %vm1365, %v1344
      %1378 = vst.msk [vmem:[%s318 + $0x60] sm:$0xff] %vm1365, %v1345
      %1379 = vst.msk [vmem:[%s318 + $0x68] sm:$0xff] %vm1365, %v1346
      %1380 = vst.msk [vmem:[%s318 + $0x70] sm:$0xff] %vm1365, %v1347
      %1381 = vst.msk [vmem:[%s318 + $0x78] sm:$0xff] %vm1365, %v1348
      %1382 = vst.msk [vmem:[%s318 + $0x80] sm:$0xff] %vm1365, %v1349
      %1383 = vst.msk [vmem:[%s318 + $0x88] sm:$0xff] %vm1365, %v1350
      %1384 = vst.msk [vmem:[%s318 + $0x90] sm:$0xff] %vm1365, %v1351
      %1385 = vst.msk [vmem:[%s318 + $0x98] sm:$0xff] %vm1365, %v1352
      %1386 = vst.msk [vmem:[%s318 + $0xa0] sm:$0xff] %vm1365, %v1353
      %1387 = vst.msk [vmem:[%s318 + $0xa8] sm:$0xff] %vm1365, %v1354
      %1388 = vst.msk [vmem:[%s318 + $0xb0] sm:$0xff] %vm1365, %v1355
      %1389 = vst.msk [vmem:[%s318 + $0xb8] sm:$0xff] %vm1365, %v1356
      %1390 = vst.msk [vmem:[%s318 + $0xc0] sm:$0xff] %vm1365, %v1357
      %1391 = vst.msk [vmem:[%s318 + $0xc8] sm:$0xff] %vm1365, %v1358
      %1392 = vst.msk [vmem:[%s318 + $0xd0] sm:$0xff] %vm1365, %v1359
      %1393 = vst.msk [vmem:[%s318 + $0xd8] sm:$0xff] %vm1365, %v1360
      %1394 = vst.msk [vmem:[%s318 + $0xe0] sm:$0xff] %vm1365, %v1361
      %1395 = vst.msk [vmem:[%s318 + $0xe8] sm:$0xff] %vm1365, %v1362
      %1396 = vst.msk [vmem:[%s318 + $0xf0] sm:$0xff] %vm1365, %v1363
      %1397 = vst.msk [vmem:[%s318 + $0xf8] sm:$0xff] %vm1365, %v1364
      %s1398 = smul.u32 32, %s21
      %p1399 = scmp.lt.s32.totalorder %s1398, 63
      %s1400 = scalar_select %p1399, %s1398, 63
      %p1401 = scmp.lt.s32.totalorder %s22, 0
      %s1402 = scalar_select %p1401, %s22, 0
      %s1403 = sadd.s32 %s1402, %s1400
      %s1404 = smul.addr %s1403, 8
      %s1405 = scalar_lea.vmem %s6, %s1404
      // Predicated region
      $region45: #{mobilevit_block_forward.14} parent=43 // pred_check
        %p1406 = pneg %p195
      $region46: #{mobilevit_block_forward.14} parent=43 // pred_check_branch
        %1408 = sbr.rel (%p1406) target = $region48
      $region47: #{mobilevit_block_forward.14} parent=43 // pred_region
        %s1409 = smul.u32 32, %s21
      $region48: #{mobilevit_block_forward.14} parent=43 // pred_fallthru
        _
    $region44: #{mobilevit_block_forward.14} parent=5 // pred_fallthru
      _
    %p1410 = scmp.le.s32.totalorder 2, %s12
    // Predicated region
    $region49: #{mobilevit_block_forward.14} parent=5 // pred_check
      %p1411 = pneg %p1410
    $region50: #{mobilevit_block_forward.14} parent=5 // pred_check_branch
      %1413 = sbr.rel (%p1411) target = $region52
    $region51: #{mobilevit_block_forward.14} parent=5 // pred_region
      %s1414 = ssub.s32 %s12, 2
      // Predicated region
      $region53: #{mobilevit_block_forward.14} parent=51 // pred_check
        %p1415 = pneg %p201
      $region54: #{mobilevit_block_forward.14} parent=51 // pred_check_branch
        %1417 = sbr.rel (%p1415) target = $region56
      $region55: #{mobilevit_block_forward.14} parent=51 // pred_region
        %s1418 = smul.u32 32, %s23
        %p1419 = scmp.lt.s32.totalorder %s1418, 63
        %s1420 = scalar_select %p1419, %s1418, 63
        %p1421 = scmp.lt.s32.totalorder %s24, 0
        %s1422 = scalar_select %p1421, %s24, 0
        %s1423 = sadd.s32 %s1422, %s1420
        %s1424 = smul.addr %s1423, 8
        %s1425 = scalar_lea.vmem %s6, %s1424
      $region56: #{mobilevit_block_forward.14} parent=51 // pred_fallthru
        _
    $region52: #{mobilevit_block_forward.14} parent=5 // pred_fallthru
      _
  $region6: #{mobilevit_block_forward.14} parent=0 // loop_footer
    %s16 = sadd.s32 1, %s12
  $region7: #{mobilevit_block_forward.14} parent=0 // loop_footer_branch
    %11 = sbr.rel target = $region3
  $region8: #{mobilevit_block_forward.14} parent=0 // loop_exit
    _

// kernel: mobilevit_block_forward.15
$region0: #{mobilevit_block_forward.15}
  #allocation0 [shape = 'u32[]', space=smem, size = 0x4, offset = 0x4, fixed_abs, tag = 'smem constant byte address 0x4 - core index']
  #allocation1 [shape = 'u32[72,128]{1,0:T(1,128)}', space=vmem, size = 0x9000, scoped, tag = 'internal scratch']
  %s0 = inlined_call_operand.vmem [shape: f32[2,18,18,12], index: 0, kind: input, shape index: {}]
  %s1 = inlined_call_operand.vmem [shape: f32[9,12,8], index: 1, kind: input, shape index: {}]
  %s2 = inlined_call_operand.vmem [shape: f32[1,8], index: 2, kind: input, shape index: {}]
  %s3 = inlined_call_operand.vmem [shape: f32[1,8], index: 3, kind: input, shape index: {}]
  %s4 = inlined_call_operand.vmem [shape: f32[2,16,16,8], index: 4, kind: output, shape index: {}]
  %s5 = sld [smem:[#allocation0]]
  $region49: #{mobilevit_block_forward.15} parent=0
    _
  %s7 = ssub.s32 1, %s5
  %s8 = scalar_select 0, %s7, %s5
  loop: start=0, step=1, limit=4
  $region2: #{mobilevit_block_forward.15} parent=0 // loop_pre_header
    _
  $region3: #{mobilevit_block_forward.15} parent=0 // loop_header
    %s10 = sphi 0, %s14
    %p11 = scmp.ge.s32.totalorder %s10, 4
    %s20 = sphi 0, %s22
    %s23 = sphi 0, %s20
    %s24 = sphi 0, %s23
    %s40 = sphi 0, %s24
    %s44 = sphi 0, %s44
    %s46 = sphi 0, %s44
    %s47 = sphi 0, %s46
    %s61 = sphi 0, %s47
    %s65 = sphi 0, %s65
    %s67 = sphi 0, %s65
    %s68 = sphi 0, %s67
    %s82 = sphi 0, %s68
    %s86 = sphi 0, %s86
    %s88 = sphi 0, %s86
    %s89 = sphi 0, %s88
    %s103 = sphi 0, %s89
    %s109 = sphi 0, %s111
    %s112 = sphi 0, %s109
    %s113 = sphi 0, %s112
    %s129 = sphi 0, %s113
  $region4: #{mobilevit_block_forward.15} parent=0 // loop_header_branch
    %13 = sbr.rel (%p11) target = $region8
  $region5: #{mobilevit_block_forward.15} parent=0 // loop_body
    %s15 = ssub.s32 %s10, 1
    %s16 = ssub.s32 %s10, 2
    %s17 = sadd.s32 %s10, 1
    %s18 = ssub.s32 %s10, %s17
    %p19 = scmp.eq.s32.totalorder %s18, 0
    %s21 = sadd.s32 %s20, 1
    %s22 = scalar_select %p19, %s20, %s21
    %p25 = pneg %p19
    %p26 = scmp.eq.s32.totalorder %s10, 1
    %p27 = por %p25, %p26
    %p28 = scmp.ne.s32.totalorder %s20, %s23
    %p29 = scmp.eq.s32.totalorder %s10, 0
    %p30 = por %p28, %p29
    %p31 = scmp.ne.s32.totalorder %s20, %s23
    %p32 = scmp.eq.s32.totalorder %s15, 1
    %p33 = por %p31, %p32
    %p34 = scmp.ne.s32.totalorder %s23, %s24
    %p35 = scmp.eq.s32.totalorder %s15, 0
    %p36 = por %p34, %p35
    %p37 = scmp.ne.s32.totalorder %s23, %s24
    %p38 = scmp.eq.s32.totalorder %s16, 1
    %p39 = por %p37, %p38
    %p41 = scmp.ne.s32.totalorder %s24, %s40
    %p42 = scmp.eq.s32.totalorder %s16, 0
    %p43 = por %p41, %p42
    %s45 = sadd.s32 %s44, 1
    %p48 = scmp.eq.s32.totalorder %s10, 1
    %p49 = scmp.ne.s32.totalorder %s44, %s46
    %p50 = scmp.eq.s32.totalorder %s10, 0
    %p51 = por %p49, %p50
    %p52 = scmp.ne.s32.totalorder %s44, %s46
    %p53 = scmp.eq.s32.totalorder %s15, 1
    %p54 = por %p52, %p53
    %p55 = scmp.ne.s32.totalorder %s46, %s47
    %p56 = scmp.eq.s32.totalorder %s15, 0
    %p57 = por %p55, %p56
    %p58 = scmp.ne.s32.totalorder %s46, %s47
    %p59 = scmp.eq.s32.totalorder %s16, 1
    %p60 = por %p58, %p59
    %p62 = scmp.ne.s32.totalorder %s47, %s61
    %p63 = scmp.eq.s32.totalorder %s16, 0
    %p64 = por %p62, %p63
    %s66 = sadd.s32 %s65, 1
    %p69 = scmp.eq.s32.totalorder %s10, 1
    %p70 = scmp.ne.s32.totalorder %s65, %s67
    %p71 = scmp.eq.s32.totalorder %s10, 0
    %p72 = por %p70, %p71
    %p73 = scmp.ne.s32.totalorder %s65, %s67
    %p74 = scmp.eq.s32.totalorder %s15, 1
    %p75 = por %p73, %p74
    %p76 = scmp.ne.s32.totalorder %s67, %s68
    %p77 = scmp.eq.s32.totalorder %s15, 0
    %p78 = por %p76, %p77
    %p79 = scmp.ne.s32.totalorder %s67, %s68
    %p80 = scmp.eq.s32.totalorder %s16, 1
    %p81 = por %p79, %p80
    %p83 = scmp.ne.s32.totalorder %s68, %s82
    %p84 = scmp.eq.s32.totalorder %s16, 0
    %p85 = por %p83, %p84
    %s87 = sadd.s32 %s86, 1
    %p90 = scmp.eq.s32.totalorder %s10, 1
    %p91 = scmp.ne.s32.totalorder %s86, %s88
    %p92 = scmp.eq.s32.totalorder %s10, 0
    %p93 = por %p91, %p92
    %p94 = scmp.ne.s32.totalorder %s86, %s88
    %p95 = scmp.eq.s32.totalorder %s15, 1
    %p96 = por %p94, %p95
    %p97 = scmp.ne.s32.totalorder %s88, %s89
    %p98 = scmp.eq.s32.totalorder %s15, 0
    %p99 = por %p97, %p98
    %p100 = scmp.ne.s32.totalorder %s88, %s89
    %p101 = scmp.eq.s32.totalorder %s16, 1
    %p102 = por %p100, %p101
    %p104 = scmp.ne.s32.totalorder %s89, %s103
    %p105 = scmp.eq.s32.totalorder %s16, 0
    %p106 = por %p104, %p105
    %s107 = ssub.s32 %s10, %s17
    %p108 = scmp.eq.s32.totalorder %s107, 0
    %s110 = sadd.s32 %s109, 1
    %s111 = scalar_select %p108, %s109, %s110
    %p114 = pneg %p108
    %p115 = scmp.eq.s32.totalorder %s10, 1
    %p116 = por %p114, %p115
    %p117 = scmp.ne.s32.totalorder %s109, %s112
    %p118 = scmp.eq.s32.totalorder %s10, 0
    %p119 = por %p117, %p118
    %p120 = scmp.ne.s32.totalorder %s109, %s112
    %p121 = scmp.eq.s32.totalorder %s15, 1
    %p122 = por %p120, %p121
    %p123 = scmp.ne.s32.totalorder %s112, %s113
    %p124 = scmp.eq.s32.totalorder %s15, 0
    %p125 = por %p123, %p124
    %p126 = scmp.ne.s32.totalorder %s112, %s113
    %p127 = scmp.eq.s32.totalorder %s16, 1
    %p128 = por %p126, %p127
    %p130 = scmp.ne.s32.totalorder %s113, %s129
    %p131 = scmp.eq.s32.totalorder %s16, 0
    %p132 = por %p130, %p131
    %p133 = scmp.le.s32.totalorder 1, %s10
    %p134 = scmp.lt.s32.totalorder %s10, 3
    %p135 = pnand %p133, %p134
    %p136 = pneg %p135
    // Predicated region
    $region9: #{mobilevit_block_forward.15} parent=5 // pred_check
      _
    $region10: #{mobilevit_block_forward.15} parent=5 // pred_check_branch
      %138 = sbr.rel (%p135) target = $region12
    $region11: #{mobilevit_block_forward.15} parent=5 // pred_region
      %s139 = ssub.s32 %s10, 1
      // Predicated region
      $region13: #{mobilevit_block_forward.15} parent=11 // pred_check
        %p140 = pneg %p57
      $region14: #{mobilevit_block_forward.15} parent=11 // pred_check_branch
        %142 = sbr.rel (%p140) target = $region16
      $region15: #{mobilevit_block_forward.15} parent=11 // pred_region
        _
      $region16: #{mobilevit_block_forward.15} parent=11 // pred_fallthru
        _
      // Predicated region
      $region17: #{mobilevit_block_forward.15} parent=11 // pred_check
        %p143 = pneg %p78
      $region18: #{mobilevit_block_forward.15} parent=11 // pred_check_branch
        %145 = sbr.rel (%p143) target = $region20
      $region19: #{mobilevit_block_forward.15} parent=11 // pred_region
        _
      $region20: #{mobilevit_block_forward.15} parent=11 // pred_fallthru
        _
      // Predicated region
      $region21: #{mobilevit_block_forward.15} parent=11 // pred_check
        %p146 = pneg %p99
      $region22: #{mobilevit_block_forward.15} parent=11 // pred_check_branch
        %148 = sbr.rel (%p146) target = $region24
      $region23: #{mobilevit_block_forward.15} parent=11 // pred_region
        _
      $region24: #{mobilevit_block_forward.15} parent=11 // pred_fallthru
        _
    $region12: #{mobilevit_block_forward.15} parent=5 // pred_fallthru
      _
    %p149 = scmp.lt.s32.totalorder %s10, 2
    // Predicated region
    $region25: #{mobilevit_block_forward.15} parent=5 // pred_check
      %p150 = pneg %p149
    $region26: #{mobilevit_block_forward.15} parent=5 // pred_check_branch
      %152 = sbr.rel (%p150) target = $region28
    $region27: #{mobilevit_block_forward.15} parent=5 // pred_region
      // Predicated region
      $region29: #{mobilevit_block_forward.15} parent=27 // pred_check
        %p153 = pneg %p30
      $region30: #{mobilevit_block_forward.15} parent=27 // pred_check_branch
        %155 = sbr.rel (%p153) target = $region32
      $region31: #{mobilevit_block_forward.15} parent=27 // pred_region
        %p156 = scmp.lt.s32.totalorder %s10, 1
        %s157 = scalar_select %p156, %s10, 1
        %s158 = smul.addr %s157, 54
        %s159 = smul.addr %s158, 8
        %s160 = scalar_lea.vmem %s0, %s159
      $region32: #{mobilevit_block_forward.15} parent=27 // pred_fallthru
        _
    $region28: #{mobilevit_block_forward.15} parent=5 // pred_fallthru
      _
    %p161 = scmp.le.s32.totalorder 1, %s10
    %p162 = scmp.lt.s32.totalorder %s10, 3
    %p163 = pnand %p161, %p162
    %p164 = pneg %p163
    // Predicated region
    $region33: #{mobilevit_block_forward.15} parent=5 // pred_check
      _
    $region34: #{mobilevit_block_forward.15} parent=5 // pred_check_branch
      %166 = sbr.rel (%p163) target = $region36
    $region35: #{mobilevit_block_forward.15} parent=5 // pred_region
      %s167 = ssub.s32 %s10, 1
      %p168 = scmp.lt.s32.totalorder %s15, 1
      %s169 = scalar_select %p168, %s15, 1
      %s170 = smul.addr %s169, 54
      %s171 = smul.addr %s170, 8
      %s172 = scalar_lea.vmem %s0, %s171
      %p173 = pneg %p36
      %p174 = pneg %p33
      %p175 = pneg %p57
      %p176 = pneg %p54
      %p177 = pneg %p78
      %p178 = pneg %p75
      %p179 = pneg %p99
      %p180 = pneg %p96
      %p181 = pneg %p125
      %p182 = pneg %p122
      %p183 = scmp.lt.s32.totalorder %s15, 1
      %s184 = scalar_select %p183, %s15, 1
      %s185 = smul.addr %s184, 32
      %s186 = smul.addr %s185, 8
      %s187 = scalar_lea.vmem %s4, %s186
      %p188 = scmp.lt.s32.totalorder %s15, 1
      %s189 = scalar_select %p188, %s15, 1
      %s190 = smul.addr %s189, 54
      %s191 = smul.addr %s190, 8
      %s192 = scalar_lea.vmem %s0, %s191
      %p193 = scmp.lt.s32.totalorder %s15, 1
      %s194 = scalar_select %p193, %s15, 1
      %s195 = smul.addr %s194, 32
      %s196 = smul.addr %s195, 8
      %s197 = scalar_lea.vmem %s4, %s196
      %v199 = vld [vmem:[%s192] sm:$0xff]
      %v200 = vld [vmem:[%s192 + $0x8] sm:$0xff]
      %v201 = vld [vmem:[%s192 + $0x10] sm:$0x3]
      %v202 = vld [vmem:[%s192 + $0x18] sm:$0xff]
      %v203 = vld [vmem:[%s192 + $0x20] sm:$0xff]
      %v204 = vld [vmem:[%s192 + $0x28] sm:$0x3]
      %v205 = vld [vmem:[%s192 + $0x30] sm:$0xff]
      %v206 = vld [vmem:[%s192 + $0x38] sm:$0xff]
      %v207 = vld [vmem:[%s192 + $0x40] sm:$0x3]
      %v208 = vld [vmem:[%s192 + $0x48] sm:$0xff]
      %v209 = vld [vmem:[%s192 + $0x50] sm:$0xff]
      %v210 = vld [vmem:[%s192 + $0x58] sm:$0x3]
      %v211 = vld [vmem:[%s192 + $0x60] sm:$0xff]
      %v212 = vld [vmem:[%s192 + $0x68] sm:$0xff]
      %v213 = vld [vmem:[%s192 + $0x70] sm:$0x3]
      %v214 = vld [vmem:[%s192 + $0x78] sm:$0xff]
      %v215 = vld [vmem:[%s192 + $0x80] sm:$0xff]
      %v216 = vld [vmem:[%s192 + $0x88] sm:$0x3]
      %v217 = vld [vmem:[%s192 + $0x90] sm:$0xff]
      %v218 = vld [vmem:[%s192 + $0x98] sm:$0xff]
      %v219 = vld [vmem:[%s192 + $0xa0] sm:$0x3]
      %v220 = vld [vmem:[%s192 + $0xa8] sm:$0xff]
      %v221 = vld [vmem:[%s192 + $0xb0] sm:$0xff]
      %v222 = vld [vmem:[%s192 + $0xb8] sm:$0x3]
      %v223 = vld [vmem:[%s192 + $0xc0] sm:$0xff]
      %v224 = vld [vmem:[%s192 + $0xc8] sm:$0xff]
      %v225 = vld [vmem:[%s192 + $0xd0] sm:$0x3]
      %v226 = vld [vmem:[%s192 + $0xd8] sm:$0xff]
      %v227 = vld [vmem:[%s192 + $0xe0] sm:$0xff]
      %v228 = vld [vmem:[%s192 + $0xe8] sm:$0x3]
      %v229 = vld [vmem:[%s192 + $0xf0] sm:$0xff]
      %v230 = vld [vmem:[%s192 + $0xf8] sm:$0xff]
      %v231 = vld [vmem:[%s192 + $0x100] sm:$0x3]
      %v232 = vld [vmem:[%s192 + $0x108] sm:$0xff]
      %v233 = vld [vmem:[%s192 + $0x110] sm:$0xff]
      %v234 = vld [vmem:[%s192 + $0x118] sm:$0x3]
      %v235 = vld [vmem:[%s192 + $0x120] sm:$0xff]
      %v236 = vld [vmem:[%s192 + $0x128] sm:$0xff]
      %v237 = vld [vmem:[%s192 + $0x130] sm:$0x3]
      %v238 = vld [vmem:[%s192 + $0x138] sm:$0xff]
      %v239 = vld [vmem:[%s192 + $0x140] sm:$0xff]
      %v240 = vld [vmem:[%s192 + $0x148] sm:$0x3]
      %v241 = vld [vmem:[%s192 + $0x150] sm:$0xff]
      %v242 = vld [vmem:[%s192 + $0x158] sm:$0xff]
      %v243 = vld [vmem:[%s192 + $0x160] sm:$0x3]
      %v244 = vld [vmem:[%s192 + $0x168] sm:$0xff]
      %v245 = vld [vmem:[%s192 + $0x170] sm:$0xff]
      %v246 = vld [vmem:[%s192 + $0x178] sm:$0x3]
      %v247 = vld [vmem:[%s192 + $0x180] sm:$0xff]
      %v248 = vld [vmem:[%s192 + $0x188] sm:$0xff]
      %v249 = vld [vmem:[%s192 + $0x190] sm:$0x3]
      %v250 = vld [vmem:[%s192 + $0x198] sm:$0xff]
      %v251 = vld [vmem:[%s192 + $0x1a0] sm:$0xff]
      %v252 = vld [vmem:[%s192 + $0x1a8] sm:$0x3]
      %v253 = vpack.c.bf16 %v200, %v199
      %v254 = vpack.c.bf16 %v203, %v202
      %v255 = vpack.c.bf16 %v206, %v205
      %v256 = vpack.c.bf16 %v209, %v208
      %v257 = vpack.c.bf16 %v212, %v211
      %v258 = vpack.c.bf16 %v215, %v214
      %v259 = vpack.c.bf16 %v218, %v217
      %v260 = vpack.c.bf16 %v221, %v220
      %v261 = vpack.c.bf16 %v224, %v223
      %v262 = vpack.c.bf16 %v227, %v226
      %v263 = vpack.c.bf16 %v230, %v229
      %v264 = vpack.c.bf16 %v233, %v232
      %v265 = vpack.c.bf16 %v236, %v235
      %v266 = vpack.c.bf16 %v239, %v238
      %v267 = vpack.c.bf16 %v242, %v241
      %v268 = vpack.c.bf16 %v245, %v244
      %v269 = vld [vmem:[%s1] sm:$0xff]
      %v270 = vld [vmem:[%s1 + $0x8] sm:$0xf]
      %v271 = vpack.c.bf16 %v270, %v269
      %vm320 = vcmask 1046528
      %v321 = vrot.slane %v199, 1
      %v322 = vrot.slane %v200, 1
      %v323 = vsel %vm320, %v321, %v322
      %v324 = vrot.slane %v201, 1
      %v325 = vsel %vm320, %v322, %v324
      %v326 = vrot.slane %v202, 1
      %v327 = vrot.slane %v203, 1
      %v328 = vsel %vm320, %v326, %v327
      %v329 = vrot.slane %v204, 1
      %v330 = vsel %vm320, %v327, %v329
      %v331 = vrot.slane %v205, 1
      %v332 = vrot.slane %v206, 1
      %v333 = vsel %vm320, %v331, %v332
      %v334 = vrot.slane %v207, 1
      %v335 = vsel %vm320, %v332, %v334
      %v336 = vrot.slane %v208, 1
      %v337 = vrot.slane %v209, 1
      %v338 = vsel %vm320, %v336, %v337
      %v339 = vrot.slane %v210, 1
      %v340 = vsel %vm320, %v337, %v339
      %v341 = vrot.slane %v211, 1
      %v342 = vrot.slane %v212, 1
      %v343 = vsel %vm320, %v341, %v342
      %v344 = vrot.slane %v213, 1
      %v345 = vsel %vm320, %v342, %v344
      %v346 = vrot.slane %v214, 1
      %v347 = vrot.slane %v215, 1
      %v348 = vsel %vm320, %v346, %v347
      %v349 = vrot.slane %v216, 1
      %v350 = vsel %vm320, %v347, %v349
      %v351 = vrot.slane %v217, 1
      %v352 = vrot.slane %v218, 1
      %v353 = vsel %vm320, %v351, %v352
      %v354 = vrot.slane %v219, 1
      %v355 = vsel %vm320, %v352, %v354
      %v356 = vrot.slane %v220, 1
      %v357 = vrot.slane %v221, 1
      %v358 = vsel %vm320, %v356, %v357
      %v359 = vrot.slane %v222, 1
      %v360 = vsel %vm320, %v357, %v359
      %v361 = vrot.slane %v223, 1
      %v362 = vrot.slane %v224, 1
      %v363 = vsel %vm320, %v361, %v362
      %v364 = vrot.slane %v225, 1
      %v365 = vsel %vm320, %v362, %v364
      %v366 = vrot.slane %v226, 1
      %v367 = vrot.slane %v227, 1
      %v368 = vsel %vm320, %v366, %v367
      %v369 = vrot.slane %v228, 1
      %v370 = vsel %vm320, %v367, %v369
      %v371 = vrot.slane %v229, 1
      %v372 = vrot.slane %v230, 1
      %v373 = vsel %vm320, %v371, %v372
      %v374 = vrot.slane %v231, 1
      %v375 = vsel %vm320, %v372, %v374
      %v376 = vrot.slane %v232, 1
      %v377 = vrot.slane %v233, 1
      %v378 = vsel %vm320, %v376, %v377
      %v379 = vrot.slane %v234, 1
      %v380 = vsel %vm320, %v377, %v379
      %v381 = vrot.slane %v235, 1
      %v382 = vrot.slane %v236, 1
      %v383 = vsel %vm320, %v381, %v382
      %v384 = vrot.slane %v237, 1
      %v385 = vsel %vm320, %v382, %v384
      %v386 = vrot.slane %v238, 1
      %v387 = vrot.slane %v239, 1
      %v388 = vsel %vm320, %v386, %v387
      %v389 = vrot.slane %v240, 1
      %v390 = vsel %vm320, %v387, %v389
      %v391 = vrot.slane %v241, 1
      %v392 = vrot.slane %v242, 1
      %v393 = vsel %vm320, %v391, %v392
      %v394 = vrot.slane %v243, 1
      %v395 = vsel %vm320, %v392, %v394
      %v396 = vrot.slane %v244, 1
      %v397 = vrot.slane %v245, 1
      %v398 = vsel %vm320, %v396, %v397
      %v399 = vrot.slane %v246, 1
      %v400 = vsel %vm320, %v397, %v399
      %v433 = vpack.c.bf16 %v325, %v323
      %v434 = vpack.c.bf16 %v330, %v328
      %v435 = vpack.c.bf16 %v335, %v333
      %v436 = vpack.c.bf16 %v340, %v338
      %v437 = vpack.c.bf16 %v345, %v343
      %v438 = vpack.c.bf16 %v350, %v348
      %v439 = vpack.c.bf16 %v355, %v353
      %v440 = vpack.c.bf16 %v360, %v358
      %v441 = vpack.c.bf16 %v365, %v363
      %v442 = vpack.c.bf16 %v370, %v368
      %v443 = vpack.c.bf16 %v375, %v373
      %v444 = vpack.c.bf16 %v380, %v378
      %v445 = vpack.c.bf16 %v385, %v383
      %v446 = vpack.c.bf16 %v390, %v388
      %v447 = vpack.c.bf16 %v395, %v393
      %v448 = vpack.c.bf16 %v400, %v398
      %s449 = scalar_lea.vmem %s1, 16
      %v450 = vld [vmem:[%s449] sm:$0xff]
      %v451 = vld [vmem:[%s449 + $0x8] sm:$0xf]
      %v452 = vpack.c.bf16 %v451, %v450
      %vm453 = vcmask 97280
      %v455 = vsel %vm453, %v433, 0
      %v458 = vsel %vm453, %v434, 0
      %v461 = vsel %vm453, %v435, 0
      %v464 = vsel %vm453, %v436, 0
      %v467 = vsel %vm453, %v437, 0
      %v470 = vsel %vm453, %v438, 0
      %v473 = vsel %vm453, %v439, 0
      %v476 = vsel %vm453, %v440, 0
      %v479 = vsel %vm453, %v441, 0
      %v482 = vsel %vm453, %v442, 0
      %v485 = vsel %vm453, %v443, 0
      %v488 = vsel %vm453, %v444, 0
      %v491 = vsel %vm453, %v445, 0
      %v494 = vsel %vm453, %v446, 0
      %v497 = vsel %vm453, %v447, 0
      %v500 = vsel %vm453, %v448, 0
      %vm502 = vcmask 1045504
      %v504 = vsel %vm502, %v452, 0
      %506 = vmatpush.bf16.msra.mxu0 0
      %507 = vmatpush.bf16.msra.mxu0 0
      %508 = vmatpush.bf16.msra.mxu0 0
      %509 = vmatpush.bf16.msra.mxu0 0
      %510 = vmatpush.bf16.msra.mxu0 0
      %511 = vmatpush.bf16.msra.mxu0 0
      %512 = vmatpush.bf16.msra.mxu0 0
      %513 = vmatpush.bf16.msra.mxu0 %v504
      %514 = vmatmul.bf16.gmra.mxu0 %v455
      %v515 = vpop.f32.mrf.mxu0
      %v516 = vadd.f32 0.0, %v515
      %v517 = vpop.f32.mrf.mxu0
      %v518 = vadd.f32 0.0, %v517
      %519 = vmatmul.bf16.gmra.mxu0 %v458
      %v520 = vpop.f32.mrf.mxu0
      %v521 = vadd.f32 0.0, %v520
      %v522 = vpop.f32.mrf.mxu0
      %v523 = vadd.f32 0.0, %v522
      %524 = vmatmul.bf16.gmra.mxu0 %v461
      %v525 = vpop.f32.mrf.mxu0
      %v526 = vadd.f32 0.0, %v525
      %v527 = vpop.f32.mrf.mxu0
      %v528 = vadd.f32 0.0, %v527
      %529 = vmatmul.bf16.gmra.mxu0 %v464
      %v530 = vpop.f32.mrf.mxu0
      %v531 = vadd.f32 0.0, %v530
      %v532 = vpop.f32.mrf.mxu0
      %v533 = vadd.f32 0.0, %v532
      %534 = vmatmul.bf16.gmra.mxu0 %v467
      %v535 = vpop.f32.mrf.mxu0
      %v536 = vadd.f32 0.0, %v535
      %v537 = vpop.f32.mrf.mxu0
      %v538 = vadd.f32 0.0, %v537
      %539 = vmatmul.bf16.gmra.mxu0 %v470
      %v540 = vpop.f32.mrf.mxu0
      %v541 = vadd.f32 0.0, %v540
      %v542 = vpop.f32.mrf.mxu0
      %v543 = vadd.f32 0.0, %v542
      %544 = vmatmul.bf16.gmra.mxu0 %v473
      %v545 = vpop.f32.mrf.mxu0
      %v546 = vadd.f32 0.0, %v545
      %v547 = vpop.f32.mrf.mxu0
      %v548 = vadd.f32 0.0, %v547
      %549 = vmatmul.bf16.gmra.mxu0 %v476
      %v550 = vpop.f32.mrf.mxu0
      %v551 = vadd.f32 0.0, %v550
      %v552 = vpop.f32.mrf.mxu0
      %v553 = vadd.f32 0.0, %v552
      %554 = vmatmul.bf16.gmra.mxu0 %v479
      %v555 = vpop.f32.mrf.mxu0
      %v556 = vadd.f32 0.0, %v555
      %v557 = vpop.f32.mrf.mxu0
      %v558 = vadd.f32 0.0, %v557
      %559 = vmatmul.bf16.gmra.mxu0 %v482
      %v560 = vpop.f32.mrf.mxu0
      %v561 = vadd.f32 0.0, %v560
      %v562 = vpop.f32.mrf.mxu0
      %v563 = vadd.f32 0.0, %v562
      %564 = vmatmul.bf16.gmra.mxu0 %v485
      %v565 = vpop.f32.mrf.mxu0
      %v566 = vadd.f32 0.0, %v565
      %v567 = vpop.f32.mrf.mxu0
      %v568 = vadd.f32 0.0, %v567
      %569 = vmatmul.bf16.gmra.mxu0 %v488
      %v570 = vpop.f32.mrf.mxu0
      %v571 = vadd.f32 0.0, %v570
      %v572 = vpop.f32.mrf.mxu0
      %v573 = vadd.f32 0.0, %v572
      %574 = vmatmul.bf16.gmra.mxu0 %v491
      %v575 = vpop.f32.mrf.mxu0
      %v576 = vadd.f32 0.0, %v575
      %v577 = vpop.f32.mrf.mxu0
      %v578 = vadd.f32 0.0, %v577
      %579 = vmatmul.bf16.gmra.mxu0 %v494
      %v580 = vpop.f32.mrf.mxu0
      %v581 = vadd.f32 0.0, %v580
      %v582 = vpop.f32.mrf.mxu0
      %v583 = vadd.f32 0.0, %v582
      %584 = vmatmul.bf16.gmra.mxu0 %v497
      %v585 = vpop.f32.mrf.mxu0
      %v586 = vadd.f32 0.0, %v585
      %v587 = vpop.f32.mrf.mxu0
      %v588 = vadd.f32 0.0, %v587
      %589 = vmatmul.bf16.gmra.mxu0 %v500
      %v590 = vpop.f32.mrf.mxu0
      %v591 = vadd.f32 0.0, %v590
      %v592 = vpop.f32.mrf.mxu0
      %v593 = vadd.f32 0.0, %v592
      %594 = vdwg.mxu0
      %v596 = vsel %vm453, %v253, 0
      %v599 = vsel %vm453, %v254, 0
      %v602 = vsel %vm453, %v255, 0
      %v605 = vsel %vm453, %v256, 0
      %v608 = vsel %vm453, %v257, 0
      %v611 = vsel %vm453, %v258, 0
      %v614 = vsel %vm453, %v259, 0
      %v617 = vsel %vm453, %v260, 0
      %v620 = vsel %vm453, %v261, 0
      %v623 = vsel %vm453, %v262, 0
      %v626 = vsel %vm453, %v263, 0
      %v629 = vsel %vm453, %v264, 0
      %v632 = vsel %vm453, %v265, 0
      %v635 = vsel %vm453, %v266, 0
      %v638 = vsel %vm453, %v267, 0
      %v641 = vsel %vm453, %v268, 0
      %v644 = vsel %vm502, %v271, 0
      %646 = vmatpush.bf16.msra.mxu0 0
      %647 = vmatpush.bf16.msra.mxu0 0
      %648 = vmatpush.bf16.msra.mxu0 0
      %649 = vmatpush.bf16.msra.mxu0 0
      %650 = vmatpush.bf16.msra.mxu0 0
      %651 = vmatpush.bf16.msra.mxu0 0
      %652 = vmatpush.bf16.msra.mxu0 0
      %653 = vmatpush.bf16.msra.mxu0 %v644
      %654 = vmatmul.bf16.gmra.mxu0 %v596
      %v655 = vpop.f32.mrf.mxu0
      %v656 = vadd.f32 %v516, %v655
      %v657 = vpop.f32.mrf.mxu0
      %v658 = vadd.f32 %v518, %v657
      %659 = vmatmul.bf16.gmra.mxu0 %v599
      %v660 = vpop.f32.mrf.mxu0
      %v661 = vadd.f32 %v521, %v660
      %v662 = vpop.f32.mrf.mxu0
      %v663 = vadd.f32 %v523, %v662
      %664 = vmatmul.bf16.gmra.mxu0 %v602
      %v665 = vpop.f32.mrf.mxu0
      %v666 = vadd.f32 %v526, %v665
      %v667 = vpop.f32.mrf.mxu0
      %v668 = vadd.f32 %v528, %v667
      %669 = vmatmul.bf16.gmra.mxu0 %v605
      %v670 = vpop.f32.mrf.mxu0
      %v671 = vadd.f32 %v531, %v670
      %v672 = vpop.f32.mrf.mxu0
      %v673 = vadd.f32 %v533, %v672
      %674 = vmatmul.bf16.gmra.mxu0 %v608
      %v675 = vpop.f32.mrf.mxu0
      %v676 = vadd.f32 %v536, %v675
      %v677 = vpop.f32.mrf.mxu0
      %v678 = vadd.f32 %v538, %v677
      %679 = vmatmul.bf16.gmra.mxu0 %v611
      %v680 = vpop.f32.mrf.mxu0
      %v681 = vadd.f32 %v541, %v680
      %v682 = vpop.f32.mrf.mxu0
      %v683 = vadd.f32 %v543, %v682
      %684 = vmatmul.bf16.gmra.mxu0 %v614
      %v685 = vpop.f32.mrf.mxu0
      %v686 = vadd.f32 %v546, %v685
      %v687 = vpop.f32.mrf.mxu0
      %v688 = vadd.f32 %v548, %v687
      %689 = vmatmul.bf16.gmra.mxu0 %v617
      %v690 = vpop.f32.mrf.mxu0
      %v691 = vadd.f32 %v551, %v690
      %v692 = vpop.f32.mrf.mxu0
      %v693 = vadd.f32 %v553, %v692
      %694 = vmatmul.bf16.gmra.mxu0 %v620
      %v695 = vpop.f32.mrf.mxu0
      %v696 = vadd.f32 %v556, %v695
      %v697 = vpop.f32.mrf.mxu0
      %v698 = vadd.f32 %v558, %v697
      %699 = vmatmul.bf16.gmra.mxu0 %v623
      %v700 = vpop.f32.mrf.mxu0
      %v701 = vadd.f32 %v561, %v700
      %v702 = vpop.f32.mrf.mxu0
      %v703 = vadd.f32 %v563, %v702
      %704 = vmatmul.bf16.gmra.mxu0 %v626
      %v705 = vpop.f32.mrf.mxu0
      %v706 = vadd.f32 %v566, %v705
      %v707 = vpop.f32.mrf.mxu0
      %v708 = vadd.f32 %v568, %v707
      %709 = vmatmul.bf16.gmra.mxu0 %v629
      %v710 = vpop.f32.mrf.mxu0
      %v711 = vadd.f32 %v571, %v710
      %v712 = vpop.f32.mrf.mxu0
      %v713 = vadd.f32 %v573, %v712
      %714 = vmatmul.bf16.gmra.mxu0 %v632
      %v715 = vpop.f32.mrf.mxu0
      %v716 = vadd.f32 %v576, %v715
      %v717 = vpop.f32.mrf.mxu0
      %v718 = vadd.f32 %v578, %v717
      %719 = vmatmul.bf16.gmra.mxu0 %v635
      %v720 = vpop.f32.mrf.mxu0
      %v721 = vadd.f32 %v581, %v720
      %v722 = vpop.f32.mrf.mxu0
      %v723 = vadd.f32 %v583, %v722
      %724 = vmatmul.bf16.gmra.mxu0 %v638
      %v725 = vpop.f32.mrf.mxu0
      %v726 = vadd.f32 %v586, %v725
      %v727 = vpop.f32.mrf.mxu0
      %v728 = vadd.f32 %v588, %v727
      %729 = vmatmul.bf16.gmra.mxu0 %v641
      %v730 = vpop.f32.mrf.mxu0
      %v731 = vadd.f32 %v591, %v730
      %v732 = vpop.f32.mrf.mxu0
      %v733 = vadd.f32 %v593, %v732
      %734 = vdwg.mxu0
      %v735 = vrot.slane %v199, 2
      %v736 = vrot.slane %v200, 2
      %v737 = vsel %vm502, %v735, %v736
      %v738 = vrot.slane %v201, 2
      %v739 = vsel %vm502, %v736, %v738
      %v740 = vrot.slane %v202, 2
      %v741 = vrot.slane %v203, 2
      %v742 = vsel %vm502, %v740, %v741
      %v743 = vrot.slane %v204, 2
      %v744 = vsel %vm502, %v741, %v743
      %v745 = vrot.slane %v205, 2
      %v746 = vrot.slane %v206, 2
      %v747 = vsel %vm502, %v745, %v746
      %v748 = vrot.slane %v207, 2
      %v749 = vsel %vm502, %v746, %v748
      %v750 = vrot.slane %v208, 2
      %v751 = vrot.slane %v209, 2
      %v752 = vsel %vm502, %v750, %v751
      %v753 = vrot.slane %v210, 2
      %v754 = vsel %vm502, %v751, %v753
      %v755 = vrot.slane %v211, 2
      %v756 = vrot.slane %v212, 2
      %v757 = vsel %vm502, %v755, %v756
      %v758 = vrot.slane %v213, 2
      %v759 = vsel %vm502, %v756, %v758
      %v760 = vrot.slane %v214, 2
      %v761 = vrot.slane %v215, 2
      %v762 = vsel %vm502, %v760, %v761
      %v763 = vrot.slane %v216, 2
      %v764 = vsel %vm502, %v761, %v763
      %v765 = vrot.slane %v217, 2
      %v766 = vrot.slane %v218, 2
      %v767 = vsel %vm502, %v765, %v766
      %v768 = vrot.slane %v219, 2
      %v769 = vsel %vm502, %v766, %v768
      %v770 = vrot.slane %v220, 2
      %v771 = vrot.slane %v221, 2
      %v772 = vsel %vm502, %v770, %v771
      %v773 = vrot.slane %v222, 2
      %v774 = vsel %vm502, %v771, %v773
      %v775 = vrot.slane %v223, 2
      %v776 = vrot.slane %v224, 2
      %v777 = vsel %vm502, %v775, %v776
      %v778 = vrot.slane %v225, 2
      %v779 = vsel %vm502, %v776, %v778
      %v780 = vrot.slane %v226, 2
      %v781 = vrot.slane %v227, 2
      %v782 = vsel %vm502, %v780, %v781
      %v783 = vrot.slane %v228, 2
      %v784 = vsel %vm502, %v781, %v783
      %v785 = vrot.slane %v229, 2
      %v786 = vrot.slane %v230, 2
      %v787 = vsel %vm502, %v785, %v786
      %v788 = vrot.slane %v231, 2
      %v789 = vsel %vm502, %v786, %v788
      %v790 = vrot.slane %v232, 2
      %v791 = vrot.slane %v233, 2
      %v792 = vsel %vm502, %v790, %v791
      %v793 = vrot.slane %v234, 2
      %v794 = vsel %vm502, %v791, %v793
      %v795 = vrot.slane %v235, 2
      %v796 = vrot.slane %v236, 2
      %v797 = vsel %vm502, %v795, %v796
      %v798 = vrot.slane %v237, 2
      %v799 = vsel %vm502, %v796, %v798
      %v800 = vrot.slane %v238, 2
      %v801 = vrot.slane %v239, 2
      %v802 = vsel %vm502, %v800, %v801
      %v803 = vrot.slane %v240, 2
      %v804 = vsel %vm502, %v801, %v803
      %v805 = vrot.slane %v241, 2
      %v806 = vrot.slane %v242, 2
      %v807 = vsel %vm502, %v805, %v806
      %v808 = vrot.slane %v243, 2
      %v809 = vsel %vm502, %v806, %v808
      %v810 = vrot.slane %v244, 2
      %v811 = vrot.slane %v245, 2
      %v812 = vsel %vm502, %v810, %v811
      %v813 = vrot.slane %v246, 2
      %v814 = vsel %vm502, %v811, %v813
      %v847 = vpack.c.bf16 %v739, %v737
      %v848 = vpack.c.bf16 %v744, %v742
      %v849 = vpack.c.bf16 %v749, %v747
      %v850 = vpack.c.bf16 %v754, %v752
      %v851 = vpack.c.bf16 %v759, %v757
      %v852 = vpack.c.bf16 %v764, %v762
      %v853 = vpack.c.bf16 %v769, %v767
      %v854 = vpack.c.bf16 %v774, %v772
      %v855 = vpack.c.bf16 %v779, %v777
      %v856 = vpack.c.bf16 %v784, %v782
      %v857 = vpack.c.bf16 %v789, %v787
      %v858 = vpack.c.bf16 %v794, %v792
      %v859 = vpack.c.bf16 %v799, %v797
      %v860 = vpack.c.bf16 %v804, %v802
      %v861 = vpack.c.bf16 %v809, %v807
      %v862 = vpack.c.bf16 %v814, %v812
      %s863 = scalar_lea.vmem %s1, 32
      %v864 = vld [vmem:[%s863] sm:$0xff]
      %v865 = vld [vmem:[%s863 + $0x8] sm:$0xf]
      %v866 = vpack.c.bf16 %v865, %v864
      %v868 = vsel %vm453, %v847, 0
      %v871 = vsel %vm453, %v848, 0
      %v874 = vsel %vm453, %v849, 0
      %v877 = vsel %vm453, %v850, 0
      %v880 = vsel %vm453, %v851, 0
      %v883 = vsel %vm453, %v852, 0
      %v886 = vsel %vm453, %v853, 0
      %v889 = vsel %vm453, %v854, 0
      %v892 = vsel %vm453, %v855, 0
      %v895 = vsel %vm453, %v856, 0
      %v898 = vsel %vm453, %v857, 0
      %v901 = vsel %vm453, %v858, 0
      %v904 = vsel %vm453, %v859, 0
      %v907 = vsel %vm453, %v860, 0
      %v910 = vsel %vm453, %v861, 0
      %v913 = vsel %vm453, %v862, 0
      %v916 = vsel %vm502, %v866, 0
      %918 = vmatpush.bf16.msra.mxu0 0
      %919 = vmatpush.bf16.msra.mxu0 0
      %920 = vmatpush.bf16.msra.mxu0 0
      %921 = vmatpush.bf16.msra.mxu0 0
      %922 = vmatpush.bf16.msra.mxu0 0
      %923 = vmatpush.bf16.msra.mxu0 0
      %924 = vmatpush.bf16.msra.mxu0 0
      %925 = vmatpush.bf16.msra.mxu0 %v916
      %926 = vmatmul.bf16.gmra.mxu0 %v868
      %v927 = vpop.f32.mrf.mxu0
      %v928 = vadd.f32 0.0, %v927
      %v929 = vpop.f32.mrf.mxu0
      %v930 = vadd.f32 0.0, %v929
      %931 = vmatmul.bf16.gmra.mxu0 %v871
      %v932 = vpop.f32.mrf.mxu0
      %v933 = vadd.f32 0.0, %v932
      %v934 = vpop.f32.mrf.mxu0
      %v935 = vadd.f32 0.0, %v934
      %936 = vmatmul.bf16.gmra.mxu0 %v874
      %v937 = vpop.f32.mrf.mxu0
      %v938 = vadd.f32 0.0, %v937
      %v939 = vpop.f32.mrf.mxu0
      %v940 = vadd.f32 0.0, %v939
      %941 = vmatmul.bf16.gmra.mxu0 %v877
      %v942 = vpop.f32.mrf.mxu0
      %v943 = vadd.f32 0.0, %v942
      %v944 = vpop.f32.mrf.mxu0
      %v945 = vadd.f32 0.0, %v944
      %946 = vmatmul.bf16.gmra.mxu0 %v880
      %v947 = vpop.f32.mrf.mxu0
      %v948 = vadd.f32 0.0, %v947
      %v949 = vpop.f32.mrf.mxu0
      %v950 = vadd.f32 0.0, %v949
      %951 = vmatmul.bf16.gmra.mxu0 %v883
      %v952 = vpop.f32.mrf.mxu0
      %v953 = vadd.f32 0.0, %v952
      %v954 = vpop.f32.mrf.mxu0
      %v955 = vadd.f32 0.0, %v954
      %956 = vmatmul.bf16.gmra.mxu0 %v886
      %v957 = vpop.f32.mrf.mxu0
      %v958 = vadd.f32 0.0, %v957
      %v959 = vpop.f32.mrf.mxu0
      %v960 = vadd.f32 0.0, %v959
      %961 = vmatmul.bf16.gmra.mxu0 %v889
      %v962 = vpop.f32.mrf.mxu0
      %v963 = vadd.f32 0.0, %v962
      %v964 = vpop.f32.mrf.mxu0
      %v965 = vadd.f32 0.0, %v964
      %966 = vmatmul.bf16.gmra.mxu0 %v892
      %v967 = vpop.f32.mrf.mxu0
      %v968 = vadd.f32 0.0, %v967
      %v969 = vpop.f32.mrf.mxu0
      %v970 = vadd.f32 0.0, %v969
      %971 = vmatmul.bf16.gmra.mxu0 %v895
      %v972 = vpop.f32.mrf.mxu0
      %v973 = vadd.f32 0.0, %v972
      %v974 = vpop.f32.mrf.mxu0
      %v975 = vadd.f32 0.0, %v974
      %976 = vmatmul.bf16.gmra.mxu0 %v898
      %v977 = vpop.f32.mrf.mxu0
      %v978 = vadd.f32 0.0, %v977
      %v979 = vpop.f32.mrf.mxu0
      %v980 = vadd.f32 0.0, %v979
      %981 = vmatmul.bf16.gmra.mxu0 %v901
      %v982 = vpop.f32.mrf.mxu0
      %v983 = vadd.f32 0.0, %v982
      %v984 = vpop.f32.mrf.mxu0
      %v985 = vadd.f32 0.0, %v984
      %986 = vmatmul.bf16.gmra.mxu0 %v904
      %v987 = vpop.f32.mrf.mxu0
      %v988 = vadd.f32 0.0, %v987
      %v989 = vpop.f32.mrf.mxu0
      %v990 = vadd.f32 0.0, %v989
      %991 = vmatmul.bf16.gmra.mxu0 %v907
      %v992 = vpop.f32.mrf.mxu0
      %v993 = vadd.f32 0.0, %v992
      %v994 = vpop.f32.mrf.mxu0
      %v995 = vadd.f32 0.0, %v994
      %996 = vmatmul.bf16.gmra.mxu0 %v910
      %v997 = vpop.f32.mrf.mxu0
      %v998 = vadd.f32 0.0, %v997
      %v999 = vpop.f32.mrf.mxu0
      %v1000 = vadd.f32 0.0, %v999
      %1001 = vmatmul.bf16.gmra.mxu0 %v913
      %v1002 = vpop.f32.mrf.mxu0
      %v1003 = vadd.f32 0.0, %v1002
      %v1004 = vpop.f32.mrf.mxu0
      %v1005 = vadd.f32 0.0, %v1004
      %1006 = vdwg.mxu0
      %v1007 = vadd.f32 %v656, %v928
      %v1008 = vadd.f32 %v658, %v930
      %v1009 = vadd.f32 %v661, %v933
      %v1010 = vadd.f32 %v663, %v935
      %v1011 = vadd.f32 %v666, %v938
      %v1012 = vadd.f32 %v668, %v940
      %v1013 = vadd.f32 %v671, %v943
      %v1014 = vadd.f32 %v673, %v945
      %v1015 = vadd.f32 %v676, %v948
      %v1016 = vadd.f32 %v678, %v950
      %v1017 = vadd.f32 %v681, %v953
      %v1018 = vadd.f32 %v683, %v955
      %v1019 = vadd.f32 %v686, %v958
      %v1020 = vadd.f32 %v688, %v960
      %v1021 = vadd.f32 %v691, %v963
      %v1022 = vadd.f32 %v693, %v965
      %v1023 = vadd.f32 %v696, %v968
      %v1024 = vadd.f32 %v698, %v970
      %v1025 = vadd.f32 %v701, %v973
      %v1026 = vadd.f32 %v703, %v975
      %v1027 = vadd.f32 %v706, %v978
      %v1028 = vadd.f32 %v708, %v980
      %v1029 = vadd.f32 %v711, %v983
      %v1030 = vadd.f32 %v713, %v985
      %v1031 = vadd.f32 %v716, %v988
      %v1032 = vadd.f32 %v718, %v990
      %v1033 = vadd.f32 %v721, %v993
      %v1034 = vadd.f32 %v723, %v995
      %v1035 = vadd.f32 %v726, %v998
      %v1036 = vadd.f32 %v728, %v1000
      %v1037 = vadd.f32 %v731, %v1003
      %v1038 = vadd.f32 %v733, %v1005
      %v1039 = vpack.c.bf16 %v248, %v247
      %s1040 = scalar_lea.vmem %s1, 48
      %v1041 = vld [vmem:[%s1040] sm:$0xff]
      %v1042 = vld [vmem:[%s1040 + $0x8] sm:$0xf]
      %v1043 = vpack.c.bf16 %v1042, %v1041
      %v1045 = vsel %vm453, %v1039, 0
      %v1048 = vsel %vm502, %v1043, 0
      %1050 = vmatpush.bf16.msra.mxu0 0
      %1051 = vmatpush.bf16.msra.mxu0 0
      %1052 = vmatpush.bf16.msra.mxu0 0
      %1053 = vmatpush.bf16.msra.mxu0 0
      %1054 = vmatpush.bf16.msra.mxu0 0
      %1055 = vmatpush.bf16.msra.mxu0 0
      %1056 = vmatpush.bf16.msra.mxu0 0
      %1057 = vmatpush.bf16.msra.mxu0 %v1048
      %1058 = vmatmul.bf16.gmra.mxu0 %v599
      %v1059 = vpop.f32.mrf.mxu0
      %v1060 = vadd.f32 0.0, %v1059
      %v1061 = vpop.f32.mrf.mxu0
      %v1062 = vadd.f32 0.0, %v1061
      %1063 = vmatmul.bf16.gmra.mxu0 %v602
      %v1064 = vpop.f32.mrf.mxu0
      %v1065 = vadd.f32 0.0, %v1064
      %v1066 = vpop.f32.mrf.mxu0
      %v1067 = vadd.f32 0.0, %v1066
      %1068 = vmatmul.bf16.gmra.mxu0 %v605
      %v1069 = vpop.f32.mrf.mxu0
      %v1070 = vadd.f32 0.0, %v1069
      %v1071 = vpop.f32.mrf.mxu0
      %v1072 = vadd.f32 0.0, %v1071
      %1073 = vmatmul.bf16.gmra.mxu0 %v608
      %v1074 = vpop.f32.mrf.mxu0
      %v1075 = vadd.f32 0.0, %v1074
      %v1076 = vpop.f32.mrf.mxu0
      %v1077 = vadd.f32 0.0, %v1076
      %1078 = vmatmul.bf16.gmra.mxu0 %v611
      %v1079 = vpop.f32.mrf.mxu0
      %v1080 = vadd.f32 0.0, %v1079
      %v1081 = vpop.f32.mrf.mxu0
      %v1082 = vadd.f32 0.0, %v1081
      %1083 = vmatmul.bf16.gmra.mxu0 %v614
      %v1084 = vpop.f32.mrf.mxu0
      %v1085 = vadd.f32 0.0, %v1084
      %v1086 = vpop.f32.mrf.mxu0
      %v1087 = vadd.f32 0.0, %v1086
      %1088 = vmatmul.bf16.gmra.mxu0 %v617
      %v1089 = vpop.f32.mrf.mxu0
      %v1090 = vadd.f32 0.0, %v1089
      %v1091 = vpop.f32.mrf.mxu0
      %v1092 = vadd.f32 0.0, %v1091
      %1093 = vmatmul.bf16.gmra.mxu0 %v620
      %v1094 = vpop.f32.mrf.mxu0
      %v1095 = vadd.f32 0.0, %v1094
      %v1096 = vpop.f32.mrf.mxu0
      %v1097 = vadd.f32 0.0, %v1096
      %1098 = vmatmul.bf16.gmra.mxu0 %v623
      %v1099 = vpop.f32.mrf.mxu0
      %v1100 = vadd.f32 0.0, %v1099
      %v1101 = vpop.f32.mrf.mxu0
      %v1102 = vadd.f32 0.0, %v1101
      %1103 = vmatmul.bf16.gmra.mxu0 %v626
      %v1104 = vpop.f32.mrf.mxu0
      %v1105 = vadd.f32 0.0, %v1104
      %v1106 = vpop.f32.mrf.mxu0
      %v1107 = vadd.f32 0.0, %v1106
      %1108 = vmatmul.bf16.gmra.mxu0 %v629
      %v1109 = vpop.f32.mrf.mxu0
      %v1110 = vadd.f32 0.0, %v1109
      %v1111 = vpop.f32.mrf.mxu0
      %v1112 = vadd.f32 0.0, %v1111
      %1113 = vmatmul.bf16.gmra.mxu0 %v632
      %v1114 = vpop.f32.mrf.mxu0
      %v1115 = vadd.f32 0.0, %v1114
      %v1116 = vpop.f32.mrf.mxu0
      %v1117 = vadd.f32 0.0, %v1116
      %1118 = vmatmul.bf16.gmra.mxu0 %v635
      %v1119 = vpop.f32.mrf.mxu0
      %v1120 = vadd.f32 0.0, %v1119
      %v1121 = vpop.f32.mrf.mxu0
      %v1122 = vadd.f32 0.0, %v1121
      %1123 = vmatmul.bf16.gmra.mxu0 %v638
      %v1124 = vpop.f32.mrf.mxu0
      %v1125 = vadd.f32 0.0, %v1124
      %v1126 = vpop.f32.mrf.mxu0
      %v1127 = vadd.f32 0.0, %v1126
      %1128 = vmatmul.bf16.gmra.mxu0 %v641
      %v1129 = vpop.f32.mrf.mxu0
      %v1130 = vadd.f32 0.0, %v1129
      %v1131 = vpop.f32.mrf.mxu0
      %v1132 = vadd.f32 0.0, %v1131
      %1133 = vmatmul.bf16.gmra.mxu0 %v1045
      %v1134 = vpop.f32.mrf.mxu0
      %v1135 = vadd.f32 0.0, %v1134
      %v1136 = vpop.f32.mrf.mxu0
      %v1137 = vadd.f32 0.0, %v1136
      %1138 = vdwg.mxu0
      %v1139 = vadd.f32 %v1007, %v1060
      %v1140 = vadd.f32 %v1008, %v1062
      %v1141 = vadd.f32 %v1009, %v1065
      %v1142 = vadd.f32 %v1010, %v1067
      %v1143 = vadd.f32 %v1011, %v1070
      %v1144 = vadd.f32 %v1012, %v1072
      %v1145 = vadd.f32 %v1013, %v1075
      %v1146 = vadd.f32 %v1014, %v1077
      %v1147 = vadd.f32 %v1015, %v1080
      %v1148 = vadd.f32 %v1016, %v1082
      %v1149 = vadd.f32 %v1017, %v1085
      %v1150 = vadd.f32 %v1018, %v1087
      %v1151 = vadd.f32 %v1019, %v1090
      %v1152 = vadd.f32 %v1020, %v1092
      %v1153 = vadd.f32 %v1021, %v1095
      %v1154 = vadd.f32 %v1022, %v1097
      %v1155 = vadd.f32 %v1023, %v1100
      %v1156 = vadd.f32 %v1024, %v1102
      %v1157 = vadd.f32 %v1025, %v1105
      %v1158 = vadd.f32 %v1026, %v1107
      %v1159 = vadd.f32 %v1027, %v1110
      %v1160 = vadd.f32 %v1028, %v1112
      %v1161 = vadd.f32 %v1029, %v1115
      %v1162 = vadd.f32 %v1030, %v1117
      %v1163 = vadd.f32 %v1031, %v1120
      %v1164 = vadd.f32 %v1032, %v1122
      %v1165 = vadd.f32 %v1033, %v1125
      %v1166 = vadd.f32 %v1034, %v1127
      %v1167 = vadd.f32 %v1035, %v1130
      %v1168 = vadd.f32 %v1036, %v1132
      %v1169 = vadd.f32 %v1037, %v1135
      %v1170 = vadd.f32 %v1038, %v1137
      %v1174 = vrot.slane %v247, 1
      %v1175 = vrot.slane %v248, 1
      %v1176 = vsel %vm320, %v1174, %v1175
      %v1177 = vrot.slane %v249, 1
      %v1178 = vsel %vm320, %v1175, %v1177
      %v1181 = vpack.c.bf16 %v1178, %v1176
      %s1182 = scalar_lea.vmem %s1, 64
      %v1183 = vld [vmem:[%s1182] sm:$0xff]
      %v1184 = vld [vmem:[%s1182 + $0x8] sm:$0xf]
      %v1185 = vpack.c.bf16 %v1184, %v1183
      %v1187 = vsel %vm453, %v1181, 0
      %v1190 = vsel %vm502, %v1185, 0
      %1192 = vmatpush.bf16.msra.mxu0 0
      %1193 = vmatpush.bf16.msra.mxu0 0
      %1194 = vmatpush.bf16.msra.mxu0 0
      %1195 = vmatpush.bf16.msra.mxu0 0
      %1196 = vmatpush.bf16.msra.mxu0 0
      %1197 = vmatpush.bf16.msra.mxu0 0
      %1198 = vmatpush.bf16.msra.mxu0 0
      %1199 = vmatpush.bf16.msra.mxu0 %v1190
      %1200 = vmatmul.bf16.gmra.mxu0 %v458
      %v1201 = vpop.f32.mrf.mxu0
      %v1202 = vadd.f32 0.0, %v1201
      %v1203 = vpop.f32.mrf.mxu0
      %v1204 = vadd.f32 0.0, %v1203
      %1205 = vmatmul.bf16.gmra.mxu0 %v461
      %v1206 = vpop.f32.mrf.mxu0
      %v1207 = vadd.f32 0.0, %v1206
      %v1208 = vpop.f32.mrf.mxu0
      %v1209 = vadd.f32 0.0, %v1208
      %1210 = vmatmul.bf16.gmra.mxu0 %v464
      %v1211 = vpop.f32.mrf.mxu0
      %v1212 = vadd.f32 0.0, %v1211
      %v1213 = vpop.f32.mrf.mxu0
      %v1214 = vadd.f32 0.0, %v1213
      %1215 = vmatmul.bf16.gmra.mxu0 %v467
      %v1216 = vpop.f32.mrf.mxu0
      %v1217 = vadd.f32 0.0, %v1216
      %v1218 = vpop.f32.mrf.mxu0
      %v1219 = vadd.f32 0.0, %v1218
      %1220 = vmatmul.bf16.gmra.mxu0 %v470
      %v1221 = vpop.f32.mrf.mxu0
      %v1222 = vadd.f32 0.0, %v1221
      %v1223 = vpop.f32.mrf.mxu0
      %v1224 = vadd.f32 0.0, %v1223
      %1225 = vmatmul.bf16.gmra.mxu0 %v473
      %v1226 = vpop.f32.mrf.mxu0
      %v1227 = vadd.f32 0.0, %v1226
      %v1228 = vpop.f32.mrf.mxu0
      %v1229 = vadd.f32 0.0, %v1228
      %1230 = vmatmul.bf16.gmra.mxu0 %v476
      %v1231 = vpop.f32.mrf.mxu0
      %v1232 = vadd.f32 0.0, %v1231
      %v1233 = vpop.f32.mrf.mxu0
      %v1234 = vadd.f32 0.0, %v1233
      %1235 = vmatmul.bf16.gmra.mxu0 %v479
      %v1236 = vpop.f32.mrf.mxu0
      %v1237 = vadd.f32 0.0, %v1236
      %v1238 = vpop.f32.mrf.mxu0
      %v1239 = vadd.f32 0.0, %v1238
      %1240 = vmatmul.bf16.gmra.mxu0 %v482
      %v1241 = vpop.f32.mrf.mxu0
      %v1242 = vadd.f32 0.0, %v1241
      %v1243 = vpop.f32.mrf.mxu0
      %v1244 = vadd.f32 0.0, %v1243
      %1245 = vmatmul.bf16.gmra.mxu0 %v485
      %v1246 = vpop.f32.mrf.mxu0
      %v1247 = vadd.f32 0.0, %v1246
      %v1248 = vpop.f32.mrf.mxu0
      %v1249 = vadd.f32 0.0, %v1248
      %1250 = vmatmul.bf16.gmra.mxu0 %v488
      %v1251 = vpop.f32.mrf.mxu0
      %v1252 = vadd.f32 0.0, %v1251
      %v1253 = vpop.f32.mrf.mxu0
      %v1254 = vadd.f32 0.0, %v1253
      %1255 = vmatmul.bf16.gmra.mxu0 %v491
      %v1256 = vpop.f32.mrf.mxu0
      %v1257 = vadd.f32 0.0, %v1256
      %v1258 = vpop.f32.mrf.mxu0
      %v1259 = vadd.f32 0.0, %v1258
      %1260 = vmatmul.bf16.gmra.mxu0 %v494
      %v1261 = vpop.f32.mrf.mxu0
      %v1262 = vadd.f32 0.0, %v1261
      %v1263 = vpop.f32.mrf.mxu0
      %v1264 = vadd.f32 0.0, %v1263
      %1265 = vmatmul.bf16.gmra.mxu0 %v497
      %v1266 = vpop.f32.mrf.mxu0
      %v1267 = vadd.f32 0.0, %v1266
      %v1268 = vpop.f32.mrf.mxu0
      %v1269 = vadd.f32 0.0, %v1268
      %1270 = vmatmul.bf16.gmra.mxu0 %v500
      %v1271 = vpop.f32.mrf.mxu0
      %v1272 = vadd.f32 0.0, %v1271
      %v1273 = vpop.f32.mrf.mxu0
      %v1274 = vadd.f32 0.0, %v1273
      %1275 = vmatmul.bf16.gmra.mxu0 %v1187
      %v1276 = vpop.f32.mrf.mxu0
      %v1277 = vadd.f32 0.0, %v1276
      %v1278 = vpop.f32.mrf.mxu0
      %v1279 = vadd.f32 0.0, %v1278
      %1280 = vdwg.mxu0
      %v1281 = vadd.f32 %v1139, %v1202
      %v1282 = vadd.f32 %v1140, %v1204
      %v1283 = vadd.f32 %v1141, %v1207
      %v1284 = vadd.f32 %v1142, %v1209
      %v1285 = vadd.f32 %v1143, %v1212
      %v1286 = vadd.f32 %v1144, %v1214
      %v1287 = vadd.f32 %v1145, %v1217
      %v1288 = vadd.f32 %v1146, %v1219
      %v1289 = vadd.f32 %v1147, %v1222
      %v1290 = vadd.f32 %v1148, %v1224
      %v1291 = vadd.f32 %v1149, %v1227
      %v1292 = vadd.f32 %v1150, %v1229
      %v1293 = vadd.f32 %v1151, %v1232
      %v1294 = vadd.f32 %v1152, %v1234
      %v1295 = vadd.f32 %v1153, %v1237
      %v1296 = vadd.f32 %v1154, %v1239
      %v1297 = vadd.f32 %v1155, %v1242
      %v1298 = vadd.f32 %v1156, %v1244
      %v1299 = vadd.f32 %v1157, %v1247
      %v1300 = vadd.f32 %v1158, %v1249
      %v1301 = vadd.f32 %v1159, %v1252
      %v1302 = vadd.f32 %v1160, %v1254
      %v1303 = vadd.f32 %v1161, %v1257
      %v1304 = vadd.f32 %v1162, %v1259
      %v1305 = vadd.f32 %v1163, %v1262
      %v1306 = vadd.f32 %v1164, %v1264
      %v1307 = vadd.f32 %v1165, %v1267
      %v1308 = vadd.f32 %v1166, %v1269
      %v1309 = vadd.f32 %v1167, %v1272
      %v1310 = vadd.f32 %v1168, %v1274
      %v1311 = vadd.f32 %v1169, %v1277
      %v1312 = vadd.f32 %v1170, %v1279
      %v1313 = vrot.slane %v247, 2
      %v1314 = vrot.slane %v248, 2
      %v1315 = vsel %vm502, %v1313, %v1314
      %v1316 = vrot.slane %v249, 2
      %v1317 = vsel %vm502, %v1314, %v1316
      %v1320 = vpack.c.bf16 %v1317, %v1315
      %s1321 = scalar_lea.vmem %s1, 80
      %v1322 = vld [vmem:[%s1321] sm:$0xff]
      %v1323 = vld [vmem:[%s1321 + $0x8] sm:$0xf]
      %v1324 = vpack.c.bf16 %v1323, %v1322
      %v1326 = vsel %vm453, %v1320, 0
      %v1329 = vsel %vm502, %v1324, 0
      %1331 = vmatpush.bf16.msra.mxu0 0
      %1332 = vmatpush.bf16.msra.mxu0 0
      %1333 = vmatpush.bf16.msra.mxu0 0
      %1334 = vmatpush.bf16.msra.mxu0 0
      %1335 = vmatpush.bf16.msra.mxu0 0
      %1336 = vmatpush.bf16.msra.mxu0 0
      %1337 = vmatpush.bf16.msra.mxu0 0
      %1338 = vmatpush.bf16.msra.mxu0 %v1329
      %1339 = vmatmul.bf16.gmra.mxu0 %v871
      %v1340 = vpop.f32.mrf.mxu0
      %v1341 = vadd.f32 0.0, %v1340
      %v1342 = vpop.f32.mrf.mxu0
      %v1343 = vadd.f32 0.0, %v1342
      %1344 = vmatmul.bf16.gmra.mxu0 %v874
      %v1345 = vpop.f32.mrf.mxu0
      %v1346 = vadd.f32 0.0, %v1345
      %v1347 = vpop.f32.mrf.mxu0
      %v1348 = vadd.f32 0.0, %v1347
      %1349 = vmatmul.bf16.gmra.mxu0 %v877
      %v1350 = vpop.f32.mrf.mxu0
      %v1351 = vadd.f32 0.0, %v1350
      %v1352 = vpop.f32.mrf.mxu0
      %v1353 = vadd.f32 0.0, %v1352
      %1354 = vmatmul.bf16.gmra.mxu0 %v880
      %v1355 = vpop.f32.mrf.mxu0
      %v1356 = vadd.f32 0.0, %v1355
      %v1357 = vpop.f32.mrf.mxu0
      %v1358 = vadd.f32 0.0, %v1357
      %1359 = vmatmul.bf16.gmra.mxu0 %v883
      %v1360 = vpop.f32.mrf.mxu0
      %v1361 = vadd.f32 0.0, %v1360
      %v1362 = vpop.f32.mrf.mxu0
      %v1363 = vadd.f32 0.0, %v1362
      %1364 = vmatmul.bf16.gmra.mxu0 %v886
      %v1365 = vpop.f32.mrf.mxu0
      %v1366 = vadd.f32 0.0, %v1365
      %v1367 = vpop.f32.mrf.mxu0
      %v1368 = vadd.f32 0.0, %v1367
      %1369 = vmatmul.bf16.gmra.mxu0 %v889
      %v1370 = vpop.f32.mrf.mxu0
      %v1371 = vadd.f32 0.0, %v1370
      %v1372 = vpop.f32.mrf.mxu0
      %v1373 = vadd.f32 0.0, %v1372
      %1374 = vmatmul.bf16.gmra.mxu0 %v892
      %v1375 = vpop.f32.mrf.mxu0
      %v1376 = vadd.f32 0.0, %v1375
      %v1377 = vpop.f32.mrf.mxu0
      %v1378 = vadd.f32 0.0, %v1377
      %1379 = vmatmul.bf16.gmra.mxu0 %v895
      %v1380 = vpop.f32.mrf.mxu0
      %v1381 = vadd.f32 0.0, %v1380
      %v1382 = vpop.f32.mrf.mxu0
      %v1383 = vadd.f32 0.0, %v1382
      %1384 = vmatmul.bf16.gmra.mxu0 %v898
      %v1385 = vpop.f32.mrf.mxu0
      %v1386 = vadd.f32 0.0, %v1385
      %v1387 = vpop.f32.mrf.mxu0
      %v1388 = vadd.f32 0.0, %v1387
      %1389 = vmatmul.bf16.gmra.mxu0 %v901
      %v1390 = vpop.f32.mrf.mxu0
      %v1391 = vadd.f32 0.0, %v1390
      %v1392 = vpop.f32.mrf.mxu0
      %v1393 = vadd.f32 0.0, %v1392
      %1394 = vmatmul.bf16.gmra.mxu0 %v904
      %v1395 = vpop.f32.mrf.mxu0
      %v1396 = vadd.f32 0.0, %v1395
      %v1397 = vpop.f32.mrf.mxu0
      %v1398 = vadd.f32 0.0, %v1397
      %1399 = vmatmul.bf16.gmra.mxu0 %v907
      %v1400 = vpop.f32.mrf.mxu0
      %v1401 = vadd.f32 0.0, %v1400
      %v1402 = vpop.f32.mrf.mxu0
      %v1403 = vadd.f32 0.0, %v1402
      %1404 = vmatmul.bf16.gmra.mxu0 %v910
      %v1405 = vpop.f32.mrf.mxu0
      %v1406 = vadd.f32 0.0, %v1405
      %v1407 = vpop.f32.mrf.mxu0
      %v1408 = vadd.f32 0.0, %v1407
      %1409 = vmatmul.bf16.gmra.mxu0 %v913
      %v1410 = vpop.f32.mrf.mxu0
      %v1411 = vadd.f32 0.0, %v1410
      %v1412 = vpop.f32.mrf.mxu0
      %v1413 = vadd.f32 0.0, %v1412
      %1414 = vmatmul.bf16.gmra.mxu0 %v1326
      %v1415 = vpop.f32.mrf.mxu0
      %v1416 = vadd.f32 0.0, %v1415
      %v1417 = vpop.f32.mrf.mxu0
      %v1418 = vadd.f32 0.0, %v1417
      %1419 = vdwg.mxu0
      %v1420 = vadd.f32 %v1281, %v1341
      %v1421 = vadd.f32 %v1282, %v1343
      %v1422 = vadd.f32 %v1283, %v1346
      %v1423 = vadd.f32 %v1284, %v1348
      %v1424 = vadd.f32 %v1285, %v1351
      %v1425 = vadd.f32 %v1286, %v1353
      %v1426 = vadd.f32 %v1287, %v1356
      %v1427 = vadd.f32 %v1288, %v1358
      %v1428 = vadd.f32 %v1289, %v1361
      %v1429 = vadd.f32 %v1290, %v1363
      %v1430 = vadd.f32 %v1291, %v1366
      %v1431 = vadd.f32 %v1292, %v1368
      %v1432 = vadd.f32 %v1293, %v1371
      %v1433 = vadd.f32 %v1294, %v1373
      %v1434 = vadd.f32 %v1295, %v1376
      %v1435 = vadd.f32 %v1296, %v1378
      %v1436 = vadd.f32 %v1297, %v1381
      %v1437 = vadd.f32 %v1298, %v1383
      %v1438 = vadd.f32 %v1299, %v1386
      %v1439 = vadd.f32 %v1300, %v1388
      %v1440 = vadd.f32 %v1301, %v1391
      %v1441 = vadd.f32 %v1302, %v1393
      %v1442 = vadd.f32 %v1303, %v1396
      %v1443 = vadd.f32 %v1304, %v1398
      %v1444 = vadd.f32 %v1305, %v1401
      %v1445 = vadd.f32 %v1306, %v1403
      %v1446 = vadd.f32 %v1307, %v1406
      %v1447 = vadd.f32 %v1308, %v1408
      %v1448 = vadd.f32 %v1309, %v1411
      %v1449 = vadd.f32 %v1310, %v1413
      %v1450 = vadd.f32 %v1311, %v1416
      %v1451 = vadd.f32 %v1312, %v1418
      %v1452 = vpack.c.bf16 %v251, %v250
      %s1453 = scalar_lea.vmem %s1, 96
      %v1454 = vld [vmem:[%s1453] sm:$0xff]
      %v1455 = vld [vmem:[%s1453 + $0x8] sm:$0xf]
      %v1456 = vpack.c.bf16 %v1455, %v1454
      %v1458 = vsel %vm453, %v1452, 0
      %v1461 = vsel %vm502, %v1456, 0
      %1463 = vmatpush.bf16.msra.mxu0 0
      %1464 = vmatpush.bf16.msra.mxu0 0
      %1465 = vmatpush.bf16.msra.mxu0 0
      %1466 = vmatpush.bf16.msra.mxu0 0
      %1467 = vmatpush.bf16.msra.mxu0 0
      %1468 = vmatpush.bf16.msra.mxu0 0
      %1469 = vmatpush.bf16.msra.mxu0 0
      %1470 = vmatpush.bf16.msra.mxu0 %v1461
      %1471 = vmatmul.bf16.gmra.mxu0 %v602
      %v1472 = vpop.f32.mrf.mxu0
      %v1473 = vadd.f32 0.0, %v1472
      %v1474 = vpop.f32.mrf.mxu0
      %v1475 = vadd.f32 0.0, %v1474
      %1476 = vmatmul.bf16.gmra.mxu0 %v605
      %v1477 = vpop.f32.mrf.mxu0
      %v1478 = vadd.f32 0.0, %v1477
      %v1479 = vpop.f32.mrf.mxu0
      %v1480 = vadd.f32 0.0, %v1479
      %1481 = vmatmul.bf16.gmra.mxu0 %v608
      %v1482 = vpop.f32.mrf.mxu0
      %v1483 = vadd.f32 0.0, %v1482
      %v1484 = vpop.f32.mrf.mxu0
      %v1485 = vadd.f32 0.0, %v1484
      %1486 = vmatmul.bf16.gmra.mxu0 %v611
      %v1487 = vpop.f32.mrf.mxu0
      %v1488 = vadd.f32 0.0, %v1487
      %v1489 = vpop.f32.mrf.mxu0
      %v1490 = vadd.f32 0.0, %v1489
      %1491 = vmatmul.bf16.gmra.mxu0 %v614
      %v1492 = vpop.f32.mrf.mxu0
      %v1493 = vadd.f32 0.0, %v1492
      %v1494 = vpop.f32.mrf.mxu0
      %v1495 = vadd.f32 0.0, %v1494
      %1496 = vmatmul.bf16.gmra.mxu0 %v617
      %v1497 = vpop.f32.mrf.mxu0
      %v1498 = vadd.f32 0.0, %v1497
      %v1499 = vpop.f32.mrf.mxu0
      %v1500 = vadd.f32 0.0, %v1499
      %1501 = vmatmul.bf16.gmra.mxu0 %v620
      %v1502 = vpop.f32.mrf.mxu0
      %v1503 = vadd.f32 0.0, %v1502
      %v1504 = vpop.f32.mrf.mxu0
      %v1505 = vadd.f32 0.0, %v1504
      %1506 = vmatmul.bf16.gmra.mxu0 %v623
      %v1507 = vpop.f32.mrf.mxu0
      %v1508 = vadd.f32 0.0, %v1507
      %v1509 = vpop.f32.mrf.mxu0
      %v1510 = vadd.f32 0.0, %v1509
      %1511 = vmatmul.bf16.gmra.mxu0 %v626
      %v1512 = vpop.f32.mrf.mxu0
      %v1513 = vadd.f32 0.0, %v1512
      %v1514 = vpop.f32.mrf.mxu0
      %v1515 = vadd.f32 0.0, %v1514
      %1516 = vmatmul.bf16.gmra.mxu0 %v629
      %v1517 = vpop.f32.mrf.mxu0
      %v1518 = vadd.f32 0.0, %v1517
      %v1519 = vpop.f32.mrf.mxu0
      %v1520 = vadd.f32 0.0, %v1519
      %1521 = vmatmul.bf16.gmra.mxu0 %v632
      %v1522 = vpop.f32.mrf.mxu0
      %v1523 = vadd.f32 0.0, %v1522
      %v1524 = vpop.f32.mrf.mxu0
      %v1525 = vadd.f32 0.0, %v1524
      %1526 = vmatmul.bf16.gmra.mxu0 %v635
      %v1527 = vpop.f32.mrf.mxu0
      %v1528 = vadd.f32 0.0, %v1527
      %v1529 = vpop.f32.mrf.mxu0
      %v1530 = vadd.f32 0.0, %v1529
      %1531 = vmatmul.bf16.gmra.mxu0 %v638
      %v1532 = vpop.f32.mrf.mxu0
      %v1533 = vadd.f32 0.0, %v1532
      %v1534 = vpop.f32.mrf.mxu0
      %v1535 = vadd.f32 0.0, %v1534
      %1536 = vmatmul.bf16.gmra.mxu0 %v641
      %v1537 = vpop.f32.mrf.mxu0
      %v1538 = vadd.f32 0.0, %v1537
      %v1539 = vpop.f32.mrf.mxu0
      %v1540 = vadd.f32 0.0, %v1539
      %1541 = vmatmul.bf16.gmra.mxu0 %v1045
      %v1542 = vpop.f32.mrf.mxu0
      %v1543 = vadd.f32 0.0, %v1542
      %v1544 = vpop.f32.mrf.mxu0
      %v1545 = vadd.f32 0.0, %v1544
      %1546 = vmatmul.bf16.gmra.mxu0 %v1458
      %v1547 = vpop.f32.mrf.mxu0
      %v1548 = vadd.f32 0.0, %v1547
      %v1549 = vpop.f32.mrf.mxu0
      %v1550 = vadd.f32 0.0, %v1549
      %1551 = vdwg.mxu0
      %v1552 = vadd.f32 %v1420, %v1473
      %v1553 = vadd.f32 %v1421, %v1475
      %v1554 = vadd.f32 %v1422, %v1478
      %v1555 = vadd.f32 %v1423, %v1480
      %v1556 = vadd.f32 %v1424, %v1483
      %v1557 = vadd.f32 %v1425, %v1485
      %v1558 = vadd.f32 %v1426, %v1488
      %v1559 = vadd.f32 %v1427, %v1490
      %v1560 = vadd.f32 %v1428, %v1493
      %v1561 = vadd.f32 %v1429, %v1495
      %v1562 = vadd.f32 %v1430, %v1498
      %v1563 = vadd.f32 %v1431, %v1500
      %v1564 = vadd.f32 %v1432, %v1503
      %v1565 = vadd.f32 %v1433, %v1505
      %v1566 = vadd.f32 %v1434, %v1508
      %v1567 = vadd.f32 %v1435, %v1510
      %v1568 = vadd.f32 %v1436, %v1513
      %v1569 = vadd.f32 %v1437, %v1515
      %v1570 = vadd.f32 %v1438, %v1518
      %v1571 = vadd.f32 %v1439, %v1520
      %v1572 = vadd.f32 %v1440, %v1523
      %v1573 = vadd.f32 %v1441, %v1525
      %v1574 = vadd.f32 %v1442, %v1528
      %v1575 = vadd.f32 %v1443, %v1530
      %v1576 = vadd.f32 %v1444, %v1533
      %v1577 = vadd.f32 %v1445, %v1535
      %v1578 = vadd.f32 %v1446, %v1538
      %v1579 = vadd.f32 %v1447, %v1540
      %v1580 = vadd.f32 %v1448, %v1543
      %v1581 = vadd.f32 %v1449, %v1545
      %v1582 = vadd.f32 %v1450, %v1548
      %v1583 = vadd.f32 %v1451, %v1550
      %v1587 = vrot.slane %v250, 1
      %v1588 = vrot.slane %v251, 1
      %v1589 = vsel %vm320, %v1587, %v1588
      %v1590 = vrot.slane %v252, 1
      %v1591 = vsel %vm320, %v1588, %v1590
      %v1594 = vpack.c.bf16 %v1591, %v1589
      %s1595 = scalar_lea.vmem %s1, 112
      %v1596 = vld [vmem:[%s1595] sm:$0xff]
      %v1597 = vld [vmem:[%s1595 + $0x8] sm:$0xf]
      %v1598 = vpack.c.bf16 %v1597, %v1596
      %v1600 = vsel %vm453, %v1594, 0
      %v1603 = vsel %vm502, %v1598, 0
      %1605 = vmatpush.bf16.msra.mxu0 0
      %1606 = vmatpush.bf16.msra.mxu0 0
      %1607 = vmatpush.bf16.msra.mxu0 0
      %1608 = vmatpush.bf16.msra.mxu0 0
      %1609 = vmatpush.bf16.msra.mxu0 0
      %1610 = vmatpush.bf16.msra.mxu0 0
      %1611 = vmatpush.bf16.msra.mxu0 0
      %1612 = vmatpush.bf16.msra.mxu0 %v1603
      %1613 = vmatmul.bf16.gmra.mxu0 %v461
      %v1614 = vpop.f32.mrf.mxu0
      %v1615 = vadd.f32 0.0, %v1614
      %v1616 = vpop.f32.mrf.mxu0
      %v1617 = vadd.f32 0.0, %v1616
      %1618 = vmatmul.bf16.gmra.mxu0 %v464
      %v1619 = vpop.f32.mrf.mxu0
      %v1620 = vadd.f32 0.0, %v1619
      %v1621 = vpop.f32.mrf.mxu0
      %v1622 = vadd.f32 0.0, %v1621
      %1623 = vmatmul.bf16.gmra.mxu0 %v467
      %v1624 = vpop.f32.mrf.mxu0
      %v1625 = vadd.f32 0.0, %v1624
      %v1626 = vpop.f32.mrf.mxu0
      %v1627 = vadd.f32 0.0, %v1626
      %1628 = vmatmul.bf16.gmra.mxu0 %v470
      %v1629 = vpop.f32.mrf.mxu0
      %v1630 = vadd.f32 0.0, %v1629
      %v1631 = vpop.f32.mrf.mxu0
      %v1632 = vadd.f32 0.0, %v1631
      %1633 = vmatmul.bf16.gmra.mxu0 %v473
      %v1634 = vpop.f32.mrf.mxu0
      %v1635 = vadd.f32 0.0, %v1634
      %v1636 = vpop.f32.mrf.mxu0
      %v1637 = vadd.f32 0.0, %v1636
      %1638 = vmatmul.bf16.gmra.mxu0 %v476
      %v1639 = vpop.f32.mrf.mxu0
      %v1640 = vadd.f32 0.0, %v1639
      %v1641 = vpop.f32.mrf.mxu0
      %v1642 = vadd.f32 0.0, %v1641
      %1643 = vmatmul.bf16.gmra.mxu0 %v479
      %v1644 = vpop.f32.mrf.mxu0
      %v1645 = vadd.f32 0.0, %v1644
      %v1646 = vpop.f32.mrf.mxu0
      %v1647 = vadd.f32 0.0, %v1646
      %1648 = vmatmul.bf16.gmra.mxu0 %v482
      %v1649 = vpop.f32.mrf.mxu0
      %v1650 = vadd.f32 0.0, %v1649
      %v1651 = vpop.f32.mrf.mxu0
      %v1652 = vadd.f32 0.0, %v1651
      %1653 = vmatmul.bf16.gmra.mxu0 %v485
      %v1654 = vpop.f32.mrf.mxu0
      %v1655 = vadd.f32 0.0, %v1654
      %v1656 = vpop.f32.mrf.mxu0
      %v1657 = vadd.f32 0.0, %v1656
      %1658 = vmatmul.bf16.gmra.mxu0 %v488
      %v1659 = vpop.f32.mrf.mxu0
      %v1660 = vadd.f32 0.0, %v1659
      %v1661 = vpop.f32.mrf.mxu0
      %v1662 = vadd.f32 0.0, %v1661
      %1663 = vmatmul.bf16.gmra.mxu0 %v491
      %v1664 = vpop.f32.mrf.mxu0
      %v1665 = vadd.f32 0.0, %v1664
      %v1666 = vpop.f32.mrf.mxu0
      %v1667 = vadd.f32 0.0, %v1666
      %1668 = vmatmul.bf16.gmra.mxu0 %v494
      %v1669 = vpop.f32.mrf.mxu0
      %v1670 = vadd.f32 0.0, %v1669
      %v1671 = vpop.f32.mrf.mxu0
      %v1672 = vadd.f32 0.0, %v1671
      %1673 = vmatmul.bf16.gmra.mxu0 %v497
      %v1674 = vpop.f32.mrf.mxu0
      %v1675 = vadd.f32 0.0, %v1674
      %v1676 = vpop.f32.mrf.mxu0
      %v1677 = vadd.f32 0.0, %v1676
      %1678 = vmatmul.bf16.gmra.mxu0 %v500
      %v1679 = vpop.f32.mrf.mxu0
      %v1680 = vadd.f32 0.0, %v1679
      %v1681 = vpop.f32.mrf.mxu0
      %v1682 = vadd.f32 0.0, %v1681
      %1683 = vmatmul.bf16.gmra.mxu0 %v1187
      %v1684 = vpop.f32.mrf.mxu0
      %v1685 = vadd.f32 0.0, %v1684
      %v1686 = vpop.f32.mrf.mxu0
      %v1687 = vadd.f32 0.0, %v1686
      %1688 = vmatmul.bf16.gmra.mxu0 %v1600
      %v1689 = vpop.f32.mrf.mxu0
      %v1690 = vadd.f32 0.0, %v1689
      %v1691 = vpop.f32.mrf.mxu0
      %v1692 = vadd.f32 0.0, %v1691
      %1693 = vdwg.mxu0
      %v1694 = vadd.f32 %v1552, %v1615
      %v1695 = vadd.f32 %v1553, %v1617
      %v1696 = vadd.f32 %v1554, %v1620
      %v1697 = vadd.f32 %v1555, %v1622
      %v1698 = vadd.f32 %v1556, %v1625
      %v1699 = vadd.f32 %v1557, %v1627
      %v1700 = vadd.f32 %v1558, %v1630
      %v1701 = vadd.f32 %v1559, %v1632
      %v1702 = vadd.f32 %v1560, %v1635
      %v1703 = vadd.f32 %v1561, %v1637
      %v1704 = vadd.f32 %v1562, %v1640
      %v1705 = vadd.f32 %v1563, %v1642
      %v1706 = vadd.f32 %v1564, %v1645
      %v1707 = vadd.f32 %v1565, %v1647
      %v1708 = vadd.f32 %v1566, %v1650
      %v1709 = vadd.f32 %v1567, %v1652
      %v1710 = vadd.f32 %v1568, %v1655
      %v1711 = vadd.f32 %v1569, %v1657
      %v1712 = vadd.f32 %v1570, %v1660
      %v1713 = vadd.f32 %v1571, %v1662
      %v1714 = vadd.f32 %v1572, %v1665
      %v1715 = vadd.f32 %v1573, %v1667
      %v1716 = vadd.f32 %v1574, %v1670
      %v1717 = vadd.f32 %v1575, %v1672
      %v1718 = vadd.f32 %v1576, %v1675
      %v1719 = vadd.f32 %v1577, %v1677
      %v1720 = vadd.f32 %v1578, %v1680
      %v1721 = vadd.f32 %v1579, %v1682
      %v1722 = vadd.f32 %v1580, %v1685
      %v1723 = vadd.f32 %v1581, %v1687
      %v1724 = vadd.f32 %v1582, %v1690
      %v1725 = vadd.f32 %v1583, %v1692
      %v1726 = vrot.slane %v250, 2
      %v1727 = vrot.slane %v251, 2
      %v1728 = vsel %vm502, %v1726, %v1727
      %v1729 = vrot.slane %v252, 2
      %v1730 = vsel %vm502, %v1727, %v1729
      %v1733 = vpack.c.bf16 %v1730, %v1728
      %s1734 = scalar_lea.vmem %s1, 128
      %v1735 = vld [vmem:[%s1734] sm:$0xff]
      %v1736 = vld [vmem:[%s1734 + $0x8] sm:$0xf]
      %v1737 = vpack.c.bf16 %v1736, %v1735
      %v1739 = vsel %vm453, %v1733, 0
      %v1742 = vsel %vm502, %v1737, 0
      %1744 = vmatpush.bf16.msra.mxu0 0
      %1745 = vmatpush.bf16.msra.mxu0 0
      %1746 = vmatpush.bf16.msra.mxu0 0
      %1747 = vmatpush.bf16.msra.mxu0 0
      %1748 = vmatpush.bf16.msra.mxu0 0
      %1749 = vmatpush.bf16.msra.mxu0 0
      %1750 = vmatpush.bf16.msra.mxu0 0
      %1751 = vmatpush.bf16.msra.mxu0 %v1742
      %1752 = vmatmul.bf16.gmra.mxu0 %v874
      %v1753 = vpop.f32.mrf.mxu0
      %v1754 = vadd.f32 0.0, %v1753
      %v1755 = vpop.f32.mrf.mxu0
      %v1756 = vadd.f32 0.0, %v1755
      %1757 = vmatmul.bf16.gmra.mxu0 %v877
      %v1758 = vpop.f32.mrf.mxu0
      %v1759 = vadd.f32 0.0, %v1758
      %v1760 = vpop.f32.mrf.mxu0
      %v1761 = vadd.f32 0.0, %v1760
      %1762 = vmatmul.bf16.gmra.mxu0 %v880
      %v1763 = vpop.f32.mrf.mxu0
      %v1764 = vadd.f32 0.0, %v1763
      %v1765 = vpop.f32.mrf.mxu0
      %v1766 = vadd.f32 0.0, %v1765
      %1767 = vmatmul.bf16.gmra.mxu0 %v883
      %v1768 = vpop.f32.mrf.mxu0
      %v1769 = vadd.f32 0.0, %v1768
      %v1770 = vpop.f32.mrf.mxu0
      %v1771 = vadd.f32 0.0, %v1770
      %1772 = vmatmul.bf16.gmra.mxu0 %v886
      %v1773 = vpop.f32.mrf.mxu0
      %v1774 = vadd.f32 0.0, %v1773
      %v1775 = vpop.f32.mrf.mxu0
      %v1776 = vadd.f32 0.0, %v1775
      %1777 = vmatmul.bf16.gmra.mxu0 %v889
      %v1778 = vpop.f32.mrf.mxu0
      %v1779 = vadd.f32 0.0, %v1778
      %v1780 = vpop.f32.mrf.mxu0
      %v1781 = vadd.f32 0.0, %v1780
      %1782 = vmatmul.bf16.gmra.mxu0 %v892
      %v1783 = vpop.f32.mrf.mxu0
      %v1784 = vadd.f32 0.0, %v1783
      %v1785 = vpop.f32.mrf.mxu0
      %v1786 = vadd.f32 0.0, %v1785
      %1787 = vmatmul.bf16.gmra.mxu0 %v895
      %v1788 = vpop.f32.mrf.mxu0
      %v1789 = vadd.f32 0.0, %v1788
      %v1790 = vpop.f32.mrf.mxu0
      %v1791 = vadd.f32 0.0, %v1790
      %1792 = vmatmul.bf16.gmra.mxu0 %v898
      %v1793 = vpop.f32.mrf.mxu0
      %v1794 = vadd.f32 0.0, %v1793
      %v1795 = vpop.f32.mrf.mxu0
      %v1796 = vadd.f32 0.0, %v1795
      %1797 = vmatmul.bf16.gmra.mxu0 %v901
      %v1798 = vpop.f32.mrf.mxu0
      %v1799 = vadd.f32 0.0, %v1798
      %v1800 = vpop.f32.mrf.mxu0
      %v1801 = vadd.f32 0.0, %v1800
      %1802 = vmatmul.bf16.gmra.mxu0 %v904
      %v1803 = vpop.f32.mrf.mxu0
      %v1804 = vadd.f32 0.0, %v1803
      %v1805 = vpop.f32.mrf.mxu0
      %v1806 = vadd.f32 0.0, %v1805
      %1807 = vmatmul.bf16.gmra.mxu0 %v907
      %v1808 = vpop.f32.mrf.mxu0
      %v1809 = vadd.f32 0.0, %v1808
      %v1810 = vpop.f32.mrf.mxu0
      %v1811 = vadd.f32 0.0, %v1810
      %1812 = vmatmul.bf16.gmra.mxu0 %v910
      %v1813 = vpop.f32.mrf.mxu0
      %v1814 = vadd.f32 0.0, %v1813
      %v1815 = vpop.f32.mrf.mxu0
      %v1816 = vadd.f32 0.0, %v1815
      %1817 = vmatmul.bf16.gmra.mxu0 %v913
      %v1818 = vpop.f32.mrf.mxu0
      %v1819 = vadd.f32 0.0, %v1818
      %v1820 = vpop.f32.mrf.mxu0
      %v1821 = vadd.f32 0.0, %v1820
      %1822 = vmatmul.bf16.gmra.mxu0 %v1326
      %v1823 = vpop.f32.mrf.mxu0
      %v1824 = vadd.f32 0.0, %v1823
      %v1825 = vpop.f32.mrf.mxu0
      %v1826 = vadd.f32 0.0, %v1825
      %1827 = vmatmul.bf16.gmra.mxu0 %v1739
      %v1828 = vpop.f32.mrf.mxu0
      %v1829 = vadd.f32 0.0, %v1828
      %v1830 = vpop.f32.mrf.mxu0
      %v1831 = vadd.f32 0.0, %v1830
      %1832 = vdwg.mxu0
      %v1833 = vadd.f32 %v1694, %v1754
      %v1834 = vadd.f32 %v1695, %v1756
      %v1835 = vadd.f32 %v1696, %v1759
      %v1836 = vadd.f32 %v1697, %v1761
      %v1837 = vadd.f32 %v1698, %v1764
      %v1838 = vadd.f32 %v1699, %v1766
      %v1839 = vadd.f32 %v1700, %v1769
      %v1840 = vadd.f32 %v1701, %v1771
      %v1841 = vadd.f32 %v1702, %v1774
      %v1842 = vadd.f32 %v1703, %v1776
      %v1843 = vadd.f32 %v1704, %v1779
      %v1844 = vadd.f32 %v1705, %v1781
      %v1845 = vadd.f32 %v1706, %v1784
      %v1846 = vadd.f32 %v1707, %v1786
      %v1847 = vadd.f32 %v1708, %v1789
      %v1848 = vadd.f32 %v1709, %v1791
      %v1849 = vadd.f32 %v1710, %v1794
      %v1850 = vadd.f32 %v1711, %v1796
      %v1851 = vadd.f32 %v1712, %v1799
      %v1852 = vadd.f32 %v1713, %v1801
      %v1853 = vadd.f32 %v1714, %v1804
      %v1854 = vadd.f32 %v1715, %v1806
      %v1855 = vadd.f32 %v1716, %v1809
      %v1856 = vadd.f32 %v1717, %v1811
      %v1857 = vadd.f32 %v1718, %v1814
      %v1858 = vadd.f32 %v1719, %v1816
      %v1859 = vadd.f32 %v1720, %v1819
      %v1860 = vadd.f32 %v1721, %v1821
      %v1861 = vadd.f32 %v1722, %v1824
      %v1862 = vadd.f32 %v1723, %v1826
      %v1863 = vadd.f32 %v1724, %v1829
      %v1864 = vadd.f32 %v1725, %v1831
      %v1865 = vld [vmem:[%s2] sm:$0x1]
      %v1867 = vperm.slane %v1865, 0
      %v1869 = vmul.f32 %v1833, %v1867
      %v1870 = vmul.f32 %v1834, %v1867
      %v1871 = vmul.f32 %v1835, %v1867
      %v1872 = vmul.f32 %v1836, %v1867
      %v1873 = vmul.f32 %v1837, %v1867
      %v1874 = vmul.f32 %v1838, %v1867
      %v1875 = vmul.f32 %v1839, %v1867
      %v1876 = vmul.f32 %v1840, %v1867
      %v1877 = vmul.f32 %v1841, %v1867
      %v1878 = vmul.f32 %v1842, %v1867
      %v1879 = vmul.f32 %v1843, %v1867
      %v1880 = vmul.f32 %v1844, %v1867
      %v1881 = vmul.f32 %v1845, %v1867
      %v1882 = vmul.f32 %v1846, %v1867
      %v1883 = vmul.f32 %v1847, %v1867
      %v1884 = vmul.f32 %v1848, %v1867
      %v1885 = vmul.f32 %v1849, %v1867
      %v1886 = vmul.f32 %v1850, %v1867
      %v1887 = vmul.f32 %v1851, %v1867
      %v1888 = vmul.f32 %v1852, %v1867
      %v1889 = vmul.f32 %v1853, %v1867
      %v1890 = vmul.f32 %v1854, %v1867
      %v1891 = vmul.f32 %v1855, %v1867
      %v1892 = vmul.f32 %v1856, %v1867
      %v1893 = vmul.f32 %v1857, %v1867
      %v1894 = vmul.f32 %v1858, %v1867
      %v1895 = vmul.f32 %v1859, %v1867
      %v1896 = vmul.f32 %v1860, %v1867
      %v1897 = vmul.f32 %v1861, %v1867
      %v1898 = vmul.f32 %v1862, %v1867
      %v1899 = vmul.f32 %v1863, %v1867
      %v1900 = vmul.f32 %v1864, %v1867
      %v1901 = vld [vmem:[%s3] sm:$0x1]
      %v1903 = vperm.slane %v1901, 0
      %v1905 = vadd.f32 %v1869, %v1903
      %v1906 = vadd.f32 %v1870, %v1903
      %v1907 = vadd.f32 %v1871, %v1903
      %v1908 = vadd.f32 %v1872, %v1903
      %v1909 = vadd.f32 %v1873, %v1903
      %v1910 = vadd.f32 %v1874, %v1903
      %v1911 = vadd.f32 %v1875, %v1903
      %v1912 = vadd.f32 %v1876, %v1903
      %v1913 = vadd.f32 %v1877, %v1903
      %v1914 = vadd.f32 %v1878, %v1903
      %v1915 = vadd.f32 %v1879, %v1903
      %v1916 = vadd.f32 %v1880, %v1903
      %v1917 = vadd.f32 %v1881, %v1903
      %v1918 = vadd.f32 %v1882, %v1903
      %v1919 = vadd.f32 %v1883, %v1903
      %v1920 = vadd.f32 %v1884, %v1903
      %v1921 = vadd.f32 %v1885, %v1903
      %v1922 = vadd.f32 %v1886, %v1903
      %v1923 = vadd.f32 %v1887, %v1903
      %v1924 = vadd.f32 %v1888, %v1903
      %v1925 = vadd.f32 %v1889, %v1903
      %v1926 = vadd.f32 %v1890, %v1903
      %v1927 = vadd.f32 %v1891, %v1903
      %v1928 = vadd.f32 %v1892, %v1903
      %v1929 = vadd.f32 %v1893, %v1903
      %v1930 = vadd.f32 %v1894, %v1903
      %v1931 = vadd.f32 %v1895, %v1903
      %v1932 = vadd.f32 %v1896, %v1903
      %v1933 = vadd.f32 %v1897, %v1903
      %v1934 = vadd.f32 %v1898, %v1903
      %v1935 = vadd.f32 %v1899, %v1903
      %v1936 = vadd.f32 %v1900, %v1903
      %v1937 = vxor.u32 %v1905, 2147483648
      %v1938 = vxor.u32 %v1906, 2147483648
      %v1939 = vxor.u32 %v1907, 2147483648
      %v1940 = vxor.u32 %v1908, 2147483648
      %v1941 = vxor.u32 %v1909, 2147483648
      %v1942 = vxor.u32 %v1910, 2147483648
      %v1943 = vxor.u32 %v1911, 2147483648
      %v1944 = vxor.u32 %v1912, 2147483648
      %v1945 = vxor.u32 %v1913, 2147483648
      %v1946 = vxor.u32 %v1914, 2147483648
      %v1947 = vxor.u32 %v1915, 2147483648
      %v1948 = vxor.u32 %v1916, 2147483648
      %v1949 = vxor.u32 %v1917, 2147483648
      %v1950 = vxor.u32 %v1918, 2147483648
      %v1951 = vxor.u32 %v1919, 2147483648
      %v1952 = vxor.u32 %v1920, 2147483648
      %v1953 = vxor.u32 %v1921, 2147483648
      %v1954 = vxor.u32 %v1922, 2147483648
      %v1955 = vxor.u32 %v1923, 2147483648
      %v1956 = vxor.u32 %v1924, 2147483648
      %v1957 = vxor.u32 %v1925, 2147483648
      %v1958 = vxor.u32 %v1926, 2147483648
      %v1959 = vxor.u32 %v1927, 2147483648
      %v1960 = vxor.u32 %v1928, 2147483648
      %v1961 = vxor.u32 %v1929, 2147483648
      %v1962 = vxor.u32 %v1930, 2147483648
      %v1963 = vxor.u32 %v1931, 2147483648
      %v1964 = vxor.u32 %v1932, 2147483648
      %v1965 = vxor.u32 %v1933, 2147483648
      %v1966 = vxor.u32 %v1934, 2147483648
      %v1967 = vxor.u32 %v1935, 2147483648
      %v1968 = vxor.u32 %v1936, 2147483648
      %v1969 = vmul.f32 %v1937, 1.442695
      %v1970 = vpow.pop %v1969
      %v1971 = vmul.f32 %v1938, 1.442695
      %v1972 = vpow.pop %v1971
      %v1973 = vmul.f32 %v1939, 1.442695
      %v1974 = vpow.pop %v1973
      %v1975 = vmul.f32 %v1940, 1.442695
      %v1976 = vpow.pop %v1975
      %v1977 = vmul.f32 %v1941, 1.442695
      %v1978 = vpow.pop %v1977
      %v1979 = vmul.f32 %v1942, 1.442695
      %v1980 = vpow.pop %v1979
      %v1981 = vmul.f32 %v1943, 1.442695
      %v1982 = vpow.pop %v1981
      %v1983 = vmul.f32 %v1944, 1.442695
      %v1984 = vpow.pop %v1983
      %v1985 = vmul.f32 %v1945, 1.442695
      %v1986 = vpow.pop %v1985
      %v1987 = vmul.f32 %v1946, 1.442695
      %v1988 = vpow.pop %v1987
      %v1989 = vmul.f32 %v1947, 1.442695
      %v1990 = vpow.pop %v1989
      %v1991 = vmul.f32 %v1948, 1.442695
      %v1992 = vpow.pop %v1991
      %v1993 = vmul.f32 %v1949, 1.442695
      %v1994 = vpow.pop %v1993
      %v1995 = vmul.f32 %v1950, 1.442695
      %v1996 = vpow.pop %v1995
      %v1997 = vmul.f32 %v1951, 1.442695
      %v1998 = vpow.pop %v1997
      %v1999 = vmul.f32 %v1952, 1.442695
      %v2000 = vpow.pop %v1999
      %v2001 = vmul.f32 %v1953, 1.442695
      %v2002 = vpow.pop %v2001
      %v2003 = vmul.f32 %v1954, 1.442695
      %v2004 = vpow.pop %v2003
      %v2005 = vmul.f32 %v1955, 1.442695
      %v2006 = vpow.pop %v2005
      %v2007 = vmul.f32 %v1956, 1.442695
      %v2008 = vpow.pop %v2007
      %v2009 = vmul.f32 %v1957, 1.442695
      %v2010 = vpow.pop %v2009
      %v2011 = vmul.f32 %v1958, 1.442695
      %v2012 = vpow.pop %v2011
      %v2013 = vmul.f32 %v1959, 1.442695
      %v2014 = vpow.pop %v2013
      %v2015 = vmul.f32 %v1960, 1.442695
      %v2016 = vpow.pop %v2015
      %v2017 = vmul.f32 %v1961, 1.442695
      %v2018 = vpow.pop %v2017
      %v2019 = vmul.f32 %v1962, 1.442695
      %v2020 = vpow.pop %v2019
      %v2021 = vmul.f32 %v1963, 1.442695
      %v2022 = vpow.pop %v2021
      %v2023 = vmul.f32 %v1964, 1.442695
      %v2024 = vpow.pop %v2023
      %v2025 = vmul.f32 %v1965, 1.442695
      %v2026 = vpow.pop %v2025
      %v2027 = vmul.f32 %v1966, 1.442695
      %v2028 = vpow.pop %v2027
      %v2029 = vmul.f32 %v1967, 1.442695
      %v2030 = vpow.pop %v2029
      %v2031 = vmul.f32 %v1968, 1.442695
      %v2032 = vpow.pop %v2031
      %v2033 = vadd.f32 %v1970, 1.0
      %v2034 = vadd.f32 %v1972, 1.0
      %v2035 = vadd.f32 %v1974, 1.0
      %v2036 = vadd.f32 %v1976, 1.0
      %v2037 = vadd.f32 %v1978, 1.0
      %v2038 = vadd.f32 %v1980, 1.0
      %v2039 = vadd.f32 %v1982, 1.0
      %v2040 = vadd.f32 %v1984, 1.0
      %v2041 = vadd.f32 %v1986, 1.0
      %v2042 = vadd.f32 %v1988, 1.0
      %v2043 = vadd.f32 %v1990, 1.0
      %v2044 = vadd.f32 %v1992, 1.0
      %v2045 = vadd.f32 %v1994, 1.0
      %v2046 = vadd.f32 %v1996, 1.0
      %v2047 = vadd.f32 %v1998, 1.0
      %v2048 = vadd.f32 %v2000, 1.0
      %v2049 = vadd.f32 %v2002, 1.0
      %v2050 = vadd.f32 %v2004, 1.0
      %v2051 = vadd.f32 %v2006, 1.0
      %v2052 = vadd.f32 %v2008, 1.0
      %v2053 = vadd.f32 %v2010, 1.0
      %v2054 = vadd.f32 %v2012, 1.0
      %v2055 = vadd.f32 %v2014, 1.0
      %v2056 = vadd.f32 %v2016, 1.0
      %v2057 = vadd.f32 %v2018, 1.0
      %v2058 = vadd.f32 %v2020, 1.0
      %v2059 = vadd.f32 %v2022, 1.0
      %v2060 = vadd.f32 %v2024, 1.0
      %v2061 = vadd.f32 %v2026, 1.0
      %v2062 = vadd.f32 %v2028, 1.0
      %v2063 = vadd.f32 %v2030, 1.0
      %v2064 = vadd.f32 %v2032, 1.0
      %v2065 = vrcp.pop %v2033
      %v2066 = vmul.f32 %v2033, %v2065
      %v2067 = vsub.f32 1.0, %v2066
      %v2068 = vmul.f32 %v2065, %v2067
      %v2069 = vadd.f32 %v2065, %v2068
      %vm2070 = vweird.f32 %v2033
      %vm2071 = vweird.f32 %v2065
      %vm2072 = vmor %vm2070, %vm2071
      %v2073 = vsel %vm2072, %v2065, %v2069
      %v2074 = vand.u32 2147483647, %v2033
      %vm2075 = vcmp.eq.f32.partialorder %v2074, 8.507059e+37
      %v2076 = vand.u32 %v2033, 2147483648
      %v2077 = vor.u32 1.1754944e-38, %v2076
      %v2078 = vsel %vm2075, %v2077, %v2073
      %v2079 = vmul.f32 1.0, %v2078
      %v2080 = vrcp.pop %v2034
      %v2081 = vmul.f32 %v2034, %v2080
      %v2082 = vsub.f32 1.0, %v2081
      %v2083 = vmul.f32 %v2080, %v2082
      %v2084 = vadd.f32 %v2080, %v2083
      %vm2085 = vweird.f32 %v2034
      %vm2086 = vweird.f32 %v2080
      %vm2087 = vmor %vm2085, %vm2086
      %v2088 = vsel %vm2087, %v2080, %v2084
      %v2089 = vand.u32 2147483647, %v2034
      %vm2090 = vcmp.eq.f32.partialorder %v2089, 8.507059e+37
      %v2091 = vand.u32 %v2034, 2147483648
      %v2092 = vor.u32 1.1754944e-38, %v2091
      %v2093 = vsel %vm2090, %v2092, %v2088
      %v2094 = vmul.f32 1.0, %v2093
      %v2095 = vrcp.pop %v2035
      %v2096 = vmul.f32 %v2035, %v2095
      %v2097 = vsub.f32 1.0, %v2096
      %v2098 = vmul.f32 %v2095, %v2097
      %v2099 = vadd.f32 %v2095, %v2098
      %vm2100 = vweird.f32 %v2035
      %vm2101 = vweird.f32 %v2095
      %vm2102 = vmor %vm2100, %vm2101
      %v2103 = vsel %vm2102, %v2095, %v2099
      %v2104 = vand.u32 2147483647, %v2035
      %vm2105 = vcmp.eq.f32.partialorder %v2104, 8.507059e+37
      %v2106 = vand.u32 %v2035, 2147483648
      %v2107 = vor.u32 1.1754944e-38, %v2106
      %v2108 = vsel %vm2105, %v2107, %v2103
      %v2109 = vmul.f32 1.0, %v2108
      %v2110 = vrcp.pop %v2036
      %v2111 = vmul.f32 %v2036, %v2110
      %v2112 = vsub.f32 1.0, %v2111
      %v2113 = vmul.f32 %v2110, %v2112
      %v2114 = vadd.f32 %v2110, %v2113
      %vm2115 = vweird.f32 %v2036
      %vm2116 = vweird.f32 %v2110
      %vm2117 = vmor %vm2115, %vm2116
      %v2118 = vsel %vm2117, %v2110, %v2114
      %v2119 = vand.u32 2147483647, %v2036
      %vm2120 = vcmp.eq.f32.partialorder %v2119, 8.507059e+37
      %v2121 = vand.u32 %v2036, 2147483648
      %v2122 = vor.u32 1.1754944e-38, %v2121
      %v2123 = vsel %vm2120, %v2122, %v2118
      %v2124 = vmul.f32 1.0, %v2123
      %v2125 = vrcp.pop %v2037
      %v2126 = vmul.f32 %v2037, %v2125
      %v2127 = vsub.f32 1.0, %v2126
      %v2128 = vmul.f32 %v2125, %v2127
      %v2129 = vadd.f32 %v2125, %v2128
      %vm2130 = vweird.f32 %v2037
      %vm2131 = vweird.f32 %v2125
      %vm2132 = vmor %vm2130, %vm2131
      %v2133 = vsel %vm2132, %v2125, %v2129
      %v2134 = vand.u32 2147483647, %v2037
      %vm2135 = vcmp.eq.f32.partialorder %v2134, 8.507059e+37
      %v2136 = vand.u32 %v2037, 2147483648
      %v2137 = vor.u32 1.1754944e-38, %v2136
      %v2138 = vsel %vm2135, %v2137, %v2133
      %v2139 = vmul.f32 1.0, %v2138
      %v2140 = vrcp.pop %v2038
      %v2141 = vmul.f32 %v2038, %v2140
      %v2142 = vsub.f32 1.0, %v2141
      %v2143 = vmul.f32 %v2140, %v2142
      %v2144 = vadd.f32 %v2140, %v2143
      %vm2145 = vweird.f32 %v2038
      %vm2146 = vweird.f32 %v2140
      %vm2147 = vmor %vm2145, %vm2146
      %v2148 = vsel %vm2147, %v2140, %v2144
      %v2149 = vand.u32 2147483647, %v2038
      %vm2150 = vcmp.eq.f32.partialorder %v2149, 8.507059e+37
      %v2151 = vand.u32 %v2038, 2147483648
      %v2152 = vor.u32 1.1754944e-38, %v2151
      %v2153 = vsel %vm2150, %v2152, %v2148
      %v2154 = vmul.f32 1.0, %v2153
      %v2155 = vrcp.pop %v2039
      %v2156 = vmul.f32 %v2039, %v2155
      %v2157 = vsub.f32 1.0, %v2156
      %v2158 = vmul.f32 %v2155, %v2157
      %v2159 = vadd.f32 %v2155, %v2158
      %vm2160 = vweird.f32 %v2039
      %vm2161 = vweird.f32 %v2155
      %vm2162 = vmor %vm2160, %vm2161
      %v2163 = vsel %vm2162, %v2155, %v2159
      %v2164 = vand.u32 2147483647, %v2039
      %vm2165 = vcmp.eq.f32.partialorder %v2164, 8.507059e+37
      %v2166 = vand.u32 %v2039, 2147483648
      %v2167 = vor.u32 1.1754944e-38, %v2166
      %v2168 = vsel %vm2165, %v2167, %v2163
      %v2169 = vmul.f32 1.0, %v2168
      %v2170 = vrcp.pop %v2040
      %v2171 = vmul.f32 %v2040, %v2170
      %v2172 = vsub.f32 1.0, %v2171
      %v2173 = vmul.f32 %v2170, %v2172
      %v2174 = vadd.f32 %v2170, %v2173
      %vm2175 = vweird.f32 %v2040
      %vm2176 = vweird.f32 %v2170
      %vm2177 = vmor %vm2175, %vm2176
      %v2178 = vsel %vm2177, %v2170, %v2174
      %v2179 = vand.u32 2147483647, %v2040
      %vm2180 = vcmp.eq.f32.partialorder %v2179, 8.507059e+37
      %v2181 = vand.u32 %v2040, 2147483648
      %v2182 = vor.u32 1.1754944e-38, %v2181
      %v2183 = vsel %vm2180, %v2182, %v2178
      %v2184 = vmul.f32 1.0, %v2183
      %v2185 = vrcp.pop %v2041
      %v2186 = vmul.f32 %v2041, %v2185
      %v2187 = vsub.f32 1.0, %v2186
      %v2188 = vmul.f32 %v2185, %v2187
      %v2189 = vadd.f32 %v2185, %v2188
      %vm2190 = vweird.f32 %v2041
      %vm2191 = vweird.f32 %v2185
      %vm2192 = vmor %vm2190, %vm2191
      %v2193 = vsel %vm2192, %v2185, %v2189
      %v2194 = vand.u32 2147483647, %v2041
      %vm2195 = vcmp.eq.f32.partialorder %v2194, 8.507059e+37
      %v2196 = vand.u32 %v2041, 2147483648
      %v2197 = vor.u32 1.1754944e-38, %v2196
      %v2198 = vsel %vm2195, %v2197, %v2193
      %v2199 = vmul.f32 1.0, %v2198
      %v2200 = vrcp.pop %v2042
      %v2201 = vmul.f32 %v2042, %v2200
      %v2202 = vsub.f32 1.0, %v2201
      %v2203 = vmul.f32 %v2200, %v2202
      %v2204 = vadd.f32 %v2200, %v2203
      %vm2205 = vweird.f32 %v2042
      %vm2206 = vweird.f32 %v2200
      %vm2207 = vmor %vm2205, %vm2206
      %v2208 = vsel %vm2207, %v2200, %v2204
      %v2209 = vand.u32 2147483647, %v2042
      %vm2210 = vcmp.eq.f32.partialorder %v2209, 8.507059e+37
      %v2211 = vand.u32 %v2042, 2147483648
      %v2212 = vor.u32 1.1754944e-38, %v2211
      %v2213 = vsel %vm2210, %v2212, %v2208
      %v2214 = vmul.f32 1.0, %v2213
      %v2215 = vrcp.pop %v2043
      %v2216 = vmul.f32 %v2043, %v2215
      %v2217 = vsub.f32 1.0, %v2216
      %v2218 = vmul.f32 %v2215, %v2217
      %v2219 = vadd.f32 %v2215, %v2218
      %vm2220 = vweird.f32 %v2043
      %vm2221 = vweird.f32 %v2215
      %vm2222 = vmor %vm2220, %vm2221
      %v2223 = vsel %vm2222, %v2215, %v2219
      %v2224 = vand.u32 2147483647, %v2043
      %vm2225 = vcmp.eq.f32.partialorder %v2224, 8.507059e+37
      %v2226 = vand.u32 %v2043, 2147483648
      %v2227 = vor.u32 1.1754944e-38, %v2226
      %v2228 = vsel %vm2225, %v2227, %v2223
      %v2229 = vmul.f32 1.0, %v2228
      %v2230 = vrcp.pop %v2044
      %v2231 = vmul.f32 %v2044, %v2230
      %v2232 = vsub.f32 1.0, %v2231
      %v2233 = vmul.f32 %v2230, %v2232
      %v2234 = vadd.f32 %v2230, %v2233
      %vm2235 = vweird.f32 %v2044
      %vm2236 = vweird.f32 %v2230
      %vm2237 = vmor %vm2235, %vm2236
      %v2238 = vsel %vm2237, %v2230, %v2234
      %v2239 = vand.u32 2147483647, %v2044
      %vm2240 = vcmp.eq.f32.partialorder %v2239, 8.507059e+37
      %v2241 = vand.u32 %v2044, 2147483648
      %v2242 = vor.u32 1.1754944e-38, %v2241
      %v2243 = vsel %vm2240, %v2242, %v2238
      %v2244 = vmul.f32 1.0, %v2243
      %v2245 = vrcp.pop %v2045
      %v2246 = vmul.f32 %v2045, %v2245
      %v2247 = vsub.f32 1.0, %v2246
      %v2248 = vmul.f32 %v2245, %v2247
      %v2249 = vadd.f32 %v2245, %v2248
      %vm2250 = vweird.f32 %v2045
      %vm2251 = vweird.f32 %v2245
      %vm2252 = vmor %vm2250, %vm2251
      %v2253 = vsel %vm2252, %v2245, %v2249
      %v2254 = vand.u32 2147483647, %v2045
      %vm2255 = vcmp.eq.f32.partialorder %v2254, 8.507059e+37
      %v2256 = vand.u32 %v2045, 2147483648
      %v2257 = vor.u32 1.1754944e-38, %v2256
      %v2258 = vsel %vm2255, %v2257, %v2253
      %v2259 = vmul.f32 1.0, %v2258
      %v2260 = vrcp.pop %v2046
      %v2261 = vmul.f32 %v2046, %v2260
      %v2262 = vsub.f32 1.0, %v2261
      %v2263 = vmul.f32 %v2260, %v2262
      %v2264 = vadd.f32 %v2260, %v2263
      %vm2265 = vweird.f32 %v2046
      %vm2266 = vweird.f32 %v2260
      %vm2267 = vmor %vm2265, %vm2266
      %v2268 = vsel %vm2267, %v2260, %v2264
      %v2269 = vand.u32 2147483647, %v2046
      %vm2270 = vcmp.eq.f32.partialorder %v2269, 8.507059e+37
      %v2271 = vand.u32 %v2046, 2147483648
      %v2272 = vor.u32 1.1754944e-38, %v2271
      %v2273 = vsel %vm2270, %v2272, %v2268
      %v2274 = vmul.f32 1.0, %v2273
      %v2275 = vrcp.pop %v2047
      %v2276 = vmul.f32 %v2047, %v2275
      %v2277 = vsub.f32 1.0, %v2276
      %v2278 = vmul.f32 %v2275, %v2277
      %v2279 = vadd.f32 %v2275, %v2278
      %vm2280 = vweird.f32 %v2047
      %vm2281 = vweird.f32 %v2275
      %vm2282 = vmor %vm2280, %vm2281
      %v2283 = vsel %vm2282, %v2275, %v2279
      %v2284 = vand.u32 2147483647, %v2047
      %vm2285 = vcmp.eq.f32.partialorder %v2284, 8.507059e+37
      %v2286 = vand.u32 %v2047, 2147483648
      %v2287 = vor.u32 1.1754944e-38, %v2286
      %v2288 = vsel %vm2285, %v2287, %v2283
      %v2289 = vmul.f32 1.0, %v2288
      %v2290 = vrcp.pop %v2048
      %v2291 = vmul.f32 %v2048, %v2290
      %v2292 = vsub.f32 1.0, %v2291
      %v2293 = vmul.f32 %v2290, %v2292
      %v2294 = vadd.f32 %v2290, %v2293
      %vm2295 = vweird.f32 %v2048
      %vm2296 = vweird.f32 %v2290
      %vm2297 = vmor %vm2295, %vm2296
      %v2298 = vsel %vm2297, %v2290, %v2294
      %v2299 = vand.u32 2147483647, %v2048
      %vm2300 = vcmp.eq.f32.partialorder %v2299, 8.507059e+37
      %v2301 = vand.u32 %v2048, 2147483648
      %v2302 = vor.u32 1.1754944e-38, %v2301
      %v2303 = vsel %vm2300, %v2302, %v2298
      %v2304 = vmul.f32 1.0, %v2303
      %v2305 = vrcp.pop %v2049
      %v2306 = vmul.f32 %v2049, %v2305
      %v2307 = vsub.f32 1.0, %v2306
      %v2308 = vmul.f32 %v2305, %v2307
      %v2309 = vadd.f32 %v2305, %v2308
      %vm2310 = vweird.f32 %v2049
      %vm2311 = vweird.f32 %v2305
      %vm2312 = vmor %vm2310, %vm2311
      %v2313 = vsel %vm2312, %v2305, %v2309
      %v2314 = vand.u32 2147483647, %v2049
      %vm2315 = vcmp.eq.f32.partialorder %v2314, 8.507059e+37
      %v2316 = vand.u32 %v2049, 2147483648
      %v2317 = vor.u32 1.1754944e-38, %v2316
      %v2318 = vsel %vm2315, %v2317, %v2313
      %v2319 = vmul.f32 1.0, %v2318
      %v2320 = vrcp.pop %v2050
      %v2321 = vmul.f32 %v2050, %v2320
      %v2322 = vsub.f32 1.0, %v2321
      %v2323 = vmul.f32 %v2320, %v2322
      %v2324 = vadd.f32 %v2320, %v2323
      %vm2325 = vweird.f32 %v2050
      %vm2326 = vweird.f32 %v2320
      %vm2327 = vmor %vm2325, %vm2326
      %v2328 = vsel %vm2327, %v2320, %v2324
      %v2329 = vand.u32 2147483647, %v2050
      %vm2330 = vcmp.eq.f32.partialorder %v2329, 8.507059e+37
      %v2331 = vand.u32 %v2050, 2147483648
      %v2332 = vor.u32 1.1754944e-38, %v2331
      %v2333 = vsel %vm2330, %v2332, %v2328
      %v2334 = vmul.f32 1.0, %v2333
      %v2335 = vrcp.pop %v2051
      %v2336 = vmul.f32 %v2051, %v2335
      %v2337 = vsub.f32 1.0, %v2336
      %v2338 = vmul.f32 %v2335, %v2337
      %v2339 = vadd.f32 %v2335, %v2338
      %vm2340 = vweird.f32 %v2051
      %vm2341 = vweird.f32 %v2335
      %vm2342 = vmor %vm2340, %vm2341
      %v2343 = vsel %vm2342, %v2335, %v2339
      %v2344 = vand.u32 2147483647, %v2051
      %vm2345 = vcmp.eq.f32.partialorder %v2344, 8.507059e+37
      %v2346 = vand.u32 %v2051, 2147483648
      %v2347 = vor.u32 1.1754944e-38, %v2346
      %v2348 = vsel %vm2345, %v2347, %v2343
      %v2349 = vmul.f32 1.0, %v2348
      %v2350 = vrcp.pop %v2052
      %v2351 = vmul.f32 %v2052, %v2350
      %v2352 = vsub.f32 1.0, %v2351
      %v2353 = vmul.f32 %v2350, %v2352
      %v2354 = vadd.f32 %v2350, %v2353
      %vm2355 = vweird.f32 %v2052
      %vm2356 = vweird.f32 %v2350
      %vm2357 = vmor %vm2355, %vm2356
      %v2358 = vsel %vm2357, %v2350, %v2354
      %v2359 = vand.u32 2147483647, %v2052
      %vm2360 = vcmp.eq.f32.partialorder %v2359, 8.507059e+37
      %v2361 = vand.u32 %v2052, 2147483648
      %v2362 = vor.u32 1.1754944e-38, %v2361
      %v2363 = vsel %vm2360, %v2362, %v2358
      %v2364 = vmul.f32 1.0, %v2363
      %v2365 = vrcp.pop %v2053
      %v2366 = vmul.f32 %v2053, %v2365
      %v2367 = vsub.f32 1.0, %v2366
      %v2368 = vmul.f32 %v2365, %v2367
      %v2369 = vadd.f32 %v2365, %v2368
      %vm2370 = vweird.f32 %v2053
      %vm2371 = vweird.f32 %v2365
      %vm2372 = vmor %vm2370, %vm2371
      %v2373 = vsel %vm2372, %v2365, %v2369
      %v2374 = vand.u32 2147483647, %v2053
      %vm2375 = vcmp.eq.f32.partialorder %v2374, 8.507059e+37
      %v2376 = vand.u32 %v2053, 2147483648
      %v2377 = vor.u32 1.1754944e-38, %v2376
      %v2378 = vsel %vm2375, %v2377, %v2373
      %v2379 = vmul.f32 1.0, %v2378
      %v2380 = vrcp.pop %v2054
      %v2381 = vmul.f32 %v2054, %v2380
      %v2382 = vsub.f32 1.0, %v2381
      %v2383 = vmul.f32 %v2380, %v2382
      %v2384 = vadd.f32 %v2380, %v2383
      %vm2385 = vweird.f32 %v2054
      %vm2386 = vweird.f32 %v2380
      %vm2387 = vmor %vm2385, %vm2386
      %v2388 = vsel %vm2387, %v2380, %v2384
      %v2389 = vand.u32 2147483647, %v2054
      %vm2390 = vcmp.eq.f32.partialorder %v2389, 8.507059e+37
      %v2391 = vand.u32 %v2054, 2147483648
      %v2392 = vor.u32 1.1754944e-38, %v2391
      %v2393 = vsel %vm2390, %v2392, %v2388
      %v2394 = vmul.f32 1.0, %v2393
      %v2395 = vrcp.pop %v2055
      %v2396 = vmul.f32 %v2055, %v2395
      %v2397 = vsub.f32 1.0, %v2396
      %v2398 = vmul.f32 %v2395, %v2397
      %v2399 = vadd.f32 %v2395, %v2398
      %vm2400 = vweird.f32 %v2055
      %vm2401 = vweird.f32 %v2395
      %vm2402 = vmor %vm2400, %vm2401
      %v2403 = vsel %vm2402, %v2395, %v2399
      %v2404 = vand.u32 2147483647, %v2055
      %vm2405 = vcmp.eq.f32.partialorder %v2404, 8.507059e+37
      %v2406 = vand.u32 %v2055, 2147483648
      %v2407 = vor.u32 1.1754944e-38, %v2406
      %v2408 = vsel %vm2405, %v2407, %v2403
      %v2409 = vmul.f32 1.0, %v2408
      %v2410 = vrcp.pop %v2056
      %v2411 = vmul.f32 %v2056, %v2410
      %v2412 = vsub.f32 1.0, %v2411
      %v2413 = vmul.f32 %v2410, %v2412
      %v2414 = vadd.f32 %v2410, %v2413
      %vm2415 = vweird.f32 %v2056
      %vm2416 = vweird.f32 %v2410
      %vm2417 = vmor %vm2415, %vm2416
      %v2418 = vsel %vm2417, %v2410, %v2414
      %v2419 = vand.u32 2147483647, %v2056
      %vm2420 = vcmp.eq.f32.partialorder %v2419, 8.507059e+37
      %v2421 = vand.u32 %v2056, 2147483648
      %v2422 = vor.u32 1.1754944e-38, %v2421
      %v2423 = vsel %vm2420, %v2422, %v2418
      %v2424 = vmul.f32 1.0, %v2423
      %v2425 = vrcp.pop %v2057
      %v2426 = vmul.f32 %v2057, %v2425
      %v2427 = vsub.f32 1.0, %v2426
      %v2428 = vmul.f32 %v2425, %v2427
      %v2429 = vadd.f32 %v2425, %v2428
      %vm2430 = vweird.f32 %v2057
      %vm2431 = vweird.f32 %v2425
      %vm2432 = vmor %vm2430, %vm2431
      %v2433 = vsel %vm2432, %v2425, %v2429
      %v2434 = vand.u32 2147483647, %v2057
      %vm2435 = vcmp.eq.f32.partialorder %v2434, 8.507059e+37
      %v2436 = vand.u32 %v2057, 2147483648
      %v2437 = vor.u32 1.1754944e-38, %v2436
      %v2438 = vsel %vm2435, %v2437, %v2433
      %v2439 = vmul.f32 1.0, %v2438
      %v2440 = vrcp.pop %v2058
      %v2441 = vmul.f32 %v2058, %v2440
      %v2442 = vsub.f32 1.0, %v2441
      %v2443 = vmul.f32 %v2440, %v2442
      %v2444 = vadd.f32 %v2440, %v2443
      %vm2445 = vweird.f32 %v2058
      %vm2446 = vweird.f32 %v2440
      %vm2447 = vmor %vm2445, %vm2446
      %v2448 = vsel %vm2447, %v2440, %v2444
      %v2449 = vand.u32 2147483647, %v2058
      %vm2450 = vcmp.eq.f32.partialorder %v2449, 8.507059e+37
      %v2451 = vand.u32 %v2058, 2147483648
      %v2452 = vor.u32 1.1754944e-38, %v2451
      %v2453 = vsel %vm2450, %v2452, %v2448
      %v2454 = vmul.f32 1.0, %v2453
      %v2455 = vrcp.pop %v2059
      %v2456 = vmul.f32 %v2059, %v2455
      %v2457 = vsub.f32 1.0, %v2456
      %v2458 = vmul.f32 %v2455, %v2457
      %v2459 = vadd.f32 %v2455, %v2458
      %vm2460 = vweird.f32 %v2059
      %vm2461 = vweird.f32 %v2455
      %vm2462 = vmor %vm2460, %vm2461
      %v2463 = vsel %vm2462, %v2455, %v2459
      %v2464 = vand.u32 2147483647, %v2059
      %vm2465 = vcmp.eq.f32.partialorder %v2464, 8.507059e+37
      %v2466 = vand.u32 %v2059, 2147483648
      %v2467 = vor.u32 1.1754944e-38, %v2466
      %v2468 = vsel %vm2465, %v2467, %v2463
      %v2469 = vmul.f32 1.0, %v2468
      %v2470 = vrcp.pop %v2060
      %v2471 = vmul.f32 %v2060, %v2470
      %v2472 = vsub.f32 1.0, %v2471
      %v2473 = vmul.f32 %v2470, %v2472
      %v2474 = vadd.f32 %v2470, %v2473
      %vm2475 = vweird.f32 %v2060
      %vm2476 = vweird.f32 %v2470
      %vm2477 = vmor %vm2475, %vm2476
      %v2478 = vsel %vm2477, %v2470, %v2474
      %v2479 = vand.u32 2147483647, %v2060
      %vm2480 = vcmp.eq.f32.partialorder %v2479, 8.507059e+37
      %v2481 = vand.u32 %v2060, 2147483648
      %v2482 = vor.u32 1.1754944e-38, %v2481
      %v2483 = vsel %vm2480, %v2482, %v2478
      %v2484 = vmul.f32 1.0, %v2483
      %v2485 = vrcp.pop %v2061
      %v2486 = vmul.f32 %v2061, %v2485
      %v2487 = vsub.f32 1.0, %v2486
      %v2488 = vmul.f32 %v2485, %v2487
      %v2489 = vadd.f32 %v2485, %v2488
      %vm2490 = vweird.f32 %v2061
      %vm2491 = vweird.f32 %v2485
      %vm2492 = vmor %vm2490, %vm2491
      %v2493 = vsel %vm2492, %v2485, %v2489
      %v2494 = vand.u32 2147483647, %v2061
      %vm2495 = vcmp.eq.f32.partialorder %v2494, 8.507059e+37
      %v2496 = vand.u32 %v2061, 2147483648
      %v2497 = vor.u32 1.1754944e-38, %v2496
      %v2498 = vsel %vm2495, %v2497, %v2493
      %v2499 = vmul.f32 1.0, %v2498
      %v2500 = vrcp.pop %v2062
      %v2501 = vmul.f32 %v2062, %v2500
      %v2502 = vsub.f32 1.0, %v2501
      %v2503 = vmul.f32 %v2500, %v2502
      %v2504 = vadd.f32 %v2500, %v2503
      %vm2505 = vweird.f32 %v2062
      %vm2506 = vweird.f32 %v2500
      %vm2507 = vmor %vm2505, %vm2506
      %v2508 = vsel %vm2507, %v2500, %v2504
      %v2509 = vand.u32 2147483647, %v2062
      %vm2510 = vcmp.eq.f32.partialorder %v2509, 8.507059e+37
      %v2511 = vand.u32 %v2062, 2147483648
      %v2512 = vor.u32 1.1754944e-38, %v2511
      %v2513 = vsel %vm2510, %v2512, %v2508
      %v2514 = vmul.f32 1.0, %v2513
      %v2515 = vrcp.pop %v2063
      %v2516 = vmul.f32 %v2063, %v2515
      %v2517 = vsub.f32 1.0, %v2516
      %v2518 = vmul.f32 %v2515, %v2517
      %v2519 = vadd.f32 %v2515, %v2518
      %vm2520 = vweird.f32 %v2063
      %vm2521 = vweird.f32 %v2515
      %vm2522 = vmor %vm2520, %vm2521
      %v2523 = vsel %vm2522, %v2515, %v2519
      %v2524 = vand.u32 2147483647, %v2063
      %vm2525 = vcmp.eq.f32.partialorder %v2524, 8.507059e+37
      %v2526 = vand.u32 %v2063, 2147483648
      %v2527 = vor.u32 1.1754944e-38, %v2526
      %v2528 = vsel %vm2525, %v2527, %v2523
      %v2529 = vmul.f32 1.0, %v2528
      %v2530 = vrcp.pop %v2064
      %v2531 = vmul.f32 %v2064, %v2530
      %v2532 = vsub.f32 1.0, %v2531
      %v2533 = vmul.f32 %v2530, %v2532
      %v2534 = vadd.f32 %v2530, %v2533
      %vm2535 = vweird.f32 %v2064
      %vm2536 = vweird.f32 %v2530
      %vm2537 = vmor %vm2535, %vm2536
      %v2538 = vsel %vm2537, %v2530, %v2534
      %v2539 = vand.u32 2147483647, %v2064
      %vm2540 = vcmp.eq.f32.partialorder %v2539, 8.507059e+37
      %v2541 = vand.u32 %v2064, 2147483648
      %v2542 = vor.u32 1.1754944e-38, %v2541
      %v2543 = vsel %vm2540, %v2542, %v2538
      %v2544 = vmul.f32 1.0, %v2543
      %v2545 = vmul.f32 %v1905, %v2079
      %v2546 = vmul.f32 %v1906, %v2094
      %v2547 = vmul.f32 %v1907, %v2109
      %v2548 = vmul.f32 %v1908, %v2124
      %v2549 = vmul.f32 %v1909, %v2139
      %v2550 = vmul.f32 %v1910, %v2154
      %v2551 = vmul.f32 %v1911, %v2169
      %v2552 = vmul.f32 %v1912, %v2184
      %v2553 = vmul.f32 %v1913, %v2199
      %v2554 = vmul.f32 %v1914, %v2214
      %v2555 = vmul.f32 %v1915, %v2229
      %v2556 = vmul.f32 %v1916, %v2244
      %v2557 = vmul.f32 %v1917, %v2259
      %v2558 = vmul.f32 %v1918, %v2274
      %v2559 = vmul.f32 %v1919, %v2289
      %v2560 = vmul.f32 %v1920, %v2304
      %v2561 = vmul.f32 %v1921, %v2319
      %v2562 = vmul.f32 %v1922, %v2334
      %v2563 = vmul.f32 %v1923, %v2349
      %v2564 = vmul.f32 %v1924, %v2364
      %v2565 = vmul.f32 %v1925, %v2379
      %v2566 = vmul.f32 %v1926, %v2394
      %v2567 = vmul.f32 %v1927, %v2409
      %v2568 = vmul.f32 %v1928, %v2424
      %v2569 = vmul.f32 %v1929, %v2439
      %v2570 = vmul.f32 %v1930, %v2454
      %v2571 = vmul.f32 %v1931, %v2469
      %v2572 = vmul.f32 %v1932, %v2484
      %v2573 = vmul.f32 %v1933, %v2499
      %v2574 = vmul.f32 %v1934, %v2514
      %v2575 = vmul.f32 %v1935, %v2529
      %v2576 = vmul.f32 %v1936, %v2544
      %vm2577 = vcmask 64512
      %2578 = vst.msk [vmem:[%s197] sm:$0xff] %vm2577, %v2545
      %2579 = vst.msk [vmem:[%s197 + $0x8] sm:$0xff] %vm2577, %v2546
      %2580 = vst.msk [vmem:[%s197 + $0x10] sm:$0xff] %vm2577, %v2547
      %2581 = vst.msk [vmem:[%s197 + $0x18] sm:$0xff] %vm2577, %v2548
      %2582 = vst.msk [vmem:[%s197 + $0x20] sm:$0xff] %vm2577, %v2549
      %2583 = vst.msk [vmem:[%s197 + $0x28] sm:$0xff] %vm2577, %v2550
      %2584 = vst.msk [vmem:[%s197 + $0x30] sm:$0xff] %vm2577, %v2551
      %2585 = vst.msk [vmem:[%s197 + $0x38] sm:$0xff] %vm2577, %v2552
      %2586 = vst.msk [vmem:[%s197 + $0x40] sm:$0xff] %vm2577, %v2553
      %2587 = vst.msk [vmem:[%s197 + $0x48] sm:$0xff] %vm2577, %v2554
      %2588 = vst.msk [vmem:[%s197 + $0x50] sm:$0xff] %vm2577, %v2555
      %2589 = vst.msk [vmem:[%s197 + $0x58] sm:$0xff] %vm2577, %v2556
      %2590 = vst.msk [vmem:[%s197 + $0x60] sm:$0xff] %vm2577, %v2557
      %2591 = vst.msk [vmem:[%s197 + $0x68] sm:$0xff] %vm2577, %v2558
      %2592 = vst.msk [vmem:[%s197 + $0x70] sm:$0xff] %vm2577, %v2559
      %2593 = vst.msk [vmem:[%s197 + $0x78] sm:$0xff] %vm2577, %v2560
      %2594 = vst.msk [vmem:[%s197 + $0x80] sm:$0xff] %vm2577, %v2561
      %2595 = vst.msk [vmem:[%s197 + $0x88] sm:$0xff] %vm2577, %v2562
      %2596 = vst.msk [vmem:[%s197 + $0x90] sm:$0xff] %vm2577, %v2563
      %2597 = vst.msk [vmem:[%s197 + $0x98] sm:$0xff] %vm2577, %v2564
      %2598 = vst.msk [vmem:[%s197 + $0xa0] sm:$0xff] %vm2577, %v2565
      %2599 = vst.msk [vmem:[%s197 + $0xa8] sm:$0xff] %vm2577, %v2566
      %2600 = vst.msk [vmem:[%s197 + $0xb0] sm:$0xff] %vm2577, %v2567
      %2601 = vst.msk [vmem:[%s197 + $0xb8] sm:$0xff] %vm2577, %v2568
      %2602 = vst.msk [vmem:[%s197 + $0xc0] sm:$0xff] %vm2577, %v2569
      %2603 = vst.msk [vmem:[%s197 + $0xc8] sm:$0xff] %vm2577, %v2570
      %2604 = vst.msk [vmem:[%s197 + $0xd0] sm:$0xff] %vm2577, %v2571
      %2605 = vst.msk [vmem:[%s197 + $0xd8] sm:$0xff] %vm2577, %v2572
      %2606 = vst.msk [vmem:[%s197 + $0xe0] sm:$0xff] %vm2577, %v2573
      %2607 = vst.msk [vmem:[%s197 + $0xe8] sm:$0xff] %vm2577, %v2574
      %2608 = vst.msk [vmem:[%s197 + $0xf0] sm:$0xff] %vm2577, %v2575
      %2609 = vst.msk [vmem:[%s197 + $0xf8] sm:$0xff] %vm2577, %v2576
      %p2610 = scmp.lt.s32.totalorder %s15, 1
      %s2611 = scalar_select %p2610, %s15, 1
      %s2612 = smul.addr %s2611, 32
      %s2613 = smul.addr %s2612, 8
      %s2614 = scalar_lea.vmem %s4, %s2613
      // Predicated region
      $region37: #{mobilevit_block_forward.15} parent=35 // pred_check
        %p2615 = pneg %p122
      $region38: #{mobilevit_block_forward.15} parent=35 // pred_check_branch
        %2617 = sbr.rel (%p2615) target = $region40
      $region39: #{mobilevit_block_forward.15} parent=35 // pred_region
        _
      $region40: #{mobilevit_block_forward.15} parent=35 // pred_fallthru
        _
    $region36: #{mobilevit_block_forward.15} parent=5 // pred_fallthru
      _
    %p2618 = scmp.le.s32.totalorder 2, %s10
    // Predicated region
    $region41: #{mobilevit_block_forward.15} parent=5 // pred_check
      %p2619 = pneg %p2618
    $region42: #{mobilevit_block_forward.15} parent=5 // pred_check_branch
      %2621 = sbr.rel (%p2619) target = $region44
    $region43: #{mobilevit_block_forward.15} parent=5 // pred_region
      %s2622 = ssub.s32 %s10, 2
      // Predicated region
      $region45: #{mobilevit_block_forward.15} parent=43 // pred_check
        %p2623 = pneg %p128
      $region46: #{mobilevit_block_forward.15} parent=43 // pred_check_branch
        %2625 = sbr.rel (%p2623) target = $region48
      $region47: #{mobilevit_block_forward.15} parent=43 // pred_region
        %p2626 = scmp.lt.s32.totalorder %s16, 1
        %s2627 = scalar_select %p2626, %s16, 1
        %s2628 = smul.addr %s2627, 32
        %s2629 = smul.addr %s2628, 8
        %s2630 = scalar_lea.vmem %s4, %s2629
      $region48: #{mobilevit_block_forward.15} parent=43 // pred_fallthru
        _
    $region44: #{mobilevit_block_forward.15} parent=5 // pred_fallthru
      _
  $region6: #{mobilevit_block_forward.15} parent=0 // loop_footer
    %s14 = sadd.s32 1, %s10
  $region7: #{mobilevit_block_forward.15} parent=0 // loop_footer_branch
    %9 = sbr.rel target = $region3
  $region8: #{mobilevit_block_forward.15} parent=0 // loop_exit
    _

</llo_original>
